<compile_context>
chip_gen: v7x
topology: tpu7x:2x2x1
jax: 0.10.0
libtpu: 0.0.40
codegen_flags: <defaults>
</compile_context>

<pallas_src>
import jax
import jax.numpy as jnp
from jax.experimental import pallas as pl
from jax.experimental.pallas import tpu as pltpu


def _avg_mask_kernel(mask_ref, x_ref, out_ref):
    m = mask_ref[...]                                    # (tile_i, D) f32
    denom = jnp.sum(m, axis=-1, keepdims=True)           # (tile_i, 1)
    inv = 1.0 / denom                                    # exact f32 reciprocal
    # Upcast the streamed block to f32 so the D-reduction accumulates in f32
    # even when x arrives as bf16.  Mask varies per i -> batched mat-vec:
    # VPU multiply + XLU lane-reduce, both free filler under the HBM DMA.
    # TODO(synk): if the bundle dump ever shows the (tile_i, tile_j, D) product
    # materializing in VMEM, restructure as a fori_loop over D chunks into a
    # (tile_i, tile_j) f32 accumulator.
    x = x_ref[...].astype(jnp.float32)                   # (tile_i, tile_j, D)
    s = jnp.sum(x * m[:, None, :], axis=2)               # (tile_i, tile_j)
    out_ref[...] = (s * inv).astype(out_ref.dtype)


def _round_up(v, m):
    return ((v + m - 1) // m) * m


def _gen_budgets():
    """(per-buffer x block byte budget, vmem_limit_bytes) per TPU generation."""
    kind = ""
    try:
        kind = jax.devices()[0].device_kind.lower()
    except Exception:
        pass
    if "v7" in kind:
        # 64 MiB physical VMEM and ~3.2 TB/s HBM: modest blocks, modest limit.
        return 8 << 20, 28 << 20
    if "v6" in kind:
        # 128 MiB VMEM, ~1.4 TB/s HBM.
        return 12 << 20, 64 << 20
    if "v5" in kind:
        # ~0.8 TB/s HBM: 8 MiB blocks already amortize the per-step overhead,
        # but the 16 MiB scoped default must be raised explicitly.
        return 8 << 20, 40 << 20
    # Unknown generation: conservative choice that is safe even on 64 MiB VMEM.
    return 8 << 20, 40 << 20


def average_with_mask(x, mask):
    """x: (I, J, D) any float dtype, mask: (I, D) -> (I, J) float32."""
    I, J, D = x.shape
    assert mask.shape == (I, D), "mask must be (I, D), matching x dims 0 and 2"
    # Mask is tiny (I*D vs I*J*D); cast once to f32 so sublane constraints stay
    # simple.  x is deliberately NOT cast: it streams in its native dtype.
    mask = mask.astype(jnp.float32)

    elem = jnp.dtype(x.dtype).itemsize
    sub_i = 8       # sublane granularity for the (f32) mask / output blocks
    lane_j = 128    # lane granularity for the output block
    x_blk_budget, vmem_limit = _gen_budgets()

    # --- tile selection: prefer full (padded) J, then grow tile_i to budget ---
    j_full = _round_up(J, lane_j)
    bytes_per_i_row = j_full * D * elem
    if sub_i * bytes_per_i_row <= x_blk_budget:
        tile_j = j_full                     # one contiguous J*D run per i per DMA
    else:
        tile_j = max(lane_j,
                     (x_blk_budget // (sub_i * D * elem)) // lane_j * lane_j)
        tile_j = min(tile_j, j_full)
    j_pad = _round_up(J, tile_j)

    tile_i = max(sub_i, (x_blk_budget // (tile_j * D * elem)) // sub_i * sub_i)
    tile_i = min(tile_i, _round_up(I, sub_i))
    i_pad = _round_up(I, tile_i)

    # Keep >=4 grid steps (>=2 per TensorCore on v7x); shrink tile_i, not tile_j.
    while (i_pad // tile_i) * (j_pad // tile_j) < 4 and tile_i > sub_i:
        tile_i = _round_up(max(sub_i, tile_i // 2), sub_i)
        i_pad = _round_up(I, tile_i)

    # --- pad to aligned extents (padded mask rows get 1s -> no divide-by-zero) ---
    if i_pad != I or j_pad != J:
        x = jnp.pad(x, ((0, i_pad - I), (0, j_pad - J), (0, 0)))
    if i_pad != I:
        mask = jnp.pad(mask, ((0, i_pad - I), (0, 0)), constant_values=1.0)

    grid = (i_pad // tile_i, j_pad // tile_j)   # j innermost: mask block stays resident

    cost = pl.CostEstimate(
        flops=2 * I * J * D,
        bytes_accessed=I * J * D * elem + I * D * 4 + I * J * 4,
        transcendentals=0,
    )

    # TODO(synk): for very large D, add a third ("arbitrary") grid axis tiling D
    # and accumulate partial sums in a VMEM scratch.
    out = pl.pallas_call(
        _avg_mask_kernel,
        out_shape=jax.ShapeDtypeStruct((i_pad, j_pad), jnp.float32),
        grid_spec=pltpu.PrefetchScalarGridSpec(
            num_scalar_prefetch=0,
            grid=grid,
            in_specs=[
                pl.BlockSpec((tile_i, D), lambda i, j: (i, 0)),             # mask rows
                pl.BlockSpec((tile_i, tile_j, D), lambda i, j: (i, j, 0)),  # x block
            ],
            out_specs=pl.BlockSpec((tile_i, tile_j), lambda i, j: (i, j)),
        ),
        compiler_params=pltpu.CompilerParams(
            dimension_semantics=("parallel", "parallel"),
            vmem_limit_bytes=vmem_limit,
        ),
        cost_estimate=cost,
    )(mask, x)

    if i_pad != I or j_pad != J:
        out = out[:I, :J]
    return out


if __name__ == "__main__":
    key = jax.random.PRNGKey(0)
    k_mask, k_x = jax.random.split(key)

    # Shapes implied by the module's use in neural_act.py:
    #   I = number of nodes, J = batch size, D = input_size (28*28).
    I, J, D = 32, 256, 28 * 28

    x = jax.random.normal(k_x, (I, J, D), dtype=jnp.float32)
    mask = (jax.random.uniform(k_mask, (I, D)) < 0.5).astype(jnp.float32)
    mask = mask.at[:, 0].set(1.0)  # the op assumes non-zero denominators

    # f32 path.
    out = jax.block_until_ready(average_with_mask(x, mask))
    denom = jnp.sum(mask, axis=-1, keepdims=True)
    ref = jnp.sum(x * mask[:, None, :], axis=-1) / denom
    assert out.shape == (I, J) and out.dtype == jnp.float32
    assert jnp.allclose(out, ref, atol=1e-5, rtol=1e-4), float(
        jnp.max(jnp.abs(out - ref)))

    # Native bf16 streaming path (half the HBM bytes; accumulation stays f32).
    x_bf16 = x.astype(jnp.bfloat16)
    out_bf16 = jax.block_until_ready(average_with_mask(x_bf16, mask))
    ref_bf16 = jnp.sum(x_bf16.astype(jnp.float32) * mask[:, None, :], axis=-1) / denom
    assert jnp.allclose(out_bf16, ref_bf16, atol=1e-3, rtol=1e-3), float(
        jnp.max(jnp.abs(out_bf16 - ref_bf16)))

    # Non-divisible I / J / D exercise the padding path.
    I2, J2, D2 = 20, 100, 33
    x2 = jax.random.normal(k_x, (I2, J2, D2), dtype=jnp.float32)
    mask2 = (jax.random.uniform(k_mask, (I2, D2)) < 0.5).astype(jnp.float32)
    mask2 = mask2.at[:, 0].set(1.0)
    out2 = jax.block_until_ready(average_with_mask(x2, mask2))
    ref2 = jnp.sum(x2 * mask2[:, None, :], axis=-1) / jnp.sum(
        mask2, axis=-1, keepdims=True)
    assert out2.shape == (I2, J2)
    assert jnp.allclose(out2, ref2, atol=1e-5, rtol=1e-4), float(
        jnp.max(jnp.abs(out2 - ref2)))

    print("KERNEL_OK")
</pallas_src>

<mosaic_0001>
module attributes {stable_mosaic.version = 11 : i64} {
  func.func @_avg_mask_kernel(%arg0: i32, %arg1: i32, %arg2: memref<8x784xf32, #tpu.memory_space<vmem>>, %arg3: memref<8x256x784xf32, #tpu.memory_space<vmem>>, %arg4: memref<8x256xf32, #tpu.memory_space<vmem>>) attributes {dimension_semantics = [#tpu.dimension_semantics<parallel>, #tpu.dimension_semantics<parallel>], iteration_bounds = array<i64: 4, 1>, scalar_prefetch = 0 : i64, scratch_operands = 0 : i64, tpu.core_type = #tpu.core_type<tc>, window_params = [{transform_indices = @transform_0, window_bounds = array<i64: 8, 784>}, {transform_indices = @transform_1, window_bounds = array<i64: 8, 256, 784>}, {transform_indices = @transform_2, window_bounds = array<i64: 8, 256>}]} {
    %c0 = arith.constant 0 : index
    %c0_0 = arith.constant 0 : index
    %0 = vector.load %arg2[%c0, %c0_0] : memref<8x784xf32, #tpu.memory_space<vmem>>, vector<8x784xf32>
    %cst = arith.constant dense<0.000000e+00> : vector<8xf32>
    %1 = vector.multi_reduction <add>, %0, %cst [1] : vector<8x784xf32> to vector<8xf32>
    %2 = vector.shape_cast %1 : vector<8xf32> to vector<8x1xf32>
    %cst_1 = arith.constant 1.000000e+00 : f32
    %3 = vector.broadcast %cst_1 : f32 to vector<8x1xf32>
    %4 = arith.divf %3, %2 : vector<8x1xf32>
    %c0_2 = arith.constant 0 : index
    %c0_3 = arith.constant 0 : index
    %c0_4 = arith.constant 0 : index
    %5 = vector.load %arg3[%c0_2, %c0_3, %c0_4] : memref<8x256x784xf32, #tpu.memory_space<vmem>>, vector<8x256x784xf32>
    %6 = vector.shape_cast %0 : vector<8x784xf32> to vector<8x1x784xf32>
    %7 = vector.broadcast %6 : vector<8x1x784xf32> to vector<8x256x784xf32>
    %8 = arith.mulf %5, %7 : vector<8x256x784xf32>
    %cst_5 = arith.constant dense<0.000000e+00> : vector<8x256xf32>
    %9 = vector.multi_reduction <add>, %8, %cst_5 [2] : vector<8x256x784xf32> to vector<8x256xf32>
    %10 = vector.broadcast %4 : vector<8x1xf32> to vector<8x256xf32>
    %11 = arith.mulf %9, %10 : vector<8x256xf32>
    %c0_6 = arith.constant 0 : index
    %c0_7 = arith.constant 0 : index
    %12 = vector.load %arg4[%c0_6, %c0_7] : memref<8x256xf32, #tpu.memory_space<vmem>>, vector<8x256xf32>
    tpu.vector_store %arg4[%c0_6, %c0_7], %11 {strides = array<i32>} : memref<8x256xf32, #tpu.memory_space<vmem>>, vector<8x256xf32>,
    return
  }
  func.func @transform_0(%arg0: i32, %arg1: i32) -> (i32, i32) {
    %c0_i32 = arith.constant 0 : i32
    %c0_i32_0 = arith.constant 0 : i32
    return %arg0, %c0_i32 : i32, i32
  }
  func.func @transform_1(%arg0: i32, %arg1: i32) -> (i32, i32, i32) {
    %c0_i32 = arith.constant 0 : i32
    %c0_i32_0 = arith.constant 0 : i32
    return %arg0, %arg1, %c0_i32 : i32, i32, i32
  }
  func.func @transform_2(%arg0: i32, %arg1: i32) -> (i32, i32) {
    %c0_i32 = arith.constant 0 : i32
    return %arg0, %arg1 : i32, i32
  }
}

</mosaic_0001>

<llo_original>
// kernel: tpu_custom_call.1
$region0: #{tpu_custom_call.1}
  #allocation0 [shape = 'u32[]', space=smem, size = 0x4, offset = 0x4, fixed_abs, tag = 'smem constant byte address 0x4 - core index']
  #allocation1 [shape = 'u32[144,128]{1,0:T(1,128)}', space=vmem, size = 0x12000, scoped, tag = 'internal scratch']
  %s0 = inlined_call_operand.vmem [shape: f32[32,784], index: 0, kind: input, shape index: {}]
  %s1 = inlined_call_operand.hbm [shape: f32[32,256,784], index: 1, kind: input, shape index: {}]
  %s2 = inlined_call_operand.hbm [shape: f32[32,256], index: 2, kind: output, shape index: {}]
  %s3 = sld [smem:[#allocation0]]
  $region45: #{tpu_custom_call.1} parent=0
    _
  %s5 = ssub.s32 1, %s3
  %s6 = scalar_select 0, %s5, %s3
  $region1: #{tpu_custom_call.1} parent=0
    #allocation2 [shape = 'u8[14680064]{0}', space=vmem, size = 0xe00000, scoped, tag = 'input window, operand 1']
    #allocation3 [shape = 's32[2]{0}', space=sflag, size = 0x8, scoped, tag = 'scoped memory for tpu_custom_call.1']
    #allocation4 [shape = 's32[2]{0}', space=sflag, size = 0x8, scoped, tag = 'scoped memory for tpu_custom_call.1']
    #allocation5 [shape = 'u8[16384]{0}', space=vmem, size = 0x4000, scoped, tag = 'output window, operand 0']
    %7 = vsyncpa [#allocation3], 0
    %s8 = scalar_lea.sflag [#allocation3], 1
    %9 = vsyncpa %s8, 0
    %10 = vsyncpa [#allocation4], 0
    %s11 = scalar_lea.sflag [#allocation4], 1
    %12 = vsyncpa %s11, 0
    loop: start=0, step=1, limit=6
    $region2: #{tpu_custom_call.1} parent=1 // loop_pre_header
      _
    $region3: #{tpu_custom_call.1} parent=1 // loop_header
      %s14 = sphi 0, %s18
      %p15 = scmp.ge.s32.totalorder %s14, 6
      %s21 = sphi 0, %s33
      %s22 = sphi 0, %s29
      %s23 = sphi 0, %s21
      %s24 = sphi 0, %s22
      %s25 = sphi 0, %s23
      %s26 = sphi 0, %s24
      %s36 = sphi 0, %s38
      %s39 = sphi 0, %s36
      %s40 = sphi 0, %s39
      %s56 = sphi 0, %s40
      %s64 = sphi 0, %s66
      %s67 = sphi 0, %s64
      %s68 = sphi 0, %s67
      %s84 = sphi 0, %s68
      %s92 = sphi 0, %s94
      %s95 = sphi 0, %s92
      %s96 = sphi 0, %s95
      %s112 = sphi 0, %s96
    $region4: #{tpu_custom_call.1} parent=1 // loop_header_branch
      %17 = sbr.rel (%p15) target = $region8
    $region5: #{tpu_custom_call.1} parent=1 // loop_body
      %s19 = ssub.s32 %s14, 1
      %s20 = ssub.s32 %s14, 2
      %s27 = sadd.s32 1, %s22
      %p28 = scmp.ge.s32.totalorder %s27, 1
      %s29 = scalar_select %p28, 0, %s27
      %s30 = sadd.s32 1, %s21
      %s31 = scalar_select %p28, %s30, %s21
      %p32 = scmp.ge.s32.totalorder %s31, 4
      %s33 = scalar_select %p32, 0, %s31
      %s34 = ssub.s32 %s21, %s33
      %p35 = scmp.eq.s32.totalorder %s34, 0
      %s37 = sadd.s32 %s36, 1
      %s38 = scalar_select %p35, %s36, %s37
      %p41 = pneg %p35
      %p42 = scmp.eq.s32.totalorder %s14, 3
      %p43 = por %p41, %p42
      %p44 = scmp.ne.s32.totalorder %s36, %s39
      %p45 = scmp.eq.s32.totalorder %s14, 0
      %p46 = por %p44, %p45
      %p47 = scmp.ne.s32.totalorder %s36, %s39
      %p48 = scmp.eq.s32.totalorder %s19, 3
      %p49 = por %p47, %p48
      %p50 = scmp.ne.s32.totalorder %s39, %s40
      %p51 = scmp.eq.s32.totalorder %s19, 0
      %p52 = por %p50, %p51
      %p53 = scmp.ne.s32.totalorder %s39, %s40
      %p54 = scmp.eq.s32.totalorder %s20, 3
      %p55 = por %p53, %p54
      %p57 = scmp.ne.s32.totalorder %s40, %s56
      %p58 = scmp.eq.s32.totalorder %s20, 0
      %p59 = por %p57, %p58
      %s60 = ssub.s32 %s21, %s33
      %s61 = ssub.s32 %s22, %s29
      %s62 = sor.u32 %s60, %s61
      %p63 = scmp.eq.s32.totalorder %s62, 0
      %s65 = sadd.s32 %s64, 1
      %s66 = scalar_select %p63, %s64, %s65
      %p69 = pneg %p63
      %p70 = scmp.eq.s32.totalorder %s14, 3
      %p71 = por %p69, %p70
      %p72 = scmp.ne.s32.totalorder %s64, %s67
      %p73 = scmp.eq.s32.totalorder %s14, 0
      %p74 = por %p72, %p73
      %p75 = scmp.ne.s32.totalorder %s64, %s67
      %p76 = scmp.eq.s32.totalorder %s19, 3
      %p77 = por %p75, %p76
      %p78 = scmp.ne.s32.totalorder %s67, %s68
      %p79 = scmp.eq.s32.totalorder %s19, 0
      %p80 = por %p78, %p79
      %p81 = scmp.ne.s32.totalorder %s67, %s68
      %p82 = scmp.eq.s32.totalorder %s20, 3
      %p83 = por %p81, %p82
      %p85 = scmp.ne.s32.totalorder %s68, %s84
      %p86 = scmp.eq.s32.totalorder %s20, 0
      %p87 = por %p85, %p86
      %s88 = ssub.s32 %s21, %s33
      %s89 = ssub.s32 %s22, %s29
      %s90 = sor.u32 %s88, %s89
      %p91 = scmp.eq.s32.totalorder %s90, 0
      %s93 = sadd.s32 %s92, 1
      %s94 = scalar_select %p91, %s92, %s93
      %p97 = pneg %p91
      %p98 = scmp.eq.s32.totalorder %s14, 3
      %p99 = por %p97, %p98
      %p100 = scmp.ne.s32.totalorder %s92, %s95
      %p101 = scmp.eq.s32.totalorder %s14, 0
      %p102 = por %p100, %p101
      %p103 = scmp.ne.s32.totalorder %s92, %s95
      %p104 = scmp.eq.s32.totalorder %s19, 3
      %p105 = por %p103, %p104
      %p106 = scmp.ne.s32.totalorder %s95, %s96
      %p107 = scmp.eq.s32.totalorder %s19, 0
      %p108 = por %p106, %p107
      %p109 = scmp.ne.s32.totalorder %s95, %s96
      %p110 = scmp.eq.s32.totalorder %s20, 3
      %p111 = por %p109, %p110
      %p113 = scmp.ne.s32.totalorder %s96, %s112
      %p114 = scmp.eq.s32.totalorder %s20, 0
      %p115 = por %p113, %p114
      %p116 = scmp.le.s32.totalorder 1, %s14
      %p117 = scmp.lt.s32.totalorder %s14, 5
      %p118 = pnand %p116, %p117
      %p119 = pneg %p118
      // Predicated region
      $region9: #{tpu_custom_call.1} parent=5 // pred_check
        _
      $region10: #{tpu_custom_call.1} parent=5 // pred_check_branch
        %121 = sbr.rel (%p118) target = $region12
      $region11: #{tpu_custom_call.1} parent=5 // pred_region
        %s122 = ssub.s32 %s14, 1
      $region12: #{tpu_custom_call.1} parent=5 // pred_fallthru
        _
      %p123 = scmp.lt.s32.totalorder %s14, 4
      // Predicated region
      $region13: #{tpu_custom_call.1} parent=5 // pred_check
        %p124 = pneg %p123
      $region14: #{tpu_custom_call.1} parent=5 // pred_check_branch
        %126 = sbr.rel (%p124) target = $region16
      $region15: #{tpu_custom_call.1} parent=5 // pred_region
        // Predicated region
        $region17: #{tpu_custom_call.1} parent=15 // pred_check
          %p127 = pneg %p46
        $region18: #{tpu_custom_call.1} parent=15 // pred_check_branch
          %129 = sbr.rel (%p127) target = $region20
        $region19: #{tpu_custom_call.1} parent=15 // pred_region
          %p130 = scmp.lt.s32.totalorder %s21, 3
          %s131 = scalar_select %p130, %s21, 3
          %s132 = smul.addr %s131, 7
          %s133 = smul.addr %s132, 8
          %s134 = scalar_lea.vmem %s0, %s133
        $region20: #{tpu_custom_call.1} parent=15 // pred_fallthru
          _
        // Predicated region
        $region21: #{tpu_custom_call.1} parent=15 // pred_check
          %p135 = pneg %p74
        $region22: #{tpu_custom_call.1} parent=15 // pred_check_branch
          %137 = sbr.rel (%p135) target = $region24
        $region23: #{tpu_custom_call.1} parent=15 // pred_region
          %s138 = sand.u32 %s64, 1
          %s139 = scalar_lea.sflag [#allocation3], %s138
          %s140 = sand.u32 %s64, 1
          %s141 = smul.addr %s140, 14336
          %s142 = scalar_lea.vmem [#allocation2], %s141
          %s143 = smul.u32 8, %s21
          %s144 = smul.u32 32, %s22
          %s146 = ssub.s32 229376, 229376
          %147 = vsyncadd %s139, %s146
          %s148 = smul.addr %s144, 7
          %s149 = smul.addr %s143, 224
          %s150 = sadd.s32 %s148, %s149
          %s151 = smul.addr %s150, 128
          %s152 = scalar_lea.hbm %s1, %s151
          %s153 = sshll.u32 %s142, 4
          %s154 = int_to_ptr.vmem [resolvable:$true] %s153
          %159 = dma.hbm_to_vmem [thread:$0]  %s152, 229376, %s154, %s139, 896, 896, 56
        $region24: #{tpu_custom_call.1} parent=15 // pred_fallthru
          _
      $region16: #{tpu_custom_call.1} parent=5 // pred_fallthru
        _
      %p160 = scmp.le.s32.totalorder 1, %s14
      %p161 = scmp.lt.s32.totalorder %s14, 5
      %p162 = pnand %p160, %p161
      %p163 = pneg %p162
      // Predicated region
      $region25: #{tpu_custom_call.1} parent=5 // pred_check
        _
      $region26: #{tpu_custom_call.1} parent=5 // pred_check_branch
        %165 = sbr.rel (%p162) target = $region28
      $region27: #{tpu_custom_call.1} parent=5 // pred_region
        %s166 = ssub.s32 %s14, 1
        %s167 = sand.u32 %s67, 1
        %s168 = scalar_lea.sflag [#allocation3], %s167
        %s169 = sand.u32 %s67, 1
        %s170 = smul.addr %s169, 14336
        %s171 = scalar_lea.vmem [#allocation2], %s170
        // Predicated region
        $region29: #{tpu_custom_call.1} parent=27 // pred_check
          %p172 = pneg %p80
        $region30: #{tpu_custom_call.1} parent=27 // pred_check_branch
          %174 = sbr.rel (%p172) target = $region32
        $region31: #{tpu_custom_call.1} parent=27 // pred_region
          %175 = dma.done %s168, 229376
        $region32: #{tpu_custom_call.1} parent=27 // pred_fallthru
          _
        %p176 = scmp.lt.s32.totalorder %s23, 3
        %s177 = scalar_select %p176, %s23, 3
        %s178 = smul.addr %s177, 7
        %s179 = smul.addr %s178, 8
        %s180 = scalar_lea.vmem %s0, %s179
        %p181 = pneg %p52
        %p182 = pneg %p49
        %s183 = sand.u32 %s67, 1
        %s184 = scalar_lea.sflag [#allocation3], %s183
        %s185 = sand.u32 %s67, 1
        %s186 = smul.addr %s185, 14336
        %s187 = scalar_lea.vmem [#allocation2], %s186
        %p188 = pneg %p80
        %p189 = pneg %p77
        %p190 = pneg %p108
        %p191 = pneg %p105
        %s192 = sand.u32 %s95, 1
        %s193 = scalar_lea.sflag [#allocation4], %s192
        %s194 = sand.u32 %s95, 1
        %s195 = smul.addr %s194, 16
        %s196 = scalar_lea.vmem [#allocation5], %s195
        %p197 = scmp.lt.s32.totalorder %s23, 3
        %s198 = scalar_select %p197, %s23, 3
        %s199 = smul.addr %s198, 7
        %s200 = smul.addr %s199, 8
        %s201 = scalar_lea.vmem %s0, %s200
        %s202 = smul.u32 8, %s23
        %s203 = smul.u32 32, %s24
        %s204 = smul.u32 2, %s24
        %v205 = vld [vmem:[%s201] sm:$0xff]
        %v206 = vld [vmem:[%s201 + $0x8] sm:$0xff]
        %v207 = vld [vmem:[%s201 + $0x10] sm:$0xff]
        %v208 = vld [vmem:[%s201 + $0x18] sm:$0xff]
        %v209 = vld [vmem:[%s201 + $0x20] sm:$0xff]
        %v210 = vld [vmem:[%s201 + $0x28] sm:$0xff]
        %v211 = vld [vmem:[%s201 + $0x30] sm:$0xff]
        %v212 = vadd.f32 %v205, %v206
        %v213 = vadd.f32 %v212, %v207
        %v214 = vadd.f32 %v213, %v208
        %v215 = vadd.f32 %v214, %v209
        %v216 = vadd.f32 %v215, %v210
        %vm217 = vcmask 130048
        %v218 = vsel %vm217, %v211, 0.0
        %v219 = vadd.f32 %v216, %v218
        %220 = vadd.xlane.f32.xlu0 %v219
        %v221 = vpop.xlane.xlu0 %220
        %v222 = vrcp.pop %v221
        %v223 = vmul.f32 1.0, %v222
        %v224 = vld [vmem:[%s171] sm:$0xff]
        %v225 = vld [vmem:[%s171 + $0x8] sm:$0xff]
        %v226 = vld [vmem:[%s171 + $0x10] sm:$0xff]
        %v227 = vld [vmem:[%s171 + $0x18] sm:$0xff]
        %v228 = vld [vmem:[%s171 + $0x20] sm:$0xff]
        %v229 = vld [vmem:[%s171 + $0x28] sm:$0xff]
        %v230 = vld [vmem:[%s171 + $0x30] sm:$0xff]
        %v231 = vld [vmem:[%s171 + $0x38] sm:$0xff]
        %v232 = vld [vmem:[%s171 + $0x40] sm:$0xff]
        %v233 = vld [vmem:[%s171 + $0x48] sm:$0xff]
        %v234 = vld [vmem:[%s171 + $0x50] sm:$0xff]
        %v235 = vld [vmem:[%s171 + $0x58] sm:$0xff]
        %v236 = vld [vmem:[%s171 + $0x60] sm:$0xff]
        %v237 = vld [vmem:[%s171 + $0x68] sm:$0xff]
        %v238 = vld [vmem:[%s171 + $0x70] sm:$0xff]
        %v239 = vld [vmem:[%s171 + $0x78] sm:$0xff]
        %v240 = vld [vmem:[%s171 + $0x80] sm:$0xff]
        %v241 = vld [vmem:[%s171 + $0x88] sm:$0xff]
        %v242 = vld [vmem:[%s171 + $0x90] sm:$0xff]
        %v243 = vld [vmem:[%s171 + $0x98] sm:$0xff]
        %v244 = vld [vmem:[%s171 + $0xa0] sm:$0xff]
        %v245 = vld [vmem:[%s171 + $0xa8] sm:$0xff]
        %v246 = vld [vmem:[%s171 + $0xb0] sm:$0xff]
        %v247 = vld [vmem:[%s171 + $0xb8] sm:$0xff]
        %v248 = vld [vmem:[%s171 + $0xc0] sm:$0xff]
        %v249 = vld [vmem:[%s171 + $0xc8] sm:$0xff]
        %v250 = vld [vmem:[%s171 + $0xd0] sm:$0xff]
        %v251 = vld [vmem:[%s171 + $0xd8] sm:$0xff]
        %v252 = vld [vmem:[%s171 + $0xe0] sm:$0xff]
        %v253 = vld [vmem:[%s171 + $0xe8] sm:$0xff]
        %v254 = vld [vmem:[%s171 + $0xf0] sm:$0xff]
        %v255 = vld [vmem:[%s171 + $0xf8] sm:$0xff]
        %v256 = vld [vmem:[%s171 + $0x100] sm:$0xff]
        %v257 = vld [vmem:[%s171 + $0x108] sm:$0xff]
        %v258 = vld [vmem:[%s171 + $0x110] sm:$0xff]
        %v259 = vld [vmem:[%s171 + $0x118] sm:$0xff]
        %v260 = vld [vmem:[%s171 + $0x120] sm:$0xff]
        %v261 = vld [vmem:[%s171 + $0x128] sm:$0xff]
        %v262 = vld [vmem:[%s171 + $0x130] sm:$0xff]
        %v263 = vld [vmem:[%s171 + $0x138] sm:$0xff]
        %v264 = vld [vmem:[%s171 + $0x140] sm:$0xff]
        %v265 = vld [vmem:[%s171 + $0x148] sm:$0xff]
        %v266 = vld [vmem:[%s171 + $0x150] sm:$0xff]
        %v267 = vld [vmem:[%s171 + $0x158] sm:$0xff]
        %v268 = vld [vmem:[%s171 + $0x160] sm:$0xff]
        %v269 = vld [vmem:[%s171 + $0x168] sm:$0xff]
        %v270 = vld [vmem:[%s171 + $0x170] sm:$0xff]
        %v271 = vld [vmem:[%s171 + $0x178] sm:$0xff]
        %v272 = vld [vmem:[%s171 + $0x180] sm:$0xff]
        %v273 = vld [vmem:[%s171 + $0x188] sm:$0xff]
        %v274 = vld [vmem:[%s171 + $0x190] sm:$0xff]
        %v275 = vld [vmem:[%s171 + $0x198] sm:$0xff]
        %v276 = vld [vmem:[%s171 + $0x1a0] sm:$0xff]
        %v277 = vld [vmem:[%s171 + $0x1a8] sm:$0xff]
        %v278 = vld [vmem:[%s171 + $0x1b0] sm:$0xff]
        %v279 = vld [vmem:[%s171 + $0x1b8] sm:$0xff]
        %v280 = vld [vmem:[%s171 + $0x1c0] sm:$0xff]
        %v281 = vld [vmem:[%s171 + $0x1c8] sm:$0xff]
        %v282 = vld [vmem:[%s171 + $0x1d0] sm:$0xff]
        %v283 = vld [vmem:[%s171 + $0x1d8] sm:$0xff]
        %v284 = vld [vmem:[%s171 + $0x1e0] sm:$0xff]
        %v285 = vld [vmem:[%s171 + $0x1e8] sm:$0xff]
        %v286 = vld [vmem:[%s171 + $0x1f0] sm:$0xff]
        %v287 = vld [vmem:[%s171 + $0x1f8] sm:$0xff]
        %v288 = vld [vmem:[%s171 + $0x200] sm:$0xff]
        %v289 = vld [vmem:[%s171 + $0x208] sm:$0xff]
        %v290 = vld [vmem:[%s171 + $0x210] sm:$0xff]
        %v291 = vld [vmem:[%s171 + $0x218] sm:$0xff]
        %v292 = vld [vmem:[%s171 + $0x220] sm:$0xff]
        %v293 = vld [vmem:[%s171 + $0x228] sm:$0xff]
        %v294 = vld [vmem:[%s171 + $0x230] sm:$0xff]
        %v295 = vld [vmem:[%s171 + $0x238] sm:$0xff]
        %v296 = vld [vmem:[%s171 + $0x240] sm:$0xff]
        %v297 = vld [vmem:[%s171 + $0x248] sm:$0xff]
        %v298 = vld [vmem:[%s171 + $0x250] sm:$0xff]
        %v299 = vld [vmem:[%s171 + $0x258] sm:$0xff]
        %v300 = vld [vmem:[%s171 + $0x260] sm:$0xff]
        %v301 = vld [vmem:[%s171 + $0x268] sm:$0xff]
        %v302 = vld [vmem:[%s171 + $0x270] sm:$0xff]
        %v303 = vld [vmem:[%s171 + $0x278] sm:$0xff]
        %v304 = vld [vmem:[%s171 + $0x280] sm:$0xff]
        %v305 = vld [vmem:[%s171 + $0x288] sm:$0xff]
        %v306 = vld [vmem:[%s171 + $0x290] sm:$0xff]
        %v307 = vld [vmem:[%s171 + $0x298] sm:$0xff]
        %v308 = vld [vmem:[%s171 + $0x2a0] sm:$0xff]
        %v309 = vld [vmem:[%s171 + $0x2a8] sm:$0xff]
        %v310 = vld [vmem:[%s171 + $0x2b0] sm:$0xff]
        %v311 = vld [vmem:[%s171 + $0x2b8] sm:$0xff]
        %v312 = vld [vmem:[%s171 + $0x2c0] sm:$0xff]
        %v313 = vld [vmem:[%s171 + $0x2c8] sm:$0xff]
        %v314 = vld [vmem:[%s171 + $0x2d0] sm:$0xff]
        %v315 = vld [vmem:[%s171 + $0x2d8] sm:$0xff]
        %v316 = vld [vmem:[%s171 + $0x2e0] sm:$0xff]
        %v317 = vld [vmem:[%s171 + $0x2e8] sm:$0xff]
        %v318 = vld [vmem:[%s171 + $0x2f0] sm:$0xff]
        %v319 = vld [vmem:[%s171 + $0x2f8] sm:$0xff]
        %v320 = vld [vmem:[%s171 + $0x300] sm:$0xff]
        %v321 = vld [vmem:[%s171 + $0x308] sm:$0xff]
        %v322 = vld [vmem:[%s171 + $0x310] sm:$0xff]
        %v323 = vld [vmem:[%s171 + $0x318] sm:$0xff]
        %v324 = vld [vmem:[%s171 + $0x320] sm:$0xff]
        %v325 = vld [vmem:[%s171 + $0x328] sm:$0xff]
        %v326 = vld [vmem:[%s171 + $0x330] sm:$0xff]
        %v327 = vld [vmem:[%s171 + $0x338] sm:$0xff]
        %v328 = vld [vmem:[%s171 + $0x340] sm:$0xff]
        %v329 = vld [vmem:[%s171 + $0x348] sm:$0xff]
        %v330 = vld [vmem:[%s171 + $0x350] sm:$0xff]
        %v331 = vld [vmem:[%s171 + $0x358] sm:$0xff]
        %v332 = vld [vmem:[%s171 + $0x360] sm:$0xff]
        %v333 = vld [vmem:[%s171 + $0x368] sm:$0xff]
        %v334 = vld [vmem:[%s171 + $0x370] sm:$0xff]
        %v335 = vld [vmem:[%s171 + $0x378] sm:$0xff]
        %v336 = vld [vmem:[%s171 + $0x380] sm:$0xff]
        %v337 = vld [vmem:[%s171 + $0x388] sm:$0xff]
        %v338 = vld [vmem:[%s171 + $0x390] sm:$0xff]
        %v339 = vld [vmem:[%s171 + $0x398] sm:$0xff]
        %v340 = vld [vmem:[%s171 + $0x3a0] sm:$0xff]
        %v341 = vld [vmem:[%s171 + $0x3a8] sm:$0xff]
        %v342 = vld [vmem:[%s171 + $0x3b0] sm:$0xff]
        %v343 = vld [vmem:[%s171 + $0x3b8] sm:$0xff]
        %v344 = vld [vmem:[%s171 + $0x3c0] sm:$0xff]
        %v345 = vld [vmem:[%s171 + $0x3c8] sm:$0xff]
        %v346 = vld [vmem:[%s171 + $0x3d0] sm:$0xff]
        %v347 = vld [vmem:[%s171 + $0x3d8] sm:$0xff]
        %v348 = vld [vmem:[%s171 + $0x3e0] sm:$0xff]
        %v349 = vld [vmem:[%s171 + $0x3e8] sm:$0xff]
        %v350 = vld [vmem:[%s171 + $0x3f0] sm:$0xff]
        %v351 = vld [vmem:[%s171 + $0x3f8] sm:$0xff]
        %v352 = vld [vmem:[%s171 + $0x400] sm:$0xff]
        %v353 = vld [vmem:[%s171 + $0x408] sm:$0xff]
        %v354 = vld [vmem:[%s171 + $0x410] sm:$0xff]
        %v355 = vld [vmem:[%s171 + $0x418] sm:$0xff]
        %v356 = vld [vmem:[%s171 + $0x420] sm:$0xff]
        %v357 = vld [vmem:[%s171 + $0x428] sm:$0xff]
        %v358 = vld [vmem:[%s171 + $0x430] sm:$0xff]
        %v359 = vld [vmem:[%s171 + $0x438] sm:$0xff]
        %v360 = vld [vmem:[%s171 + $0x440] sm:$0xff]
        %v361 = vld [vmem:[%s171 + $0x448] sm:$0xff]
        %v362 = vld [vmem:[%s171 + $0x450] sm:$0xff]
        %v363 = vld [vmem:[%s171 + $0x458] sm:$0xff]
        %v364 = vld [vmem:[%s171 + $0x460] sm:$0xff]
        %v365 = vld [vmem:[%s171 + $0x468] sm:$0xff]
        %v366 = vld [vmem:[%s171 + $0x470] sm:$0xff]
        %v367 = vld [vmem:[%s171 + $0x478] sm:$0xff]
        %v368 = vld [vmem:[%s171 + $0x480] sm:$0xff]
        %v369 = vld [vmem:[%s171 + $0x488] sm:$0xff]
        %v370 = vld [vmem:[%s171 + $0x490] sm:$0xff]
        %v371 = vld [vmem:[%s171 + $0x498] sm:$0xff]
        %v372 = vld [vmem:[%s171 + $0x4a0] sm:$0xff]
        %v373 = vld [vmem:[%s171 + $0x4a8] sm:$0xff]
        %v374 = vld [vmem:[%s171 + $0x4b0] sm:$0xff]
        %v375 = vld [vmem:[%s171 + $0x4b8] sm:$0xff]
        %v376 = vld [vmem:[%s171 + $0x4c0] sm:$0xff]
        %v377 = vld [vmem:[%s171 + $0x4c8] sm:$0xff]
        %v378 = vld [vmem:[%s171 + $0x4d0] sm:$0xff]
        %v379 = vld [vmem:[%s171 + $0x4d8] sm:$0xff]
        %v380 = vld [vmem:[%s171 + $0x4e0] sm:$0xff]
        %v381 = vld [vmem:[%s171 + $0x4e8] sm:$0xff]
        %v382 = vld [vmem:[%s171 + $0x4f0] sm:$0xff]
        %v383 = vld [vmem:[%s171 + $0x4f8] sm:$0xff]
        %v384 = vld [vmem:[%s171 + $0x500] sm:$0xff]
        %v385 = vld [vmem:[%s171 + $0x508] sm:$0xff]
        %v386 = vld [vmem:[%s171 + $0x510] sm:$0xff]
        %v387 = vld [vmem:[%s171 + $0x518] sm:$0xff]
        %v388 = vld [vmem:[%s171 + $0x520] sm:$0xff]
        %v389 = vld [vmem:[%s171 + $0x528] sm:$0xff]
        %v390 = vld [vmem:[%s171 + $0x530] sm:$0xff]
        %v391 = vld [vmem:[%s171 + $0x538] sm:$0xff]
        %v392 = vld [vmem:[%s171 + $0x540] sm:$0xff]
        %v393 = vld [vmem:[%s171 + $0x548] sm:$0xff]
        %v394 = vld [vmem:[%s171 + $0x550] sm:$0xff]
        %v395 = vld [vmem:[%s171 + $0x558] sm:$0xff]
        %v396 = vld [vmem:[%s171 + $0x560] sm:$0xff]
        %v397 = vld [vmem:[%s171 + $0x568] sm:$0xff]
        %v398 = vld [vmem:[%s171 + $0x570] sm:$0xff]
        %v399 = vld [vmem:[%s171 + $0x578] sm:$0xff]
        %v400 = vld [vmem:[%s171 + $0x580] sm:$0xff]
        %v401 = vld [vmem:[%s171 + $0x588] sm:$0xff]
        %v402 = vld [vmem:[%s171 + $0x590] sm:$0xff]
        %v403 = vld [vmem:[%s171 + $0x598] sm:$0xff]
        %v404 = vld [vmem:[%s171 + $0x5a0] sm:$0xff]
        %v405 = vld [vmem:[%s171 + $0x5a8] sm:$0xff]
        %v406 = vld [vmem:[%s171 + $0x5b0] sm:$0xff]
        %v407 = vld [vmem:[%s171 + $0x5b8] sm:$0xff]
        %v408 = vld [vmem:[%s171 + $0x5c0] sm:$0xff]
        %v409 = vld [vmem:[%s171 + $0x5c8] sm:$0xff]
        %v410 = vld [vmem:[%s171 + $0x5d0] sm:$0xff]
        %v411 = vld [vmem:[%s171 + $0x5d8] sm:$0xff]
        %v412 = vld [vmem:[%s171 + $0x5e0] sm:$0xff]
        %v413 = vld [vmem:[%s171 + $0x5e8] sm:$0xff]
        %v414 = vld [vmem:[%s171 + $0x5f0] sm:$0xff]
        %v415 = vld [vmem:[%s171 + $0x5f8] sm:$0xff]
        %v416 = vld [vmem:[%s171 + $0x600] sm:$0xff]
        %v417 = vld [vmem:[%s171 + $0x608] sm:$0xff]
        %v418 = vld [vmem:[%s171 + $0x610] sm:$0xff]
        %v419 = vld [vmem:[%s171 + $0x618] sm:$0xff]
        %v420 = vld [vmem:[%s171 + $0x620] sm:$0xff]
        %v421 = vld [vmem:[%s171 + $0x628] sm:$0xff]
        %v422 = vld [vmem:[%s171 + $0x630] sm:$0xff]
        %v423 = vld [vmem:[%s171 + $0x638] sm:$0xff]
        %v424 = vld [vmem:[%s171 + $0x640] sm:$0xff]
        %v425 = vld [vmem:[%s171 + $0x648] sm:$0xff]
        %v426 = vld [vmem:[%s171 + $0x650] sm:$0xff]
        %v427 = vld [vmem:[%s171 + $0x658] sm:$0xff]
        %v428 = vld [vmem:[%s171 + $0x660] sm:$0xff]
        %v429 = vld [vmem:[%s171 + $0x668] sm:$0xff]
        %v430 = vld [vmem:[%s171 + $0x670] sm:$0xff]
        %v431 = vld [vmem:[%s171 + $0x678] sm:$0xff]
        %v432 = vld [vmem:[%s171 + $0x680] sm:$0xff]
        %v433 = vld [vmem:[%s171 + $0x688] sm:$0xff]
        %v434 = vld [vmem:[%s171 + $0x690] sm:$0xff]
        %v435 = vld [vmem:[%s171 + $0x698] sm:$0xff]
        %v436 = vld [vmem:[%s171 + $0x6a0] sm:$0xff]
        %v437 = vld [vmem:[%s171 + $0x6a8] sm:$0xff]
        %v438 = vld [vmem:[%s171 + $0x6b0] sm:$0xff]
        %v439 = vld [vmem:[%s171 + $0x6b8] sm:$0xff]
        %v440 = vld [vmem:[%s171 + $0x6c0] sm:$0xff]
        %v441 = vld [vmem:[%s171 + $0x6c8] sm:$0xff]
        %v442 = vld [vmem:[%s171 + $0x6d0] sm:$0xff]
        %v443 = vld [vmem:[%s171 + $0x6d8] sm:$0xff]
        %v444 = vld [vmem:[%s171 + $0x6e0] sm:$0xff]
        %v445 = vld [vmem:[%s171 + $0x6e8] sm:$0xff]
        %v446 = vld [vmem:[%s171 + $0x6f0] sm:$0xff]
        %v447 = vld [vmem:[%s171 + $0x6f8] sm:$0xff]
        %v448 = vld [vmem:[%s171 + $0x700] sm:$0xff]
        %v449 = vld [vmem:[%s171 + $0x708] sm:$0xff]
        %v450 = vld [vmem:[%s171 + $0x710] sm:$0xff]
        %v451 = vld [vmem:[%s171 + $0x718] sm:$0xff]
        %v452 = vld [vmem:[%s171 + $0x720] sm:$0xff]
        %v453 = vld [vmem:[%s171 + $0x728] sm:$0xff]
        %v454 = vld [vmem:[%s171 + $0x730] sm:$0xff]
        %v455 = vld [vmem:[%s171 + $0x738] sm:$0xff]
        %v456 = vld [vmem:[%s171 + $0x740] sm:$0xff]
        %v457 = vld [vmem:[%s171 + $0x748] sm:$0xff]
        %v458 = vld [vmem:[%s171 + $0x750] sm:$0xff]
        %v459 = vld [vmem:[%s171 + $0x758] sm:$0xff]
        %v460 = vld [vmem:[%s171 + $0x760] sm:$0xff]
        %v461 = vld [vmem:[%s171 + $0x768] sm:$0xff]
        %v462 = vld [vmem:[%s171 + $0x770] sm:$0xff]
        %v463 = vld [vmem:[%s171 + $0x778] sm:$0xff]
        %v464 = vld [vmem:[%s171 + $0x780] sm:$0xff]
        %v465 = vld [vmem:[%s171 + $0x788] sm:$0xff]
        %v466 = vld [vmem:[%s171 + $0x790] sm:$0xff]
        %v467 = vld [vmem:[%s171 + $0x798] sm:$0xff]
        %v468 = vld [vmem:[%s171 + $0x7a0] sm:$0xff]
        %v469 = vld [vmem:[%s171 + $0x7a8] sm:$0xff]
        %v470 = vld [vmem:[%s171 + $0x7b0] sm:$0xff]
        %v471 = vld [vmem:[%s171 + $0x7b8] sm:$0xff]
        %v472 = vld [vmem:[%s171 + $0x7c0] sm:$0xff]
        %v473 = vld [vmem:[%s171 + $0x7c8] sm:$0xff]
        %v474 = vld [vmem:[%s171 + $0x7d0] sm:$0xff]
        %v475 = vld [vmem:[%s171 + $0x7d8] sm:$0xff]
        %v476 = vld [vmem:[%s171 + $0x7e0] sm:$0xff]
        %v477 = vld [vmem:[%s171 + $0x7e8] sm:$0xff]
        %v478 = vld [vmem:[%s171 + $0x7f0] sm:$0xff]
        %v479 = vld [vmem:[%s171 + $0x7f8] sm:$0xff]
        %v480 = vld [vmem:[%s171 + $0x800] sm:$0xff]
        %v481 = vld [vmem:[%s171 + $0x808] sm:$0xff]
        %v482 = vld [vmem:[%s171 + $0x810] sm:$0xff]
        %v483 = vld [vmem:[%s171 + $0x818] sm:$0xff]
        %v484 = vld [vmem:[%s171 + $0x820] sm:$0xff]
        %v485 = vld [vmem:[%s171 + $0x828] sm:$0xff]
        %v486 = vld [vmem:[%s171 + $0x830] sm:$0xff]
        %v487 = vld [vmem:[%s171 + $0x838] sm:$0xff]
        %v488 = vld [vmem:[%s171 + $0x840] sm:$0xff]
        %v489 = vld [vmem:[%s171 + $0x848] sm:$0xff]
        %v490 = vld [vmem:[%s171 + $0x850] sm:$0xff]
        %v491 = vld [vmem:[%s171 + $0x858] sm:$0xff]
        %v492 = vld [vmem:[%s171 + $0x860] sm:$0xff]
        %v493 = vld [vmem:[%s171 + $0x868] sm:$0xff]
        %v494 = vld [vmem:[%s171 + $0x870] sm:$0xff]
        %v495 = vld [vmem:[%s171 + $0x878] sm:$0xff]
        %v496 = vld [vmem:[%s171 + $0x880] sm:$0xff]
        %v497 = vld [vmem:[%s171 + $0x888] sm:$0xff]
        %v498 = vld [vmem:[%s171 + $0x890] sm:$0xff]
        %v499 = vld [vmem:[%s171 + $0x898] sm:$0xff]
        %v500 = vld [vmem:[%s171 + $0x8a0] sm:$0xff]
        %v501 = vld [vmem:[%s171 + $0x8a8] sm:$0xff]
        %v502 = vld [vmem:[%s171 + $0x8b0] sm:$0xff]
        %v503 = vld [vmem:[%s171 + $0x8b8] sm:$0xff]
        %v504 = vld [vmem:[%s171 + $0x8c0] sm:$0xff]
        %v505 = vld [vmem:[%s171 + $0x8c8] sm:$0xff]
        %v506 = vld [vmem:[%s171 + $0x8d0] sm:$0xff]
        %v507 = vld [vmem:[%s171 + $0x8d8] sm:$0xff]
        %v508 = vld [vmem:[%s171 + $0x8e0] sm:$0xff]
        %v509 = vld [vmem:[%s171 + $0x8e8] sm:$0xff]
        %v510 = vld [vmem:[%s171 + $0x8f0] sm:$0xff]
        %v511 = vld [vmem:[%s171 + $0x8f8] sm:$0xff]
        %v512 = vld [vmem:[%s171 + $0x900] sm:$0xff]
        %v513 = vld [vmem:[%s171 + $0x908] sm:$0xff]
        %v514 = vld [vmem:[%s171 + $0x910] sm:$0xff]
        %v515 = vld [vmem:[%s171 + $0x918] sm:$0xff]
        %v516 = vld [vmem:[%s171 + $0x920] sm:$0xff]
        %v517 = vld [vmem:[%s171 + $0x928] sm:$0xff]
        %v518 = vld [vmem:[%s171 + $0x930] sm:$0xff]
        %v519 = vld [vmem:[%s171 + $0x938] sm:$0xff]
        %v520 = vld [vmem:[%s171 + $0x940] sm:$0xff]
        %v521 = vld [vmem:[%s171 + $0x948] sm:$0xff]
        %v522 = vld [vmem:[%s171 + $0x950] sm:$0xff]
        %v523 = vld [vmem:[%s171 + $0x958] sm:$0xff]
        %v524 = vld [vmem:[%s171 + $0x960] sm:$0xff]
        %v525 = vld [vmem:[%s171 + $0x968] sm:$0xff]
        %v526 = vld [vmem:[%s171 + $0x970] sm:$0xff]
        %v527 = vld [vmem:[%s171 + $0x978] sm:$0xff]
        %v528 = vld [vmem:[%s171 + $0x980] sm:$0xff]
        %v529 = vld [vmem:[%s171 + $0x988] sm:$0xff]
        %v530 = vld [vmem:[%s171 + $0x990] sm:$0xff]
        %v531 = vld [vmem:[%s171 + $0x998] sm:$0xff]
        %v532 = vld [vmem:[%s171 + $0x9a0] sm:$0xff]
        %v533 = vld [vmem:[%s171 + $0x9a8] sm:$0xff]
        %v534 = vld [vmem:[%s171 + $0x9b0] sm:$0xff]
        %v535 = vld [vmem:[%s171 + $0x9b8] sm:$0xff]
        %v536 = vld [vmem:[%s171 + $0x9c0] sm:$0xff]
        %v537 = vld [vmem:[%s171 + $0x9c8] sm:$0xff]
        %v538 = vld [vmem:[%s171 + $0x9d0] sm:$0xff]
        %v539 = vld [vmem:[%s171 + $0x9d8] sm:$0xff]
        %v540 = vld [vmem:[%s171 + $0x9e0] sm:$0xff]
        %v541 = vld [vmem:[%s171 + $0x9e8] sm:$0xff]
        %v542 = vld [vmem:[%s171 + $0x9f0] sm:$0xff]
        %v543 = vld [vmem:[%s171 + $0x9f8] sm:$0xff]
        %v544 = vld [vmem:[%s171 + $0xa00] sm:$0xff]
        %v545 = vld [vmem:[%s171 + $0xa08] sm:$0xff]
        %v546 = vld [vmem:[%s171 + $0xa10] sm:$0xff]
        %v547 = vld [vmem:[%s171 + $0xa18] sm:$0xff]
        %v548 = vld [vmem:[%s171 + $0xa20] sm:$0xff]
        %v549 = vld [vmem:[%s171 + $0xa28] sm:$0xff]
        %v550 = vld [vmem:[%s171 + $0xa30] sm:$0xff]
        %v551 = vld [vmem:[%s171 + $0xa38] sm:$0xff]
        %v552 = vld [vmem:[%s171 + $0xa40] sm:$0xff]
        %v553 = vld [vmem:[%s171 + $0xa48] sm:$0xff]
        %v554 = vld [vmem:[%s171 + $0xa50] sm:$0xff]
        %v555 = vld [vmem:[%s171 + $0xa58] sm:$0xff]
        %v556 = vld [vmem:[%s171 + $0xa60] sm:$0xff]
        %v557 = vld [vmem:[%s171 + $0xa68] sm:$0xff]
        %v558 = vld [vmem:[%s171 + $0xa70] sm:$0xff]
        %v559 = vld [vmem:[%s171 + $0xa78] sm:$0xff]
        %v560 = vld [vmem:[%s171 + $0xa80] sm:$0xff]
        %v561 = vld [vmem:[%s171 + $0xa88] sm:$0xff]
        %v562 = vld [vmem:[%s171 + $0xa90] sm:$0xff]
        %v563 = vld [vmem:[%s171 + $0xa98] sm:$0xff]
        %v564 = vld [vmem:[%s171 + $0xaa0] sm:$0xff]
        %v565 = vld [vmem:[%s171 + $0xaa8] sm:$0xff]
        %v566 = vld [vmem:[%s171 + $0xab0] sm:$0xff]
        %v567 = vld [vmem:[%s171 + $0xab8] sm:$0xff]
        %v568 = vld [vmem:[%s171 + $0xac0] sm:$0xff]
        %v569 = vld [vmem:[%s171 + $0xac8] sm:$0xff]
        %v570 = vld [vmem:[%s171 + $0xad0] sm:$0xff]
        %v571 = vld [vmem:[%s171 + $0xad8] sm:$0xff]
        %v572 = vld [vmem:[%s171 + $0xae0] sm:$0xff]
        %v573 = vld [vmem:[%s171 + $0xae8] sm:$0xff]
        %v574 = vld [vmem:[%s171 + $0xaf0] sm:$0xff]
        %v575 = vld [vmem:[%s171 + $0xaf8] sm:$0xff]
        %v576 = vld [vmem:[%s171 + $0xb00] sm:$0xff]
        %v577 = vld [vmem:[%s171 + $0xb08] sm:$0xff]
        %v578 = vld [vmem:[%s171 + $0xb10] sm:$0xff]
        %v579 = vld [vmem:[%s171 + $0xb18] sm:$0xff]
        %v580 = vld [vmem:[%s171 + $0xb20] sm:$0xff]
        %v581 = vld [vmem:[%s171 + $0xb28] sm:$0xff]
        %v582 = vld [vmem:[%s171 + $0xb30] sm:$0xff]
        %v583 = vld [vmem:[%s171 + $0xb38] sm:$0xff]
        %v584 = vld [vmem:[%s171 + $0xb40] sm:$0xff]
        %v585 = vld [vmem:[%s171 + $0xb48] sm:$0xff]
        %v586 = vld [vmem:[%s171 + $0xb50] sm:$0xff]
        %v587 = vld [vmem:[%s171 + $0xb58] sm:$0xff]
        %v588 = vld [vmem:[%s171 + $0xb60] sm:$0xff]
        %v589 = vld [vmem:[%s171 + $0xb68] sm:$0xff]
        %v590 = vld [vmem:[%s171 + $0xb70] sm:$0xff]
        %v591 = vld [vmem:[%s171 + $0xb78] sm:$0xff]
        %v592 = vld [vmem:[%s171 + $0xb80] sm:$0xff]
        %v593 = vld [vmem:[%s171 + $0xb88] sm:$0xff]
        %v594 = vld [vmem:[%s171 + $0xb90] sm:$0xff]
        %v595 = vld [vmem:[%s171 + $0xb98] sm:$0xff]
        %v596 = vld [vmem:[%s171 + $0xba0] sm:$0xff]
        %v597 = vld [vmem:[%s171 + $0xba8] sm:$0xff]
        %v598 = vld [vmem:[%s171 + $0xbb0] sm:$0xff]
        %v599 = vld [vmem:[%s171 + $0xbb8] sm:$0xff]
        %v600 = vld [vmem:[%s171 + $0xbc0] sm:$0xff]
        %v601 = vld [vmem:[%s171 + $0xbc8] sm:$0xff]
        %v602 = vld [vmem:[%s171 + $0xbd0] sm:$0xff]
        %v603 = vld [vmem:[%s171 + $0xbd8] sm:$0xff]
        %v604 = vld [vmem:[%s171 + $0xbe0] sm:$0xff]
        %v605 = vld [vmem:[%s171 + $0xbe8] sm:$0xff]
        %v606 = vld [vmem:[%s171 + $0xbf0] sm:$0xff]
        %v607 = vld [vmem:[%s171 + $0xbf8] sm:$0xff]
        %v608 = vld [vmem:[%s171 + $0xc00] sm:$0xff]
        %v609 = vld [vmem:[%s171 + $0xc08] sm:$0xff]
        %v610 = vld [vmem:[%s171 + $0xc10] sm:$0xff]
        %v611 = vld [vmem:[%s171 + $0xc18] sm:$0xff]
        %v612 = vld [vmem:[%s171 + $0xc20] sm:$0xff]
        %v613 = vld [vmem:[%s171 + $0xc28] sm:$0xff]
        %v614 = vld [vmem:[%s171 + $0xc30] sm:$0xff]
        %v615 = vld [vmem:[%s171 + $0xc38] sm:$0xff]
        %v616 = vld [vmem:[%s171 + $0xc40] sm:$0xff]
        %v617 = vld [vmem:[%s171 + $0xc48] sm:$0xff]
        %v618 = vld [vmem:[%s171 + $0xc50] sm:$0xff]
        %v619 = vld [vmem:[%s171 + $0xc58] sm:$0xff]
        %v620 = vld [vmem:[%s171 + $0xc60] sm:$0xff]
        %v621 = vld [vmem:[%s171 + $0xc68] sm:$0xff]
        %v622 = vld [vmem:[%s171 + $0xc70] sm:$0xff]
        %v623 = vld [vmem:[%s171 + $0xc78] sm:$0xff]
        %v624 = vld [vmem:[%s171 + $0xc80] sm:$0xff]
        %v625 = vld [vmem:[%s171 + $0xc88] sm:$0xff]
        %v626 = vld [vmem:[%s171 + $0xc90] sm:$0xff]
        %v627 = vld [vmem:[%s171 + $0xc98] sm:$0xff]
        %v628 = vld [vmem:[%s171 + $0xca0] sm:$0xff]
        %v629 = vld [vmem:[%s171 + $0xca8] sm:$0xff]
        %v630 = vld [vmem:[%s171 + $0xcb0] sm:$0xff]
        %v631 = vld [vmem:[%s171 + $0xcb8] sm:$0xff]
        %v632 = vld [vmem:[%s171 + $0xcc0] sm:$0xff]
        %v633 = vld [vmem:[%s171 + $0xcc8] sm:$0xff]
        %v634 = vld [vmem:[%s171 + $0xcd0] sm:$0xff]
        %v635 = vld [vmem:[%s171 + $0xcd8] sm:$0xff]
        %v636 = vld [vmem:[%s171 + $0xce0] sm:$0xff]
        %v637 = vld [vmem:[%s171 + $0xce8] sm:$0xff]
        %v638 = vld [vmem:[%s171 + $0xcf0] sm:$0xff]
        %v639 = vld [vmem:[%s171 + $0xcf8] sm:$0xff]
        %v640 = vld [vmem:[%s171 + $0xd00] sm:$0xff]
        %v641 = vld [vmem:[%s171 + $0xd08] sm:$0xff]
        %v642 = vld [vmem:[%s171 + $0xd10] sm:$0xff]
        %v643 = vld [vmem:[%s171 + $0xd18] sm:$0xff]
        %v644 = vld [vmem:[%s171 + $0xd20] sm:$0xff]
        %v645 = vld [vmem:[%s171 + $0xd28] sm:$0xff]
        %v646 = vld [vmem:[%s171 + $0xd30] sm:$0xff]
        %v647 = vld [vmem:[%s171 + $0xd38] sm:$0xff]
        %v648 = vld [vmem:[%s171 + $0xd40] sm:$0xff]
        %v649 = vld [vmem:[%s171 + $0xd48] sm:$0xff]
        %v650 = vld [vmem:[%s171 + $0xd50] sm:$0xff]
        %v651 = vld [vmem:[%s171 + $0xd58] sm:$0xff]
        %v652 = vld [vmem:[%s171 + $0xd60] sm:$0xff]
        %v653 = vld [vmem:[%s171 + $0xd68] sm:$0xff]
        %v654 = vld [vmem:[%s171 + $0xd70] sm:$0xff]
        %v655 = vld [vmem:[%s171 + $0xd78] sm:$0xff]
        %v656 = vld [vmem:[%s171 + $0xd80] sm:$0xff]
        %v657 = vld [vmem:[%s171 + $0xd88] sm:$0xff]
        %v658 = vld [vmem:[%s171 + $0xd90] sm:$0xff]
        %v659 = vld [vmem:[%s171 + $0xd98] sm:$0xff]
        %v660 = vld [vmem:[%s171 + $0xda0] sm:$0xff]
        %v661 = vld [vmem:[%s171 + $0xda8] sm:$0xff]
        %v662 = vld [vmem:[%s171 + $0xdb0] sm:$0xff]
        %v663 = vld [vmem:[%s171 + $0xdb8] sm:$0xff]
        %v664 = vld [vmem:[%s171 + $0xdc0] sm:$0xff]
        %v665 = vld [vmem:[%s171 + $0xdc8] sm:$0xff]
        %v666 = vld [vmem:[%s171 + $0xdd0] sm:$0xff]
        %v667 = vld [vmem:[%s171 + $0xdd8] sm:$0xff]
        %v668 = vld [vmem:[%s171 + $0xde0] sm:$0xff]
        %v669 = vld [vmem:[%s171 + $0xde8] sm:$0xff]
        %v670 = vld [vmem:[%s171 + $0xdf0] sm:$0xff]
        %v671 = vld [vmem:[%s171 + $0xdf8] sm:$0xff]
        %v672 = vld [vmem:[%s171 + $0xe00] sm:$0xff]
        %v673 = vld [vmem:[%s171 + $0xe08] sm:$0xff]
        %v674 = vld [vmem:[%s171 + $0xe10] sm:$0xff]
        %v675 = vld [vmem:[%s171 + $0xe18] sm:$0xff]
        %v676 = vld [vmem:[%s171 + $0xe20] sm:$0xff]
        %v677 = vld [vmem:[%s171 + $0xe28] sm:$0xff]
        %v678 = vld [vmem:[%s171 + $0xe30] sm:$0xff]
        %v679 = vld [vmem:[%s171 + $0xe38] sm:$0xff]
        %v680 = vld [vmem:[%s171 + $0xe40] sm:$0xff]
        %v681 = vld [vmem:[%s171 + $0xe48] sm:$0xff]
        %v682 = vld [vmem:[%s171 + $0xe50] sm:$0xff]
        %v683 = vld [vmem:[%s171 + $0xe58] sm:$0xff]
        %v684 = vld [vmem:[%s171 + $0xe60] sm:$0xff]
        %v685 = vld [vmem:[%s171 + $0xe68] sm:$0xff]
        %v686 = vld [vmem:[%s171 + $0xe70] sm:$0xff]
        %v687 = vld [vmem:[%s171 + $0xe78] sm:$0xff]
        %v688 = vld [vmem:[%s171 + $0xe80] sm:$0xff]
        %v689 = vld [vmem:[%s171 + $0xe88] sm:$0xff]
        %v690 = vld [vmem:[%s171 + $0xe90] sm:$0xff]
        %v691 = vld [vmem:[%s171 + $0xe98] sm:$0xff]
        %v692 = vld [vmem:[%s171 + $0xea0] sm:$0xff]
        %v693 = vld [vmem:[%s171 + $0xea8] sm:$0xff]
        %v694 = vld [vmem:[%s171 + $0xeb0] sm:$0xff]
        %v695 = vld [vmem:[%s171 + $0xeb8] sm:$0xff]
        %v696 = vld [vmem:[%s171 + $0xec0] sm:$0xff]
        %v697 = vld [vmem:[%s171 + $0xec8] sm:$0xff]
        %v698 = vld [vmem:[%s171 + $0xed0] sm:$0xff]
        %v699 = vld [vmem:[%s171 + $0xed8] sm:$0xff]
        %v700 = vld [vmem:[%s171 + $0xee0] sm:$0xff]
        %v701 = vld [vmem:[%s171 + $0xee8] sm:$0xff]
        %v702 = vld [vmem:[%s171 + $0xef0] sm:$0xff]
        %v703 = vld [vmem:[%s171 + $0xef8] sm:$0xff]
        %v704 = vld [vmem:[%s171 + $0xf00] sm:$0xff]
        %v705 = vld [vmem:[%s171 + $0xf08] sm:$0xff]
        %v706 = vld [vmem:[%s171 + $0xf10] sm:$0xff]
        %v707 = vld [vmem:[%s171 + $0xf18] sm:$0xff]
        %v708 = vld [vmem:[%s171 + $0xf20] sm:$0xff]
        %v709 = vld [vmem:[%s171 + $0xf28] sm:$0xff]
        %v710 = vld [vmem:[%s171 + $0xf30] sm:$0xff]
        %v711 = vld [vmem:[%s171 + $0xf38] sm:$0xff]
        %v712 = vld [vmem:[%s171 + $0xf40] sm:$0xff]
        %v713 = vld [vmem:[%s171 + $0xf48] sm:$0xff]
        %v714 = vld [vmem:[%s171 + $0xf50] sm:$0xff]
        %v715 = vld [vmem:[%s171 + $0xf58] sm:$0xff]
        %v716 = vld [vmem:[%s171 + $0xf60] sm:$0xff]
        %v717 = vld [vmem:[%s171 + $0xf68] sm:$0xff]
        %v718 = vld [vmem:[%s171 + $0xf70] sm:$0xff]
        %v719 = vld [vmem:[%s171 + $0xf78] sm:$0xff]
        %v720 = vld [vmem:[%s171 + $0xf80] sm:$0xff]
        %v721 = vld [vmem:[%s171 + $0xf88] sm:$0xff]
        %v722 = vld [vmem:[%s171 + $0xf90] sm:$0xff]
        %v723 = vld [vmem:[%s171 + $0xf98] sm:$0xff]
        %v724 = vld [vmem:[%s171 + $0xfa0] sm:$0xff]
        %v725 = vld [vmem:[%s171 + $0xfa8] sm:$0xff]
        %v726 = vld [vmem:[%s171 + $0xfb0] sm:$0xff]
        %v727 = vld [vmem:[%s171 + $0xfb8] sm:$0xff]
        %v728 = vld [vmem:[%s171 + $0xfc0] sm:$0xff]
        %v729 = vld [vmem:[%s171 + $0xfc8] sm:$0xff]
        %v730 = vld [vmem:[%s171 + $0xfd0] sm:$0xff]
        %v731 = vld [vmem:[%s171 + $0xfd8] sm:$0xff]
        %v732 = vld [vmem:[%s171 + $0xfe0] sm:$0xff]
        %v733 = vld [vmem:[%s171 + $0xfe8] sm:$0xff]
        %v734 = vld [vmem:[%s171 + $0xff0] sm:$0xff]
        %v735 = vld [vmem:[%s171 + $0xff8] sm:$0xff]
        %v736 = vld [vmem:[%s171 + $0x1000] sm:$0xff]
        %v737 = vld [vmem:[%s171 + $0x1008] sm:$0xff]
        %v738 = vld [vmem:[%s171 + $0x1010] sm:$0xff]
        %v739 = vld [vmem:[%s171 + $0x1018] sm:$0xff]
        %v740 = vld [vmem:[%s171 + $0x1020] sm:$0xff]
        %v741 = vld [vmem:[%s171 + $0x1028] sm:$0xff]
        %v742 = vld [vmem:[%s171 + $0x1030] sm:$0xff]
        %v743 = vld [vmem:[%s171 + $0x1038] sm:$0xff]
        %v744 = vld [vmem:[%s171 + $0x1040] sm:$0xff]
        %v745 = vld [vmem:[%s171 + $0x1048] sm:$0xff]
        %v746 = vld [vmem:[%s171 + $0x1050] sm:$0xff]
        %v747 = vld [vmem:[%s171 + $0x1058] sm:$0xff]
        %v748 = vld [vmem:[%s171 + $0x1060] sm:$0xff]
        %v749 = vld [vmem:[%s171 + $0x1068] sm:$0xff]
        %v750 = vld [vmem:[%s171 + $0x1070] sm:$0xff]
        %v751 = vld [vmem:[%s171 + $0x1078] sm:$0xff]
        %v752 = vld [vmem:[%s171 + $0x1080] sm:$0xff]
        %v753 = vld [vmem:[%s171 + $0x1088] sm:$0xff]
        %v754 = vld [vmem:[%s171 + $0x1090] sm:$0xff]
        %v755 = vld [vmem:[%s171 + $0x1098] sm:$0xff]
        %v756 = vld [vmem:[%s171 + $0x10a0] sm:$0xff]
        %v757 = vld [vmem:[%s171 + $0x10a8] sm:$0xff]
        %v758 = vld [vmem:[%s171 + $0x10b0] sm:$0xff]
        %v759 = vld [vmem:[%s171 + $0x10b8] sm:$0xff]
        %v760 = vld [vmem:[%s171 + $0x10c0] sm:$0xff]
        %v761 = vld [vmem:[%s171 + $0x10c8] sm:$0xff]
        %v762 = vld [vmem:[%s171 + $0x10d0] sm:$0xff]
        %v763 = vld [vmem:[%s171 + $0x10d8] sm:$0xff]
        %v764 = vld [vmem:[%s171 + $0x10e0] sm:$0xff]
        %v765 = vld [vmem:[%s171 + $0x10e8] sm:$0xff]
        %v766 = vld [vmem:[%s171 + $0x10f0] sm:$0xff]
        %v767 = vld [vmem:[%s171 + $0x10f8] sm:$0xff]
        %v768 = vld [vmem:[%s171 + $0x1100] sm:$0xff]
        %v769 = vld [vmem:[%s171 + $0x1108] sm:$0xff]
        %v770 = vld [vmem:[%s171 + $0x1110] sm:$0xff]
        %v771 = vld [vmem:[%s171 + $0x1118] sm:$0xff]
        %v772 = vld [vmem:[%s171 + $0x1120] sm:$0xff]
        %v773 = vld [vmem:[%s171 + $0x1128] sm:$0xff]
        %v774 = vld [vmem:[%s171 + $0x1130] sm:$0xff]
        %v775 = vld [vmem:[%s171 + $0x1138] sm:$0xff]
        %v776 = vld [vmem:[%s171 + $0x1140] sm:$0xff]
        %v777 = vld [vmem:[%s171 + $0x1148] sm:$0xff]
        %v778 = vld [vmem:[%s171 + $0x1150] sm:$0xff]
        %v779 = vld [vmem:[%s171 + $0x1158] sm:$0xff]
        %v780 = vld [vmem:[%s171 + $0x1160] sm:$0xff]
        %v781 = vld [vmem:[%s171 + $0x1168] sm:$0xff]
        %v782 = vld [vmem:[%s171 + $0x1170] sm:$0xff]
        %v783 = vld [vmem:[%s171 + $0x1178] sm:$0xff]
        %v784 = vld [vmem:[%s171 + $0x1180] sm:$0xff]
        %v785 = vld [vmem:[%s171 + $0x1188] sm:$0xff]
        %v786 = vld [vmem:[%s171 + $0x1190] sm:$0xff]
        %v787 = vld [vmem:[%s171 + $0x1198] sm:$0xff]
        %v788 = vld [vmem:[%s171 + $0x11a0] sm:$0xff]
        %v789 = vld [vmem:[%s171 + $0x11a8] sm:$0xff]
        %v790 = vld [vmem:[%s171 + $0x11b0] sm:$0xff]
        %v791 = vld [vmem:[%s171 + $0x11b8] sm:$0xff]
        %v792 = vld [vmem:[%s171 + $0x11c0] sm:$0xff]
        %v793 = vld [vmem:[%s171 + $0x11c8] sm:$0xff]
        %v794 = vld [vmem:[%s171 + $0x11d0] sm:$0xff]
        %v795 = vld [vmem:[%s171 + $0x11d8] sm:$0xff]
        %v796 = vld [vmem:[%s171 + $0x11e0] sm:$0xff]
        %v797 = vld [vmem:[%s171 + $0x11e8] sm:$0xff]
        %v798 = vld [vmem:[%s171 + $0x11f0] sm:$0xff]
        %v799 = vld [vmem:[%s171 + $0x11f8] sm:$0xff]
        %v800 = vld [vmem:[%s171 + $0x1200] sm:$0xff]
        %v801 = vld [vmem:[%s171 + $0x1208] sm:$0xff]
        %v802 = vld [vmem:[%s171 + $0x1210] sm:$0xff]
        %v803 = vld [vmem:[%s171 + $0x1218] sm:$0xff]
        %v804 = vld [vmem:[%s171 + $0x1220] sm:$0xff]
        %v805 = vld [vmem:[%s171 + $0x1228] sm:$0xff]
        %v806 = vld [vmem:[%s171 + $0x1230] sm:$0xff]
        %v807 = vld [vmem:[%s171 + $0x1238] sm:$0xff]
        %v808 = vld [vmem:[%s171 + $0x1240] sm:$0xff]
        %v809 = vld [vmem:[%s171 + $0x1248] sm:$0xff]
        %v810 = vld [vmem:[%s171 + $0x1250] sm:$0xff]
        %v811 = vld [vmem:[%s171 + $0x1258] sm:$0xff]
        %v812 = vld [vmem:[%s171 + $0x1260] sm:$0xff]
        %v813 = vld [vmem:[%s171 + $0x1268] sm:$0xff]
        %v814 = vld [vmem:[%s171 + $0x1270] sm:$0xff]
        %v815 = vld [vmem:[%s171 + $0x1278] sm:$0xff]
        %v816 = vld [vmem:[%s171 + $0x1280] sm:$0xff]
        %v817 = vld [vmem:[%s171 + $0x1288] sm:$0xff]
        %v818 = vld [vmem:[%s171 + $0x1290] sm:$0xff]
        %v819 = vld [vmem:[%s171 + $0x1298] sm:$0xff]
        %v820 = vld [vmem:[%s171 + $0x12a0] sm:$0xff]
        %v821 = vld [vmem:[%s171 + $0x12a8] sm:$0xff]
        %v822 = vld [vmem:[%s171 + $0x12b0] sm:$0xff]
        %v823 = vld [vmem:[%s171 + $0x12b8] sm:$0xff]
        %v824 = vld [vmem:[%s171 + $0x12c0] sm:$0xff]
        %v825 = vld [vmem:[%s171 + $0x12c8] sm:$0xff]
        %v826 = vld [vmem:[%s171 + $0x12d0] sm:$0xff]
        %v827 = vld [vmem:[%s171 + $0x12d8] sm:$0xff]
        %v828 = vld [vmem:[%s171 + $0x12e0] sm:$0xff]
        %v829 = vld [vmem:[%s171 + $0x12e8] sm:$0xff]
        %v830 = vld [vmem:[%s171 + $0x12f0] sm:$0xff]
        %v831 = vld [vmem:[%s171 + $0x12f8] sm:$0xff]
        %v832 = vld [vmem:[%s171 + $0x1300] sm:$0xff]
        %v833 = vld [vmem:[%s171 + $0x1308] sm:$0xff]
        %v834 = vld [vmem:[%s171 + $0x1310] sm:$0xff]
        %v835 = vld [vmem:[%s171 + $0x1318] sm:$0xff]
        %v836 = vld [vmem:[%s171 + $0x1320] sm:$0xff]
        %v837 = vld [vmem:[%s171 + $0x1328] sm:$0xff]
        %v838 = vld [vmem:[%s171 + $0x1330] sm:$0xff]
        %v839 = vld [vmem:[%s171 + $0x1338] sm:$0xff]
        %v840 = vld [vmem:[%s171 + $0x1340] sm:$0xff]
        %v841 = vld [vmem:[%s171 + $0x1348] sm:$0xff]
        %v842 = vld [vmem:[%s171 + $0x1350] sm:$0xff]
        %v843 = vld [vmem:[%s171 + $0x1358] sm:$0xff]
        %v844 = vld [vmem:[%s171 + $0x1360] sm:$0xff]
        %v845 = vld [vmem:[%s171 + $0x1368] sm:$0xff]
        %v846 = vld [vmem:[%s171 + $0x1370] sm:$0xff]
        %v847 = vld [vmem:[%s171 + $0x1378] sm:$0xff]
        %v848 = vld [vmem:[%s171 + $0x1380] sm:$0xff]
        %v849 = vld [vmem:[%s171 + $0x1388] sm:$0xff]
        %v850 = vld [vmem:[%s171 + $0x1390] sm:$0xff]
        %v851 = vld [vmem:[%s171 + $0x1398] sm:$0xff]
        %v852 = vld [vmem:[%s171 + $0x13a0] sm:$0xff]
        %v853 = vld [vmem:[%s171 + $0x13a8] sm:$0xff]
        %v854 = vld [vmem:[%s171 + $0x13b0] sm:$0xff]
        %v855 = vld [vmem:[%s171 + $0x13b8] sm:$0xff]
        %v856 = vld [vmem:[%s171 + $0x13c0] sm:$0xff]
        %v857 = vld [vmem:[%s171 + $0x13c8] sm:$0xff]
        %v858 = vld [vmem:[%s171 + $0x13d0] sm:$0xff]
        %v859 = vld [vmem:[%s171 + $0x13d8] sm:$0xff]
        %v860 = vld [vmem:[%s171 + $0x13e0] sm:$0xff]
        %v861 = vld [vmem:[%s171 + $0x13e8] sm:$0xff]
        %v862 = vld [vmem:[%s171 + $0x13f0] sm:$0xff]
        %v863 = vld [vmem:[%s171 + $0x13f8] sm:$0xff]
        %v864 = vld [vmem:[%s171 + $0x1400] sm:$0xff]
        %v865 = vld [vmem:[%s171 + $0x1408] sm:$0xff]
        %v866 = vld [vmem:[%s171 + $0x1410] sm:$0xff]
        %v867 = vld [vmem:[%s171 + $0x1418] sm:$0xff]
        %v868 = vld [vmem:[%s171 + $0x1420] sm:$0xff]
        %v869 = vld [vmem:[%s171 + $0x1428] sm:$0xff]
        %v870 = vld [vmem:[%s171 + $0x1430] sm:$0xff]
        %v871 = vld [vmem:[%s171 + $0x1438] sm:$0xff]
        %v872 = vld [vmem:[%s171 + $0x1440] sm:$0xff]
        %v873 = vld [vmem:[%s171 + $0x1448] sm:$0xff]
        %v874 = vld [vmem:[%s171 + $0x1450] sm:$0xff]
        %v875 = vld [vmem:[%s171 + $0x1458] sm:$0xff]
        %v876 = vld [vmem:[%s171 + $0x1460] sm:$0xff]
        %v877 = vld [vmem:[%s171 + $0x1468] sm:$0xff]
        %v878 = vld [vmem:[%s171 + $0x1470] sm:$0xff]
        %v879 = vld [vmem:[%s171 + $0x1478] sm:$0xff]
        %v880 = vld [vmem:[%s171 + $0x1480] sm:$0xff]
        %v881 = vld [vmem:[%s171 + $0x1488] sm:$0xff]
        %v882 = vld [vmem:[%s171 + $0x1490] sm:$0xff]
        %v883 = vld [vmem:[%s171 + $0x1498] sm:$0xff]
        %v884 = vld [vmem:[%s171 + $0x14a0] sm:$0xff]
        %v885 = vld [vmem:[%s171 + $0x14a8] sm:$0xff]
        %v886 = vld [vmem:[%s171 + $0x14b0] sm:$0xff]
        %v887 = vld [vmem:[%s171 + $0x14b8] sm:$0xff]
        %v888 = vld [vmem:[%s171 + $0x14c0] sm:$0xff]
        %v889 = vld [vmem:[%s171 + $0x14c8] sm:$0xff]
        %v890 = vld [vmem:[%s171 + $0x14d0] sm:$0xff]
        %v891 = vld [vmem:[%s171 + $0x14d8] sm:$0xff]
        %v892 = vld [vmem:[%s171 + $0x14e0] sm:$0xff]
        %v893 = vld [vmem:[%s171 + $0x14e8] sm:$0xff]
        %v894 = vld [vmem:[%s171 + $0x14f0] sm:$0xff]
        %v895 = vld [vmem:[%s171 + $0x14f8] sm:$0xff]
        %v896 = vld [vmem:[%s171 + $0x1500] sm:$0xff]
        %v897 = vld [vmem:[%s171 + $0x1508] sm:$0xff]
        %v898 = vld [vmem:[%s171 + $0x1510] sm:$0xff]
        %v899 = vld [vmem:[%s171 + $0x1518] sm:$0xff]
        %v900 = vld [vmem:[%s171 + $0x1520] sm:$0xff]
        %v901 = vld [vmem:[%s171 + $0x1528] sm:$0xff]
        %v902 = vld [vmem:[%s171 + $0x1530] sm:$0xff]
        %v903 = vld [vmem:[%s171 + $0x1538] sm:$0xff]
        %v904 = vld [vmem:[%s171 + $0x1540] sm:$0xff]
        %v905 = vld [vmem:[%s171 + $0x1548] sm:$0xff]
        %v906 = vld [vmem:[%s171 + $0x1550] sm:$0xff]
        %v907 = vld [vmem:[%s171 + $0x1558] sm:$0xff]
        %v908 = vld [vmem:[%s171 + $0x1560] sm:$0xff]
        %v909 = vld [vmem:[%s171 + $0x1568] sm:$0xff]
        %v910 = vld [vmem:[%s171 + $0x1570] sm:$0xff]
        %v911 = vld [vmem:[%s171 + $0x1578] sm:$0xff]
        %v912 = vld [vmem:[%s171 + $0x1580] sm:$0xff]
        %v913 = vld [vmem:[%s171 + $0x1588] sm:$0xff]
        %v914 = vld [vmem:[%s171 + $0x1590] sm:$0xff]
        %v915 = vld [vmem:[%s171 + $0x1598] sm:$0xff]
        %v916 = vld [vmem:[%s171 + $0x15a0] sm:$0xff]
        %v917 = vld [vmem:[%s171 + $0x15a8] sm:$0xff]
        %v918 = vld [vmem:[%s171 + $0x15b0] sm:$0xff]
        %v919 = vld [vmem:[%s171 + $0x15b8] sm:$0xff]
        %v920 = vld [vmem:[%s171 + $0x15c0] sm:$0xff]
        %v921 = vld [vmem:[%s171 + $0x15c8] sm:$0xff]
        %v922 = vld [vmem:[%s171 + $0x15d0] sm:$0xff]
        %v923 = vld [vmem:[%s171 + $0x15d8] sm:$0xff]
        %v924 = vld [vmem:[%s171 + $0x15e0] sm:$0xff]
        %v925 = vld [vmem:[%s171 + $0x15e8] sm:$0xff]
        %v926 = vld [vmem:[%s171 + $0x15f0] sm:$0xff]
        %v927 = vld [vmem:[%s171 + $0x15f8] sm:$0xff]
        %v928 = vld [vmem:[%s171 + $0x1600] sm:$0xff]
        %v929 = vld [vmem:[%s171 + $0x1608] sm:$0xff]
        %v930 = vld [vmem:[%s171 + $0x1610] sm:$0xff]
        %v931 = vld [vmem:[%s171 + $0x1618] sm:$0xff]
        %v932 = vld [vmem:[%s171 + $0x1620] sm:$0xff]
        %v933 = vld [vmem:[%s171 + $0x1628] sm:$0xff]
        %v934 = vld [vmem:[%s171 + $0x1630] sm:$0xff]
        %v935 = vld [vmem:[%s171 + $0x1638] sm:$0xff]
        %v936 = vld [vmem:[%s171 + $0x1640] sm:$0xff]
        %v937 = vld [vmem:[%s171 + $0x1648] sm:$0xff]
        %v938 = vld [vmem:[%s171 + $0x1650] sm:$0xff]
        %v939 = vld [vmem:[%s171 + $0x1658] sm:$0xff]
        %v940 = vld [vmem:[%s171 + $0x1660] sm:$0xff]
        %v941 = vld [vmem:[%s171 + $0x1668] sm:$0xff]
        %v942 = vld [vmem:[%s171 + $0x1670] sm:$0xff]
        %v943 = vld [vmem:[%s171 + $0x1678] sm:$0xff]
        %v944 = vld [vmem:[%s171 + $0x1680] sm:$0xff]
        %v945 = vld [vmem:[%s171 + $0x1688] sm:$0xff]
        %v946 = vld [vmem:[%s171 + $0x1690] sm:$0xff]
        %v947 = vld [vmem:[%s171 + $0x1698] sm:$0xff]
        %v948 = vld [vmem:[%s171 + $0x16a0] sm:$0xff]
        %v949 = vld [vmem:[%s171 + $0x16a8] sm:$0xff]
        %v950 = vld [vmem:[%s171 + $0x16b0] sm:$0xff]
        %v951 = vld [vmem:[%s171 + $0x16b8] sm:$0xff]
        %v952 = vld [vmem:[%s171 + $0x16c0] sm:$0xff]
        %v953 = vld [vmem:[%s171 + $0x16c8] sm:$0xff]
        %v954 = vld [vmem:[%s171 + $0x16d0] sm:$0xff]
        %v955 = vld [vmem:[%s171 + $0x16d8] sm:$0xff]
        %v956 = vld [vmem:[%s171 + $0x16e0] sm:$0xff]
        %v957 = vld [vmem:[%s171 + $0x16e8] sm:$0xff]
        %v958 = vld [vmem:[%s171 + $0x16f0] sm:$0xff]
        %v959 = vld [vmem:[%s171 + $0x16f8] sm:$0xff]
        %v960 = vld [vmem:[%s171 + $0x1700] sm:$0xff]
        %v961 = vld [vmem:[%s171 + $0x1708] sm:$0xff]
        %v962 = vld [vmem:[%s171 + $0x1710] sm:$0xff]
        %v963 = vld [vmem:[%s171 + $0x1718] sm:$0xff]
        %v964 = vld [vmem:[%s171 + $0x1720] sm:$0xff]
        %v965 = vld [vmem:[%s171 + $0x1728] sm:$0xff]
        %v966 = vld [vmem:[%s171 + $0x1730] sm:$0xff]
        %v967 = vld [vmem:[%s171 + $0x1738] sm:$0xff]
        %v968 = vld [vmem:[%s171 + $0x1740] sm:$0xff]
        %v969 = vld [vmem:[%s171 + $0x1748] sm:$0xff]
        %v970 = vld [vmem:[%s171 + $0x1750] sm:$0xff]
        %v971 = vld [vmem:[%s171 + $0x1758] sm:$0xff]
        %v972 = vld [vmem:[%s171 + $0x1760] sm:$0xff]
        %v973 = vld [vmem:[%s171 + $0x1768] sm:$0xff]
        %v974 = vld [vmem:[%s171 + $0x1770] sm:$0xff]
        %v975 = vld [vmem:[%s171 + $0x1778] sm:$0xff]
        %v976 = vld [vmem:[%s171 + $0x1780] sm:$0xff]
        %v977 = vld [vmem:[%s171 + $0x1788] sm:$0xff]
        %v978 = vld [vmem:[%s171 + $0x1790] sm:$0xff]
        %v979 = vld [vmem:[%s171 + $0x1798] sm:$0xff]
        %v980 = vld [vmem:[%s171 + $0x17a0] sm:$0xff]
        %v981 = vld [vmem:[%s171 + $0x17a8] sm:$0xff]
        %v982 = vld [vmem:[%s171 + $0x17b0] sm:$0xff]
        %v983 = vld [vmem:[%s171 + $0x17b8] sm:$0xff]
        %v984 = vld [vmem:[%s171 + $0x17c0] sm:$0xff]
        %v985 = vld [vmem:[%s171 + $0x17c8] sm:$0xff]
        %v986 = vld [vmem:[%s171 + $0x17d0] sm:$0xff]
        %v987 = vld [vmem:[%s171 + $0x17d8] sm:$0xff]
        %v988 = vld [vmem:[%s171 + $0x17e0] sm:$0xff]
        %v989 = vld [vmem:[%s171 + $0x17e8] sm:$0xff]
        %v990 = vld [vmem:[%s171 + $0x17f0] sm:$0xff]
        %v991 = vld [vmem:[%s171 + $0x17f8] sm:$0xff]
        %v992 = vld [vmem:[%s171 + $0x1800] sm:$0xff]
        %v993 = vld [vmem:[%s171 + $0x1808] sm:$0xff]
        %v994 = vld [vmem:[%s171 + $0x1810] sm:$0xff]
        %v995 = vld [vmem:[%s171 + $0x1818] sm:$0xff]
        %v996 = vld [vmem:[%s171 + $0x1820] sm:$0xff]
        %v997 = vld [vmem:[%s171 + $0x1828] sm:$0xff]
        %v998 = vld [vmem:[%s171 + $0x1830] sm:$0xff]
        %v999 = vld [vmem:[%s171 + $0x1838] sm:$0xff]
        %v1000 = vld [vmem:[%s171 + $0x1840] sm:$0xff]
        %v1001 = vld [vmem:[%s171 + $0x1848] sm:$0xff]
        %v1002 = vld [vmem:[%s171 + $0x1850] sm:$0xff]
        %v1003 = vld [vmem:[%s171 + $0x1858] sm:$0xff]
        %v1004 = vld [vmem:[%s171 + $0x1860] sm:$0xff]
        %v1005 = vld [vmem:[%s171 + $0x1868] sm:$0xff]
        %v1006 = vld [vmem:[%s171 + $0x1870] sm:$0xff]
        %v1007 = vld [vmem:[%s171 + $0x1878] sm:$0xff]
        %v1008 = vld [vmem:[%s171 + $0x1880] sm:$0xff]
        %v1009 = vld [vmem:[%s171 + $0x1888] sm:$0xff]
        %v1010 = vld [vmem:[%s171 + $0x1890] sm:$0xff]
        %v1011 = vld [vmem:[%s171 + $0x1898] sm:$0xff]
        %v1012 = vld [vmem:[%s171 + $0x18a0] sm:$0xff]
        %v1013 = vld [vmem:[%s171 + $0x18a8] sm:$0xff]
        %v1014 = vld [vmem:[%s171 + $0x18b0] sm:$0xff]
        %v1015 = vld [vmem:[%s171 + $0x18b8] sm:$0xff]
        %v1016 = vld [vmem:[%s171 + $0x18c0] sm:$0xff]
        %v1017 = vld [vmem:[%s171 + $0x18c8] sm:$0xff]
        %v1018 = vld [vmem:[%s171 + $0x18d0] sm:$0xff]
        %v1019 = vld [vmem:[%s171 + $0x18d8] sm:$0xff]
        %v1020 = vld [vmem:[%s171 + $0x18e0] sm:$0xff]
        %v1021 = vld [vmem:[%s171 + $0x18e8] sm:$0xff]
        %v1022 = vld [vmem:[%s171 + $0x18f0] sm:$0xff]
        %v1023 = vld [vmem:[%s171 + $0x18f8] sm:$0xff]
        %v1024 = vld [vmem:[%s171 + $0x1900] sm:$0xff]
        %v1025 = vld [vmem:[%s171 + $0x1908] sm:$0xff]
        %v1026 = vld [vmem:[%s171 + $0x1910] sm:$0xff]
        %v1027 = vld [vmem:[%s171 + $0x1918] sm:$0xff]
        %v1028 = vld [vmem:[%s171 + $0x1920] sm:$0xff]
        %v1029 = vld [vmem:[%s171 + $0x1928] sm:$0xff]
        %v1030 = vld [vmem:[%s171 + $0x1930] sm:$0xff]
        %v1031 = vld [vmem:[%s171 + $0x1938] sm:$0xff]
        %v1032 = vld [vmem:[%s171 + $0x1940] sm:$0xff]
        %v1033 = vld [vmem:[%s171 + $0x1948] sm:$0xff]
        %v1034 = vld [vmem:[%s171 + $0x1950] sm:$0xff]
        %v1035 = vld [vmem:[%s171 + $0x1958] sm:$0xff]
        %v1036 = vld [vmem:[%s171 + $0x1960] sm:$0xff]
        %v1037 = vld [vmem:[%s171 + $0x1968] sm:$0xff]
        %v1038 = vld [vmem:[%s171 + $0x1970] sm:$0xff]
        %v1039 = vld [vmem:[%s171 + $0x1978] sm:$0xff]
        %v1040 = vld [vmem:[%s171 + $0x1980] sm:$0xff]
        %v1041 = vld [vmem:[%s171 + $0x1988] sm:$0xff]
        %v1042 = vld [vmem:[%s171 + $0x1990] sm:$0xff]
        %v1043 = vld [vmem:[%s171 + $0x1998] sm:$0xff]
        %v1044 = vld [vmem:[%s171 + $0x19a0] sm:$0xff]
        %v1045 = vld [vmem:[%s171 + $0x19a8] sm:$0xff]
        %v1046 = vld [vmem:[%s171 + $0x19b0] sm:$0xff]
        %v1047 = vld [vmem:[%s171 + $0x19b8] sm:$0xff]
        %v1048 = vld [vmem:[%s171 + $0x19c0] sm:$0xff]
        %v1049 = vld [vmem:[%s171 + $0x19c8] sm:$0xff]
        %v1050 = vld [vmem:[%s171 + $0x19d0] sm:$0xff]
        %v1051 = vld [vmem:[%s171 + $0x19d8] sm:$0xff]
        %v1052 = vld [vmem:[%s171 + $0x19e0] sm:$0xff]
        %v1053 = vld [vmem:[%s171 + $0x19e8] sm:$0xff]
        %v1054 = vld [vmem:[%s171 + $0x19f0] sm:$0xff]
        %v1055 = vld [vmem:[%s171 + $0x19f8] sm:$0xff]
        %v1056 = vld [vmem:[%s171 + $0x1a00] sm:$0xff]
        %v1057 = vld [vmem:[%s171 + $0x1a08] sm:$0xff]
        %v1058 = vld [vmem:[%s171 + $0x1a10] sm:$0xff]
        %v1059 = vld [vmem:[%s171 + $0x1a18] sm:$0xff]
        %v1060 = vld [vmem:[%s171 + $0x1a20] sm:$0xff]
        %v1061 = vld [vmem:[%s171 + $0x1a28] sm:$0xff]
        %v1062 = vld [vmem:[%s171 + $0x1a30] sm:$0xff]
        %v1063 = vld [vmem:[%s171 + $0x1a38] sm:$0xff]
        %v1064 = vld [vmem:[%s171 + $0x1a40] sm:$0xff]
        %v1065 = vld [vmem:[%s171 + $0x1a48] sm:$0xff]
        %v1066 = vld [vmem:[%s171 + $0x1a50] sm:$0xff]
        %v1067 = vld [vmem:[%s171 + $0x1a58] sm:$0xff]
        %v1068 = vld [vmem:[%s171 + $0x1a60] sm:$0xff]
        %v1069 = vld [vmem:[%s171 + $0x1a68] sm:$0xff]
        %v1070 = vld [vmem:[%s171 + $0x1a70] sm:$0xff]
        %v1071 = vld [vmem:[%s171 + $0x1a78] sm:$0xff]
        %v1072 = vld [vmem:[%s171 + $0x1a80] sm:$0xff]
        %v1073 = vld [vmem:[%s171 + $0x1a88] sm:$0xff]
        %v1074 = vld [vmem:[%s171 + $0x1a90] sm:$0xff]
        %v1075 = vld [vmem:[%s171 + $0x1a98] sm:$0xff]
        %v1076 = vld [vmem:[%s171 + $0x1aa0] sm:$0xff]
        %v1077 = vld [vmem:[%s171 + $0x1aa8] sm:$0xff]
        %v1078 = vld [vmem:[%s171 + $0x1ab0] sm:$0xff]
        %v1079 = vld [vmem:[%s171 + $0x1ab8] sm:$0xff]
        %v1080 = vld [vmem:[%s171 + $0x1ac0] sm:$0xff]
        %v1081 = vld [vmem:[%s171 + $0x1ac8] sm:$0xff]
        %v1082 = vld [vmem:[%s171 + $0x1ad0] sm:$0xff]
        %v1083 = vld [vmem:[%s171 + $0x1ad8] sm:$0xff]
        %v1084 = vld [vmem:[%s171 + $0x1ae0] sm:$0xff]
        %v1085 = vld [vmem:[%s171 + $0x1ae8] sm:$0xff]
        %v1086 = vld [vmem:[%s171 + $0x1af0] sm:$0xff]
        %v1087 = vld [vmem:[%s171 + $0x1af8] sm:$0xff]
        %v1088 = vld [vmem:[%s171 + $0x1b00] sm:$0xff]
        %v1089 = vld [vmem:[%s171 + $0x1b08] sm:$0xff]
        %v1090 = vld [vmem:[%s171 + $0x1b10] sm:$0xff]
        %v1091 = vld [vmem:[%s171 + $0x1b18] sm:$0xff]
        %v1092 = vld [vmem:[%s171 + $0x1b20] sm:$0xff]
        %v1093 = vld [vmem:[%s171 + $0x1b28] sm:$0xff]
        %v1094 = vld [vmem:[%s171 + $0x1b30] sm:$0xff]
        %v1095 = vld [vmem:[%s171 + $0x1b38] sm:$0xff]
        %v1096 = vld [vmem:[%s171 + $0x1b40] sm:$0xff]
        %v1097 = vld [vmem:[%s171 + $0x1b48] sm:$0xff]
        %v1098 = vld [vmem:[%s171 + $0x1b50] sm:$0xff]
        %v1099 = vld [vmem:[%s171 + $0x1b58] sm:$0xff]
        %v1100 = vld [vmem:[%s171 + $0x1b60] sm:$0xff]
        %v1101 = vld [vmem:[%s171 + $0x1b68] sm:$0xff]
        %v1102 = vld [vmem:[%s171 + $0x1b70] sm:$0xff]
        %v1103 = vld [vmem:[%s171 + $0x1b78] sm:$0xff]
        %v1104 = vld [vmem:[%s171 + $0x1b80] sm:$0xff]
        %v1105 = vld [vmem:[%s171 + $0x1b88] sm:$0xff]
        %v1106 = vld [vmem:[%s171 + $0x1b90] sm:$0xff]
        %v1107 = vld [vmem:[%s171 + $0x1b98] sm:$0xff]
        %v1108 = vld [vmem:[%s171 + $0x1ba0] sm:$0xff]
        %v1109 = vld [vmem:[%s171 + $0x1ba8] sm:$0xff]
        %v1110 = vld [vmem:[%s171 + $0x1bb0] sm:$0xff]
        %v1111 = vld [vmem:[%s171 + $0x1bb8] sm:$0xff]
        %v1112 = vld [vmem:[%s171 + $0x1bc0] sm:$0xff]
        %v1113 = vld [vmem:[%s171 + $0x1bc8] sm:$0xff]
        %v1114 = vld [vmem:[%s171 + $0x1bd0] sm:$0xff]
        %v1115 = vld [vmem:[%s171 + $0x1bd8] sm:$0xff]
        %v1116 = vld [vmem:[%s171 + $0x1be0] sm:$0xff]
        %v1117 = vld [vmem:[%s171 + $0x1be8] sm:$0xff]
        %v1118 = vld [vmem:[%s171 + $0x1bf0] sm:$0xff]
        %v1119 = vld [vmem:[%s171 + $0x1bf8] sm:$0xff]
        %v1120 = vld [vmem:[%s171 + $0x1c00] sm:$0xff]
        %v1121 = vld [vmem:[%s171 + $0x1c08] sm:$0xff]
        %v1122 = vld [vmem:[%s171 + $0x1c10] sm:$0xff]
        %v1123 = vld [vmem:[%s171 + $0x1c18] sm:$0xff]
        %v1124 = vld [vmem:[%s171 + $0x1c20] sm:$0xff]
        %v1125 = vld [vmem:[%s171 + $0x1c28] sm:$0xff]
        %v1126 = vld [vmem:[%s171 + $0x1c30] sm:$0xff]
        %v1127 = vld [vmem:[%s171 + $0x1c38] sm:$0xff]
        %v1128 = vld [vmem:[%s171 + $0x1c40] sm:$0xff]
        %v1129 = vld [vmem:[%s171 + $0x1c48] sm:$0xff]
        %v1130 = vld [vmem:[%s171 + $0x1c50] sm:$0xff]
        %v1131 = vld [vmem:[%s171 + $0x1c58] sm:$0xff]
        %v1132 = vld [vmem:[%s171 + $0x1c60] sm:$0xff]
        %v1133 = vld [vmem:[%s171 + $0x1c68] sm:$0xff]
        %v1134 = vld [vmem:[%s171 + $0x1c70] sm:$0xff]
        %v1135 = vld [vmem:[%s171 + $0x1c78] sm:$0xff]
        %v1136 = vld [vmem:[%s171 + $0x1c80] sm:$0xff]
        %v1137 = vld [vmem:[%s171 + $0x1c88] sm:$0xff]
        %v1138 = vld [vmem:[%s171 + $0x1c90] sm:$0xff]
        %v1139 = vld [vmem:[%s171 + $0x1c98] sm:$0xff]
        %v1140 = vld [vmem:[%s171 + $0x1ca0] sm:$0xff]
        %v1141 = vld [vmem:[%s171 + $0x1ca8] sm:$0xff]
        %v1142 = vld [vmem:[%s171 + $0x1cb0] sm:$0xff]
        %v1143 = vld [vmem:[%s171 + $0x1cb8] sm:$0xff]
        %v1144 = vld [vmem:[%s171 + $0x1cc0] sm:$0xff]
        %v1145 = vld [vmem:[%s171 + $0x1cc8] sm:$0xff]
        %v1146 = vld [vmem:[%s171 + $0x1cd0] sm:$0xff]
        %v1147 = vld [vmem:[%s171 + $0x1cd8] sm:$0xff]
        %v1148 = vld [vmem:[%s171 + $0x1ce0] sm:$0xff]
        %v1149 = vld [vmem:[%s171 + $0x1ce8] sm:$0xff]
        %v1150 = vld [vmem:[%s171 + $0x1cf0] sm:$0xff]
        %v1151 = vld [vmem:[%s171 + $0x1cf8] sm:$0xff]
        %v1152 = vld [vmem:[%s171 + $0x1d00] sm:$0xff]
        %v1153 = vld [vmem:[%s171 + $0x1d08] sm:$0xff]
        %v1154 = vld [vmem:[%s171 + $0x1d10] sm:$0xff]
        %v1155 = vld [vmem:[%s171 + $0x1d18] sm:$0xff]
        %v1156 = vld [vmem:[%s171 + $0x1d20] sm:$0xff]
        %v1157 = vld [vmem:[%s171 + $0x1d28] sm:$0xff]
        %v1158 = vld [vmem:[%s171 + $0x1d30] sm:$0xff]
        %v1159 = vld [vmem:[%s171 + $0x1d38] sm:$0xff]
        %v1160 = vld [vmem:[%s171 + $0x1d40] sm:$0xff]
        %v1161 = vld [vmem:[%s171 + $0x1d48] sm:$0xff]
        %v1162 = vld [vmem:[%s171 + $0x1d50] sm:$0xff]
        %v1163 = vld [vmem:[%s171 + $0x1d58] sm:$0xff]
        %v1164 = vld [vmem:[%s171 + $0x1d60] sm:$0xff]
        %v1165 = vld [vmem:[%s171 + $0x1d68] sm:$0xff]
        %v1166 = vld [vmem:[%s171 + $0x1d70] sm:$0xff]
        %v1167 = vld [vmem:[%s171 + $0x1d78] sm:$0xff]
        %v1168 = vld [vmem:[%s171 + $0x1d80] sm:$0xff]
        %v1169 = vld [vmem:[%s171 + $0x1d88] sm:$0xff]
        %v1170 = vld [vmem:[%s171 + $0x1d90] sm:$0xff]
        %v1171 = vld [vmem:[%s171 + $0x1d98] sm:$0xff]
        %v1172 = vld [vmem:[%s171 + $0x1da0] sm:$0xff]
        %v1173 = vld [vmem:[%s171 + $0x1da8] sm:$0xff]
        %v1174 = vld [vmem:[%s171 + $0x1db0] sm:$0xff]
        %v1175 = vld [vmem:[%s171 + $0x1db8] sm:$0xff]
        %v1176 = vld [vmem:[%s171 + $0x1dc0] sm:$0xff]
        %v1177 = vld [vmem:[%s171 + $0x1dc8] sm:$0xff]
        %v1178 = vld [vmem:[%s171 + $0x1dd0] sm:$0xff]
        %v1179 = vld [vmem:[%s171 + $0x1dd8] sm:$0xff]
        %v1180 = vld [vmem:[%s171 + $0x1de0] sm:$0xff]
        %v1181 = vld [vmem:[%s171 + $0x1de8] sm:$0xff]
        %v1182 = vld [vmem:[%s171 + $0x1df0] sm:$0xff]
        %v1183 = vld [vmem:[%s171 + $0x1df8] sm:$0xff]
        %v1184 = vld [vmem:[%s171 + $0x1e00] sm:$0xff]
        %v1185 = vld [vmem:[%s171 + $0x1e08] sm:$0xff]
        %v1186 = vld [vmem:[%s171 + $0x1e10] sm:$0xff]
        %v1187 = vld [vmem:[%s171 + $0x1e18] sm:$0xff]
        %v1188 = vld [vmem:[%s171 + $0x1e20] sm:$0xff]
        %v1189 = vld [vmem:[%s171 + $0x1e28] sm:$0xff]
        %v1190 = vld [vmem:[%s171 + $0x1e30] sm:$0xff]
        %v1191 = vld [vmem:[%s171 + $0x1e38] sm:$0xff]
        %v1192 = vld [vmem:[%s171 + $0x1e40] sm:$0xff]
        %v1193 = vld [vmem:[%s171 + $0x1e48] sm:$0xff]
        %v1194 = vld [vmem:[%s171 + $0x1e50] sm:$0xff]
        %v1195 = vld [vmem:[%s171 + $0x1e58] sm:$0xff]
        %v1196 = vld [vmem:[%s171 + $0x1e60] sm:$0xff]
        %v1197 = vld [vmem:[%s171 + $0x1e68] sm:$0xff]
        %v1198 = vld [vmem:[%s171 + $0x1e70] sm:$0xff]
        %v1199 = vld [vmem:[%s171 + $0x1e78] sm:$0xff]
        %v1200 = vld [vmem:[%s171 + $0x1e80] sm:$0xff]
        %v1201 = vld [vmem:[%s171 + $0x1e88] sm:$0xff]
        %v1202 = vld [vmem:[%s171 + $0x1e90] sm:$0xff]
        %v1203 = vld [vmem:[%s171 + $0x1e98] sm:$0xff]
        %v1204 = vld [vmem:[%s171 + $0x1ea0] sm:$0xff]
        %v1205 = vld [vmem:[%s171 + $0x1ea8] sm:$0xff]
        %v1206 = vld [vmem:[%s171 + $0x1eb0] sm:$0xff]
        %v1207 = vld [vmem:[%s171 + $0x1eb8] sm:$0xff]
        %v1208 = vld [vmem:[%s171 + $0x1ec0] sm:$0xff]
        %v1209 = vld [vmem:[%s171 + $0x1ec8] sm:$0xff]
        %v1210 = vld [vmem:[%s171 + $0x1ed0] sm:$0xff]
        %v1211 = vld [vmem:[%s171 + $0x1ed8] sm:$0xff]
        %v1212 = vld [vmem:[%s171 + $0x1ee0] sm:$0xff]
        %v1213 = vld [vmem:[%s171 + $0x1ee8] sm:$0xff]
        %v1214 = vld [vmem:[%s171 + $0x1ef0] sm:$0xff]
        %v1215 = vld [vmem:[%s171 + $0x1ef8] sm:$0xff]
        %v1216 = vld [vmem:[%s171 + $0x1f00] sm:$0xff]
        %v1217 = vld [vmem:[%s171 + $0x1f08] sm:$0xff]
        %v1218 = vld [vmem:[%s171 + $0x1f10] sm:$0xff]
        %v1219 = vld [vmem:[%s171 + $0x1f18] sm:$0xff]
        %v1220 = vld [vmem:[%s171 + $0x1f20] sm:$0xff]
        %v1221 = vld [vmem:[%s171 + $0x1f28] sm:$0xff]
        %v1222 = vld [vmem:[%s171 + $0x1f30] sm:$0xff]
        %v1223 = vld [vmem:[%s171 + $0x1f38] sm:$0xff]
        %v1224 = vld [vmem:[%s171 + $0x1f40] sm:$0xff]
        %v1225 = vld [vmem:[%s171 + $0x1f48] sm:$0xff]
        %v1226 = vld [vmem:[%s171 + $0x1f50] sm:$0xff]
        %v1227 = vld [vmem:[%s171 + $0x1f58] sm:$0xff]
        %v1228 = vld [vmem:[%s171 + $0x1f60] sm:$0xff]
        %v1229 = vld [vmem:[%s171 + $0x1f68] sm:$0xff]
        %v1230 = vld [vmem:[%s171 + $0x1f70] sm:$0xff]
        %v1231 = vld [vmem:[%s171 + $0x1f78] sm:$0xff]
        %v1232 = vld [vmem:[%s171 + $0x1f80] sm:$0xff]
        %v1233 = vld [vmem:[%s171 + $0x1f88] sm:$0xff]
        %v1234 = vld [vmem:[%s171 + $0x1f90] sm:$0xff]
        %v1235 = vld [vmem:[%s171 + $0x1f98] sm:$0xff]
        %v1236 = vld [vmem:[%s171 + $0x1fa0] sm:$0xff]
        %v1237 = vld [vmem:[%s171 + $0x1fa8] sm:$0xff]
        %v1238 = vld [vmem:[%s171 + $0x1fb0] sm:$0xff]
        %v1239 = vld [vmem:[%s171 + $0x1fb8] sm:$0xff]
        %v1240 = vld [vmem:[%s171 + $0x1fc0] sm:$0xff]
        %v1241 = vld [vmem:[%s171 + $0x1fc8] sm:$0xff]
        %v1242 = vld [vmem:[%s171 + $0x1fd0] sm:$0xff]
        %v1243 = vld [vmem:[%s171 + $0x1fd8] sm:$0xff]
        %v1244 = vld [vmem:[%s171 + $0x1fe0] sm:$0xff]
        %v1245 = vld [vmem:[%s171 + $0x1fe8] sm:$0xff]
        %v1246 = vld [vmem:[%s171 + $0x1ff0] sm:$0xff]
        %v1247 = vld [vmem:[%s171 + $0x1ff8] sm:$0xff]
        %v1248 = vld [vmem:[%s171 + $0x2000] sm:$0xff]
        %v1249 = vld [vmem:[%s171 + $0x2008] sm:$0xff]
        %v1250 = vld [vmem:[%s171 + $0x2010] sm:$0xff]
        %v1251 = vld [vmem:[%s171 + $0x2018] sm:$0xff]
        %v1252 = vld [vmem:[%s171 + $0x2020] sm:$0xff]
        %v1253 = vld [vmem:[%s171 + $0x2028] sm:$0xff]
        %v1254 = vld [vmem:[%s171 + $0x2030] sm:$0xff]
        %v1255 = vld [vmem:[%s171 + $0x2038] sm:$0xff]
        %v1256 = vld [vmem:[%s171 + $0x2040] sm:$0xff]
        %v1257 = vld [vmem:[%s171 + $0x2048] sm:$0xff]
        %v1258 = vld [vmem:[%s171 + $0x2050] sm:$0xff]
        %v1259 = vld [vmem:[%s171 + $0x2058] sm:$0xff]
        %v1260 = vld [vmem:[%s171 + $0x2060] sm:$0xff]
        %v1261 = vld [vmem:[%s171 + $0x2068] sm:$0xff]
        %v1262 = vld [vmem:[%s171 + $0x2070] sm:$0xff]
        %v1263 = vld [vmem:[%s171 + $0x2078] sm:$0xff]
        %v1264 = vld [vmem:[%s171 + $0x2080] sm:$0xff]
        %v1265 = vld [vmem:[%s171 + $0x2088] sm:$0xff]
        %v1266 = vld [vmem:[%s171 + $0x2090] sm:$0xff]
        %v1267 = vld [vmem:[%s171 + $0x2098] sm:$0xff]
        %v1268 = vld [vmem:[%s171 + $0x20a0] sm:$0xff]
        %v1269 = vld [vmem:[%s171 + $0x20a8] sm:$0xff]
        %v1270 = vld [vmem:[%s171 + $0x20b0] sm:$0xff]
        %v1271 = vld [vmem:[%s171 + $0x20b8] sm:$0xff]
        %v1272 = vld [vmem:[%s171 + $0x20c0] sm:$0xff]
        %v1273 = vld [vmem:[%s171 + $0x20c8] sm:$0xff]
        %v1274 = vld [vmem:[%s171 + $0x20d0] sm:$0xff]
        %v1275 = vld [vmem:[%s171 + $0x20d8] sm:$0xff]
        %v1276 = vld [vmem:[%s171 + $0x20e0] sm:$0xff]
        %v1277 = vld [vmem:[%s171 + $0x20e8] sm:$0xff]
        %v1278 = vld [vmem:[%s171 + $0x20f0] sm:$0xff]
        %v1279 = vld [vmem:[%s171 + $0x20f8] sm:$0xff]
        %v1280 = vld [vmem:[%s171 + $0x2100] sm:$0xff]
        %v1281 = vld [vmem:[%s171 + $0x2108] sm:$0xff]
        %v1282 = vld [vmem:[%s171 + $0x2110] sm:$0xff]
        %v1283 = vld [vmem:[%s171 + $0x2118] sm:$0xff]
        %v1284 = vld [vmem:[%s171 + $0x2120] sm:$0xff]
        %v1285 = vld [vmem:[%s171 + $0x2128] sm:$0xff]
        %v1286 = vld [vmem:[%s171 + $0x2130] sm:$0xff]
        %v1287 = vld [vmem:[%s171 + $0x2138] sm:$0xff]
        %v1288 = vld [vmem:[%s171 + $0x2140] sm:$0xff]
        %v1289 = vld [vmem:[%s171 + $0x2148] sm:$0xff]
        %v1290 = vld [vmem:[%s171 + $0x2150] sm:$0xff]
        %v1291 = vld [vmem:[%s171 + $0x2158] sm:$0xff]
        %v1292 = vld [vmem:[%s171 + $0x2160] sm:$0xff]
        %v1293 = vld [vmem:[%s171 + $0x2168] sm:$0xff]
        %v1294 = vld [vmem:[%s171 + $0x2170] sm:$0xff]
        %v1295 = vld [vmem:[%s171 + $0x2178] sm:$0xff]
        %v1296 = vld [vmem:[%s171 + $0x2180] sm:$0xff]
        %v1297 = vld [vmem:[%s171 + $0x2188] sm:$0xff]
        %v1298 = vld [vmem:[%s171 + $0x2190] sm:$0xff]
        %v1299 = vld [vmem:[%s171 + $0x2198] sm:$0xff]
        %v1300 = vld [vmem:[%s171 + $0x21a0] sm:$0xff]
        %v1301 = vld [vmem:[%s171 + $0x21a8] sm:$0xff]
        %v1302 = vld [vmem:[%s171 + $0x21b0] sm:$0xff]
        %v1303 = vld [vmem:[%s171 + $0x21b8] sm:$0xff]
        %v1304 = vld [vmem:[%s171 + $0x21c0] sm:$0xff]
        %v1305 = vld [vmem:[%s171 + $0x21c8] sm:$0xff]
        %v1306 = vld [vmem:[%s171 + $0x21d0] sm:$0xff]
        %v1307 = vld [vmem:[%s171 + $0x21d8] sm:$0xff]
        %v1308 = vld [vmem:[%s171 + $0x21e0] sm:$0xff]
        %v1309 = vld [vmem:[%s171 + $0x21e8] sm:$0xff]
        %v1310 = vld [vmem:[%s171 + $0x21f0] sm:$0xff]
        %v1311 = vld [vmem:[%s171 + $0x21f8] sm:$0xff]
        %v1312 = vld [vmem:[%s171 + $0x2200] sm:$0xff]
        %v1313 = vld [vmem:[%s171 + $0x2208] sm:$0xff]
        %v1314 = vld [vmem:[%s171 + $0x2210] sm:$0xff]
        %v1315 = vld [vmem:[%s171 + $0x2218] sm:$0xff]
        %v1316 = vld [vmem:[%s171 + $0x2220] sm:$0xff]
        %v1317 = vld [vmem:[%s171 + $0x2228] sm:$0xff]
        %v1318 = vld [vmem:[%s171 + $0x2230] sm:$0xff]
        %v1319 = vld [vmem:[%s171 + $0x2238] sm:$0xff]
        %v1320 = vld [vmem:[%s171 + $0x2240] sm:$0xff]
        %v1321 = vld [vmem:[%s171 + $0x2248] sm:$0xff]
        %v1322 = vld [vmem:[%s171 + $0x2250] sm:$0xff]
        %v1323 = vld [vmem:[%s171 + $0x2258] sm:$0xff]
        %v1324 = vld [vmem:[%s171 + $0x2260] sm:$0xff]
        %v1325 = vld [vmem:[%s171 + $0x2268] sm:$0xff]
        %v1326 = vld [vmem:[%s171 + $0x2270] sm:$0xff]
        %v1327 = vld [vmem:[%s171 + $0x2278] sm:$0xff]
        %v1328 = vld [vmem:[%s171 + $0x2280] sm:$0xff]
        %v1329 = vld [vmem:[%s171 + $0x2288] sm:$0xff]
        %v1330 = vld [vmem:[%s171 + $0x2290] sm:$0xff]
        %v1331 = vld [vmem:[%s171 + $0x2298] sm:$0xff]
        %v1332 = vld [vmem:[%s171 + $0x22a0] sm:$0xff]
        %v1333 = vld [vmem:[%s171 + $0x22a8] sm:$0xff]
        %v1334 = vld [vmem:[%s171 + $0x22b0] sm:$0xff]
        %v1335 = vld [vmem:[%s171 + $0x22b8] sm:$0xff]
        %v1336 = vld [vmem:[%s171 + $0x22c0] sm:$0xff]
        %v1337 = vld [vmem:[%s171 + $0x22c8] sm:$0xff]
        %v1338 = vld [vmem:[%s171 + $0x22d0] sm:$0xff]
        %v1339 = vld [vmem:[%s171 + $0x22d8] sm:$0xff]
        %v1340 = vld [vmem:[%s171 + $0x22e0] sm:$0xff]
        %v1341 = vld [vmem:[%s171 + $0x22e8] sm:$0xff]
        %v1342 = vld [vmem:[%s171 + $0x22f0] sm:$0xff]
        %v1343 = vld [vmem:[%s171 + $0x22f8] sm:$0xff]
        %v1344 = vld [vmem:[%s171 + $0x2300] sm:$0xff]
        %v1345 = vld [vmem:[%s171 + $0x2308] sm:$0xff]
        %v1346 = vld [vmem:[%s171 + $0x2310] sm:$0xff]
        %v1347 = vld [vmem:[%s171 + $0x2318] sm:$0xff]
        %v1348 = vld [vmem:[%s171 + $0x2320] sm:$0xff]
        %v1349 = vld [vmem:[%s171 + $0x2328] sm:$0xff]
        %v1350 = vld [vmem:[%s171 + $0x2330] sm:$0xff]
        %v1351 = vld [vmem:[%s171 + $0x2338] sm:$0xff]
        %v1352 = vld [vmem:[%s171 + $0x2340] sm:$0xff]
        %v1353 = vld [vmem:[%s171 + $0x2348] sm:$0xff]
        %v1354 = vld [vmem:[%s171 + $0x2350] sm:$0xff]
        %v1355 = vld [vmem:[%s171 + $0x2358] sm:$0xff]
        %v1356 = vld [vmem:[%s171 + $0x2360] sm:$0xff]
        %v1357 = vld [vmem:[%s171 + $0x2368] sm:$0xff]
        %v1358 = vld [vmem:[%s171 + $0x2370] sm:$0xff]
        %v1359 = vld [vmem:[%s171 + $0x2378] sm:$0xff]
        %v1360 = vld [vmem:[%s171 + $0x2380] sm:$0xff]
        %v1361 = vld [vmem:[%s171 + $0x2388] sm:$0xff]
        %v1362 = vld [vmem:[%s171 + $0x2390] sm:$0xff]
        %v1363 = vld [vmem:[%s171 + $0x2398] sm:$0xff]
        %v1364 = vld [vmem:[%s171 + $0x23a0] sm:$0xff]
        %v1365 = vld [vmem:[%s171 + $0x23a8] sm:$0xff]
        %v1366 = vld [vmem:[%s171 + $0x23b0] sm:$0xff]
        %v1367 = vld [vmem:[%s171 + $0x23b8] sm:$0xff]
        %v1368 = vld [vmem:[%s171 + $0x23c0] sm:$0xff]
        %v1369 = vld [vmem:[%s171 + $0x23c8] sm:$0xff]
        %v1370 = vld [vmem:[%s171 + $0x23d0] sm:$0xff]
        %v1371 = vld [vmem:[%s171 + $0x23d8] sm:$0xff]
        %v1372 = vld [vmem:[%s171 + $0x23e0] sm:$0xff]
        %v1373 = vld [vmem:[%s171 + $0x23e8] sm:$0xff]
        %v1374 = vld [vmem:[%s171 + $0x23f0] sm:$0xff]
        %v1375 = vld [vmem:[%s171 + $0x23f8] sm:$0xff]
        %v1376 = vld [vmem:[%s171 + $0x2400] sm:$0xff]
        %v1377 = vld [vmem:[%s171 + $0x2408] sm:$0xff]
        %v1378 = vld [vmem:[%s171 + $0x2410] sm:$0xff]
        %v1379 = vld [vmem:[%s171 + $0x2418] sm:$0xff]
        %v1380 = vld [vmem:[%s171 + $0x2420] sm:$0xff]
        %v1381 = vld [vmem:[%s171 + $0x2428] sm:$0xff]
        %v1382 = vld [vmem:[%s171 + $0x2430] sm:$0xff]
        %v1383 = vld [vmem:[%s171 + $0x2438] sm:$0xff]
        %v1384 = vld [vmem:[%s171 + $0x2440] sm:$0xff]
        %v1385 = vld [vmem:[%s171 + $0x2448] sm:$0xff]
        %v1386 = vld [vmem:[%s171 + $0x2450] sm:$0xff]
        %v1387 = vld [vmem:[%s171 + $0x2458] sm:$0xff]
        %v1388 = vld [vmem:[%s171 + $0x2460] sm:$0xff]
        %v1389 = vld [vmem:[%s171 + $0x2468] sm:$0xff]
        %v1390 = vld [vmem:[%s171 + $0x2470] sm:$0xff]
        %v1391 = vld [vmem:[%s171 + $0x2478] sm:$0xff]
        %v1392 = vld [vmem:[%s171 + $0x2480] sm:$0xff]
        %v1393 = vld [vmem:[%s171 + $0x2488] sm:$0xff]
        %v1394 = vld [vmem:[%s171 + $0x2490] sm:$0xff]
        %v1395 = vld [vmem:[%s171 + $0x2498] sm:$0xff]
        %v1396 = vld [vmem:[%s171 + $0x24a0] sm:$0xff]
        %v1397 = vld [vmem:[%s171 + $0x24a8] sm:$0xff]
        %v1398 = vld [vmem:[%s171 + $0x24b0] sm:$0xff]
        %v1399 = vld [vmem:[%s171 + $0x24b8] sm:$0xff]
        %v1400 = vld [vmem:[%s171 + $0x24c0] sm:$0xff]
        %v1401 = vld [vmem:[%s171 + $0x24c8] sm:$0xff]
        %v1402 = vld [vmem:[%s171 + $0x24d0] sm:$0xff]
        %v1403 = vld [vmem:[%s171 + $0x24d8] sm:$0xff]
        %v1404 = vld [vmem:[%s171 + $0x24e0] sm:$0xff]
        %v1405 = vld [vmem:[%s171 + $0x24e8] sm:$0xff]
        %v1406 = vld [vmem:[%s171 + $0x24f0] sm:$0xff]
        %v1407 = vld [vmem:[%s171 + $0x24f8] sm:$0xff]
        %v1408 = vld [vmem:[%s171 + $0x2500] sm:$0xff]
        %v1409 = vld [vmem:[%s171 + $0x2508] sm:$0xff]
        %v1410 = vld [vmem:[%s171 + $0x2510] sm:$0xff]
        %v1411 = vld [vmem:[%s171 + $0x2518] sm:$0xff]
        %v1412 = vld [vmem:[%s171 + $0x2520] sm:$0xff]
        %v1413 = vld [vmem:[%s171 + $0x2528] sm:$0xff]
        %v1414 = vld [vmem:[%s171 + $0x2530] sm:$0xff]
        %v1415 = vld [vmem:[%s171 + $0x2538] sm:$0xff]
        %v1416 = vld [vmem:[%s171 + $0x2540] sm:$0xff]
        %v1417 = vld [vmem:[%s171 + $0x2548] sm:$0xff]
        %v1418 = vld [vmem:[%s171 + $0x2550] sm:$0xff]
        %v1419 = vld [vmem:[%s171 + $0x2558] sm:$0xff]
        %v1420 = vld [vmem:[%s171 + $0x2560] sm:$0xff]
        %v1421 = vld [vmem:[%s171 + $0x2568] sm:$0xff]
        %v1422 = vld [vmem:[%s171 + $0x2570] sm:$0xff]
        %v1423 = vld [vmem:[%s171 + $0x2578] sm:$0xff]
        %v1424 = vld [vmem:[%s171 + $0x2580] sm:$0xff]
        %v1425 = vld [vmem:[%s171 + $0x2588] sm:$0xff]
        %v1426 = vld [vmem:[%s171 + $0x2590] sm:$0xff]
        %v1427 = vld [vmem:[%s171 + $0x2598] sm:$0xff]
        %v1428 = vld [vmem:[%s171 + $0x25a0] sm:$0xff]
        %v1429 = vld [vmem:[%s171 + $0x25a8] sm:$0xff]
        %v1430 = vld [vmem:[%s171 + $0x25b0] sm:$0xff]
        %v1431 = vld [vmem:[%s171 + $0x25b8] sm:$0xff]
        %v1432 = vld [vmem:[%s171 + $0x25c0] sm:$0xff]
        %v1433 = vld [vmem:[%s171 + $0x25c8] sm:$0xff]
        %v1434 = vld [vmem:[%s171 + $0x25d0] sm:$0xff]
        %v1435 = vld [vmem:[%s171 + $0x25d8] sm:$0xff]
        %v1436 = vld [vmem:[%s171 + $0x25e0] sm:$0xff]
        %v1437 = vld [vmem:[%s171 + $0x25e8] sm:$0xff]
        %v1438 = vld [vmem:[%s171 + $0x25f0] sm:$0xff]
        %v1439 = vld [vmem:[%s171 + $0x25f8] sm:$0xff]
        %v1440 = vld [vmem:[%s171 + $0x2600] sm:$0xff]
        %v1441 = vld [vmem:[%s171 + $0x2608] sm:$0xff]
        %v1442 = vld [vmem:[%s171 + $0x2610] sm:$0xff]
        %v1443 = vld [vmem:[%s171 + $0x2618] sm:$0xff]
        %v1444 = vld [vmem:[%s171 + $0x2620] sm:$0xff]
        %v1445 = vld [vmem:[%s171 + $0x2628] sm:$0xff]
        %v1446 = vld [vmem:[%s171 + $0x2630] sm:$0xff]
        %v1447 = vld [vmem:[%s171 + $0x2638] sm:$0xff]
        %v1448 = vld [vmem:[%s171 + $0x2640] sm:$0xff]
        %v1449 = vld [vmem:[%s171 + $0x2648] sm:$0xff]
        %v1450 = vld [vmem:[%s171 + $0x2650] sm:$0xff]
        %v1451 = vld [vmem:[%s171 + $0x2658] sm:$0xff]
        %v1452 = vld [vmem:[%s171 + $0x2660] sm:$0xff]
        %v1453 = vld [vmem:[%s171 + $0x2668] sm:$0xff]
        %v1454 = vld [vmem:[%s171 + $0x2670] sm:$0xff]
        %v1455 = vld [vmem:[%s171 + $0x2678] sm:$0xff]
        %v1456 = vld [vmem:[%s171 + $0x2680] sm:$0xff]
        %v1457 = vld [vmem:[%s171 + $0x2688] sm:$0xff]
        %v1458 = vld [vmem:[%s171 + $0x2690] sm:$0xff]
        %v1459 = vld [vmem:[%s171 + $0x2698] sm:$0xff]
        %v1460 = vld [vmem:[%s171 + $0x26a0] sm:$0xff]
        %v1461 = vld [vmem:[%s171 + $0x26a8] sm:$0xff]
        %v1462 = vld [vmem:[%s171 + $0x26b0] sm:$0xff]
        %v1463 = vld [vmem:[%s171 + $0x26b8] sm:$0xff]
        %v1464 = vld [vmem:[%s171 + $0x26c0] sm:$0xff]
        %v1465 = vld [vmem:[%s171 + $0x26c8] sm:$0xff]
        %v1466 = vld [vmem:[%s171 + $0x26d0] sm:$0xff]
        %v1467 = vld [vmem:[%s171 + $0x26d8] sm:$0xff]
        %v1468 = vld [vmem:[%s171 + $0x26e0] sm:$0xff]
        %v1469 = vld [vmem:[%s171 + $0x26e8] sm:$0xff]
        %v1470 = vld [vmem:[%s171 + $0x26f0] sm:$0xff]
        %v1471 = vld [vmem:[%s171 + $0x26f8] sm:$0xff]
        %v1472 = vld [vmem:[%s171 + $0x2700] sm:$0xff]
        %v1473 = vld [vmem:[%s171 + $0x2708] sm:$0xff]
        %v1474 = vld [vmem:[%s171 + $0x2710] sm:$0xff]
        %v1475 = vld [vmem:[%s171 + $0x2718] sm:$0xff]
        %v1476 = vld [vmem:[%s171 + $0x2720] sm:$0xff]
        %v1477 = vld [vmem:[%s171 + $0x2728] sm:$0xff]
        %v1478 = vld [vmem:[%s171 + $0x2730] sm:$0xff]
        %v1479 = vld [vmem:[%s171 + $0x2738] sm:$0xff]
        %v1480 = vld [vmem:[%s171 + $0x2740] sm:$0xff]
        %v1481 = vld [vmem:[%s171 + $0x2748] sm:$0xff]
        %v1482 = vld [vmem:[%s171 + $0x2750] sm:$0xff]
        %v1483 = vld [vmem:[%s171 + $0x2758] sm:$0xff]
        %v1484 = vld [vmem:[%s171 + $0x2760] sm:$0xff]
        %v1485 = vld [vmem:[%s171 + $0x2768] sm:$0xff]
        %v1486 = vld [vmem:[%s171 + $0x2770] sm:$0xff]
        %v1487 = vld [vmem:[%s171 + $0x2778] sm:$0xff]
        %v1488 = vld [vmem:[%s171 + $0x2780] sm:$0xff]
        %v1489 = vld [vmem:[%s171 + $0x2788] sm:$0xff]
        %v1490 = vld [vmem:[%s171 + $0x2790] sm:$0xff]
        %v1491 = vld [vmem:[%s171 + $0x2798] sm:$0xff]
        %v1492 = vld [vmem:[%s171 + $0x27a0] sm:$0xff]
        %v1493 = vld [vmem:[%s171 + $0x27a8] sm:$0xff]
        %v1494 = vld [vmem:[%s171 + $0x27b0] sm:$0xff]
        %v1495 = vld [vmem:[%s171 + $0x27b8] sm:$0xff]
        %v1496 = vld [vmem:[%s171 + $0x27c0] sm:$0xff]
        %v1497 = vld [vmem:[%s171 + $0x27c8] sm:$0xff]
        %v1498 = vld [vmem:[%s171 + $0x27d0] sm:$0xff]
        %v1499 = vld [vmem:[%s171 + $0x27d8] sm:$0xff]
        %v1500 = vld [vmem:[%s171 + $0x27e0] sm:$0xff]
        %v1501 = vld [vmem:[%s171 + $0x27e8] sm:$0xff]
        %v1502 = vld [vmem:[%s171 + $0x27f0] sm:$0xff]
        %v1503 = vld [vmem:[%s171 + $0x27f8] sm:$0xff]
        %v1504 = vld [vmem:[%s171 + $0x2800] sm:$0xff]
        %v1505 = vld [vmem:[%s171 + $0x2808] sm:$0xff]
        %v1506 = vld [vmem:[%s171 + $0x2810] sm:$0xff]
        %v1507 = vld [vmem:[%s171 + $0x2818] sm:$0xff]
        %v1508 = vld [vmem:[%s171 + $0x2820] sm:$0xff]
        %v1509 = vld [vmem:[%s171 + $0x2828] sm:$0xff]
        %v1510 = vld [vmem:[%s171 + $0x2830] sm:$0xff]
        %v1511 = vld [vmem:[%s171 + $0x2838] sm:$0xff]
        %v1512 = vld [vmem:[%s171 + $0x2840] sm:$0xff]
        %v1513 = vld [vmem:[%s171 + $0x2848] sm:$0xff]
        %v1514 = vld [vmem:[%s171 + $0x2850] sm:$0xff]
        %v1515 = vld [vmem:[%s171 + $0x2858] sm:$0xff]
        %v1516 = vld [vmem:[%s171 + $0x2860] sm:$0xff]
        %v1517 = vld [vmem:[%s171 + $0x2868] sm:$0xff]
        %v1518 = vld [vmem:[%s171 + $0x2870] sm:$0xff]
        %v1519 = vld [vmem:[%s171 + $0x2878] sm:$0xff]
        %v1520 = vld [vmem:[%s171 + $0x2880] sm:$0xff]
        %v1521 = vld [vmem:[%s171 + $0x2888] sm:$0xff]
        %v1522 = vld [vmem:[%s171 + $0x2890] sm:$0xff]
        %v1523 = vld [vmem:[%s171 + $0x2898] sm:$0xff]
        %v1524 = vld [vmem:[%s171 + $0x28a0] sm:$0xff]
        %v1525 = vld [vmem:[%s171 + $0x28a8] sm:$0xff]
        %v1526 = vld [vmem:[%s171 + $0x28b0] sm:$0xff]
        %v1527 = vld [vmem:[%s171 + $0x28b8] sm:$0xff]
        %v1528 = vld [vmem:[%s171 + $0x28c0] sm:$0xff]
        %v1529 = vld [vmem:[%s171 + $0x28c8] sm:$0xff]
        %v1530 = vld [vmem:[%s171 + $0x28d0] sm:$0xff]
        %v1531 = vld [vmem:[%s171 + $0x28d8] sm:$0xff]
        %v1532 = vld [vmem:[%s171 + $0x28e0] sm:$0xff]
        %v1533 = vld [vmem:[%s171 + $0x28e8] sm:$0xff]
        %v1534 = vld [vmem:[%s171 + $0x28f0] sm:$0xff]
        %v1535 = vld [vmem:[%s171 + $0x28f8] sm:$0xff]
        %v1536 = vld [vmem:[%s171 + $0x2900] sm:$0xff]
        %v1537 = vld [vmem:[%s171 + $0x2908] sm:$0xff]
        %v1538 = vld [vmem:[%s171 + $0x2910] sm:$0xff]
        %v1539 = vld [vmem:[%s171 + $0x2918] sm:$0xff]
        %v1540 = vld [vmem:[%s171 + $0x2920] sm:$0xff]
        %v1541 = vld [vmem:[%s171 + $0x2928] sm:$0xff]
        %v1542 = vld [vmem:[%s171 + $0x2930] sm:$0xff]
        %v1543 = vld [vmem:[%s171 + $0x2938] sm:$0xff]
        %v1544 = vld [vmem:[%s171 + $0x2940] sm:$0xff]
        %v1545 = vld [vmem:[%s171 + $0x2948] sm:$0xff]
        %v1546 = vld [vmem:[%s171 + $0x2950] sm:$0xff]
        %v1547 = vld [vmem:[%s171 + $0x2958] sm:$0xff]
        %v1548 = vld [vmem:[%s171 + $0x2960] sm:$0xff]
        %v1549 = vld [vmem:[%s171 + $0x2968] sm:$0xff]
        %v1550 = vld [vmem:[%s171 + $0x2970] sm:$0xff]
        %v1551 = vld [vmem:[%s171 + $0x2978] sm:$0xff]
        %v1552 = vld [vmem:[%s171 + $0x2980] sm:$0xff]
        %v1553 = vld [vmem:[%s171 + $0x2988] sm:$0xff]
        %v1554 = vld [vmem:[%s171 + $0x2990] sm:$0xff]
        %v1555 = vld [vmem:[%s171 + $0x2998] sm:$0xff]
        %v1556 = vld [vmem:[%s171 + $0x29a0] sm:$0xff]
        %v1557 = vld [vmem:[%s171 + $0x29a8] sm:$0xff]
        %v1558 = vld [vmem:[%s171 + $0x29b0] sm:$0xff]
        %v1559 = vld [vmem:[%s171 + $0x29b8] sm:$0xff]
        %v1560 = vld [vmem:[%s171 + $0x29c0] sm:$0xff]
        %v1561 = vld [vmem:[%s171 + $0x29c8] sm:$0xff]
        %v1562 = vld [vmem:[%s171 + $0x29d0] sm:$0xff]
        %v1563 = vld [vmem:[%s171 + $0x29d8] sm:$0xff]
        %v1564 = vld [vmem:[%s171 + $0x29e0] sm:$0xff]
        %v1565 = vld [vmem:[%s171 + $0x29e8] sm:$0xff]
        %v1566 = vld [vmem:[%s171 + $0x29f0] sm:$0xff]
        %v1567 = vld [vmem:[%s171 + $0x29f8] sm:$0xff]
        %v1568 = vld [vmem:[%s171 + $0x2a00] sm:$0xff]
        %v1569 = vld [vmem:[%s171 + $0x2a08] sm:$0xff]
        %v1570 = vld [vmem:[%s171 + $0x2a10] sm:$0xff]
        %v1571 = vld [vmem:[%s171 + $0x2a18] sm:$0xff]
        %v1572 = vld [vmem:[%s171 + $0x2a20] sm:$0xff]
        %v1573 = vld [vmem:[%s171 + $0x2a28] sm:$0xff]
        %v1574 = vld [vmem:[%s171 + $0x2a30] sm:$0xff]
        %v1575 = vld [vmem:[%s171 + $0x2a38] sm:$0xff]
        %v1576 = vld [vmem:[%s171 + $0x2a40] sm:$0xff]
        %v1577 = vld [vmem:[%s171 + $0x2a48] sm:$0xff]
        %v1578 = vld [vmem:[%s171 + $0x2a50] sm:$0xff]
        %v1579 = vld [vmem:[%s171 + $0x2a58] sm:$0xff]
        %v1580 = vld [vmem:[%s171 + $0x2a60] sm:$0xff]
        %v1581 = vld [vmem:[%s171 + $0x2a68] sm:$0xff]
        %v1582 = vld [vmem:[%s171 + $0x2a70] sm:$0xff]
        %v1583 = vld [vmem:[%s171 + $0x2a78] sm:$0xff]
        %v1584 = vld [vmem:[%s171 + $0x2a80] sm:$0xff]
        %v1585 = vld [vmem:[%s171 + $0x2a88] sm:$0xff]
        %v1586 = vld [vmem:[%s171 + $0x2a90] sm:$0xff]
        %v1587 = vld [vmem:[%s171 + $0x2a98] sm:$0xff]
        %v1588 = vld [vmem:[%s171 + $0x2aa0] sm:$0xff]
        %v1589 = vld [vmem:[%s171 + $0x2aa8] sm:$0xff]
        %v1590 = vld [vmem:[%s171 + $0x2ab0] sm:$0xff]
        %v1591 = vld [vmem:[%s171 + $0x2ab8] sm:$0xff]
        %v1592 = vld [vmem:[%s171 + $0x2ac0] sm:$0xff]
        %v1593 = vld [vmem:[%s171 + $0x2ac8] sm:$0xff]
        %v1594 = vld [vmem:[%s171 + $0x2ad0] sm:$0xff]
        %v1595 = vld [vmem:[%s171 + $0x2ad8] sm:$0xff]
        %v1596 = vld [vmem:[%s171 + $0x2ae0] sm:$0xff]
        %v1597 = vld [vmem:[%s171 + $0x2ae8] sm:$0xff]
        %v1598 = vld [vmem:[%s171 + $0x2af0] sm:$0xff]
        %v1599 = vld [vmem:[%s171 + $0x2af8] sm:$0xff]
        %v1600 = vld [vmem:[%s171 + $0x2b00] sm:$0xff]
        %v1601 = vld [vmem:[%s171 + $0x2b08] sm:$0xff]
        %v1602 = vld [vmem:[%s171 + $0x2b10] sm:$0xff]
        %v1603 = vld [vmem:[%s171 + $0x2b18] sm:$0xff]
        %v1604 = vld [vmem:[%s171 + $0x2b20] sm:$0xff]
        %v1605 = vld [vmem:[%s171 + $0x2b28] sm:$0xff]
        %v1606 = vld [vmem:[%s171 + $0x2b30] sm:$0xff]
        %v1607 = vld [vmem:[%s171 + $0x2b38] sm:$0xff]
        %v1608 = vld [vmem:[%s171 + $0x2b40] sm:$0xff]
        %v1609 = vld [vmem:[%s171 + $0x2b48] sm:$0xff]
        %v1610 = vld [vmem:[%s171 + $0x2b50] sm:$0xff]
        %v1611 = vld [vmem:[%s171 + $0x2b58] sm:$0xff]
        %v1612 = vld [vmem:[%s171 + $0x2b60] sm:$0xff]
        %v1613 = vld [vmem:[%s171 + $0x2b68] sm:$0xff]
        %v1614 = vld [vmem:[%s171 + $0x2b70] sm:$0xff]
        %v1615 = vld [vmem:[%s171 + $0x2b78] sm:$0xff]
        %v1616 = vld [vmem:[%s171 + $0x2b80] sm:$0xff]
        %v1617 = vld [vmem:[%s171 + $0x2b88] sm:$0xff]
        %v1618 = vld [vmem:[%s171 + $0x2b90] sm:$0xff]
        %v1619 = vld [vmem:[%s171 + $0x2b98] sm:$0xff]
        %v1620 = vld [vmem:[%s171 + $0x2ba0] sm:$0xff]
        %v1621 = vld [vmem:[%s171 + $0x2ba8] sm:$0xff]
        %v1622 = vld [vmem:[%s171 + $0x2bb0] sm:$0xff]
        %v1623 = vld [vmem:[%s171 + $0x2bb8] sm:$0xff]
        %v1624 = vld [vmem:[%s171 + $0x2bc0] sm:$0xff]
        %v1625 = vld [vmem:[%s171 + $0x2bc8] sm:$0xff]
        %v1626 = vld [vmem:[%s171 + $0x2bd0] sm:$0xff]
        %v1627 = vld [vmem:[%s171 + $0x2bd8] sm:$0xff]
        %v1628 = vld [vmem:[%s171 + $0x2be0] sm:$0xff]
        %v1629 = vld [vmem:[%s171 + $0x2be8] sm:$0xff]
        %v1630 = vld [vmem:[%s171 + $0x2bf0] sm:$0xff]
        %v1631 = vld [vmem:[%s171 + $0x2bf8] sm:$0xff]
        %v1632 = vld [vmem:[%s171 + $0x2c00] sm:$0xff]
        %v1633 = vld [vmem:[%s171 + $0x2c08] sm:$0xff]
        %v1634 = vld [vmem:[%s171 + $0x2c10] sm:$0xff]
        %v1635 = vld [vmem:[%s171 + $0x2c18] sm:$0xff]
        %v1636 = vld [vmem:[%s171 + $0x2c20] sm:$0xff]
        %v1637 = vld [vmem:[%s171 + $0x2c28] sm:$0xff]
        %v1638 = vld [vmem:[%s171 + $0x2c30] sm:$0xff]
        %v1639 = vld [vmem:[%s171 + $0x2c38] sm:$0xff]
        %v1640 = vld [vmem:[%s171 + $0x2c40] sm:$0xff]
        %v1641 = vld [vmem:[%s171 + $0x2c48] sm:$0xff]
        %v1642 = vld [vmem:[%s171 + $0x2c50] sm:$0xff]
        %v1643 = vld [vmem:[%s171 + $0x2c58] sm:$0xff]
        %v1644 = vld [vmem:[%s171 + $0x2c60] sm:$0xff]
        %v1645 = vld [vmem:[%s171 + $0x2c68] sm:$0xff]
        %v1646 = vld [vmem:[%s171 + $0x2c70] sm:$0xff]
        %v1647 = vld [vmem:[%s171 + $0x2c78] sm:$0xff]
        %v1648 = vld [vmem:[%s171 + $0x2c80] sm:$0xff]
        %v1649 = vld [vmem:[%s171 + $0x2c88] sm:$0xff]
        %v1650 = vld [vmem:[%s171 + $0x2c90] sm:$0xff]
        %v1651 = vld [vmem:[%s171 + $0x2c98] sm:$0xff]
        %v1652 = vld [vmem:[%s171 + $0x2ca0] sm:$0xff]
        %v1653 = vld [vmem:[%s171 + $0x2ca8] sm:$0xff]
        %v1654 = vld [vmem:[%s171 + $0x2cb0] sm:$0xff]
        %v1655 = vld [vmem:[%s171 + $0x2cb8] sm:$0xff]
        %v1656 = vld [vmem:[%s171 + $0x2cc0] sm:$0xff]
        %v1657 = vld [vmem:[%s171 + $0x2cc8] sm:$0xff]
        %v1658 = vld [vmem:[%s171 + $0x2cd0] sm:$0xff]
        %v1659 = vld [vmem:[%s171 + $0x2cd8] sm:$0xff]
        %v1660 = vld [vmem:[%s171 + $0x2ce0] sm:$0xff]
        %v1661 = vld [vmem:[%s171 + $0x2ce8] sm:$0xff]
        %v1662 = vld [vmem:[%s171 + $0x2cf0] sm:$0xff]
        %v1663 = vld [vmem:[%s171 + $0x2cf8] sm:$0xff]
        %v1664 = vld [vmem:[%s171 + $0x2d00] sm:$0xff]
        %v1665 = vld [vmem:[%s171 + $0x2d08] sm:$0xff]
        %v1666 = vld [vmem:[%s171 + $0x2d10] sm:$0xff]
        %v1667 = vld [vmem:[%s171 + $0x2d18] sm:$0xff]
        %v1668 = vld [vmem:[%s171 + $0x2d20] sm:$0xff]
        %v1669 = vld [vmem:[%s171 + $0x2d28] sm:$0xff]
        %v1670 = vld [vmem:[%s171 + $0x2d30] sm:$0xff]
        %v1671 = vld [vmem:[%s171 + $0x2d38] sm:$0xff]
        %v1672 = vld [vmem:[%s171 + $0x2d40] sm:$0xff]
        %v1673 = vld [vmem:[%s171 + $0x2d48] sm:$0xff]
        %v1674 = vld [vmem:[%s171 + $0x2d50] sm:$0xff]
        %v1675 = vld [vmem:[%s171 + $0x2d58] sm:$0xff]
        %v1676 = vld [vmem:[%s171 + $0x2d60] sm:$0xff]
        %v1677 = vld [vmem:[%s171 + $0x2d68] sm:$0xff]
        %v1678 = vld [vmem:[%s171 + $0x2d70] sm:$0xff]
        %v1679 = vld [vmem:[%s171 + $0x2d78] sm:$0xff]
        %v1680 = vld [vmem:[%s171 + $0x2d80] sm:$0xff]
        %v1681 = vld [vmem:[%s171 + $0x2d88] sm:$0xff]
        %v1682 = vld [vmem:[%s171 + $0x2d90] sm:$0xff]
        %v1683 = vld [vmem:[%s171 + $0x2d98] sm:$0xff]
        %v1684 = vld [vmem:[%s171 + $0x2da0] sm:$0xff]
        %v1685 = vld [vmem:[%s171 + $0x2da8] sm:$0xff]
        %v1686 = vld [vmem:[%s171 + $0x2db0] sm:$0xff]
        %v1687 = vld [vmem:[%s171 + $0x2db8] sm:$0xff]
        %v1688 = vld [vmem:[%s171 + $0x2dc0] sm:$0xff]
        %v1689 = vld [vmem:[%s171 + $0x2dc8] sm:$0xff]
        %v1690 = vld [vmem:[%s171 + $0x2dd0] sm:$0xff]
        %v1691 = vld [vmem:[%s171 + $0x2dd8] sm:$0xff]
        %v1692 = vld [vmem:[%s171 + $0x2de0] sm:$0xff]
        %v1693 = vld [vmem:[%s171 + $0x2de8] sm:$0xff]
        %v1694 = vld [vmem:[%s171 + $0x2df0] sm:$0xff]
        %v1695 = vld [vmem:[%s171 + $0x2df8] sm:$0xff]
        %v1696 = vld [vmem:[%s171 + $0x2e00] sm:$0xff]
        %v1697 = vld [vmem:[%s171 + $0x2e08] sm:$0xff]
        %v1698 = vld [vmem:[%s171 + $0x2e10] sm:$0xff]
        %v1699 = vld [vmem:[%s171 + $0x2e18] sm:$0xff]
        %v1700 = vld [vmem:[%s171 + $0x2e20] sm:$0xff]
        %v1701 = vld [vmem:[%s171 + $0x2e28] sm:$0xff]
        %v1702 = vld [vmem:[%s171 + $0x2e30] sm:$0xff]
        %v1703 = vld [vmem:[%s171 + $0x2e38] sm:$0xff]
        %v1704 = vld [vmem:[%s171 + $0x2e40] sm:$0xff]
        %v1705 = vld [vmem:[%s171 + $0x2e48] sm:$0xff]
        %v1706 = vld [vmem:[%s171 + $0x2e50] sm:$0xff]
        %v1707 = vld [vmem:[%s171 + $0x2e58] sm:$0xff]
        %v1708 = vld [vmem:[%s171 + $0x2e60] sm:$0xff]
        %v1709 = vld [vmem:[%s171 + $0x2e68] sm:$0xff]
        %v1710 = vld [vmem:[%s171 + $0x2e70] sm:$0xff]
        %v1711 = vld [vmem:[%s171 + $0x2e78] sm:$0xff]
        %v1712 = vld [vmem:[%s171 + $0x2e80] sm:$0xff]
        %v1713 = vld [vmem:[%s171 + $0x2e88] sm:$0xff]
        %v1714 = vld [vmem:[%s171 + $0x2e90] sm:$0xff]
        %v1715 = vld [vmem:[%s171 + $0x2e98] sm:$0xff]
        %v1716 = vld [vmem:[%s171 + $0x2ea0] sm:$0xff]
        %v1717 = vld [vmem:[%s171 + $0x2ea8] sm:$0xff]
        %v1718 = vld [vmem:[%s171 + $0x2eb0] sm:$0xff]
        %v1719 = vld [vmem:[%s171 + $0x2eb8] sm:$0xff]
        %v1720 = vld [vmem:[%s171 + $0x2ec0] sm:$0xff]
        %v1721 = vld [vmem:[%s171 + $0x2ec8] sm:$0xff]
        %v1722 = vld [vmem:[%s171 + $0x2ed0] sm:$0xff]
        %v1723 = vld [vmem:[%s171 + $0x2ed8] sm:$0xff]
        %v1724 = vld [vmem:[%s171 + $0x2ee0] sm:$0xff]
        %v1725 = vld [vmem:[%s171 + $0x2ee8] sm:$0xff]
        %v1726 = vld [vmem:[%s171 + $0x2ef0] sm:$0xff]
        %v1727 = vld [vmem:[%s171 + $0x2ef8] sm:$0xff]
        %v1728 = vld [vmem:[%s171 + $0x2f00] sm:$0xff]
        %v1729 = vld [vmem:[%s171 + $0x2f08] sm:$0xff]
        %v1730 = vld [vmem:[%s171 + $0x2f10] sm:$0xff]
        %v1731 = vld [vmem:[%s171 + $0x2f18] sm:$0xff]
        %v1732 = vld [vmem:[%s171 + $0x2f20] sm:$0xff]
        %v1733 = vld [vmem:[%s171 + $0x2f28] sm:$0xff]
        %v1734 = vld [vmem:[%s171 + $0x2f30] sm:$0xff]
        %v1735 = vld [vmem:[%s171 + $0x2f38] sm:$0xff]
        %v1736 = vld [vmem:[%s171 + $0x2f40] sm:$0xff]
        %v1737 = vld [vmem:[%s171 + $0x2f48] sm:$0xff]
        %v1738 = vld [vmem:[%s171 + $0x2f50] sm:$0xff]
        %v1739 = vld [vmem:[%s171 + $0x2f58] sm:$0xff]
        %v1740 = vld [vmem:[%s171 + $0x2f60] sm:$0xff]
        %v1741 = vld [vmem:[%s171 + $0x2f68] sm:$0xff]
        %v1742 = vld [vmem:[%s171 + $0x2f70] sm:$0xff]
        %v1743 = vld [vmem:[%s171 + $0x2f78] sm:$0xff]
        %v1744 = vld [vmem:[%s171 + $0x2f80] sm:$0xff]
        %v1745 = vld [vmem:[%s171 + $0x2f88] sm:$0xff]
        %v1746 = vld [vmem:[%s171 + $0x2f90] sm:$0xff]
        %v1747 = vld [vmem:[%s171 + $0x2f98] sm:$0xff]
        %v1748 = vld [vmem:[%s171 + $0x2fa0] sm:$0xff]
        %v1749 = vld [vmem:[%s171 + $0x2fa8] sm:$0xff]
        %v1750 = vld [vmem:[%s171 + $0x2fb0] sm:$0xff]
        %v1751 = vld [vmem:[%s171 + $0x2fb8] sm:$0xff]
        %v1752 = vld [vmem:[%s171 + $0x2fc0] sm:$0xff]
        %v1753 = vld [vmem:[%s171 + $0x2fc8] sm:$0xff]
        %v1754 = vld [vmem:[%s171 + $0x2fd0] sm:$0xff]
        %v1755 = vld [vmem:[%s171 + $0x2fd8] sm:$0xff]
        %v1756 = vld [vmem:[%s171 + $0x2fe0] sm:$0xff]
        %v1757 = vld [vmem:[%s171 + $0x2fe8] sm:$0xff]
        %v1758 = vld [vmem:[%s171 + $0x2ff0] sm:$0xff]
        %v1759 = vld [vmem:[%s171 + $0x2ff8] sm:$0xff]
        %v1760 = vld [vmem:[%s171 + $0x3000] sm:$0xff]
        %v1761 = vld [vmem:[%s171 + $0x3008] sm:$0xff]
        %v1762 = vld [vmem:[%s171 + $0x3010] sm:$0xff]
        %v1763 = vld [vmem:[%s171 + $0x3018] sm:$0xff]
        %v1764 = vld [vmem:[%s171 + $0x3020] sm:$0xff]
        %v1765 = vld [vmem:[%s171 + $0x3028] sm:$0xff]
        %v1766 = vld [vmem:[%s171 + $0x3030] sm:$0xff]
        %v1767 = vld [vmem:[%s171 + $0x3038] sm:$0xff]
        %v1768 = vld [vmem:[%s171 + $0x3040] sm:$0xff]
        %v1769 = vld [vmem:[%s171 + $0x3048] sm:$0xff]
        %v1770 = vld [vmem:[%s171 + $0x3050] sm:$0xff]
        %v1771 = vld [vmem:[%s171 + $0x3058] sm:$0xff]
        %v1772 = vld [vmem:[%s171 + $0x3060] sm:$0xff]
        %v1773 = vld [vmem:[%s171 + $0x3068] sm:$0xff]
        %v1774 = vld [vmem:[%s171 + $0x3070] sm:$0xff]
        %v1775 = vld [vmem:[%s171 + $0x3078] sm:$0xff]
        %v1776 = vld [vmem:[%s171 + $0x3080] sm:$0xff]
        %v1777 = vld [vmem:[%s171 + $0x3088] sm:$0xff]
        %v1778 = vld [vmem:[%s171 + $0x3090] sm:$0xff]
        %v1779 = vld [vmem:[%s171 + $0x3098] sm:$0xff]
        %v1780 = vld [vmem:[%s171 + $0x30a0] sm:$0xff]
        %v1781 = vld [vmem:[%s171 + $0x30a8] sm:$0xff]
        %v1782 = vld [vmem:[%s171 + $0x30b0] sm:$0xff]
        %v1783 = vld [vmem:[%s171 + $0x30b8] sm:$0xff]
        %v1784 = vld [vmem:[%s171 + $0x30c0] sm:$0xff]
        %v1785 = vld [vmem:[%s171 + $0x30c8] sm:$0xff]
        %v1786 = vld [vmem:[%s171 + $0x30d0] sm:$0xff]
        %v1787 = vld [vmem:[%s171 + $0x30d8] sm:$0xff]
        %v1788 = vld [vmem:[%s171 + $0x30e0] sm:$0xff]
        %v1789 = vld [vmem:[%s171 + $0x30e8] sm:$0xff]
        %v1790 = vld [vmem:[%s171 + $0x30f0] sm:$0xff]
        %v1791 = vld [vmem:[%s171 + $0x30f8] sm:$0xff]
        %v1792 = vld [vmem:[%s171 + $0x3100] sm:$0xff]
        %v1793 = vld [vmem:[%s171 + $0x3108] sm:$0xff]
        %v1794 = vld [vmem:[%s171 + $0x3110] sm:$0xff]
        %v1795 = vld [vmem:[%s171 + $0x3118] sm:$0xff]
        %v1796 = vld [vmem:[%s171 + $0x3120] sm:$0xff]
        %v1797 = vld [vmem:[%s171 + $0x3128] sm:$0xff]
        %v1798 = vld [vmem:[%s171 + $0x3130] sm:$0xff]
        %v1799 = vld [vmem:[%s171 + $0x3138] sm:$0xff]
        %v1800 = vld [vmem:[%s171 + $0x3140] sm:$0xff]
        %v1801 = vld [vmem:[%s171 + $0x3148] sm:$0xff]
        %v1802 = vld [vmem:[%s171 + $0x3150] sm:$0xff]
        %v1803 = vld [vmem:[%s171 + $0x3158] sm:$0xff]
        %v1804 = vld [vmem:[%s171 + $0x3160] sm:$0xff]
        %v1805 = vld [vmem:[%s171 + $0x3168] sm:$0xff]
        %v1806 = vld [vmem:[%s171 + $0x3170] sm:$0xff]
        %v1807 = vld [vmem:[%s171 + $0x3178] sm:$0xff]
        %v1808 = vld [vmem:[%s171 + $0x3180] sm:$0xff]
        %v1809 = vld [vmem:[%s171 + $0x3188] sm:$0xff]
        %v1810 = vld [vmem:[%s171 + $0x3190] sm:$0xff]
        %v1811 = vld [vmem:[%s171 + $0x3198] sm:$0xff]
        %v1812 = vld [vmem:[%s171 + $0x31a0] sm:$0xff]
        %v1813 = vld [vmem:[%s171 + $0x31a8] sm:$0xff]
        %v1814 = vld [vmem:[%s171 + $0x31b0] sm:$0xff]
        %v1815 = vld [vmem:[%s171 + $0x31b8] sm:$0xff]
        %v1816 = vld [vmem:[%s171 + $0x31c0] sm:$0xff]
        %v1817 = vld [vmem:[%s171 + $0x31c8] sm:$0xff]
        %v1818 = vld [vmem:[%s171 + $0x31d0] sm:$0xff]
        %v1819 = vld [vmem:[%s171 + $0x31d8] sm:$0xff]
        %v1820 = vld [vmem:[%s171 + $0x31e0] sm:$0xff]
        %v1821 = vld [vmem:[%s171 + $0x31e8] sm:$0xff]
        %v1822 = vld [vmem:[%s171 + $0x31f0] sm:$0xff]
        %v1823 = vld [vmem:[%s171 + $0x31f8] sm:$0xff]
        %v1824 = vld [vmem:[%s171 + $0x3200] sm:$0xff]
        %v1825 = vld [vmem:[%s171 + $0x3208] sm:$0xff]
        %v1826 = vld [vmem:[%s171 + $0x3210] sm:$0xff]
        %v1827 = vld [vmem:[%s171 + $0x3218] sm:$0xff]
        %v1828 = vld [vmem:[%s171 + $0x3220] sm:$0xff]
        %v1829 = vld [vmem:[%s171 + $0x3228] sm:$0xff]
        %v1830 = vld [vmem:[%s171 + $0x3230] sm:$0xff]
        %v1831 = vld [vmem:[%s171 + $0x3238] sm:$0xff]
        %v1832 = vld [vmem:[%s171 + $0x3240] sm:$0xff]
        %v1833 = vld [vmem:[%s171 + $0x3248] sm:$0xff]
        %v1834 = vld [vmem:[%s171 + $0x3250] sm:$0xff]
        %v1835 = vld [vmem:[%s171 + $0x3258] sm:$0xff]
        %v1836 = vld [vmem:[%s171 + $0x3260] sm:$0xff]
        %v1837 = vld [vmem:[%s171 + $0x3268] sm:$0xff]
        %v1838 = vld [vmem:[%s171 + $0x3270] sm:$0xff]
        %v1839 = vld [vmem:[%s171 + $0x3278] sm:$0xff]
        %v1840 = vld [vmem:[%s171 + $0x3280] sm:$0xff]
        %v1841 = vld [vmem:[%s171 + $0x3288] sm:$0xff]
        %v1842 = vld [vmem:[%s171 + $0x3290] sm:$0xff]
        %v1843 = vld [vmem:[%s171 + $0x3298] sm:$0xff]
        %v1844 = vld [vmem:[%s171 + $0x32a0] sm:$0xff]
        %v1845 = vld [vmem:[%s171 + $0x32a8] sm:$0xff]
        %v1846 = vld [vmem:[%s171 + $0x32b0] sm:$0xff]
        %v1847 = vld [vmem:[%s171 + $0x32b8] sm:$0xff]
        %v1848 = vld [vmem:[%s171 + $0x32c0] sm:$0xff]
        %v1849 = vld [vmem:[%s171 + $0x32c8] sm:$0xff]
        %v1850 = vld [vmem:[%s171 + $0x32d0] sm:$0xff]
        %v1851 = vld [vmem:[%s171 + $0x32d8] sm:$0xff]
        %v1852 = vld [vmem:[%s171 + $0x32e0] sm:$0xff]
        %v1853 = vld [vmem:[%s171 + $0x32e8] sm:$0xff]
        %v1854 = vld [vmem:[%s171 + $0x32f0] sm:$0xff]
        %v1855 = vld [vmem:[%s171 + $0x32f8] sm:$0xff]
        %v1856 = vld [vmem:[%s171 + $0x3300] sm:$0xff]
        %v1857 = vld [vmem:[%s171 + $0x3308] sm:$0xff]
        %v1858 = vld [vmem:[%s171 + $0x3310] sm:$0xff]
        %v1859 = vld [vmem:[%s171 + $0x3318] sm:$0xff]
        %v1860 = vld [vmem:[%s171 + $0x3320] sm:$0xff]
        %v1861 = vld [vmem:[%s171 + $0x3328] sm:$0xff]
        %v1862 = vld [vmem:[%s171 + $0x3330] sm:$0xff]
        %v1863 = vld [vmem:[%s171 + $0x3338] sm:$0xff]
        %v1864 = vld [vmem:[%s171 + $0x3340] sm:$0xff]
        %v1865 = vld [vmem:[%s171 + $0x3348] sm:$0xff]
        %v1866 = vld [vmem:[%s171 + $0x3350] sm:$0xff]
        %v1867 = vld [vmem:[%s171 + $0x3358] sm:$0xff]
        %v1868 = vld [vmem:[%s171 + $0x3360] sm:$0xff]
        %v1869 = vld [vmem:[%s171 + $0x3368] sm:$0xff]
        %v1870 = vld [vmem:[%s171 + $0x3370] sm:$0xff]
        %v1871 = vld [vmem:[%s171 + $0x3378] sm:$0xff]
        %v1872 = vld [vmem:[%s171 + $0x3380] sm:$0xff]
        %v1873 = vld [vmem:[%s171 + $0x3388] sm:$0xff]
        %v1874 = vld [vmem:[%s171 + $0x3390] sm:$0xff]
        %v1875 = vld [vmem:[%s171 + $0x3398] sm:$0xff]
        %v1876 = vld [vmem:[%s171 + $0x33a0] sm:$0xff]
        %v1877 = vld [vmem:[%s171 + $0x33a8] sm:$0xff]
        %v1878 = vld [vmem:[%s171 + $0x33b0] sm:$0xff]
        %v1879 = vld [vmem:[%s171 + $0x33b8] sm:$0xff]
        %v1880 = vld [vmem:[%s171 + $0x33c0] sm:$0xff]
        %v1881 = vld [vmem:[%s171 + $0x33c8] sm:$0xff]
        %v1882 = vld [vmem:[%s171 + $0x33d0] sm:$0xff]
        %v1883 = vld [vmem:[%s171 + $0x33d8] sm:$0xff]
        %v1884 = vld [vmem:[%s171 + $0x33e0] sm:$0xff]
        %v1885 = vld [vmem:[%s171 + $0x33e8] sm:$0xff]
        %v1886 = vld [vmem:[%s171 + $0x33f0] sm:$0xff]
        %v1887 = vld [vmem:[%s171 + $0x33f8] sm:$0xff]
        %v1888 = vld [vmem:[%s171 + $0x3400] sm:$0xff]
        %v1889 = vld [vmem:[%s171 + $0x3408] sm:$0xff]
        %v1890 = vld [vmem:[%s171 + $0x3410] sm:$0xff]
        %v1891 = vld [vmem:[%s171 + $0x3418] sm:$0xff]
        %v1892 = vld [vmem:[%s171 + $0x3420] sm:$0xff]
        %v1893 = vld [vmem:[%s171 + $0x3428] sm:$0xff]
        %v1894 = vld [vmem:[%s171 + $0x3430] sm:$0xff]
        %v1895 = vld [vmem:[%s171 + $0x3438] sm:$0xff]
        %v1896 = vld [vmem:[%s171 + $0x3440] sm:$0xff]
        %v1897 = vld [vmem:[%s171 + $0x3448] sm:$0xff]
        %v1898 = vld [vmem:[%s171 + $0x3450] sm:$0xff]
        %v1899 = vld [vmem:[%s171 + $0x3458] sm:$0xff]
        %v1900 = vld [vmem:[%s171 + $0x3460] sm:$0xff]
        %v1901 = vld [vmem:[%s171 + $0x3468] sm:$0xff]
        %v1902 = vld [vmem:[%s171 + $0x3470] sm:$0xff]
        %v1903 = vld [vmem:[%s171 + $0x3478] sm:$0xff]
        %v1904 = vld [vmem:[%s171 + $0x3480] sm:$0xff]
        %v1905 = vld [vmem:[%s171 + $0x3488] sm:$0xff]
        %v1906 = vld [vmem:[%s171 + $0x3490] sm:$0xff]
        %v1907 = vld [vmem:[%s171 + $0x3498] sm:$0xff]
        %v1908 = vld [vmem:[%s171 + $0x34a0] sm:$0xff]
        %v1909 = vld [vmem:[%s171 + $0x34a8] sm:$0xff]
        %v1910 = vld [vmem:[%s171 + $0x34b0] sm:$0xff]
        %v1911 = vld [vmem:[%s171 + $0x34b8] sm:$0xff]
        %v1912 = vld [vmem:[%s171 + $0x34c0] sm:$0xff]
        %v1913 = vld [vmem:[%s171 + $0x34c8] sm:$0xff]
        %v1914 = vld [vmem:[%s171 + $0x34d0] sm:$0xff]
        %v1915 = vld [vmem:[%s171 + $0x34d8] sm:$0xff]
        %v1916 = vld [vmem:[%s171 + $0x34e0] sm:$0xff]
        %v1917 = vld [vmem:[%s171 + $0x34e8] sm:$0xff]
        %v1918 = vld [vmem:[%s171 + $0x34f0] sm:$0xff]
        %v1919 = vld [vmem:[%s171 + $0x34f8] sm:$0xff]
        %v1920 = vld [vmem:[%s171 + $0x3500] sm:$0xff]
        %v1921 = vld [vmem:[%s171 + $0x3508] sm:$0xff]
        %v1922 = vld [vmem:[%s171 + $0x3510] sm:$0xff]
        %v1923 = vld [vmem:[%s171 + $0x3518] sm:$0xff]
        %v1924 = vld [vmem:[%s171 + $0x3520] sm:$0xff]
        %v1925 = vld [vmem:[%s171 + $0x3528] sm:$0xff]
        %v1926 = vld [vmem:[%s171 + $0x3530] sm:$0xff]
        %v1927 = vld [vmem:[%s171 + $0x3538] sm:$0xff]
        %v1928 = vld [vmem:[%s171 + $0x3540] sm:$0xff]
        %v1929 = vld [vmem:[%s171 + $0x3548] sm:$0xff]
        %v1930 = vld [vmem:[%s171 + $0x3550] sm:$0xff]
        %v1931 = vld [vmem:[%s171 + $0x3558] sm:$0xff]
        %v1932 = vld [vmem:[%s171 + $0x3560] sm:$0xff]
        %v1933 = vld [vmem:[%s171 + $0x3568] sm:$0xff]
        %v1934 = vld [vmem:[%s171 + $0x3570] sm:$0xff]
        %v1935 = vld [vmem:[%s171 + $0x3578] sm:$0xff]
        %v1936 = vld [vmem:[%s171 + $0x3580] sm:$0xff]
        %v1937 = vld [vmem:[%s171 + $0x3588] sm:$0xff]
        %v1938 = vld [vmem:[%s171 + $0x3590] sm:$0xff]
        %v1939 = vld [vmem:[%s171 + $0x3598] sm:$0xff]
        %v1940 = vld [vmem:[%s171 + $0x35a0] sm:$0xff]
        %v1941 = vld [vmem:[%s171 + $0x35a8] sm:$0xff]
        %v1942 = vld [vmem:[%s171 + $0x35b0] sm:$0xff]
        %v1943 = vld [vmem:[%s171 + $0x35b8] sm:$0xff]
        %v1944 = vld [vmem:[%s171 + $0x35c0] sm:$0xff]
        %v1945 = vld [vmem:[%s171 + $0x35c8] sm:$0xff]
        %v1946 = vld [vmem:[%s171 + $0x35d0] sm:$0xff]
        %v1947 = vld [vmem:[%s171 + $0x35d8] sm:$0xff]
        %v1948 = vld [vmem:[%s171 + $0x35e0] sm:$0xff]
        %v1949 = vld [vmem:[%s171 + $0x35e8] sm:$0xff]
        %v1950 = vld [vmem:[%s171 + $0x35f0] sm:$0xff]
        %v1951 = vld [vmem:[%s171 + $0x35f8] sm:$0xff]
        %v1952 = vld [vmem:[%s171 + $0x3600] sm:$0xff]
        %v1953 = vld [vmem:[%s171 + $0x3608] sm:$0xff]
        %v1954 = vld [vmem:[%s171 + $0x3610] sm:$0xff]
        %v1955 = vld [vmem:[%s171 + $0x3618] sm:$0xff]
        %v1956 = vld [vmem:[%s171 + $0x3620] sm:$0xff]
        %v1957 = vld [vmem:[%s171 + $0x3628] sm:$0xff]
        %v1958 = vld [vmem:[%s171 + $0x3630] sm:$0xff]
        %v1959 = vld [vmem:[%s171 + $0x3638] sm:$0xff]
        %v1960 = vld [vmem:[%s171 + $0x3640] sm:$0xff]
        %v1961 = vld [vmem:[%s171 + $0x3648] sm:$0xff]
        %v1962 = vld [vmem:[%s171 + $0x3650] sm:$0xff]
        %v1963 = vld [vmem:[%s171 + $0x3658] sm:$0xff]
        %v1964 = vld [vmem:[%s171 + $0x3660] sm:$0xff]
        %v1965 = vld [vmem:[%s171 + $0x3668] sm:$0xff]
        %v1966 = vld [vmem:[%s171 + $0x3670] sm:$0xff]
        %v1967 = vld [vmem:[%s171 + $0x3678] sm:$0xff]
        %v1968 = vld [vmem:[%s171 + $0x3680] sm:$0xff]
        %v1969 = vld [vmem:[%s171 + $0x3688] sm:$0xff]
        %v1970 = vld [vmem:[%s171 + $0x3690] sm:$0xff]
        %v1971 = vld [vmem:[%s171 + $0x3698] sm:$0xff]
        %v1972 = vld [vmem:[%s171 + $0x36a0] sm:$0xff]
        %v1973 = vld [vmem:[%s171 + $0x36a8] sm:$0xff]
        %v1974 = vld [vmem:[%s171 + $0x36b0] sm:$0xff]
        %v1975 = vld [vmem:[%s171 + $0x36b8] sm:$0xff]
        %v1976 = vld [vmem:[%s171 + $0x36c0] sm:$0xff]
        %v1977 = vld [vmem:[%s171 + $0x36c8] sm:$0xff]
        %v1978 = vld [vmem:[%s171 + $0x36d0] sm:$0xff]
        %v1979 = vld [vmem:[%s171 + $0x36d8] sm:$0xff]
        %v1980 = vld [vmem:[%s171 + $0x36e0] sm:$0xff]
        %v1981 = vld [vmem:[%s171 + $0x36e8] sm:$0xff]
        %v1982 = vld [vmem:[%s171 + $0x36f0] sm:$0xff]
        %v1983 = vld [vmem:[%s171 + $0x36f8] sm:$0xff]
        %v1984 = vld [vmem:[%s171 + $0x3700] sm:$0xff]
        %v1985 = vld [vmem:[%s171 + $0x3708] sm:$0xff]
        %v1986 = vld [vmem:[%s171 + $0x3710] sm:$0xff]
        %v1987 = vld [vmem:[%s171 + $0x3718] sm:$0xff]
        %v1988 = vld [vmem:[%s171 + $0x3720] sm:$0xff]
        %v1989 = vld [vmem:[%s171 + $0x3728] sm:$0xff]
        %v1990 = vld [vmem:[%s171 + $0x3730] sm:$0xff]
        %v1991 = vld [vmem:[%s171 + $0x3738] sm:$0xff]
        %v1992 = vld [vmem:[%s171 + $0x3740] sm:$0xff]
        %v1993 = vld [vmem:[%s171 + $0x3748] sm:$0xff]
        %v1994 = vld [vmem:[%s171 + $0x3750] sm:$0xff]
        %v1995 = vld [vmem:[%s171 + $0x3758] sm:$0xff]
        %v1996 = vld [vmem:[%s171 + $0x3760] sm:$0xff]
        %v1997 = vld [vmem:[%s171 + $0x3768] sm:$0xff]
        %v1998 = vld [vmem:[%s171 + $0x3770] sm:$0xff]
        %v1999 = vld [vmem:[%s171 + $0x3778] sm:$0xff]
        %v2000 = vld [vmem:[%s171 + $0x3780] sm:$0xff]
        %v2001 = vld [vmem:[%s171 + $0x3788] sm:$0xff]
        %v2002 = vld [vmem:[%s171 + $0x3790] sm:$0xff]
        %v2003 = vld [vmem:[%s171 + $0x3798] sm:$0xff]
        %v2004 = vld [vmem:[%s171 + $0x37a0] sm:$0xff]
        %v2005 = vld [vmem:[%s171 + $0x37a8] sm:$0xff]
        %v2006 = vld [vmem:[%s171 + $0x37b0] sm:$0xff]
        %v2007 = vld [vmem:[%s171 + $0x37b8] sm:$0xff]
        %v2008 = vld [vmem:[%s171 + $0x37c0] sm:$0xff]
        %v2009 = vld [vmem:[%s171 + $0x37c8] sm:$0xff]
        %v2010 = vld [vmem:[%s171 + $0x37d0] sm:$0xff]
        %v2011 = vld [vmem:[%s171 + $0x37d8] sm:$0xff]
        %v2012 = vld [vmem:[%s171 + $0x37e0] sm:$0xff]
        %v2013 = vld [vmem:[%s171 + $0x37e8] sm:$0xff]
        %v2014 = vld [vmem:[%s171 + $0x37f0] sm:$0xff]
        %v2015 = vld [vmem:[%s171 + $0x37f8] sm:$0xff]
        %v2023 = vcombine.low %v205, %v206
        %v2024 = vcombine.high %v205, %v206
        %v2025 = vcombine.low %v207, %v208
        %v2026 = vcombine.high %v207, %v208
        %v2027 = vcombine.low %v209, %v210
        %v2028 = vcombine.high %v209, %v210
        %v2029 = vcombine.high %v211, %v211
        %v2031 = vunpack.c.l.s4 1966171168
        %v2032 = vunpack.c.0.s8 %v2031
        %v2033 = vlaneseq
        %v2034 = vshrl.u32 %v2033, 7
        %v2035 = vsub.s32 %v2032, %v2034
        %v2036 = vrot.slane %v2023, %v2035
        %v2038 = vunpack.c.l.s4 1966171168
        %v2039 = vunpack.c.0.s8 %v2038
        %v2040 = vlaneseq
        %v2041 = vshrl.u32 %v2040, 7
        %v2042 = vsub.s32 %v2039, %v2041
        %v2043 = vrot.slane %v2024, %v2042
        %v2045 = vunpack.c.l.s4 1966171168
        %v2046 = vunpack.c.0.s8 %v2045
        %v2047 = vlaneseq
        %v2048 = vshrl.u32 %v2047, 7
        %v2049 = vsub.s32 %v2046, %v2048
        %v2050 = vrot.slane %v2025, %v2049
        %v2052 = vunpack.c.l.s4 1966171168
        %v2053 = vunpack.c.0.s8 %v2052
        %v2054 = vlaneseq
        %v2055 = vshrl.u32 %v2054, 7
        %v2056 = vsub.s32 %v2053, %v2055
        %v2057 = vrot.slane %v2026, %v2056
        %v2059 = vunpack.c.l.s4 1966171168
        %v2060 = vunpack.c.0.s8 %v2059
        %v2061 = vlaneseq
        %v2062 = vshrl.u32 %v2061, 7
        %v2063 = vsub.s32 %v2060, %v2062
        %v2064 = vrot.slane %v2027, %v2063
        %v2066 = vunpack.c.l.s4 1966171168
        %v2067 = vunpack.c.0.s8 %v2066
        %v2068 = vlaneseq
        %v2069 = vshrl.u32 %v2068, 7
        %v2070 = vsub.s32 %v2067, %v2069
        %v2071 = vrot.slane %v2028, %v2070
        %v2073 = vunpack.c.l.s4 1966171168
        %v2074 = vunpack.c.0.s8 %v2073
        %v2075 = vlaneseq
        %v2076 = vshrl.u32 %v2075, 7
        %v2077 = vsub.s32 %v2074, %v2076
        %v2078 = vrot.slane %v211, %v2077
        %v2080 = vunpack.c.l.s4 1966171168
        %v2081 = vunpack.c.0.s8 %v2080
        %v2082 = vlaneseq
        %v2083 = vshrl.u32 %v2082, 7
        %v2084 = vsub.s32 %v2081, %v2083
        %v2085 = vrot.slane %v2029, %v2084
        %v2086 = vcombine.low %v2036, %v2050
        %v2087 = vcombine.high %v2036, %v2050
        %v2088 = vcombine.low %v2043, %v2057
        %v2089 = vcombine.high %v2043, %v2057
        %v2090 = vcombine.low %v2064, %v2078
        %v2091 = vcombine.high %v2064, %v2078
        %v2092 = vcombine.low %v2071, %v2085
        %v2093 = vcombine.high %v2071, %v2085
        %v2095 = vunpack.c.l.s4 1966171168
        %v2096 = vunpack.c.0.s8 %v2095
        %v2097 = vlaneseq
        %v2098 = vshrl.u32 %v2097, 7
        %v2099 = vsub.s32 %v2096, %v2098
        %v2100 = vrot.slane %v2086, %v2099
        %v2102 = vunpack.c.l.s4 1966171168
        %v2103 = vunpack.c.0.s8 %v2102
        %v2104 = vlaneseq
        %v2105 = vshrl.u32 %v2104, 7
        %v2106 = vsub.s32 %v2103, %v2105
        %v2107 = vrot.slane %v2088, %v2106
        %v2109 = vunpack.c.l.s4 1966171168
        %v2110 = vunpack.c.0.s8 %v2109
        %v2111 = vlaneseq
        %v2112 = vshrl.u32 %v2111, 7
        %v2113 = vsub.s32 %v2110, %v2112
        %v2114 = vrot.slane %v2087, %v2113
        %v2116 = vunpack.c.l.s4 1966171168
        %v2117 = vunpack.c.0.s8 %v2116
        %v2118 = vlaneseq
        %v2119 = vshrl.u32 %v2118, 7
        %v2120 = vsub.s32 %v2117, %v2119
        %v2121 = vrot.slane %v2089, %v2120
        %v2123 = vunpack.c.l.s4 1966171168
        %v2124 = vunpack.c.0.s8 %v2123
        %v2125 = vlaneseq
        %v2126 = vshrl.u32 %v2125, 7
        %v2127 = vsub.s32 %v2124, %v2126
        %v2128 = vrot.slane %v2090, %v2127
        %v2130 = vunpack.c.l.s4 1966171168
        %v2131 = vunpack.c.0.s8 %v2130
        %v2132 = vlaneseq
        %v2133 = vshrl.u32 %v2132, 7
        %v2134 = vsub.s32 %v2131, %v2133
        %v2135 = vrot.slane %v2092, %v2134
        %v2137 = vunpack.c.l.s4 1966171168
        %v2138 = vunpack.c.0.s8 %v2137
        %v2139 = vlaneseq
        %v2140 = vshrl.u32 %v2139, 7
        %v2141 = vsub.s32 %v2138, %v2140
        %v2142 = vrot.slane %v2091, %v2141
        %v2144 = vunpack.c.l.s4 1966171168
        %v2145 = vunpack.c.0.s8 %v2144
        %v2146 = vlaneseq
        %v2147 = vshrl.u32 %v2146, 7
        %v2148 = vsub.s32 %v2145, %v2147
        %v2149 = vrot.slane %v2093, %v2148
        %v2150 = vcombine.low %v2100, %v2128
        %v2151 = vcombine.high %v2100, %v2128
        %v2152 = vcombine.low %v2107, %v2135
        %v2153 = vcombine.high %v2107, %v2135
        %v2154 = vcombine.low %v2114, %v2142
        %v2155 = vcombine.high %v2114, %v2142
        %v2156 = vcombine.low %v2121, %v2149
        %v2157 = vcombine.high %v2121, %v2149
        %v2158 = vlaneseq
        %v2159 = vshrl.u32 %v2158, 7
        %v2160 = vsub.s32 0, %v2159
        %v2161 = vrot.slane %v2150, %v2160
        %v2162 = vlaneseq
        %v2163 = vshrl.u32 %v2162, 7
        %v2164 = vsub.s32 1, %v2163
        %v2165 = vrot.slane %v2150, %v2164
        %v2166 = vlaneseq
        %v2167 = vshrl.u32 %v2166, 7
        %v2168 = vsub.s32 2, %v2167
        %v2169 = vrot.slane %v2150, %v2168
        %v2170 = vlaneseq
        %v2171 = vshrl.u32 %v2170, 7
        %v2172 = vsub.s32 3, %v2171
        %v2173 = vrot.slane %v2150, %v2172
        %v2174 = vlaneseq
        %v2175 = vshrl.u32 %v2174, 7
        %v2176 = vsub.s32 4, %v2175
        %v2177 = vrot.slane %v2150, %v2176
        %v2178 = vlaneseq
        %v2179 = vshrl.u32 %v2178, 7
        %v2180 = vsub.s32 5, %v2179
        %v2181 = vrot.slane %v2150, %v2180
        %v2182 = vlaneseq
        %v2183 = vshrl.u32 %v2182, 7
        %v2184 = vsub.s32 6, %v2183
        %v2185 = vrot.slane %v2150, %v2184
        %v2186 = vlaneseq
        %v2187 = vshrl.u32 %v2186, 7
        %v2188 = vsub.s32 0, %v2187
        %v2189 = vrot.slane %v2154, %v2188
        %v2190 = vlaneseq
        %v2191 = vshrl.u32 %v2190, 7
        %v2192 = vsub.s32 1, %v2191
        %v2193 = vrot.slane %v2154, %v2192
        %v2194 = vlaneseq
        %v2195 = vshrl.u32 %v2194, 7
        %v2196 = vsub.s32 2, %v2195
        %v2197 = vrot.slane %v2154, %v2196
        %v2198 = vlaneseq
        %v2199 = vshrl.u32 %v2198, 7
        %v2200 = vsub.s32 3, %v2199
        %v2201 = vrot.slane %v2154, %v2200
        %v2202 = vlaneseq
        %v2203 = vshrl.u32 %v2202, 7
        %v2204 = vsub.s32 4, %v2203
        %v2205 = vrot.slane %v2154, %v2204
        %v2206 = vlaneseq
        %v2207 = vshrl.u32 %v2206, 7
        %v2208 = vsub.s32 5, %v2207
        %v2209 = vrot.slane %v2154, %v2208
        %v2210 = vlaneseq
        %v2211 = vshrl.u32 %v2210, 7
        %v2212 = vsub.s32 6, %v2211
        %v2213 = vrot.slane %v2154, %v2212
        %v2214 = vlaneseq
        %v2215 = vshrl.u32 %v2214, 7
        %v2216 = vsub.s32 0, %v2215
        %v2217 = vrot.slane %v2151, %v2216
        %v2218 = vlaneseq
        %v2219 = vshrl.u32 %v2218, 7
        %v2220 = vsub.s32 1, %v2219
        %v2221 = vrot.slane %v2151, %v2220
        %v2222 = vlaneseq
        %v2223 = vshrl.u32 %v2222, 7
        %v2224 = vsub.s32 2, %v2223
        %v2225 = vrot.slane %v2151, %v2224
        %v2226 = vlaneseq
        %v2227 = vshrl.u32 %v2226, 7
        %v2228 = vsub.s32 3, %v2227
        %v2229 = vrot.slane %v2151, %v2228
        %v2230 = vlaneseq
        %v2231 = vshrl.u32 %v2230, 7
        %v2232 = vsub.s32 4, %v2231
        %v2233 = vrot.slane %v2151, %v2232
        %v2234 = vlaneseq
        %v2235 = vshrl.u32 %v2234, 7
        %v2236 = vsub.s32 5, %v2235
        %v2237 = vrot.slane %v2151, %v2236
        %v2238 = vlaneseq
        %v2239 = vshrl.u32 %v2238, 7
        %v2240 = vsub.s32 6, %v2239
        %v2241 = vrot.slane %v2151, %v2240
        %v2242 = vlaneseq
        %v2243 = vshrl.u32 %v2242, 7
        %v2244 = vsub.s32 0, %v2243
        %v2245 = vrot.slane %v2155, %v2244
        %v2246 = vlaneseq
        %v2247 = vshrl.u32 %v2246, 7
        %v2248 = vsub.s32 1, %v2247
        %v2249 = vrot.slane %v2155, %v2248
        %v2250 = vlaneseq
        %v2251 = vshrl.u32 %v2250, 7
        %v2252 = vsub.s32 2, %v2251
        %v2253 = vrot.slane %v2155, %v2252
        %v2254 = vlaneseq
        %v2255 = vshrl.u32 %v2254, 7
        %v2256 = vsub.s32 3, %v2255
        %v2257 = vrot.slane %v2155, %v2256
        %v2258 = vlaneseq
        %v2259 = vshrl.u32 %v2258, 7
        %v2260 = vsub.s32 4, %v2259
        %v2261 = vrot.slane %v2155, %v2260
        %v2262 = vlaneseq
        %v2263 = vshrl.u32 %v2262, 7
        %v2264 = vsub.s32 5, %v2263
        %v2265 = vrot.slane %v2155, %v2264
        %v2266 = vlaneseq
        %v2267 = vshrl.u32 %v2266, 7
        %v2268 = vsub.s32 6, %v2267
        %v2269 = vrot.slane %v2155, %v2268
        %v2270 = vlaneseq
        %v2271 = vshrl.u32 %v2270, 7
        %v2272 = vsub.s32 0, %v2271
        %v2273 = vrot.slane %v2152, %v2272
        %v2274 = vlaneseq
        %v2275 = vshrl.u32 %v2274, 7
        %v2276 = vsub.s32 1, %v2275
        %v2277 = vrot.slane %v2152, %v2276
        %v2278 = vlaneseq
        %v2279 = vshrl.u32 %v2278, 7
        %v2280 = vsub.s32 2, %v2279
        %v2281 = vrot.slane %v2152, %v2280
        %v2282 = vlaneseq
        %v2283 = vshrl.u32 %v2282, 7
        %v2284 = vsub.s32 3, %v2283
        %v2285 = vrot.slane %v2152, %v2284
        %v2286 = vlaneseq
        %v2287 = vshrl.u32 %v2286, 7
        %v2288 = vsub.s32 4, %v2287
        %v2289 = vrot.slane %v2152, %v2288
        %v2290 = vlaneseq
        %v2291 = vshrl.u32 %v2290, 7
        %v2292 = vsub.s32 5, %v2291
        %v2293 = vrot.slane %v2152, %v2292
        %v2294 = vlaneseq
        %v2295 = vshrl.u32 %v2294, 7
        %v2296 = vsub.s32 6, %v2295
        %v2297 = vrot.slane %v2152, %v2296
        %v2298 = vlaneseq
        %v2299 = vshrl.u32 %v2298, 7
        %v2300 = vsub.s32 0, %v2299
        %v2301 = vrot.slane %v2156, %v2300
        %v2302 = vlaneseq
        %v2303 = vshrl.u32 %v2302, 7
        %v2304 = vsub.s32 1, %v2303
        %v2305 = vrot.slane %v2156, %v2304
        %v2306 = vlaneseq
        %v2307 = vshrl.u32 %v2306, 7
        %v2308 = vsub.s32 2, %v2307
        %v2309 = vrot.slane %v2156, %v2308
        %v2310 = vlaneseq
        %v2311 = vshrl.u32 %v2310, 7
        %v2312 = vsub.s32 3, %v2311
        %v2313 = vrot.slane %v2156, %v2312
        %v2314 = vlaneseq
        %v2315 = vshrl.u32 %v2314, 7
        %v2316 = vsub.s32 4, %v2315
        %v2317 = vrot.slane %v2156, %v2316
        %v2318 = vlaneseq
        %v2319 = vshrl.u32 %v2318, 7
        %v2320 = vsub.s32 5, %v2319
        %v2321 = vrot.slane %v2156, %v2320
        %v2322 = vlaneseq
        %v2323 = vshrl.u32 %v2322, 7
        %v2324 = vsub.s32 6, %v2323
        %v2325 = vrot.slane %v2156, %v2324
        %v2326 = vlaneseq
        %v2327 = vshrl.u32 %v2326, 7
        %v2328 = vsub.s32 0, %v2327
        %v2329 = vrot.slane %v2153, %v2328
        %v2330 = vlaneseq
        %v2331 = vshrl.u32 %v2330, 7
        %v2332 = vsub.s32 1, %v2331
        %v2333 = vrot.slane %v2153, %v2332
        %v2334 = vlaneseq
        %v2335 = vshrl.u32 %v2334, 7
        %v2336 = vsub.s32 2, %v2335
        %v2337 = vrot.slane %v2153, %v2336
        %v2338 = vlaneseq
        %v2339 = vshrl.u32 %v2338, 7
        %v2340 = vsub.s32 3, %v2339
        %v2341 = vrot.slane %v2153, %v2340
        %v2342 = vlaneseq
        %v2343 = vshrl.u32 %v2342, 7
        %v2344 = vsub.s32 4, %v2343
        %v2345 = vrot.slane %v2153, %v2344
        %v2346 = vlaneseq
        %v2347 = vshrl.u32 %v2346, 7
        %v2348 = vsub.s32 5, %v2347
        %v2349 = vrot.slane %v2153, %v2348
        %v2350 = vlaneseq
        %v2351 = vshrl.u32 %v2350, 7
        %v2352 = vsub.s32 6, %v2351
        %v2353 = vrot.slane %v2153, %v2352
        %v2354 = vlaneseq
        %v2355 = vshrl.u32 %v2354, 7
        %v2356 = vsub.s32 0, %v2355
        %v2357 = vrot.slane %v2157, %v2356
        %v2358 = vlaneseq
        %v2359 = vshrl.u32 %v2358, 7
        %v2360 = vsub.s32 1, %v2359
        %v2361 = vrot.slane %v2157, %v2360
        %v2362 = vlaneseq
        %v2363 = vshrl.u32 %v2362, 7
        %v2364 = vsub.s32 2, %v2363
        %v2365 = vrot.slane %v2157, %v2364
        %v2366 = vlaneseq
        %v2367 = vshrl.u32 %v2366, 7
        %v2368 = vsub.s32 3, %v2367
        %v2369 = vrot.slane %v2157, %v2368
        %v2370 = vlaneseq
        %v2371 = vshrl.u32 %v2370, 7
        %v2372 = vsub.s32 4, %v2371
        %v2373 = vrot.slane %v2157, %v2372
        %v2374 = vlaneseq
        %v2375 = vshrl.u32 %v2374, 7
        %v2376 = vsub.s32 5, %v2375
        %v2377 = vrot.slane %v2157, %v2376
        %v2378 = vlaneseq
        %v2379 = vshrl.u32 %v2378, 7
        %v2380 = vsub.s32 6, %v2379
        %v2381 = vrot.slane %v2157, %v2380
        %v2438 = vmul.f32 %v224, %v2161
        %v2439 = vmul.f32 %v225, %v2165
        %v2440 = vmul.f32 %v226, %v2169
        %v2441 = vmul.f32 %v227, %v2173
        %v2442 = vmul.f32 %v228, %v2177
        %v2443 = vmul.f32 %v229, %v2181
        %v2444 = vmul.f32 %v230, %v2185
        %v2445 = vmul.f32 %v231, %v2161
        %v2446 = vmul.f32 %v232, %v2165
        %v2447 = vmul.f32 %v233, %v2169
        %v2448 = vmul.f32 %v234, %v2173
        %v2449 = vmul.f32 %v235, %v2177
        %v2450 = vmul.f32 %v236, %v2181
        %v2451 = vmul.f32 %v237, %v2185
        %v2452 = vmul.f32 %v238, %v2161
        %v2453 = vmul.f32 %v239, %v2165
        %v2454 = vmul.f32 %v240, %v2169
        %v2455 = vmul.f32 %v241, %v2173
        %v2456 = vmul.f32 %v242, %v2177
        %v2457 = vmul.f32 %v243, %v2181
        %v2458 = vmul.f32 %v244, %v2185
        %v2459 = vmul.f32 %v245, %v2161
        %v2460 = vmul.f32 %v246, %v2165
        %v2461 = vmul.f32 %v247, %v2169
        %v2462 = vmul.f32 %v248, %v2173
        %v2463 = vmul.f32 %v249, %v2177
        %v2464 = vmul.f32 %v250, %v2181
        %v2465 = vmul.f32 %v251, %v2185
        %v2466 = vmul.f32 %v252, %v2161
        %v2467 = vmul.f32 %v253, %v2165
        %v2468 = vmul.f32 %v254, %v2169
        %v2469 = vmul.f32 %v255, %v2173
        %v2470 = vmul.f32 %v256, %v2177
        %v2471 = vmul.f32 %v257, %v2181
        %v2472 = vmul.f32 %v258, %v2185
        %v2473 = vmul.f32 %v259, %v2161
        %v2474 = vmul.f32 %v260, %v2165
        %v2475 = vmul.f32 %v261, %v2169
        %v2476 = vmul.f32 %v262, %v2173
        %v2477 = vmul.f32 %v263, %v2177
        %v2478 = vmul.f32 %v264, %v2181
        %v2479 = vmul.f32 %v265, %v2185
        %v2480 = vmul.f32 %v266, %v2161
        %v2481 = vmul.f32 %v267, %v2165
        %v2482 = vmul.f32 %v268, %v2169
        %v2483 = vmul.f32 %v269, %v2173
        %v2484 = vmul.f32 %v270, %v2177
        %v2485 = vmul.f32 %v271, %v2181
        %v2486 = vmul.f32 %v272, %v2185
        %v2487 = vmul.f32 %v273, %v2161
        %v2488 = vmul.f32 %v274, %v2165
        %v2489 = vmul.f32 %v275, %v2169
        %v2490 = vmul.f32 %v276, %v2173
        %v2491 = vmul.f32 %v277, %v2177
        %v2492 = vmul.f32 %v278, %v2181
        %v2493 = vmul.f32 %v279, %v2185
        %v2494 = vmul.f32 %v280, %v2161
        %v2495 = vmul.f32 %v281, %v2165
        %v2496 = vmul.f32 %v282, %v2169
        %v2497 = vmul.f32 %v283, %v2173
        %v2498 = vmul.f32 %v284, %v2177
        %v2499 = vmul.f32 %v285, %v2181
        %v2500 = vmul.f32 %v286, %v2185
        %v2501 = vmul.f32 %v287, %v2161
        %v2502 = vmul.f32 %v288, %v2165
        %v2503 = vmul.f32 %v289, %v2169
        %v2504 = vmul.f32 %v290, %v2173
        %v2505 = vmul.f32 %v291, %v2177
        %v2506 = vmul.f32 %v292, %v2181
        %v2507 = vmul.f32 %v293, %v2185
        %v2508 = vmul.f32 %v294, %v2161
        %v2509 = vmul.f32 %v295, %v2165
        %v2510 = vmul.f32 %v296, %v2169
        %v2511 = vmul.f32 %v297, %v2173
        %v2512 = vmul.f32 %v298, %v2177
        %v2513 = vmul.f32 %v299, %v2181
        %v2514 = vmul.f32 %v300, %v2185
        %v2515 = vmul.f32 %v301, %v2161
        %v2516 = vmul.f32 %v302, %v2165
        %v2517 = vmul.f32 %v303, %v2169
        %v2518 = vmul.f32 %v304, %v2173
        %v2519 = vmul.f32 %v305, %v2177
        %v2520 = vmul.f32 %v306, %v2181
        %v2521 = vmul.f32 %v307, %v2185
        %v2522 = vmul.f32 %v308, %v2161
        %v2523 = vmul.f32 %v309, %v2165
        %v2524 = vmul.f32 %v310, %v2169
        %v2525 = vmul.f32 %v311, %v2173
        %v2526 = vmul.f32 %v312, %v2177
        %v2527 = vmul.f32 %v313, %v2181
        %v2528 = vmul.f32 %v314, %v2185
        %v2529 = vmul.f32 %v315, %v2161
        %v2530 = vmul.f32 %v316, %v2165
        %v2531 = vmul.f32 %v317, %v2169
        %v2532 = vmul.f32 %v318, %v2173
        %v2533 = vmul.f32 %v319, %v2177
        %v2534 = vmul.f32 %v320, %v2181
        %v2535 = vmul.f32 %v321, %v2185
        %v2536 = vmul.f32 %v322, %v2161
        %v2537 = vmul.f32 %v323, %v2165
        %v2538 = vmul.f32 %v324, %v2169
        %v2539 = vmul.f32 %v325, %v2173
        %v2540 = vmul.f32 %v326, %v2177
        %v2541 = vmul.f32 %v327, %v2181
        %v2542 = vmul.f32 %v328, %v2185
        %v2543 = vmul.f32 %v329, %v2161
        %v2544 = vmul.f32 %v330, %v2165
        %v2545 = vmul.f32 %v331, %v2169
        %v2546 = vmul.f32 %v332, %v2173
        %v2547 = vmul.f32 %v333, %v2177
        %v2548 = vmul.f32 %v334, %v2181
        %v2549 = vmul.f32 %v335, %v2185
        %v2550 = vmul.f32 %v336, %v2161
        %v2551 = vmul.f32 %v337, %v2165
        %v2552 = vmul.f32 %v338, %v2169
        %v2553 = vmul.f32 %v339, %v2173
        %v2554 = vmul.f32 %v340, %v2177
        %v2555 = vmul.f32 %v341, %v2181
        %v2556 = vmul.f32 %v342, %v2185
        %v2557 = vmul.f32 %v343, %v2161
        %v2558 = vmul.f32 %v344, %v2165
        %v2559 = vmul.f32 %v345, %v2169
        %v2560 = vmul.f32 %v346, %v2173
        %v2561 = vmul.f32 %v347, %v2177
        %v2562 = vmul.f32 %v348, %v2181
        %v2563 = vmul.f32 %v349, %v2185
        %v2564 = vmul.f32 %v350, %v2161
        %v2565 = vmul.f32 %v351, %v2165
        %v2566 = vmul.f32 %v352, %v2169
        %v2567 = vmul.f32 %v353, %v2173
        %v2568 = vmul.f32 %v354, %v2177
        %v2569 = vmul.f32 %v355, %v2181
        %v2570 = vmul.f32 %v356, %v2185
        %v2571 = vmul.f32 %v357, %v2161
        %v2572 = vmul.f32 %v358, %v2165
        %v2573 = vmul.f32 %v359, %v2169
        %v2574 = vmul.f32 %v360, %v2173
        %v2575 = vmul.f32 %v361, %v2177
        %v2576 = vmul.f32 %v362, %v2181
        %v2577 = vmul.f32 %v363, %v2185
        %v2578 = vmul.f32 %v364, %v2161
        %v2579 = vmul.f32 %v365, %v2165
        %v2580 = vmul.f32 %v366, %v2169
        %v2581 = vmul.f32 %v367, %v2173
        %v2582 = vmul.f32 %v368, %v2177
        %v2583 = vmul.f32 %v369, %v2181
        %v2584 = vmul.f32 %v370, %v2185
        %v2585 = vmul.f32 %v371, %v2161
        %v2586 = vmul.f32 %v372, %v2165
        %v2587 = vmul.f32 %v373, %v2169
        %v2588 = vmul.f32 %v374, %v2173
        %v2589 = vmul.f32 %v375, %v2177
        %v2590 = vmul.f32 %v376, %v2181
        %v2591 = vmul.f32 %v377, %v2185
        %v2592 = vmul.f32 %v378, %v2161
        %v2593 = vmul.f32 %v379, %v2165
        %v2594 = vmul.f32 %v380, %v2169
        %v2595 = vmul.f32 %v381, %v2173
        %v2596 = vmul.f32 %v382, %v2177
        %v2597 = vmul.f32 %v383, %v2181
        %v2598 = vmul.f32 %v384, %v2185
        %v2599 = vmul.f32 %v385, %v2161
        %v2600 = vmul.f32 %v386, %v2165
        %v2601 = vmul.f32 %v387, %v2169
        %v2602 = vmul.f32 %v388, %v2173
        %v2603 = vmul.f32 %v389, %v2177
        %v2604 = vmul.f32 %v390, %v2181
        %v2605 = vmul.f32 %v391, %v2185
        %v2606 = vmul.f32 %v392, %v2161
        %v2607 = vmul.f32 %v393, %v2165
        %v2608 = vmul.f32 %v394, %v2169
        %v2609 = vmul.f32 %v395, %v2173
        %v2610 = vmul.f32 %v396, %v2177
        %v2611 = vmul.f32 %v397, %v2181
        %v2612 = vmul.f32 %v398, %v2185
        %v2613 = vmul.f32 %v399, %v2161
        %v2614 = vmul.f32 %v400, %v2165
        %v2615 = vmul.f32 %v401, %v2169
        %v2616 = vmul.f32 %v402, %v2173
        %v2617 = vmul.f32 %v403, %v2177
        %v2618 = vmul.f32 %v404, %v2181
        %v2619 = vmul.f32 %v405, %v2185
        %v2620 = vmul.f32 %v406, %v2161
        %v2621 = vmul.f32 %v407, %v2165
        %v2622 = vmul.f32 %v408, %v2169
        %v2623 = vmul.f32 %v409, %v2173
        %v2624 = vmul.f32 %v410, %v2177
        %v2625 = vmul.f32 %v411, %v2181
        %v2626 = vmul.f32 %v412, %v2185
        %v2627 = vmul.f32 %v413, %v2161
        %v2628 = vmul.f32 %v414, %v2165
        %v2629 = vmul.f32 %v415, %v2169
        %v2630 = vmul.f32 %v416, %v2173
        %v2631 = vmul.f32 %v417, %v2177
        %v2632 = vmul.f32 %v418, %v2181
        %v2633 = vmul.f32 %v419, %v2185
        %v2634 = vmul.f32 %v420, %v2161
        %v2635 = vmul.f32 %v421, %v2165
        %v2636 = vmul.f32 %v422, %v2169
        %v2637 = vmul.f32 %v423, %v2173
        %v2638 = vmul.f32 %v424, %v2177
        %v2639 = vmul.f32 %v425, %v2181
        %v2640 = vmul.f32 %v426, %v2185
        %v2641 = vmul.f32 %v427, %v2161
        %v2642 = vmul.f32 %v428, %v2165
        %v2643 = vmul.f32 %v429, %v2169
        %v2644 = vmul.f32 %v430, %v2173
        %v2645 = vmul.f32 %v431, %v2177
        %v2646 = vmul.f32 %v432, %v2181
        %v2647 = vmul.f32 %v433, %v2185
        %v2648 = vmul.f32 %v434, %v2161
        %v2649 = vmul.f32 %v435, %v2165
        %v2650 = vmul.f32 %v436, %v2169
        %v2651 = vmul.f32 %v437, %v2173
        %v2652 = vmul.f32 %v438, %v2177
        %v2653 = vmul.f32 %v439, %v2181
        %v2654 = vmul.f32 %v440, %v2185
        %v2655 = vmul.f32 %v441, %v2161
        %v2656 = vmul.f32 %v442, %v2165
        %v2657 = vmul.f32 %v443, %v2169
        %v2658 = vmul.f32 %v444, %v2173
        %v2659 = vmul.f32 %v445, %v2177
        %v2660 = vmul.f32 %v446, %v2181
        %v2661 = vmul.f32 %v447, %v2185
        %v2662 = vmul.f32 %v448, %v2189
        %v2663 = vmul.f32 %v449, %v2193
        %v2664 = vmul.f32 %v450, %v2197
        %v2665 = vmul.f32 %v451, %v2201
        %v2666 = vmul.f32 %v452, %v2205
        %v2667 = vmul.f32 %v453, %v2209
        %v2668 = vmul.f32 %v454, %v2213
        %v2669 = vmul.f32 %v455, %v2189
        %v2670 = vmul.f32 %v456, %v2193
        %v2671 = vmul.f32 %v457, %v2197
        %v2672 = vmul.f32 %v458, %v2201
        %v2673 = vmul.f32 %v459, %v2205
        %v2674 = vmul.f32 %v460, %v2209
        %v2675 = vmul.f32 %v461, %v2213
        %v2676 = vmul.f32 %v462, %v2189
        %v2677 = vmul.f32 %v463, %v2193
        %v2678 = vmul.f32 %v464, %v2197
        %v2679 = vmul.f32 %v465, %v2201
        %v2680 = vmul.f32 %v466, %v2205
        %v2681 = vmul.f32 %v467, %v2209
        %v2682 = vmul.f32 %v468, %v2213
        %v2683 = vmul.f32 %v469, %v2189
        %v2684 = vmul.f32 %v470, %v2193
        %v2685 = vmul.f32 %v471, %v2197
        %v2686 = vmul.f32 %v472, %v2201
        %v2687 = vmul.f32 %v473, %v2205
        %v2688 = vmul.f32 %v474, %v2209
        %v2689 = vmul.f32 %v475, %v2213
        %v2690 = vmul.f32 %v476, %v2189
        %v2691 = vmul.f32 %v477, %v2193
        %v2692 = vmul.f32 %v478, %v2197
        %v2693 = vmul.f32 %v479, %v2201
        %v2694 = vmul.f32 %v480, %v2205
        %v2695 = vmul.f32 %v481, %v2209
        %v2696 = vmul.f32 %v482, %v2213
        %v2697 = vmul.f32 %v483, %v2189
        %v2698 = vmul.f32 %v484, %v2193
        %v2699 = vmul.f32 %v485, %v2197
        %v2700 = vmul.f32 %v486, %v2201
        %v2701 = vmul.f32 %v487, %v2205
        %v2702 = vmul.f32 %v488, %v2209
        %v2703 = vmul.f32 %v489, %v2213
        %v2704 = vmul.f32 %v490, %v2189
        %v2705 = vmul.f32 %v491, %v2193
        %v2706 = vmul.f32 %v492, %v2197
        %v2707 = vmul.f32 %v493, %v2201
        %v2708 = vmul.f32 %v494, %v2205
        %v2709 = vmul.f32 %v495, %v2209
        %v2710 = vmul.f32 %v496, %v2213
        %v2711 = vmul.f32 %v497, %v2189
        %v2712 = vmul.f32 %v498, %v2193
        %v2713 = vmul.f32 %v499, %v2197
        %v2714 = vmul.f32 %v500, %v2201
        %v2715 = vmul.f32 %v501, %v2205
        %v2716 = vmul.f32 %v502, %v2209
        %v2717 = vmul.f32 %v503, %v2213
        %v2718 = vmul.f32 %v504, %v2189
        %v2719 = vmul.f32 %v505, %v2193
        %v2720 = vmul.f32 %v506, %v2197
        %v2721 = vmul.f32 %v507, %v2201
        %v2722 = vmul.f32 %v508, %v2205
        %v2723 = vmul.f32 %v509, %v2209
        %v2724 = vmul.f32 %v510, %v2213
        %v2725 = vmul.f32 %v511, %v2189
        %v2726 = vmul.f32 %v512, %v2193
        %v2727 = vmul.f32 %v513, %v2197
        %v2728 = vmul.f32 %v514, %v2201
        %v2729 = vmul.f32 %v515, %v2205
        %v2730 = vmul.f32 %v516, %v2209
        %v2731 = vmul.f32 %v517, %v2213
        %v2732 = vmul.f32 %v518, %v2189
        %v2733 = vmul.f32 %v519, %v2193
        %v2734 = vmul.f32 %v520, %v2197
        %v2735 = vmul.f32 %v521, %v2201
        %v2736 = vmul.f32 %v522, %v2205
        %v2737 = vmul.f32 %v523, %v2209
        %v2738 = vmul.f32 %v524, %v2213
        %v2739 = vmul.f32 %v525, %v2189
        %v2740 = vmul.f32 %v526, %v2193
        %v2741 = vmul.f32 %v527, %v2197
        %v2742 = vmul.f32 %v528, %v2201
        %v2743 = vmul.f32 %v529, %v2205
        %v2744 = vmul.f32 %v530, %v2209
        %v2745 = vmul.f32 %v531, %v2213
        %v2746 = vmul.f32 %v532, %v2189
        %v2747 = vmul.f32 %v533, %v2193
        %v2748 = vmul.f32 %v534, %v2197
        %v2749 = vmul.f32 %v535, %v2201
        %v2750 = vmul.f32 %v536, %v2205
        %v2751 = vmul.f32 %v537, %v2209
        %v2752 = vmul.f32 %v538, %v2213
        %v2753 = vmul.f32 %v539, %v2189
        %v2754 = vmul.f32 %v540, %v2193
        %v2755 = vmul.f32 %v541, %v2197
        %v2756 = vmul.f32 %v542, %v2201
        %v2757 = vmul.f32 %v543, %v2205
        %v2758 = vmul.f32 %v544, %v2209
        %v2759 = vmul.f32 %v545, %v2213
        %v2760 = vmul.f32 %v546, %v2189
        %v2761 = vmul.f32 %v547, %v2193
        %v2762 = vmul.f32 %v548, %v2197
        %v2763 = vmul.f32 %v549, %v2201
        %v2764 = vmul.f32 %v550, %v2205
        %v2765 = vmul.f32 %v551, %v2209
        %v2766 = vmul.f32 %v552, %v2213
        %v2767 = vmul.f32 %v553, %v2189
        %v2768 = vmul.f32 %v554, %v2193
        %v2769 = vmul.f32 %v555, %v2197
        %v2770 = vmul.f32 %v556, %v2201
        %v2771 = vmul.f32 %v557, %v2205
        %v2772 = vmul.f32 %v558, %v2209
        %v2773 = vmul.f32 %v559, %v2213
        %v2774 = vmul.f32 %v560, %v2189
        %v2775 = vmul.f32 %v561, %v2193
        %v2776 = vmul.f32 %v562, %v2197
        %v2777 = vmul.f32 %v563, %v2201
        %v2778 = vmul.f32 %v564, %v2205
        %v2779 = vmul.f32 %v565, %v2209
        %v2780 = vmul.f32 %v566, %v2213
        %v2781 = vmul.f32 %v567, %v2189
        %v2782 = vmul.f32 %v568, %v2193
        %v2783 = vmul.f32 %v569, %v2197
        %v2784 = vmul.f32 %v570, %v2201
        %v2785 = vmul.f32 %v571, %v2205
        %v2786 = vmul.f32 %v572, %v2209
        %v2787 = vmul.f32 %v573, %v2213
        %v2788 = vmul.f32 %v574, %v2189
        %v2789 = vmul.f32 %v575, %v2193
        %v2790 = vmul.f32 %v576, %v2197
        %v2791 = vmul.f32 %v577, %v2201
        %v2792 = vmul.f32 %v578, %v2205
        %v2793 = vmul.f32 %v579, %v2209
        %v2794 = vmul.f32 %v580, %v2213
        %v2795 = vmul.f32 %v581, %v2189
        %v2796 = vmul.f32 %v582, %v2193
        %v2797 = vmul.f32 %v583, %v2197
        %v2798 = vmul.f32 %v584, %v2201
        %v2799 = vmul.f32 %v585, %v2205
        %v2800 = vmul.f32 %v586, %v2209
        %v2801 = vmul.f32 %v587, %v2213
        %v2802 = vmul.f32 %v588, %v2189
        %v2803 = vmul.f32 %v589, %v2193
        %v2804 = vmul.f32 %v590, %v2197
        %v2805 = vmul.f32 %v591, %v2201
        %v2806 = vmul.f32 %v592, %v2205
        %v2807 = vmul.f32 %v593, %v2209
        %v2808 = vmul.f32 %v594, %v2213
        %v2809 = vmul.f32 %v595, %v2189
        %v2810 = vmul.f32 %v596, %v2193
        %v2811 = vmul.f32 %v597, %v2197
        %v2812 = vmul.f32 %v598, %v2201
        %v2813 = vmul.f32 %v599, %v2205
        %v2814 = vmul.f32 %v600, %v2209
        %v2815 = vmul.f32 %v601, %v2213
        %v2816 = vmul.f32 %v602, %v2189
        %v2817 = vmul.f32 %v603, %v2193
        %v2818 = vmul.f32 %v604, %v2197
        %v2819 = vmul.f32 %v605, %v2201
        %v2820 = vmul.f32 %v606, %v2205
        %v2821 = vmul.f32 %v607, %v2209
        %v2822 = vmul.f32 %v608, %v2213
        %v2823 = vmul.f32 %v609, %v2189
        %v2824 = vmul.f32 %v610, %v2193
        %v2825 = vmul.f32 %v611, %v2197
        %v2826 = vmul.f32 %v612, %v2201
        %v2827 = vmul.f32 %v613, %v2205
        %v2828 = vmul.f32 %v614, %v2209
        %v2829 = vmul.f32 %v615, %v2213
        %v2830 = vmul.f32 %v616, %v2189
        %v2831 = vmul.f32 %v617, %v2193
        %v2832 = vmul.f32 %v618, %v2197
        %v2833 = vmul.f32 %v619, %v2201
        %v2834 = vmul.f32 %v620, %v2205
        %v2835 = vmul.f32 %v621, %v2209
        %v2836 = vmul.f32 %v622, %v2213
        %v2837 = vmul.f32 %v623, %v2189
        %v2838 = vmul.f32 %v624, %v2193
        %v2839 = vmul.f32 %v625, %v2197
        %v2840 = vmul.f32 %v626, %v2201
        %v2841 = vmul.f32 %v627, %v2205
        %v2842 = vmul.f32 %v628, %v2209
        %v2843 = vmul.f32 %v629, %v2213
        %v2844 = vmul.f32 %v630, %v2189
        %v2845 = vmul.f32 %v631, %v2193
        %v2846 = vmul.f32 %v632, %v2197
        %v2847 = vmul.f32 %v633, %v2201
        %v2848 = vmul.f32 %v634, %v2205
        %v2849 = vmul.f32 %v635, %v2209
        %v2850 = vmul.f32 %v636, %v2213
        %v2851 = vmul.f32 %v637, %v2189
        %v2852 = vmul.f32 %v638, %v2193
        %v2853 = vmul.f32 %v639, %v2197
        %v2854 = vmul.f32 %v640, %v2201
        %v2855 = vmul.f32 %v641, %v2205
        %v2856 = vmul.f32 %v642, %v2209
        %v2857 = vmul.f32 %v643, %v2213
        %v2858 = vmul.f32 %v644, %v2189
        %v2859 = vmul.f32 %v645, %v2193
        %v2860 = vmul.f32 %v646, %v2197
        %v2861 = vmul.f32 %v647, %v2201
        %v2862 = vmul.f32 %v648, %v2205
        %v2863 = vmul.f32 %v649, %v2209
        %v2864 = vmul.f32 %v650, %v2213
        %v2865 = vmul.f32 %v651, %v2189
        %v2866 = vmul.f32 %v652, %v2193
        %v2867 = vmul.f32 %v653, %v2197
        %v2868 = vmul.f32 %v654, %v2201
        %v2869 = vmul.f32 %v655, %v2205
        %v2870 = vmul.f32 %v656, %v2209
        %v2871 = vmul.f32 %v657, %v2213
        %v2872 = vmul.f32 %v658, %v2189
        %v2873 = vmul.f32 %v659, %v2193
        %v2874 = vmul.f32 %v660, %v2197
        %v2875 = vmul.f32 %v661, %v2201
        %v2876 = vmul.f32 %v662, %v2205
        %v2877 = vmul.f32 %v663, %v2209
        %v2878 = vmul.f32 %v664, %v2213
        %v2879 = vmul.f32 %v665, %v2189
        %v2880 = vmul.f32 %v666, %v2193
        %v2881 = vmul.f32 %v667, %v2197
        %v2882 = vmul.f32 %v668, %v2201
        %v2883 = vmul.f32 %v669, %v2205
        %v2884 = vmul.f32 %v670, %v2209
        %v2885 = vmul.f32 %v671, %v2213
        %v2886 = vmul.f32 %v672, %v2217
        %v2887 = vmul.f32 %v673, %v2221
        %v2888 = vmul.f32 %v674, %v2225
        %v2889 = vmul.f32 %v675, %v2229
        %v2890 = vmul.f32 %v676, %v2233
        %v2891 = vmul.f32 %v677, %v2237
        %v2892 = vmul.f32 %v678, %v2241
        %v2893 = vmul.f32 %v679, %v2217
        %v2894 = vmul.f32 %v680, %v2221
        %v2895 = vmul.f32 %v681, %v2225
        %v2896 = vmul.f32 %v682, %v2229
        %v2897 = vmul.f32 %v683, %v2233
        %v2898 = vmul.f32 %v684, %v2237
        %v2899 = vmul.f32 %v685, %v2241
        %v2900 = vmul.f32 %v686, %v2217
        %v2901 = vmul.f32 %v687, %v2221
        %v2902 = vmul.f32 %v688, %v2225
        %v2903 = vmul.f32 %v689, %v2229
        %v2904 = vmul.f32 %v690, %v2233
        %v2905 = vmul.f32 %v691, %v2237
        %v2906 = vmul.f32 %v692, %v2241
        %v2907 = vmul.f32 %v693, %v2217
        %v2908 = vmul.f32 %v694, %v2221
        %v2909 = vmul.f32 %v695, %v2225
        %v2910 = vmul.f32 %v696, %v2229
        %v2911 = vmul.f32 %v697, %v2233
        %v2912 = vmul.f32 %v698, %v2237
        %v2913 = vmul.f32 %v699, %v2241
        %v2914 = vmul.f32 %v700, %v2217
        %v2915 = vmul.f32 %v701, %v2221
        %v2916 = vmul.f32 %v702, %v2225
        %v2917 = vmul.f32 %v703, %v2229
        %v2918 = vmul.f32 %v704, %v2233
        %v2919 = vmul.f32 %v705, %v2237
        %v2920 = vmul.f32 %v706, %v2241
        %v2921 = vmul.f32 %v707, %v2217
        %v2922 = vmul.f32 %v708, %v2221
        %v2923 = vmul.f32 %v709, %v2225
        %v2924 = vmul.f32 %v710, %v2229
        %v2925 = vmul.f32 %v711, %v2233
        %v2926 = vmul.f32 %v712, %v2237
        %v2927 = vmul.f32 %v713, %v2241
        %v2928 = vmul.f32 %v714, %v2217
        %v2929 = vmul.f32 %v715, %v2221
        %v2930 = vmul.f32 %v716, %v2225
        %v2931 = vmul.f32 %v717, %v2229
        %v2932 = vmul.f32 %v718, %v2233
        %v2933 = vmul.f32 %v719, %v2237
        %v2934 = vmul.f32 %v720, %v2241
        %v2935 = vmul.f32 %v721, %v2217
        %v2936 = vmul.f32 %v722, %v2221
        %v2937 = vmul.f32 %v723, %v2225
        %v2938 = vmul.f32 %v724, %v2229
        %v2939 = vmul.f32 %v725, %v2233
        %v2940 = vmul.f32 %v726, %v2237
        %v2941 = vmul.f32 %v727, %v2241
        %v2942 = vmul.f32 %v728, %v2217
        %v2943 = vmul.f32 %v729, %v2221
        %v2944 = vmul.f32 %v730, %v2225
        %v2945 = vmul.f32 %v731, %v2229
        %v2946 = vmul.f32 %v732, %v2233
        %v2947 = vmul.f32 %v733, %v2237
        %v2948 = vmul.f32 %v734, %v2241
        %v2949 = vmul.f32 %v735, %v2217
        %v2950 = vmul.f32 %v736, %v2221
        %v2951 = vmul.f32 %v737, %v2225
        %v2952 = vmul.f32 %v738, %v2229
        %v2953 = vmul.f32 %v739, %v2233
        %v2954 = vmul.f32 %v740, %v2237
        %v2955 = vmul.f32 %v741, %v2241
        %v2956 = vmul.f32 %v742, %v2217
        %v2957 = vmul.f32 %v743, %v2221
        %v2958 = vmul.f32 %v744, %v2225
        %v2959 = vmul.f32 %v745, %v2229
        %v2960 = vmul.f32 %v746, %v2233
        %v2961 = vmul.f32 %v747, %v2237
        %v2962 = vmul.f32 %v748, %v2241
        %v2963 = vmul.f32 %v749, %v2217
        %v2964 = vmul.f32 %v750, %v2221
        %v2965 = vmul.f32 %v751, %v2225
        %v2966 = vmul.f32 %v752, %v2229
        %v2967 = vmul.f32 %v753, %v2233
        %v2968 = vmul.f32 %v754, %v2237
        %v2969 = vmul.f32 %v755, %v2241
        %v2970 = vmul.f32 %v756, %v2217
        %v2971 = vmul.f32 %v757, %v2221
        %v2972 = vmul.f32 %v758, %v2225
        %v2973 = vmul.f32 %v759, %v2229
        %v2974 = vmul.f32 %v760, %v2233
        %v2975 = vmul.f32 %v761, %v2237
        %v2976 = vmul.f32 %v762, %v2241
        %v2977 = vmul.f32 %v763, %v2217
        %v2978 = vmul.f32 %v764, %v2221
        %v2979 = vmul.f32 %v765, %v2225
        %v2980 = vmul.f32 %v766, %v2229
        %v2981 = vmul.f32 %v767, %v2233
        %v2982 = vmul.f32 %v768, %v2237
        %v2983 = vmul.f32 %v769, %v2241
        %v2984 = vmul.f32 %v770, %v2217
        %v2985 = vmul.f32 %v771, %v2221
        %v2986 = vmul.f32 %v772, %v2225
        %v2987 = vmul.f32 %v773, %v2229
        %v2988 = vmul.f32 %v774, %v2233
        %v2989 = vmul.f32 %v775, %v2237
        %v2990 = vmul.f32 %v776, %v2241
        %v2991 = vmul.f32 %v777, %v2217
        %v2992 = vmul.f32 %v778, %v2221
        %v2993 = vmul.f32 %v779, %v2225
        %v2994 = vmul.f32 %v780, %v2229
        %v2995 = vmul.f32 %v781, %v2233
        %v2996 = vmul.f32 %v782, %v2237
        %v2997 = vmul.f32 %v783, %v2241
        %v2998 = vmul.f32 %v784, %v2217
        %v2999 = vmul.f32 %v785, %v2221
        %v3000 = vmul.f32 %v786, %v2225
        %v3001 = vmul.f32 %v787, %v2229
        %v3002 = vmul.f32 %v788, %v2233
        %v3003 = vmul.f32 %v789, %v2237
        %v3004 = vmul.f32 %v790, %v2241
        %v3005 = vmul.f32 %v791, %v2217
        %v3006 = vmul.f32 %v792, %v2221
        %v3007 = vmul.f32 %v793, %v2225
        %v3008 = vmul.f32 %v794, %v2229
        %v3009 = vmul.f32 %v795, %v2233
        %v3010 = vmul.f32 %v796, %v2237
        %v3011 = vmul.f32 %v797, %v2241
        %v3012 = vmul.f32 %v798, %v2217
        %v3013 = vmul.f32 %v799, %v2221
        %v3014 = vmul.f32 %v800, %v2225
        %v3015 = vmul.f32 %v801, %v2229
        %v3016 = vmul.f32 %v802, %v2233
        %v3017 = vmul.f32 %v803, %v2237
        %v3018 = vmul.f32 %v804, %v2241
        %v3019 = vmul.f32 %v805, %v2217
        %v3020 = vmul.f32 %v806, %v2221
        %v3021 = vmul.f32 %v807, %v2225
        %v3022 = vmul.f32 %v808, %v2229
        %v3023 = vmul.f32 %v809, %v2233
        %v3024 = vmul.f32 %v810, %v2237
        %v3025 = vmul.f32 %v811, %v2241
        %v3026 = vmul.f32 %v812, %v2217
        %v3027 = vmul.f32 %v813, %v2221
        %v3028 = vmul.f32 %v814, %v2225
        %v3029 = vmul.f32 %v815, %v2229
        %v3030 = vmul.f32 %v816, %v2233
        %v3031 = vmul.f32 %v817, %v2237
        %v3032 = vmul.f32 %v818, %v2241
        %v3033 = vmul.f32 %v819, %v2217
        %v3034 = vmul.f32 %v820, %v2221
        %v3035 = vmul.f32 %v821, %v2225
        %v3036 = vmul.f32 %v822, %v2229
        %v3037 = vmul.f32 %v823, %v2233
        %v3038 = vmul.f32 %v824, %v2237
        %v3039 = vmul.f32 %v825, %v2241
        %v3040 = vmul.f32 %v826, %v2217
        %v3041 = vmul.f32 %v827, %v2221
        %v3042 = vmul.f32 %v828, %v2225
        %v3043 = vmul.f32 %v829, %v2229
        %v3044 = vmul.f32 %v830, %v2233
        %v3045 = vmul.f32 %v831, %v2237
        %v3046 = vmul.f32 %v832, %v2241
        %v3047 = vmul.f32 %v833, %v2217
        %v3048 = vmul.f32 %v834, %v2221
        %v3049 = vmul.f32 %v835, %v2225
        %v3050 = vmul.f32 %v836, %v2229
        %v3051 = vmul.f32 %v837, %v2233
        %v3052 = vmul.f32 %v838, %v2237
        %v3053 = vmul.f32 %v839, %v2241
        %v3054 = vmul.f32 %v840, %v2217
        %v3055 = vmul.f32 %v841, %v2221
        %v3056 = vmul.f32 %v842, %v2225
        %v3057 = vmul.f32 %v843, %v2229
        %v3058 = vmul.f32 %v844, %v2233
        %v3059 = vmul.f32 %v845, %v2237
        %v3060 = vmul.f32 %v846, %v2241
        %v3061 = vmul.f32 %v847, %v2217
        %v3062 = vmul.f32 %v848, %v2221
        %v3063 = vmul.f32 %v849, %v2225
        %v3064 = vmul.f32 %v850, %v2229
        %v3065 = vmul.f32 %v851, %v2233
        %v3066 = vmul.f32 %v852, %v2237
        %v3067 = vmul.f32 %v853, %v2241
        %v3068 = vmul.f32 %v854, %v2217
        %v3069 = vmul.f32 %v855, %v2221
        %v3070 = vmul.f32 %v856, %v2225
        %v3071 = vmul.f32 %v857, %v2229
        %v3072 = vmul.f32 %v858, %v2233
        %v3073 = vmul.f32 %v859, %v2237
        %v3074 = vmul.f32 %v860, %v2241
        %v3075 = vmul.f32 %v861, %v2217
        %v3076 = vmul.f32 %v862, %v2221
        %v3077 = vmul.f32 %v863, %v2225
        %v3078 = vmul.f32 %v864, %v2229
        %v3079 = vmul.f32 %v865, %v2233
        %v3080 = vmul.f32 %v866, %v2237
        %v3081 = vmul.f32 %v867, %v2241
        %v3082 = vmul.f32 %v868, %v2217
        %v3083 = vmul.f32 %v869, %v2221
        %v3084 = vmul.f32 %v870, %v2225
        %v3085 = vmul.f32 %v871, %v2229
        %v3086 = vmul.f32 %v872, %v2233
        %v3087 = vmul.f32 %v873, %v2237
        %v3088 = vmul.f32 %v874, %v2241
        %v3089 = vmul.f32 %v875, %v2217
        %v3090 = vmul.f32 %v876, %v2221
        %v3091 = vmul.f32 %v877, %v2225
        %v3092 = vmul.f32 %v878, %v2229
        %v3093 = vmul.f32 %v879, %v2233
        %v3094 = vmul.f32 %v880, %v2237
        %v3095 = vmul.f32 %v881, %v2241
        %v3096 = vmul.f32 %v882, %v2217
        %v3097 = vmul.f32 %v883, %v2221
        %v3098 = vmul.f32 %v884, %v2225
        %v3099 = vmul.f32 %v885, %v2229
        %v3100 = vmul.f32 %v886, %v2233
        %v3101 = vmul.f32 %v887, %v2237
        %v3102 = vmul.f32 %v888, %v2241
        %v3103 = vmul.f32 %v889, %v2217
        %v3104 = vmul.f32 %v890, %v2221
        %v3105 = vmul.f32 %v891, %v2225
        %v3106 = vmul.f32 %v892, %v2229
        %v3107 = vmul.f32 %v893, %v2233
        %v3108 = vmul.f32 %v894, %v2237
        %v3109 = vmul.f32 %v895, %v2241
        %v3110 = vmul.f32 %v896, %v2245
        %v3111 = vmul.f32 %v897, %v2249
        %v3112 = vmul.f32 %v898, %v2253
        %v3113 = vmul.f32 %v899, %v2257
        %v3114 = vmul.f32 %v900, %v2261
        %v3115 = vmul.f32 %v901, %v2265
        %v3116 = vmul.f32 %v902, %v2269
        %v3117 = vmul.f32 %v903, %v2245
        %v3118 = vmul.f32 %v904, %v2249
        %v3119 = vmul.f32 %v905, %v2253
        %v3120 = vmul.f32 %v906, %v2257
        %v3121 = vmul.f32 %v907, %v2261
        %v3122 = vmul.f32 %v908, %v2265
        %v3123 = vmul.f32 %v909, %v2269
        %v3124 = vmul.f32 %v910, %v2245
        %v3125 = vmul.f32 %v911, %v2249
        %v3126 = vmul.f32 %v912, %v2253
        %v3127 = vmul.f32 %v913, %v2257
        %v3128 = vmul.f32 %v914, %v2261
        %v3129 = vmul.f32 %v915, %v2265
        %v3130 = vmul.f32 %v916, %v2269
        %v3131 = vmul.f32 %v917, %v2245
        %v3132 = vmul.f32 %v918, %v2249
        %v3133 = vmul.f32 %v919, %v2253
        %v3134 = vmul.f32 %v920, %v2257
        %v3135 = vmul.f32 %v921, %v2261
        %v3136 = vmul.f32 %v922, %v2265
        %v3137 = vmul.f32 %v923, %v2269
        %v3138 = vmul.f32 %v924, %v2245
        %v3139 = vmul.f32 %v925, %v2249
        %v3140 = vmul.f32 %v926, %v2253
        %v3141 = vmul.f32 %v927, %v2257
        %v3142 = vmul.f32 %v928, %v2261
        %v3143 = vmul.f32 %v929, %v2265
        %v3144 = vmul.f32 %v930, %v2269
        %v3145 = vmul.f32 %v931, %v2245
        %v3146 = vmul.f32 %v932, %v2249
        %v3147 = vmul.f32 %v933, %v2253
        %v3148 = vmul.f32 %v934, %v2257
        %v3149 = vmul.f32 %v935, %v2261
        %v3150 = vmul.f32 %v936, %v2265
        %v3151 = vmul.f32 %v937, %v2269
        %v3152 = vmul.f32 %v938, %v2245
        %v3153 = vmul.f32 %v939, %v2249
        %v3154 = vmul.f32 %v940, %v2253
        %v3155 = vmul.f32 %v941, %v2257
        %v3156 = vmul.f32 %v942, %v2261
        %v3157 = vmul.f32 %v943, %v2265
        %v3158 = vmul.f32 %v944, %v2269
        %v3159 = vmul.f32 %v945, %v2245
        %v3160 = vmul.f32 %v946, %v2249
        %v3161 = vmul.f32 %v947, %v2253
        %v3162 = vmul.f32 %v948, %v2257
        %v3163 = vmul.f32 %v949, %v2261
        %v3164 = vmul.f32 %v950, %v2265
        %v3165 = vmul.f32 %v951, %v2269
        %v3166 = vmul.f32 %v952, %v2245
        %v3167 = vmul.f32 %v953, %v2249
        %v3168 = vmul.f32 %v954, %v2253
        %v3169 = vmul.f32 %v955, %v2257
        %v3170 = vmul.f32 %v956, %v2261
        %v3171 = vmul.f32 %v957, %v2265
        %v3172 = vmul.f32 %v958, %v2269
        %v3173 = vmul.f32 %v959, %v2245
        %v3174 = vmul.f32 %v960, %v2249
        %v3175 = vmul.f32 %v961, %v2253
        %v3176 = vmul.f32 %v962, %v2257
        %v3177 = vmul.f32 %v963, %v2261
        %v3178 = vmul.f32 %v964, %v2265
        %v3179 = vmul.f32 %v965, %v2269
        %v3180 = vmul.f32 %v966, %v2245
        %v3181 = vmul.f32 %v967, %v2249
        %v3182 = vmul.f32 %v968, %v2253
        %v3183 = vmul.f32 %v969, %v2257
        %v3184 = vmul.f32 %v970, %v2261
        %v3185 = vmul.f32 %v971, %v2265
        %v3186 = vmul.f32 %v972, %v2269
        %v3187 = vmul.f32 %v973, %v2245
        %v3188 = vmul.f32 %v974, %v2249
        %v3189 = vmul.f32 %v975, %v2253
        %v3190 = vmul.f32 %v976, %v2257
        %v3191 = vmul.f32 %v977, %v2261
        %v3192 = vmul.f32 %v978, %v2265
        %v3193 = vmul.f32 %v979, %v2269
        %v3194 = vmul.f32 %v980, %v2245
        %v3195 = vmul.f32 %v981, %v2249
        %v3196 = vmul.f32 %v982, %v2253
        %v3197 = vmul.f32 %v983, %v2257
        %v3198 = vmul.f32 %v984, %v2261
        %v3199 = vmul.f32 %v985, %v2265
        %v3200 = vmul.f32 %v986, %v2269
        %v3201 = vmul.f32 %v987, %v2245
        %v3202 = vmul.f32 %v988, %v2249
        %v3203 = vmul.f32 %v989, %v2253
        %v3204 = vmul.f32 %v990, %v2257
        %v3205 = vmul.f32 %v991, %v2261
        %v3206 = vmul.f32 %v992, %v2265
        %v3207 = vmul.f32 %v993, %v2269
        %v3208 = vmul.f32 %v994, %v2245
        %v3209 = vmul.f32 %v995, %v2249
        %v3210 = vmul.f32 %v996, %v2253
        %v3211 = vmul.f32 %v997, %v2257
        %v3212 = vmul.f32 %v998, %v2261
        %v3213 = vmul.f32 %v999, %v2265
        %v3214 = vmul.f32 %v1000, %v2269
        %v3215 = vmul.f32 %v1001, %v2245
        %v3216 = vmul.f32 %v1002, %v2249
        %v3217 = vmul.f32 %v1003, %v2253
        %v3218 = vmul.f32 %v1004, %v2257
        %v3219 = vmul.f32 %v1005, %v2261
        %v3220 = vmul.f32 %v1006, %v2265
        %v3221 = vmul.f32 %v1007, %v2269
        %v3222 = vmul.f32 %v1008, %v2245
        %v3223 = vmul.f32 %v1009, %v2249
        %v3224 = vmul.f32 %v1010, %v2253
        %v3225 = vmul.f32 %v1011, %v2257
        %v3226 = vmul.f32 %v1012, %v2261
        %v3227 = vmul.f32 %v1013, %v2265
        %v3228 = vmul.f32 %v1014, %v2269
        %v3229 = vmul.f32 %v1015, %v2245
        %v3230 = vmul.f32 %v1016, %v2249
        %v3231 = vmul.f32 %v1017, %v2253
        %v3232 = vmul.f32 %v1018, %v2257
        %v3233 = vmul.f32 %v1019, %v2261
        %v3234 = vmul.f32 %v1020, %v2265
        %v3235 = vmul.f32 %v1021, %v2269
        %v3236 = vmul.f32 %v1022, %v2245
        %v3237 = vmul.f32 %v1023, %v2249
        %v3238 = vmul.f32 %v1024, %v2253
        %v3239 = vmul.f32 %v1025, %v2257
        %v3240 = vmul.f32 %v1026, %v2261
        %v3241 = vmul.f32 %v1027, %v2265
        %v3242 = vmul.f32 %v1028, %v2269
        %v3243 = vmul.f32 %v1029, %v2245
        %v3244 = vmul.f32 %v1030, %v2249
        %v3245 = vmul.f32 %v1031, %v2253
        %v3246 = vmul.f32 %v1032, %v2257
        %v3247 = vmul.f32 %v1033, %v2261
        %v3248 = vmul.f32 %v1034, %v2265
        %v3249 = vmul.f32 %v1035, %v2269
        %v3250 = vmul.f32 %v1036, %v2245
        %v3251 = vmul.f32 %v1037, %v2249
        %v3252 = vmul.f32 %v1038, %v2253
        %v3253 = vmul.f32 %v1039, %v2257
        %v3254 = vmul.f32 %v1040, %v2261
        %v3255 = vmul.f32 %v1041, %v2265
        %v3256 = vmul.f32 %v1042, %v2269
        %v3257 = vmul.f32 %v1043, %v2245
        %v3258 = vmul.f32 %v1044, %v2249
        %v3259 = vmul.f32 %v1045, %v2253
        %v3260 = vmul.f32 %v1046, %v2257
        %v3261 = vmul.f32 %v1047, %v2261
        %v3262 = vmul.f32 %v1048, %v2265
        %v3263 = vmul.f32 %v1049, %v2269
        %v3264 = vmul.f32 %v1050, %v2245
        %v3265 = vmul.f32 %v1051, %v2249
        %v3266 = vmul.f32 %v1052, %v2253
        %v3267 = vmul.f32 %v1053, %v2257
        %v3268 = vmul.f32 %v1054, %v2261
        %v3269 = vmul.f32 %v1055, %v2265
        %v3270 = vmul.f32 %v1056, %v2269
        %v3271 = vmul.f32 %v1057, %v2245
        %v3272 = vmul.f32 %v1058, %v2249
        %v3273 = vmul.f32 %v1059, %v2253
        %v3274 = vmul.f32 %v1060, %v2257
        %v3275 = vmul.f32 %v1061, %v2261
        %v3276 = vmul.f32 %v1062, %v2265
        %v3277 = vmul.f32 %v1063, %v2269
        %v3278 = vmul.f32 %v1064, %v2245
        %v3279 = vmul.f32 %v1065, %v2249
        %v3280 = vmul.f32 %v1066, %v2253
        %v3281 = vmul.f32 %v1067, %v2257
        %v3282 = vmul.f32 %v1068, %v2261
        %v3283 = vmul.f32 %v1069, %v2265
        %v3284 = vmul.f32 %v1070, %v2269
        %v3285 = vmul.f32 %v1071, %v2245
        %v3286 = vmul.f32 %v1072, %v2249
        %v3287 = vmul.f32 %v1073, %v2253
        %v3288 = vmul.f32 %v1074, %v2257
        %v3289 = vmul.f32 %v1075, %v2261
        %v3290 = vmul.f32 %v1076, %v2265
        %v3291 = vmul.f32 %v1077, %v2269
        %v3292 = vmul.f32 %v1078, %v2245
        %v3293 = vmul.f32 %v1079, %v2249
        %v3294 = vmul.f32 %v1080, %v2253
        %v3295 = vmul.f32 %v1081, %v2257
        %v3296 = vmul.f32 %v1082, %v2261
        %v3297 = vmul.f32 %v1083, %v2265
        %v3298 = vmul.f32 %v1084, %v2269
        %v3299 = vmul.f32 %v1085, %v2245
        %v3300 = vmul.f32 %v1086, %v2249
        %v3301 = vmul.f32 %v1087, %v2253
        %v3302 = vmul.f32 %v1088, %v2257
        %v3303 = vmul.f32 %v1089, %v2261
        %v3304 = vmul.f32 %v1090, %v2265
        %v3305 = vmul.f32 %v1091, %v2269
        %v3306 = vmul.f32 %v1092, %v2245
        %v3307 = vmul.f32 %v1093, %v2249
        %v3308 = vmul.f32 %v1094, %v2253
        %v3309 = vmul.f32 %v1095, %v2257
        %v3310 = vmul.f32 %v1096, %v2261
        %v3311 = vmul.f32 %v1097, %v2265
        %v3312 = vmul.f32 %v1098, %v2269
        %v3313 = vmul.f32 %v1099, %v2245
        %v3314 = vmul.f32 %v1100, %v2249
        %v3315 = vmul.f32 %v1101, %v2253
        %v3316 = vmul.f32 %v1102, %v2257
        %v3317 = vmul.f32 %v1103, %v2261
        %v3318 = vmul.f32 %v1104, %v2265
        %v3319 = vmul.f32 %v1105, %v2269
        %v3320 = vmul.f32 %v1106, %v2245
        %v3321 = vmul.f32 %v1107, %v2249
        %v3322 = vmul.f32 %v1108, %v2253
        %v3323 = vmul.f32 %v1109, %v2257
        %v3324 = vmul.f32 %v1110, %v2261
        %v3325 = vmul.f32 %v1111, %v2265
        %v3326 = vmul.f32 %v1112, %v2269
        %v3327 = vmul.f32 %v1113, %v2245
        %v3328 = vmul.f32 %v1114, %v2249
        %v3329 = vmul.f32 %v1115, %v2253
        %v3330 = vmul.f32 %v1116, %v2257
        %v3331 = vmul.f32 %v1117, %v2261
        %v3332 = vmul.f32 %v1118, %v2265
        %v3333 = vmul.f32 %v1119, %v2269
        %v3334 = vmul.f32 %v1120, %v2273
        %v3335 = vmul.f32 %v1121, %v2277
        %v3336 = vmul.f32 %v1122, %v2281
        %v3337 = vmul.f32 %v1123, %v2285
        %v3338 = vmul.f32 %v1124, %v2289
        %v3339 = vmul.f32 %v1125, %v2293
        %v3340 = vmul.f32 %v1126, %v2297
        %v3341 = vmul.f32 %v1127, %v2273
        %v3342 = vmul.f32 %v1128, %v2277
        %v3343 = vmul.f32 %v1129, %v2281
        %v3344 = vmul.f32 %v1130, %v2285
        %v3345 = vmul.f32 %v1131, %v2289
        %v3346 = vmul.f32 %v1132, %v2293
        %v3347 = vmul.f32 %v1133, %v2297
        %v3348 = vmul.f32 %v1134, %v2273
        %v3349 = vmul.f32 %v1135, %v2277
        %v3350 = vmul.f32 %v1136, %v2281
        %v3351 = vmul.f32 %v1137, %v2285
        %v3352 = vmul.f32 %v1138, %v2289
        %v3353 = vmul.f32 %v1139, %v2293
        %v3354 = vmul.f32 %v1140, %v2297
        %v3355 = vmul.f32 %v1141, %v2273
        %v3356 = vmul.f32 %v1142, %v2277
        %v3357 = vmul.f32 %v1143, %v2281
        %v3358 = vmul.f32 %v1144, %v2285
        %v3359 = vmul.f32 %v1145, %v2289
        %v3360 = vmul.f32 %v1146, %v2293
        %v3361 = vmul.f32 %v1147, %v2297
        %v3362 = vmul.f32 %v1148, %v2273
        %v3363 = vmul.f32 %v1149, %v2277
        %v3364 = vmul.f32 %v1150, %v2281
        %v3365 = vmul.f32 %v1151, %v2285
        %v3366 = vmul.f32 %v1152, %v2289
        %v3367 = vmul.f32 %v1153, %v2293
        %v3368 = vmul.f32 %v1154, %v2297
        %v3369 = vmul.f32 %v1155, %v2273
        %v3370 = vmul.f32 %v1156, %v2277
        %v3371 = vmul.f32 %v1157, %v2281
        %v3372 = vmul.f32 %v1158, %v2285
        %v3373 = vmul.f32 %v1159, %v2289
        %v3374 = vmul.f32 %v1160, %v2293
        %v3375 = vmul.f32 %v1161, %v2297
        %v3376 = vmul.f32 %v1162, %v2273
        %v3377 = vmul.f32 %v1163, %v2277
        %v3378 = vmul.f32 %v1164, %v2281
        %v3379 = vmul.f32 %v1165, %v2285
        %v3380 = vmul.f32 %v1166, %v2289
        %v3381 = vmul.f32 %v1167, %v2293
        %v3382 = vmul.f32 %v1168, %v2297
        %v3383 = vmul.f32 %v1169, %v2273
        %v3384 = vmul.f32 %v1170, %v2277
        %v3385 = vmul.f32 %v1171, %v2281
        %v3386 = vmul.f32 %v1172, %v2285
        %v3387 = vmul.f32 %v1173, %v2289
        %v3388 = vmul.f32 %v1174, %v2293
        %v3389 = vmul.f32 %v1175, %v2297
        %v3390 = vmul.f32 %v1176, %v2273
        %v3391 = vmul.f32 %v1177, %v2277
        %v3392 = vmul.f32 %v1178, %v2281
        %v3393 = vmul.f32 %v1179, %v2285
        %v3394 = vmul.f32 %v1180, %v2289
        %v3395 = vmul.f32 %v1181, %v2293
        %v3396 = vmul.f32 %v1182, %v2297
        %v3397 = vmul.f32 %v1183, %v2273
        %v3398 = vmul.f32 %v1184, %v2277
        %v3399 = vmul.f32 %v1185, %v2281
        %v3400 = vmul.f32 %v1186, %v2285
        %v3401 = vmul.f32 %v1187, %v2289
        %v3402 = vmul.f32 %v1188, %v2293
        %v3403 = vmul.f32 %v1189, %v2297
        %v3404 = vmul.f32 %v1190, %v2273
        %v3405 = vmul.f32 %v1191, %v2277
        %v3406 = vmul.f32 %v1192, %v2281
        %v3407 = vmul.f32 %v1193, %v2285
        %v3408 = vmul.f32 %v1194, %v2289
        %v3409 = vmul.f32 %v1195, %v2293
        %v3410 = vmul.f32 %v1196, %v2297
        %v3411 = vmul.f32 %v1197, %v2273
        %v3412 = vmul.f32 %v1198, %v2277
        %v3413 = vmul.f32 %v1199, %v2281
        %v3414 = vmul.f32 %v1200, %v2285
        %v3415 = vmul.f32 %v1201, %v2289
        %v3416 = vmul.f32 %v1202, %v2293
        %v3417 = vmul.f32 %v1203, %v2297
        %v3418 = vmul.f32 %v1204, %v2273
        %v3419 = vmul.f32 %v1205, %v2277
        %v3420 = vmul.f32 %v1206, %v2281
        %v3421 = vmul.f32 %v1207, %v2285
        %v3422 = vmul.f32 %v1208, %v2289
        %v3423 = vmul.f32 %v1209, %v2293
        %v3424 = vmul.f32 %v1210, %v2297
        %v3425 = vmul.f32 %v1211, %v2273
        %v3426 = vmul.f32 %v1212, %v2277
        %v3427 = vmul.f32 %v1213, %v2281
        %v3428 = vmul.f32 %v1214, %v2285
        %v3429 = vmul.f32 %v1215, %v2289
        %v3430 = vmul.f32 %v1216, %v2293
        %v3431 = vmul.f32 %v1217, %v2297
        %v3432 = vmul.f32 %v1218, %v2273
        %v3433 = vmul.f32 %v1219, %v2277
        %v3434 = vmul.f32 %v1220, %v2281
        %v3435 = vmul.f32 %v1221, %v2285
        %v3436 = vmul.f32 %v1222, %v2289
        %v3437 = vmul.f32 %v1223, %v2293
        %v3438 = vmul.f32 %v1224, %v2297
        %v3439 = vmul.f32 %v1225, %v2273
        %v3440 = vmul.f32 %v1226, %v2277
        %v3441 = vmul.f32 %v1227, %v2281
        %v3442 = vmul.f32 %v1228, %v2285
        %v3443 = vmul.f32 %v1229, %v2289
        %v3444 = vmul.f32 %v1230, %v2293
        %v3445 = vmul.f32 %v1231, %v2297
        %v3446 = vmul.f32 %v1232, %v2273
        %v3447 = vmul.f32 %v1233, %v2277
        %v3448 = vmul.f32 %v1234, %v2281
        %v3449 = vmul.f32 %v1235, %v2285
        %v3450 = vmul.f32 %v1236, %v2289
        %v3451 = vmul.f32 %v1237, %v2293
        %v3452 = vmul.f32 %v1238, %v2297
        %v3453 = vmul.f32 %v1239, %v2273
        %v3454 = vmul.f32 %v1240, %v2277
        %v3455 = vmul.f32 %v1241, %v2281
        %v3456 = vmul.f32 %v1242, %v2285
        %v3457 = vmul.f32 %v1243, %v2289
        %v3458 = vmul.f32 %v1244, %v2293
        %v3459 = vmul.f32 %v1245, %v2297
        %v3460 = vmul.f32 %v1246, %v2273
        %v3461 = vmul.f32 %v1247, %v2277
        %v3462 = vmul.f32 %v1248, %v2281
        %v3463 = vmul.f32 %v1249, %v2285
        %v3464 = vmul.f32 %v1250, %v2289
        %v3465 = vmul.f32 %v1251, %v2293
        %v3466 = vmul.f32 %v1252, %v2297
        %v3467 = vmul.f32 %v1253, %v2273
        %v3468 = vmul.f32 %v1254, %v2277
        %v3469 = vmul.f32 %v1255, %v2281
        %v3470 = vmul.f32 %v1256, %v2285
        %v3471 = vmul.f32 %v1257, %v2289
        %v3472 = vmul.f32 %v1258, %v2293
        %v3473 = vmul.f32 %v1259, %v2297
        %v3474 = vmul.f32 %v1260, %v2273
        %v3475 = vmul.f32 %v1261, %v2277
        %v3476 = vmul.f32 %v1262, %v2281
        %v3477 = vmul.f32 %v1263, %v2285
        %v3478 = vmul.f32 %v1264, %v2289
        %v3479 = vmul.f32 %v1265, %v2293
        %v3480 = vmul.f32 %v1266, %v2297
        %v3481 = vmul.f32 %v1267, %v2273
        %v3482 = vmul.f32 %v1268, %v2277
        %v3483 = vmul.f32 %v1269, %v2281
        %v3484 = vmul.f32 %v1270, %v2285
        %v3485 = vmul.f32 %v1271, %v2289
        %v3486 = vmul.f32 %v1272, %v2293
        %v3487 = vmul.f32 %v1273, %v2297
        %v3488 = vmul.f32 %v1274, %v2273
        %v3489 = vmul.f32 %v1275, %v2277
        %v3490 = vmul.f32 %v1276, %v2281
        %v3491 = vmul.f32 %v1277, %v2285
        %v3492 = vmul.f32 %v1278, %v2289
        %v3493 = vmul.f32 %v1279, %v2293
        %v3494 = vmul.f32 %v1280, %v2297
        %v3495 = vmul.f32 %v1281, %v2273
        %v3496 = vmul.f32 %v1282, %v2277
        %v3497 = vmul.f32 %v1283, %v2281
        %v3498 = vmul.f32 %v1284, %v2285
        %v3499 = vmul.f32 %v1285, %v2289
        %v3500 = vmul.f32 %v1286, %v2293
        %v3501 = vmul.f32 %v1287, %v2297
        %v3502 = vmul.f32 %v1288, %v2273
        %v3503 = vmul.f32 %v1289, %v2277
        %v3504 = vmul.f32 %v1290, %v2281
        %v3505 = vmul.f32 %v1291, %v2285
        %v3506 = vmul.f32 %v1292, %v2289
        %v3507 = vmul.f32 %v1293, %v2293
        %v3508 = vmul.f32 %v1294, %v2297
        %v3509 = vmul.f32 %v1295, %v2273
        %v3510 = vmul.f32 %v1296, %v2277
        %v3511 = vmul.f32 %v1297, %v2281
        %v3512 = vmul.f32 %v1298, %v2285
        %v3513 = vmul.f32 %v1299, %v2289
        %v3514 = vmul.f32 %v1300, %v2293
        %v3515 = vmul.f32 %v1301, %v2297
        %v3516 = vmul.f32 %v1302, %v2273
        %v3517 = vmul.f32 %v1303, %v2277
        %v3518 = vmul.f32 %v1304, %v2281
        %v3519 = vmul.f32 %v1305, %v2285
        %v3520 = vmul.f32 %v1306, %v2289
        %v3521 = vmul.f32 %v1307, %v2293
        %v3522 = vmul.f32 %v1308, %v2297
        %v3523 = vmul.f32 %v1309, %v2273
        %v3524 = vmul.f32 %v1310, %v2277
        %v3525 = vmul.f32 %v1311, %v2281
        %v3526 = vmul.f32 %v1312, %v2285
        %v3527 = vmul.f32 %v1313, %v2289
        %v3528 = vmul.f32 %v1314, %v2293
        %v3529 = vmul.f32 %v1315, %v2297
        %v3530 = vmul.f32 %v1316, %v2273
        %v3531 = vmul.f32 %v1317, %v2277
        %v3532 = vmul.f32 %v1318, %v2281
        %v3533 = vmul.f32 %v1319, %v2285
        %v3534 = vmul.f32 %v1320, %v2289
        %v3535 = vmul.f32 %v1321, %v2293
        %v3536 = vmul.f32 %v1322, %v2297
        %v3537 = vmul.f32 %v1323, %v2273
        %v3538 = vmul.f32 %v1324, %v2277
        %v3539 = vmul.f32 %v1325, %v2281
        %v3540 = vmul.f32 %v1326, %v2285
        %v3541 = vmul.f32 %v1327, %v2289
        %v3542 = vmul.f32 %v1328, %v2293
        %v3543 = vmul.f32 %v1329, %v2297
        %v3544 = vmul.f32 %v1330, %v2273
        %v3545 = vmul.f32 %v1331, %v2277
        %v3546 = vmul.f32 %v1332, %v2281
        %v3547 = vmul.f32 %v1333, %v2285
        %v3548 = vmul.f32 %v1334, %v2289
        %v3549 = vmul.f32 %v1335, %v2293
        %v3550 = vmul.f32 %v1336, %v2297
        %v3551 = vmul.f32 %v1337, %v2273
        %v3552 = vmul.f32 %v1338, %v2277
        %v3553 = vmul.f32 %v1339, %v2281
        %v3554 = vmul.f32 %v1340, %v2285
        %v3555 = vmul.f32 %v1341, %v2289
        %v3556 = vmul.f32 %v1342, %v2293
        %v3557 = vmul.f32 %v1343, %v2297
        %v3558 = vmul.f32 %v1344, %v2301
        %v3559 = vmul.f32 %v1345, %v2305
        %v3560 = vmul.f32 %v1346, %v2309
        %v3561 = vmul.f32 %v1347, %v2313
        %v3562 = vmul.f32 %v1348, %v2317
        %v3563 = vmul.f32 %v1349, %v2321
        %v3564 = vmul.f32 %v1350, %v2325
        %v3565 = vmul.f32 %v1351, %v2301
        %v3566 = vmul.f32 %v1352, %v2305
        %v3567 = vmul.f32 %v1353, %v2309
        %v3568 = vmul.f32 %v1354, %v2313
        %v3569 = vmul.f32 %v1355, %v2317
        %v3570 = vmul.f32 %v1356, %v2321
        %v3571 = vmul.f32 %v1357, %v2325
        %v3572 = vmul.f32 %v1358, %v2301
        %v3573 = vmul.f32 %v1359, %v2305
        %v3574 = vmul.f32 %v1360, %v2309
        %v3575 = vmul.f32 %v1361, %v2313
        %v3576 = vmul.f32 %v1362, %v2317
        %v3577 = vmul.f32 %v1363, %v2321
        %v3578 = vmul.f32 %v1364, %v2325
        %v3579 = vmul.f32 %v1365, %v2301
        %v3580 = vmul.f32 %v1366, %v2305
        %v3581 = vmul.f32 %v1367, %v2309
        %v3582 = vmul.f32 %v1368, %v2313
        %v3583 = vmul.f32 %v1369, %v2317
        %v3584 = vmul.f32 %v1370, %v2321
        %v3585 = vmul.f32 %v1371, %v2325
        %v3586 = vmul.f32 %v1372, %v2301
        %v3587 = vmul.f32 %v1373, %v2305
        %v3588 = vmul.f32 %v1374, %v2309
        %v3589 = vmul.f32 %v1375, %v2313
        %v3590 = vmul.f32 %v1376, %v2317
        %v3591 = vmul.f32 %v1377, %v2321
        %v3592 = vmul.f32 %v1378, %v2325
        %v3593 = vmul.f32 %v1379, %v2301
        %v3594 = vmul.f32 %v1380, %v2305
        %v3595 = vmul.f32 %v1381, %v2309
        %v3596 = vmul.f32 %v1382, %v2313
        %v3597 = vmul.f32 %v1383, %v2317
        %v3598 = vmul.f32 %v1384, %v2321
        %v3599 = vmul.f32 %v1385, %v2325
        %v3600 = vmul.f32 %v1386, %v2301
        %v3601 = vmul.f32 %v1387, %v2305
        %v3602 = vmul.f32 %v1388, %v2309
        %v3603 = vmul.f32 %v1389, %v2313
        %v3604 = vmul.f32 %v1390, %v2317
        %v3605 = vmul.f32 %v1391, %v2321
        %v3606 = vmul.f32 %v1392, %v2325
        %v3607 = vmul.f32 %v1393, %v2301
        %v3608 = vmul.f32 %v1394, %v2305
        %v3609 = vmul.f32 %v1395, %v2309
        %v3610 = vmul.f32 %v1396, %v2313
        %v3611 = vmul.f32 %v1397, %v2317
        %v3612 = vmul.f32 %v1398, %v2321
        %v3613 = vmul.f32 %v1399, %v2325
        %v3614 = vmul.f32 %v1400, %v2301
        %v3615 = vmul.f32 %v1401, %v2305
        %v3616 = vmul.f32 %v1402, %v2309
        %v3617 = vmul.f32 %v1403, %v2313
        %v3618 = vmul.f32 %v1404, %v2317
        %v3619 = vmul.f32 %v1405, %v2321
        %v3620 = vmul.f32 %v1406, %v2325
        %v3621 = vmul.f32 %v1407, %v2301
        %v3622 = vmul.f32 %v1408, %v2305
        %v3623 = vmul.f32 %v1409, %v2309
        %v3624 = vmul.f32 %v1410, %v2313
        %v3625 = vmul.f32 %v1411, %v2317
        %v3626 = vmul.f32 %v1412, %v2321
        %v3627 = vmul.f32 %v1413, %v2325
        %v3628 = vmul.f32 %v1414, %v2301
        %v3629 = vmul.f32 %v1415, %v2305
        %v3630 = vmul.f32 %v1416, %v2309
        %v3631 = vmul.f32 %v1417, %v2313
        %v3632 = vmul.f32 %v1418, %v2317
        %v3633 = vmul.f32 %v1419, %v2321
        %v3634 = vmul.f32 %v1420, %v2325
        %v3635 = vmul.f32 %v1421, %v2301
        %v3636 = vmul.f32 %v1422, %v2305
        %v3637 = vmul.f32 %v1423, %v2309
        %v3638 = vmul.f32 %v1424, %v2313
        %v3639 = vmul.f32 %v1425, %v2317
        %v3640 = vmul.f32 %v1426, %v2321
        %v3641 = vmul.f32 %v1427, %v2325
        %v3642 = vmul.f32 %v1428, %v2301
        %v3643 = vmul.f32 %v1429, %v2305
        %v3644 = vmul.f32 %v1430, %v2309
        %v3645 = vmul.f32 %v1431, %v2313
        %v3646 = vmul.f32 %v1432, %v2317
        %v3647 = vmul.f32 %v1433, %v2321
        %v3648 = vmul.f32 %v1434, %v2325
        %v3649 = vmul.f32 %v1435, %v2301
        %v3650 = vmul.f32 %v1436, %v2305
        %v3651 = vmul.f32 %v1437, %v2309
        %v3652 = vmul.f32 %v1438, %v2313
        %v3653 = vmul.f32 %v1439, %v2317
        %v3654 = vmul.f32 %v1440, %v2321
        %v3655 = vmul.f32 %v1441, %v2325
        %v3656 = vmul.f32 %v1442, %v2301
        %v3657 = vmul.f32 %v1443, %v2305
        %v3658 = vmul.f32 %v1444, %v2309
        %v3659 = vmul.f32 %v1445, %v2313
        %v3660 = vmul.f32 %v1446, %v2317
        %v3661 = vmul.f32 %v1447, %v2321
        %v3662 = vmul.f32 %v1448, %v2325
        %v3663 = vmul.f32 %v1449, %v2301
        %v3664 = vmul.f32 %v1450, %v2305
        %v3665 = vmul.f32 %v1451, %v2309
        %v3666 = vmul.f32 %v1452, %v2313
        %v3667 = vmul.f32 %v1453, %v2317
        %v3668 = vmul.f32 %v1454, %v2321
        %v3669 = vmul.f32 %v1455, %v2325
        %v3670 = vmul.f32 %v1456, %v2301
        %v3671 = vmul.f32 %v1457, %v2305
        %v3672 = vmul.f32 %v1458, %v2309
        %v3673 = vmul.f32 %v1459, %v2313
        %v3674 = vmul.f32 %v1460, %v2317
        %v3675 = vmul.f32 %v1461, %v2321
        %v3676 = vmul.f32 %v1462, %v2325
        %v3677 = vmul.f32 %v1463, %v2301
        %v3678 = vmul.f32 %v1464, %v2305
        %v3679 = vmul.f32 %v1465, %v2309
        %v3680 = vmul.f32 %v1466, %v2313
        %v3681 = vmul.f32 %v1467, %v2317
        %v3682 = vmul.f32 %v1468, %v2321
        %v3683 = vmul.f32 %v1469, %v2325
        %v3684 = vmul.f32 %v1470, %v2301
        %v3685 = vmul.f32 %v1471, %v2305
        %v3686 = vmul.f32 %v1472, %v2309
        %v3687 = vmul.f32 %v1473, %v2313
        %v3688 = vmul.f32 %v1474, %v2317
        %v3689 = vmul.f32 %v1475, %v2321
        %v3690 = vmul.f32 %v1476, %v2325
        %v3691 = vmul.f32 %v1477, %v2301
        %v3692 = vmul.f32 %v1478, %v2305
        %v3693 = vmul.f32 %v1479, %v2309
        %v3694 = vmul.f32 %v1480, %v2313
        %v3695 = vmul.f32 %v1481, %v2317
        %v3696 = vmul.f32 %v1482, %v2321
        %v3697 = vmul.f32 %v1483, %v2325
        %v3698 = vmul.f32 %v1484, %v2301
        %v3699 = vmul.f32 %v1485, %v2305
        %v3700 = vmul.f32 %v1486, %v2309
        %v3701 = vmul.f32 %v1487, %v2313
        %v3702 = vmul.f32 %v1488, %v2317
        %v3703 = vmul.f32 %v1489, %v2321
        %v3704 = vmul.f32 %v1490, %v2325
        %v3705 = vmul.f32 %v1491, %v2301
        %v3706 = vmul.f32 %v1492, %v2305
        %v3707 = vmul.f32 %v1493, %v2309
        %v3708 = vmul.f32 %v1494, %v2313
        %v3709 = vmul.f32 %v1495, %v2317
        %v3710 = vmul.f32 %v1496, %v2321
        %v3711 = vmul.f32 %v1497, %v2325
        %v3712 = vmul.f32 %v1498, %v2301
        %v3713 = vmul.f32 %v1499, %v2305
        %v3714 = vmul.f32 %v1500, %v2309
        %v3715 = vmul.f32 %v1501, %v2313
        %v3716 = vmul.f32 %v1502, %v2317
        %v3717 = vmul.f32 %v1503, %v2321
        %v3718 = vmul.f32 %v1504, %v2325
        %v3719 = vmul.f32 %v1505, %v2301
        %v3720 = vmul.f32 %v1506, %v2305
        %v3721 = vmul.f32 %v1507, %v2309
        %v3722 = vmul.f32 %v1508, %v2313
        %v3723 = vmul.f32 %v1509, %v2317
        %v3724 = vmul.f32 %v1510, %v2321
        %v3725 = vmul.f32 %v1511, %v2325
        %v3726 = vmul.f32 %v1512, %v2301
        %v3727 = vmul.f32 %v1513, %v2305
        %v3728 = vmul.f32 %v1514, %v2309
        %v3729 = vmul.f32 %v1515, %v2313
        %v3730 = vmul.f32 %v1516, %v2317
        %v3731 = vmul.f32 %v1517, %v2321
        %v3732 = vmul.f32 %v1518, %v2325
        %v3733 = vmul.f32 %v1519, %v2301
        %v3734 = vmul.f32 %v1520, %v2305
        %v3735 = vmul.f32 %v1521, %v2309
        %v3736 = vmul.f32 %v1522, %v2313
        %v3737 = vmul.f32 %v1523, %v2317
        %v3738 = vmul.f32 %v1524, %v2321
        %v3739 = vmul.f32 %v1525, %v2325
        %v3740 = vmul.f32 %v1526, %v2301
        %v3741 = vmul.f32 %v1527, %v2305
        %v3742 = vmul.f32 %v1528, %v2309
        %v3743 = vmul.f32 %v1529, %v2313
        %v3744 = vmul.f32 %v1530, %v2317
        %v3745 = vmul.f32 %v1531, %v2321
        %v3746 = vmul.f32 %v1532, %v2325
        %v3747 = vmul.f32 %v1533, %v2301
        %v3748 = vmul.f32 %v1534, %v2305
        %v3749 = vmul.f32 %v1535, %v2309
        %v3750 = vmul.f32 %v1536, %v2313
        %v3751 = vmul.f32 %v1537, %v2317
        %v3752 = vmul.f32 %v1538, %v2321
        %v3753 = vmul.f32 %v1539, %v2325
        %v3754 = vmul.f32 %v1540, %v2301
        %v3755 = vmul.f32 %v1541, %v2305
        %v3756 = vmul.f32 %v1542, %v2309
        %v3757 = vmul.f32 %v1543, %v2313
        %v3758 = vmul.f32 %v1544, %v2317
        %v3759 = vmul.f32 %v1545, %v2321
        %v3760 = vmul.f32 %v1546, %v2325
        %v3761 = vmul.f32 %v1547, %v2301
        %v3762 = vmul.f32 %v1548, %v2305
        %v3763 = vmul.f32 %v1549, %v2309
        %v3764 = vmul.f32 %v1550, %v2313
        %v3765 = vmul.f32 %v1551, %v2317
        %v3766 = vmul.f32 %v1552, %v2321
        %v3767 = vmul.f32 %v1553, %v2325
        %v3768 = vmul.f32 %v1554, %v2301
        %v3769 = vmul.f32 %v1555, %v2305
        %v3770 = vmul.f32 %v1556, %v2309
        %v3771 = vmul.f32 %v1557, %v2313
        %v3772 = vmul.f32 %v1558, %v2317
        %v3773 = vmul.f32 %v1559, %v2321
        %v3774 = vmul.f32 %v1560, %v2325
        %v3775 = vmul.f32 %v1561, %v2301
        %v3776 = vmul.f32 %v1562, %v2305
        %v3777 = vmul.f32 %v1563, %v2309
        %v3778 = vmul.f32 %v1564, %v2313
        %v3779 = vmul.f32 %v1565, %v2317
        %v3780 = vmul.f32 %v1566, %v2321
        %v3781 = vmul.f32 %v1567, %v2325
        %v3782 = vmul.f32 %v1568, %v2329
        %v3783 = vmul.f32 %v1569, %v2333
        %v3784 = vmul.f32 %v1570, %v2337
        %v3785 = vmul.f32 %v1571, %v2341
        %v3786 = vmul.f32 %v1572, %v2345
        %v3787 = vmul.f32 %v1573, %v2349
        %v3788 = vmul.f32 %v1574, %v2353
        %v3789 = vmul.f32 %v1575, %v2329
        %v3790 = vmul.f32 %v1576, %v2333
        %v3791 = vmul.f32 %v1577, %v2337
        %v3792 = vmul.f32 %v1578, %v2341
        %v3793 = vmul.f32 %v1579, %v2345
        %v3794 = vmul.f32 %v1580, %v2349
        %v3795 = vmul.f32 %v1581, %v2353
        %v3796 = vmul.f32 %v1582, %v2329
        %v3797 = vmul.f32 %v1583, %v2333
        %v3798 = vmul.f32 %v1584, %v2337
        %v3799 = vmul.f32 %v1585, %v2341
        %v3800 = vmul.f32 %v1586, %v2345
        %v3801 = vmul.f32 %v1587, %v2349
        %v3802 = vmul.f32 %v1588, %v2353
        %v3803 = vmul.f32 %v1589, %v2329
        %v3804 = vmul.f32 %v1590, %v2333
        %v3805 = vmul.f32 %v1591, %v2337
        %v3806 = vmul.f32 %v1592, %v2341
        %v3807 = vmul.f32 %v1593, %v2345
        %v3808 = vmul.f32 %v1594, %v2349
        %v3809 = vmul.f32 %v1595, %v2353
        %v3810 = vmul.f32 %v1596, %v2329
        %v3811 = vmul.f32 %v1597, %v2333
        %v3812 = vmul.f32 %v1598, %v2337
        %v3813 = vmul.f32 %v1599, %v2341
        %v3814 = vmul.f32 %v1600, %v2345
        %v3815 = vmul.f32 %v1601, %v2349
        %v3816 = vmul.f32 %v1602, %v2353
        %v3817 = vmul.f32 %v1603, %v2329
        %v3818 = vmul.f32 %v1604, %v2333
        %v3819 = vmul.f32 %v1605, %v2337
        %v3820 = vmul.f32 %v1606, %v2341
        %v3821 = vmul.f32 %v1607, %v2345
        %v3822 = vmul.f32 %v1608, %v2349
        %v3823 = vmul.f32 %v1609, %v2353
        %v3824 = vmul.f32 %v1610, %v2329
        %v3825 = vmul.f32 %v1611, %v2333
        %v3826 = vmul.f32 %v1612, %v2337
        %v3827 = vmul.f32 %v1613, %v2341
        %v3828 = vmul.f32 %v1614, %v2345
        %v3829 = vmul.f32 %v1615, %v2349
        %v3830 = vmul.f32 %v1616, %v2353
        %v3831 = vmul.f32 %v1617, %v2329
        %v3832 = vmul.f32 %v1618, %v2333
        %v3833 = vmul.f32 %v1619, %v2337
        %v3834 = vmul.f32 %v1620, %v2341
        %v3835 = vmul.f32 %v1621, %v2345
        %v3836 = vmul.f32 %v1622, %v2349
        %v3837 = vmul.f32 %v1623, %v2353
        %v3838 = vmul.f32 %v1624, %v2329
        %v3839 = vmul.f32 %v1625, %v2333
        %v3840 = vmul.f32 %v1626, %v2337
        %v3841 = vmul.f32 %v1627, %v2341
        %v3842 = vmul.f32 %v1628, %v2345
        %v3843 = vmul.f32 %v1629, %v2349
        %v3844 = vmul.f32 %v1630, %v2353
        %v3845 = vmul.f32 %v1631, %v2329
        %v3846 = vmul.f32 %v1632, %v2333
        %v3847 = vmul.f32 %v1633, %v2337
        %v3848 = vmul.f32 %v1634, %v2341
        %v3849 = vmul.f32 %v1635, %v2345
        %v3850 = vmul.f32 %v1636, %v2349
        %v3851 = vmul.f32 %v1637, %v2353
        %v3852 = vmul.f32 %v1638, %v2329
        %v3853 = vmul.f32 %v1639, %v2333
        %v3854 = vmul.f32 %v1640, %v2337
        %v3855 = vmul.f32 %v1641, %v2341
        %v3856 = vmul.f32 %v1642, %v2345
        %v3857 = vmul.f32 %v1643, %v2349
        %v3858 = vmul.f32 %v1644, %v2353
        %v3859 = vmul.f32 %v1645, %v2329
        %v3860 = vmul.f32 %v1646, %v2333
        %v3861 = vmul.f32 %v1647, %v2337
        %v3862 = vmul.f32 %v1648, %v2341
        %v3863 = vmul.f32 %v1649, %v2345
        %v3864 = vmul.f32 %v1650, %v2349
        %v3865 = vmul.f32 %v1651, %v2353
        %v3866 = vmul.f32 %v1652, %v2329
        %v3867 = vmul.f32 %v1653, %v2333
        %v3868 = vmul.f32 %v1654, %v2337
        %v3869 = vmul.f32 %v1655, %v2341
        %v3870 = vmul.f32 %v1656, %v2345
        %v3871 = vmul.f32 %v1657, %v2349
        %v3872 = vmul.f32 %v1658, %v2353
        %v3873 = vmul.f32 %v1659, %v2329
        %v3874 = vmul.f32 %v1660, %v2333
        %v3875 = vmul.f32 %v1661, %v2337
        %v3876 = vmul.f32 %v1662, %v2341
        %v3877 = vmul.f32 %v1663, %v2345
        %v3878 = vmul.f32 %v1664, %v2349
        %v3879 = vmul.f32 %v1665, %v2353
        %v3880 = vmul.f32 %v1666, %v2329
        %v3881 = vmul.f32 %v1667, %v2333
        %v3882 = vmul.f32 %v1668, %v2337
        %v3883 = vmul.f32 %v1669, %v2341
        %v3884 = vmul.f32 %v1670, %v2345
        %v3885 = vmul.f32 %v1671, %v2349
        %v3886 = vmul.f32 %v1672, %v2353
        %v3887 = vmul.f32 %v1673, %v2329
        %v3888 = vmul.f32 %v1674, %v2333
        %v3889 = vmul.f32 %v1675, %v2337
        %v3890 = vmul.f32 %v1676, %v2341
        %v3891 = vmul.f32 %v1677, %v2345
        %v3892 = vmul.f32 %v1678, %v2349
        %v3893 = vmul.f32 %v1679, %v2353
        %v3894 = vmul.f32 %v1680, %v2329
        %v3895 = vmul.f32 %v1681, %v2333
        %v3896 = vmul.f32 %v1682, %v2337
        %v3897 = vmul.f32 %v1683, %v2341
        %v3898 = vmul.f32 %v1684, %v2345
        %v3899 = vmul.f32 %v1685, %v2349
        %v3900 = vmul.f32 %v1686, %v2353
        %v3901 = vmul.f32 %v1687, %v2329
        %v3902 = vmul.f32 %v1688, %v2333
        %v3903 = vmul.f32 %v1689, %v2337
        %v3904 = vmul.f32 %v1690, %v2341
        %v3905 = vmul.f32 %v1691, %v2345
        %v3906 = vmul.f32 %v1692, %v2349
        %v3907 = vmul.f32 %v1693, %v2353
        %v3908 = vmul.f32 %v1694, %v2329
        %v3909 = vmul.f32 %v1695, %v2333
        %v3910 = vmul.f32 %v1696, %v2337
        %v3911 = vmul.f32 %v1697, %v2341
        %v3912 = vmul.f32 %v1698, %v2345
        %v3913 = vmul.f32 %v1699, %v2349
        %v3914 = vmul.f32 %v1700, %v2353
        %v3915 = vmul.f32 %v1701, %v2329
        %v3916 = vmul.f32 %v1702, %v2333
        %v3917 = vmul.f32 %v1703, %v2337
        %v3918 = vmul.f32 %v1704, %v2341
        %v3919 = vmul.f32 %v1705, %v2345
        %v3920 = vmul.f32 %v1706, %v2349
        %v3921 = vmul.f32 %v1707, %v2353
        %v3922 = vmul.f32 %v1708, %v2329
        %v3923 = vmul.f32 %v1709, %v2333
        %v3924 = vmul.f32 %v1710, %v2337
        %v3925 = vmul.f32 %v1711, %v2341
        %v3926 = vmul.f32 %v1712, %v2345
        %v3927 = vmul.f32 %v1713, %v2349
        %v3928 = vmul.f32 %v1714, %v2353
        %v3929 = vmul.f32 %v1715, %v2329
        %v3930 = vmul.f32 %v1716, %v2333
        %v3931 = vmul.f32 %v1717, %v2337
        %v3932 = vmul.f32 %v1718, %v2341
        %v3933 = vmul.f32 %v1719, %v2345
        %v3934 = vmul.f32 %v1720, %v2349
        %v3935 = vmul.f32 %v1721, %v2353
        %v3936 = vmul.f32 %v1722, %v2329
        %v3937 = vmul.f32 %v1723, %v2333
        %v3938 = vmul.f32 %v1724, %v2337
        %v3939 = vmul.f32 %v1725, %v2341
        %v3940 = vmul.f32 %v1726, %v2345
        %v3941 = vmul.f32 %v1727, %v2349
        %v3942 = vmul.f32 %v1728, %v2353
        %v3943 = vmul.f32 %v1729, %v2329
        %v3944 = vmul.f32 %v1730, %v2333
        %v3945 = vmul.f32 %v1731, %v2337
        %v3946 = vmul.f32 %v1732, %v2341
        %v3947 = vmul.f32 %v1733, %v2345
        %v3948 = vmul.f32 %v1734, %v2349
        %v3949 = vmul.f32 %v1735, %v2353
        %v3950 = vmul.f32 %v1736, %v2329
        %v3951 = vmul.f32 %v1737, %v2333
        %v3952 = vmul.f32 %v1738, %v2337
        %v3953 = vmul.f32 %v1739, %v2341
        %v3954 = vmul.f32 %v1740, %v2345
        %v3955 = vmul.f32 %v1741, %v2349
        %v3956 = vmul.f32 %v1742, %v2353
        %v3957 = vmul.f32 %v1743, %v2329
        %v3958 = vmul.f32 %v1744, %v2333
        %v3959 = vmul.f32 %v1745, %v2337
        %v3960 = vmul.f32 %v1746, %v2341
        %v3961 = vmul.f32 %v1747, %v2345
        %v3962 = vmul.f32 %v1748, %v2349
        %v3963 = vmul.f32 %v1749, %v2353
        %v3964 = vmul.f32 %v1750, %v2329
        %v3965 = vmul.f32 %v1751, %v2333
        %v3966 = vmul.f32 %v1752, %v2337
        %v3967 = vmul.f32 %v1753, %v2341
        %v3968 = vmul.f32 %v1754, %v2345
        %v3969 = vmul.f32 %v1755, %v2349
        %v3970 = vmul.f32 %v1756, %v2353
        %v3971 = vmul.f32 %v1757, %v2329
        %v3972 = vmul.f32 %v1758, %v2333
        %v3973 = vmul.f32 %v1759, %v2337
        %v3974 = vmul.f32 %v1760, %v2341
        %v3975 = vmul.f32 %v1761, %v2345
        %v3976 = vmul.f32 %v1762, %v2349
        %v3977 = vmul.f32 %v1763, %v2353
        %v3978 = vmul.f32 %v1764, %v2329
        %v3979 = vmul.f32 %v1765, %v2333
        %v3980 = vmul.f32 %v1766, %v2337
        %v3981 = vmul.f32 %v1767, %v2341
        %v3982 = vmul.f32 %v1768, %v2345
        %v3983 = vmul.f32 %v1769, %v2349
        %v3984 = vmul.f32 %v1770, %v2353
        %v3985 = vmul.f32 %v1771, %v2329
        %v3986 = vmul.f32 %v1772, %v2333
        %v3987 = vmul.f32 %v1773, %v2337
        %v3988 = vmul.f32 %v1774, %v2341
        %v3989 = vmul.f32 %v1775, %v2345
        %v3990 = vmul.f32 %v1776, %v2349
        %v3991 = vmul.f32 %v1777, %v2353
        %v3992 = vmul.f32 %v1778, %v2329
        %v3993 = vmul.f32 %v1779, %v2333
        %v3994 = vmul.f32 %v1780, %v2337
        %v3995 = vmul.f32 %v1781, %v2341
        %v3996 = vmul.f32 %v1782, %v2345
        %v3997 = vmul.f32 %v1783, %v2349
        %v3998 = vmul.f32 %v1784, %v2353
        %v3999 = vmul.f32 %v1785, %v2329
        %v4000 = vmul.f32 %v1786, %v2333
        %v4001 = vmul.f32 %v1787, %v2337
        %v4002 = vmul.f32 %v1788, %v2341
        %v4003 = vmul.f32 %v1789, %v2345
        %v4004 = vmul.f32 %v1790, %v2349
        %v4005 = vmul.f32 %v1791, %v2353
        %v4006 = vmul.f32 %v1792, %v2357
        %v4007 = vmul.f32 %v1793, %v2361
        %v4008 = vmul.f32 %v1794, %v2365
        %v4009 = vmul.f32 %v1795, %v2369
        %v4010 = vmul.f32 %v1796, %v2373
        %v4011 = vmul.f32 %v1797, %v2377
        %v4012 = vmul.f32 %v1798, %v2381
        %v4013 = vmul.f32 %v1799, %v2357
        %v4014 = vmul.f32 %v1800, %v2361
        %v4015 = vmul.f32 %v1801, %v2365
        %v4016 = vmul.f32 %v1802, %v2369
        %v4017 = vmul.f32 %v1803, %v2373
        %v4018 = vmul.f32 %v1804, %v2377
        %v4019 = vmul.f32 %v1805, %v2381
        %v4020 = vmul.f32 %v1806, %v2357
        %v4021 = vmul.f32 %v1807, %v2361
        %v4022 = vmul.f32 %v1808, %v2365
        %v4023 = vmul.f32 %v1809, %v2369
        %v4024 = vmul.f32 %v1810, %v2373
        %v4025 = vmul.f32 %v1811, %v2377
        %v4026 = vmul.f32 %v1812, %v2381
        %v4027 = vmul.f32 %v1813, %v2357
        %v4028 = vmul.f32 %v1814, %v2361
        %v4029 = vmul.f32 %v1815, %v2365
        %v4030 = vmul.f32 %v1816, %v2369
        %v4031 = vmul.f32 %v1817, %v2373
        %v4032 = vmul.f32 %v1818, %v2377
        %v4033 = vmul.f32 %v1819, %v2381
        %v4034 = vmul.f32 %v1820, %v2357
        %v4035 = vmul.f32 %v1821, %v2361
        %v4036 = vmul.f32 %v1822, %v2365
        %v4037 = vmul.f32 %v1823, %v2369
        %v4038 = vmul.f32 %v1824, %v2373
        %v4039 = vmul.f32 %v1825, %v2377
        %v4040 = vmul.f32 %v1826, %v2381
        %v4041 = vmul.f32 %v1827, %v2357
        %v4042 = vmul.f32 %v1828, %v2361
        %v4043 = vmul.f32 %v1829, %v2365
        %v4044 = vmul.f32 %v1830, %v2369
        %v4045 = vmul.f32 %v1831, %v2373
        %v4046 = vmul.f32 %v1832, %v2377
        %v4047 = vmul.f32 %v1833, %v2381
        %v4048 = vmul.f32 %v1834, %v2357
        %v4049 = vmul.f32 %v1835, %v2361
        %v4050 = vmul.f32 %v1836, %v2365
        %v4051 = vmul.f32 %v1837, %v2369
        %v4052 = vmul.f32 %v1838, %v2373
        %v4053 = vmul.f32 %v1839, %v2377
        %v4054 = vmul.f32 %v1840, %v2381
        %v4055 = vmul.f32 %v1841, %v2357
        %v4056 = vmul.f32 %v1842, %v2361
        %v4057 = vmul.f32 %v1843, %v2365
        %v4058 = vmul.f32 %v1844, %v2369
        %v4059 = vmul.f32 %v1845, %v2373
        %v4060 = vmul.f32 %v1846, %v2377
        %v4061 = vmul.f32 %v1847, %v2381
        %v4062 = vmul.f32 %v1848, %v2357
        %v4063 = vmul.f32 %v1849, %v2361
        %v4064 = vmul.f32 %v1850, %v2365
        %v4065 = vmul.f32 %v1851, %v2369
        %v4066 = vmul.f32 %v1852, %v2373
        %v4067 = vmul.f32 %v1853, %v2377
        %v4068 = vmul.f32 %v1854, %v2381
        %v4069 = vmul.f32 %v1855, %v2357
        %v4070 = vmul.f32 %v1856, %v2361
        %v4071 = vmul.f32 %v1857, %v2365
        %v4072 = vmul.f32 %v1858, %v2369
        %v4073 = vmul.f32 %v1859, %v2373
        %v4074 = vmul.f32 %v1860, %v2377
        %v4075 = vmul.f32 %v1861, %v2381
        %v4076 = vmul.f32 %v1862, %v2357
        %v4077 = vmul.f32 %v1863, %v2361
        %v4078 = vmul.f32 %v1864, %v2365
        %v4079 = vmul.f32 %v1865, %v2369
        %v4080 = vmul.f32 %v1866, %v2373
        %v4081 = vmul.f32 %v1867, %v2377
        %v4082 = vmul.f32 %v1868, %v2381
        %v4083 = vmul.f32 %v1869, %v2357
        %v4084 = vmul.f32 %v1870, %v2361
        %v4085 = vmul.f32 %v1871, %v2365
        %v4086 = vmul.f32 %v1872, %v2369
        %v4087 = vmul.f32 %v1873, %v2373
        %v4088 = vmul.f32 %v1874, %v2377
        %v4089 = vmul.f32 %v1875, %v2381
        %v4090 = vmul.f32 %v1876, %v2357
        %v4091 = vmul.f32 %v1877, %v2361
        %v4092 = vmul.f32 %v1878, %v2365
        %v4093 = vmul.f32 %v1879, %v2369
        %v4094 = vmul.f32 %v1880, %v2373
        %v4095 = vmul.f32 %v1881, %v2377
        %v4096 = vmul.f32 %v1882, %v2381
        %v4097 = vmul.f32 %v1883, %v2357
        %v4098 = vmul.f32 %v1884, %v2361
        %v4099 = vmul.f32 %v1885, %v2365
        %v4100 = vmul.f32 %v1886, %v2369
        %v4101 = vmul.f32 %v1887, %v2373
        %v4102 = vmul.f32 %v1888, %v2377
        %v4103 = vmul.f32 %v1889, %v2381
        %v4104 = vmul.f32 %v1890, %v2357
        %v4105 = vmul.f32 %v1891, %v2361
        %v4106 = vmul.f32 %v1892, %v2365
        %v4107 = vmul.f32 %v1893, %v2369
        %v4108 = vmul.f32 %v1894, %v2373
        %v4109 = vmul.f32 %v1895, %v2377
        %v4110 = vmul.f32 %v1896, %v2381
        %v4111 = vmul.f32 %v1897, %v2357
        %v4112 = vmul.f32 %v1898, %v2361
        %v4113 = vmul.f32 %v1899, %v2365
        %v4114 = vmul.f32 %v1900, %v2369
        %v4115 = vmul.f32 %v1901, %v2373
        %v4116 = vmul.f32 %v1902, %v2377
        %v4117 = vmul.f32 %v1903, %v2381
        %v4118 = vmul.f32 %v1904, %v2357
        %v4119 = vmul.f32 %v1905, %v2361
        %v4120 = vmul.f32 %v1906, %v2365
        %v4121 = vmul.f32 %v1907, %v2369
        %v4122 = vmul.f32 %v1908, %v2373
        %v4123 = vmul.f32 %v1909, %v2377
        %v4124 = vmul.f32 %v1910, %v2381
        %v4125 = vmul.f32 %v1911, %v2357
        %v4126 = vmul.f32 %v1912, %v2361
        %v4127 = vmul.f32 %v1913, %v2365
        %v4128 = vmul.f32 %v1914, %v2369
        %v4129 = vmul.f32 %v1915, %v2373
        %v4130 = vmul.f32 %v1916, %v2377
        %v4131 = vmul.f32 %v1917, %v2381
        %v4132 = vmul.f32 %v1918, %v2357
        %v4133 = vmul.f32 %v1919, %v2361
        %v4134 = vmul.f32 %v1920, %v2365
        %v4135 = vmul.f32 %v1921, %v2369
        %v4136 = vmul.f32 %v1922, %v2373
        %v4137 = vmul.f32 %v1923, %v2377
        %v4138 = vmul.f32 %v1924, %v2381
        %v4139 = vmul.f32 %v1925, %v2357
        %v4140 = vmul.f32 %v1926, %v2361
        %v4141 = vmul.f32 %v1927, %v2365
        %v4142 = vmul.f32 %v1928, %v2369
        %v4143 = vmul.f32 %v1929, %v2373
        %v4144 = vmul.f32 %v1930, %v2377
        %v4145 = vmul.f32 %v1931, %v2381
        %v4146 = vmul.f32 %v1932, %v2357
        %v4147 = vmul.f32 %v1933, %v2361
        %v4148 = vmul.f32 %v1934, %v2365
        %v4149 = vmul.f32 %v1935, %v2369
        %v4150 = vmul.f32 %v1936, %v2373
        %v4151 = vmul.f32 %v1937, %v2377
        %v4152 = vmul.f32 %v1938, %v2381
        %v4153 = vmul.f32 %v1939, %v2357
        %v4154 = vmul.f32 %v1940, %v2361
        %v4155 = vmul.f32 %v1941, %v2365
        %v4156 = vmul.f32 %v1942, %v2369
        %v4157 = vmul.f32 %v1943, %v2373
        %v4158 = vmul.f32 %v1944, %v2377
        %v4159 = vmul.f32 %v1945, %v2381
        %v4160 = vmul.f32 %v1946, %v2357
        %v4161 = vmul.f32 %v1947, %v2361
        %v4162 = vmul.f32 %v1948, %v2365
        %v4163 = vmul.f32 %v1949, %v2369
        %v4164 = vmul.f32 %v1950, %v2373
        %v4165 = vmul.f32 %v1951, %v2377
        %v4166 = vmul.f32 %v1952, %v2381
        %v4167 = vmul.f32 %v1953, %v2357
        %v4168 = vmul.f32 %v1954, %v2361
        %v4169 = vmul.f32 %v1955, %v2365
        %v4170 = vmul.f32 %v1956, %v2369
        %v4171 = vmul.f32 %v1957, %v2373
        %v4172 = vmul.f32 %v1958, %v2377
        %v4173 = vmul.f32 %v1959, %v2381
        %v4174 = vmul.f32 %v1960, %v2357
        %v4175 = vmul.f32 %v1961, %v2361
        %v4176 = vmul.f32 %v1962, %v2365
        %v4177 = vmul.f32 %v1963, %v2369
        %v4178 = vmul.f32 %v1964, %v2373
        %v4179 = vmul.f32 %v1965, %v2377
        %v4180 = vmul.f32 %v1966, %v2381
        %v4181 = vmul.f32 %v1967, %v2357
        %v4182 = vmul.f32 %v1968, %v2361
        %v4183 = vmul.f32 %v1969, %v2365
        %v4184 = vmul.f32 %v1970, %v2369
        %v4185 = vmul.f32 %v1971, %v2373
        %v4186 = vmul.f32 %v1972, %v2377
        %v4187 = vmul.f32 %v1973, %v2381
        %v4188 = vmul.f32 %v1974, %v2357
        %v4189 = vmul.f32 %v1975, %v2361
        %v4190 = vmul.f32 %v1976, %v2365
        %v4191 = vmul.f32 %v1977, %v2369
        %v4192 = vmul.f32 %v1978, %v2373
        %v4193 = vmul.f32 %v1979, %v2377
        %v4194 = vmul.f32 %v1980, %v2381
        %v4195 = vmul.f32 %v1981, %v2357
        %v4196 = vmul.f32 %v1982, %v2361
        %v4197 = vmul.f32 %v1983, %v2365
        %v4198 = vmul.f32 %v1984, %v2369
        %v4199 = vmul.f32 %v1985, %v2373
        %v4200 = vmul.f32 %v1986, %v2377
        %v4201 = vmul.f32 %v1987, %v2381
        %v4202 = vmul.f32 %v1988, %v2357
        %v4203 = vmul.f32 %v1989, %v2361
        %v4204 = vmul.f32 %v1990, %v2365
        %v4205 = vmul.f32 %v1991, %v2369
        %v4206 = vmul.f32 %v1992, %v2373
        %v4207 = vmul.f32 %v1993, %v2377
        %v4208 = vmul.f32 %v1994, %v2381
        %v4209 = vmul.f32 %v1995, %v2357
        %v4210 = vmul.f32 %v1996, %v2361
        %v4211 = vmul.f32 %v1997, %v2365
        %v4212 = vmul.f32 %v1998, %v2369
        %v4213 = vmul.f32 %v1999, %v2373
        %v4214 = vmul.f32 %v2000, %v2377
        %v4215 = vmul.f32 %v2001, %v2381
        %v4216 = vmul.f32 %v2002, %v2357
        %v4217 = vmul.f32 %v2003, %v2361
        %v4218 = vmul.f32 %v2004, %v2365
        %v4219 = vmul.f32 %v2005, %v2369
        %v4220 = vmul.f32 %v2006, %v2373
        %v4221 = vmul.f32 %v2007, %v2377
        %v4222 = vmul.f32 %v2008, %v2381
        %v4223 = vmul.f32 %v2009, %v2357
        %v4224 = vmul.f32 %v2010, %v2361
        %v4225 = vmul.f32 %v2011, %v2365
        %v4226 = vmul.f32 %v2012, %v2369
        %v4227 = vmul.f32 %v2013, %v2373
        %v4228 = vmul.f32 %v2014, %v2377
        %v4229 = vmul.f32 %v2015, %v2381
        %v4230 = vadd.f32 %v2438, %v2439
        %v4231 = vadd.f32 %v4230, %v2440
        %v4232 = vadd.f32 %v4231, %v2441
        %v4233 = vadd.f32 %v4232, %v2442
        %v4234 = vadd.f32 %v4233, %v2443
        %v4235 = vsel %vm217, %v2444, 0.0
        %v4236 = vadd.f32 %v4234, %v4235
        %4237 = vadd.xlane.f32.xlu0 %v4236
        %v4238 = vpop.xlane.xlu0 %4237
        %v4239 = vadd.f32 %v2445, %v2446
        %v4240 = vadd.f32 %v4239, %v2447
        %v4241 = vadd.f32 %v4240, %v2448
        %v4242 = vadd.f32 %v4241, %v2449
        %v4243 = vadd.f32 %v4242, %v2450
        %v4244 = vsel %vm217, %v2451, 0.0
        %v4245 = vadd.f32 %v4243, %v4244
        %4246 = vadd.xlane.f32.xlu0 %v4245
        %v4247 = vpop.xlane.xlu0 %4246
        %v4248 = vadd.f32 %v2452, %v2453
        %v4249 = vadd.f32 %v4248, %v2454
        %v4250 = vadd.f32 %v4249, %v2455
        %v4251 = vadd.f32 %v4250, %v2456
        %v4252 = vadd.f32 %v4251, %v2457
        %v4253 = vsel %vm217, %v2458, 0.0
        %v4254 = vadd.f32 %v4252, %v4253
        %4255 = vadd.xlane.f32.xlu0 %v4254
        %v4256 = vpop.xlane.xlu0 %4255
        %v4257 = vadd.f32 %v2459, %v2460
        %v4258 = vadd.f32 %v4257, %v2461
        %v4259 = vadd.f32 %v4258, %v2462
        %v4260 = vadd.f32 %v4259, %v2463
        %v4261 = vadd.f32 %v4260, %v2464
        %v4262 = vsel %vm217, %v2465, 0.0
        %v4263 = vadd.f32 %v4261, %v4262
        %4264 = vadd.xlane.f32.xlu0 %v4263
        %v4265 = vpop.xlane.xlu0 %4264
        %v4266 = vadd.f32 %v2466, %v2467
        %v4267 = vadd.f32 %v4266, %v2468
        %v4268 = vadd.f32 %v4267, %v2469
        %v4269 = vadd.f32 %v4268, %v2470
        %v4270 = vadd.f32 %v4269, %v2471
        %v4271 = vsel %vm217, %v2472, 0.0
        %v4272 = vadd.f32 %v4270, %v4271
        %4273 = vadd.xlane.f32.xlu0 %v4272
        %v4274 = vpop.xlane.xlu0 %4273
        %v4275 = vadd.f32 %v2473, %v2474
        %v4276 = vadd.f32 %v4275, %v2475
        %v4277 = vadd.f32 %v4276, %v2476
        %v4278 = vadd.f32 %v4277, %v2477
        %v4279 = vadd.f32 %v4278, %v2478
        %v4280 = vsel %vm217, %v2479, 0.0
        %v4281 = vadd.f32 %v4279, %v4280
        %4282 = vadd.xlane.f32.xlu0 %v4281
        %v4283 = vpop.xlane.xlu0 %4282
        %v4284 = vadd.f32 %v2480, %v2481
        %v4285 = vadd.f32 %v4284, %v2482
        %v4286 = vadd.f32 %v4285, %v2483
        %v4287 = vadd.f32 %v4286, %v2484
        %v4288 = vadd.f32 %v4287, %v2485
        %v4289 = vsel %vm217, %v2486, 0.0
        %v4290 = vadd.f32 %v4288, %v4289
        %4291 = vadd.xlane.f32.xlu0 %v4290
        %v4292 = vpop.xlane.xlu0 %4291
        %v4293 = vadd.f32 %v2487, %v2488
        %v4294 = vadd.f32 %v4293, %v2489
        %v4295 = vadd.f32 %v4294, %v2490
        %v4296 = vadd.f32 %v4295, %v2491
        %v4297 = vadd.f32 %v4296, %v2492
        %v4298 = vsel %vm217, %v2493, 0.0
        %v4299 = vadd.f32 %v4297, %v4298
        %4300 = vadd.xlane.f32.xlu0 %v4299
        %v4301 = vpop.xlane.xlu0 %4300
        %v4302 = vadd.f32 %v2494, %v2495
        %v4303 = vadd.f32 %v4302, %v2496
        %v4304 = vadd.f32 %v4303, %v2497
        %v4305 = vadd.f32 %v4304, %v2498
        %v4306 = vadd.f32 %v4305, %v2499
        %v4307 = vsel %vm217, %v2500, 0.0
        %v4308 = vadd.f32 %v4306, %v4307
        %4309 = vadd.xlane.f32.xlu0 %v4308
        %v4310 = vpop.xlane.xlu0 %4309
        %v4311 = vadd.f32 %v2501, %v2502
        %v4312 = vadd.f32 %v4311, %v2503
        %v4313 = vadd.f32 %v4312, %v2504
        %v4314 = vadd.f32 %v4313, %v2505
        %v4315 = vadd.f32 %v4314, %v2506
        %v4316 = vsel %vm217, %v2507, 0.0
        %v4317 = vadd.f32 %v4315, %v4316
        %4318 = vadd.xlane.f32.xlu0 %v4317
        %v4319 = vpop.xlane.xlu0 %4318
        %v4320 = vadd.f32 %v2508, %v2509
        %v4321 = vadd.f32 %v4320, %v2510
        %v4322 = vadd.f32 %v4321, %v2511
        %v4323 = vadd.f32 %v4322, %v2512
        %v4324 = vadd.f32 %v4323, %v2513
        %v4325 = vsel %vm217, %v2514, 0.0
        %v4326 = vadd.f32 %v4324, %v4325
        %4327 = vadd.xlane.f32.xlu0 %v4326
        %v4328 = vpop.xlane.xlu0 %4327
        %v4329 = vadd.f32 %v2515, %v2516
        %v4330 = vadd.f32 %v4329, %v2517
        %v4331 = vadd.f32 %v4330, %v2518
        %v4332 = vadd.f32 %v4331, %v2519
        %v4333 = vadd.f32 %v4332, %v2520
        %v4334 = vsel %vm217, %v2521, 0.0
        %v4335 = vadd.f32 %v4333, %v4334
        %4336 = vadd.xlane.f32.xlu0 %v4335
        %v4337 = vpop.xlane.xlu0 %4336
        %v4338 = vadd.f32 %v2522, %v2523
        %v4339 = vadd.f32 %v4338, %v2524
        %v4340 = vadd.f32 %v4339, %v2525
        %v4341 = vadd.f32 %v4340, %v2526
        %v4342 = vadd.f32 %v4341, %v2527
        %v4343 = vsel %vm217, %v2528, 0.0
        %v4344 = vadd.f32 %v4342, %v4343
        %4345 = vadd.xlane.f32.xlu0 %v4344
        %v4346 = vpop.xlane.xlu0 %4345
        %v4347 = vadd.f32 %v2529, %v2530
        %v4348 = vadd.f32 %v4347, %v2531
        %v4349 = vadd.f32 %v4348, %v2532
        %v4350 = vadd.f32 %v4349, %v2533
        %v4351 = vadd.f32 %v4350, %v2534
        %v4352 = vsel %vm217, %v2535, 0.0
        %v4353 = vadd.f32 %v4351, %v4352
        %4354 = vadd.xlane.f32.xlu0 %v4353
        %v4355 = vpop.xlane.xlu0 %4354
        %v4356 = vadd.f32 %v2536, %v2537
        %v4357 = vadd.f32 %v4356, %v2538
        %v4358 = vadd.f32 %v4357, %v2539
        %v4359 = vadd.f32 %v4358, %v2540
        %v4360 = vadd.f32 %v4359, %v2541
        %v4361 = vsel %vm217, %v2542, 0.0
        %v4362 = vadd.f32 %v4360, %v4361
        %4363 = vadd.xlane.f32.xlu0 %v4362
        %v4364 = vpop.xlane.xlu0 %4363
        %v4365 = vadd.f32 %v2543, %v2544
        %v4366 = vadd.f32 %v4365, %v2545
        %v4367 = vadd.f32 %v4366, %v2546
        %v4368 = vadd.f32 %v4367, %v2547
        %v4369 = vadd.f32 %v4368, %v2548
        %v4370 = vsel %vm217, %v2549, 0.0
        %v4371 = vadd.f32 %v4369, %v4370
        %4372 = vadd.xlane.f32.xlu0 %v4371
        %v4373 = vpop.xlane.xlu0 %4372
        %v4374 = vadd.f32 %v2550, %v2551
        %v4375 = vadd.f32 %v4374, %v2552
        %v4376 = vadd.f32 %v4375, %v2553
        %v4377 = vadd.f32 %v4376, %v2554
        %v4378 = vadd.f32 %v4377, %v2555
        %v4379 = vsel %vm217, %v2556, 0.0
        %v4380 = vadd.f32 %v4378, %v4379
        %4381 = vadd.xlane.f32.xlu0 %v4380
        %v4382 = vpop.xlane.xlu0 %4381
        %v4383 = vadd.f32 %v2557, %v2558
        %v4384 = vadd.f32 %v4383, %v2559
        %v4385 = vadd.f32 %v4384, %v2560
        %v4386 = vadd.f32 %v4385, %v2561
        %v4387 = vadd.f32 %v4386, %v2562
        %v4388 = vsel %vm217, %v2563, 0.0
        %v4389 = vadd.f32 %v4387, %v4388
        %4390 = vadd.xlane.f32.xlu0 %v4389
        %v4391 = vpop.xlane.xlu0 %4390
        %v4392 = vadd.f32 %v2564, %v2565
        %v4393 = vadd.f32 %v4392, %v2566
        %v4394 = vadd.f32 %v4393, %v2567
        %v4395 = vadd.f32 %v4394, %v2568
        %v4396 = vadd.f32 %v4395, %v2569
        %v4397 = vsel %vm217, %v2570, 0.0
        %v4398 = vadd.f32 %v4396, %v4397
        %4399 = vadd.xlane.f32.xlu0 %v4398
        %v4400 = vpop.xlane.xlu0 %4399
        %v4401 = vadd.f32 %v2571, %v2572
        %v4402 = vadd.f32 %v4401, %v2573
        %v4403 = vadd.f32 %v4402, %v2574
        %v4404 = vadd.f32 %v4403, %v2575
        %v4405 = vadd.f32 %v4404, %v2576
        %v4406 = vsel %vm217, %v2577, 0.0
        %v4407 = vadd.f32 %v4405, %v4406
        %4408 = vadd.xlane.f32.xlu0 %v4407
        %v4409 = vpop.xlane.xlu0 %4408
        %v4410 = vadd.f32 %v2578, %v2579
        %v4411 = vadd.f32 %v4410, %v2580
        %v4412 = vadd.f32 %v4411, %v2581
        %v4413 = vadd.f32 %v4412, %v2582
        %v4414 = vadd.f32 %v4413, %v2583
        %v4415 = vsel %vm217, %v2584, 0.0
        %v4416 = vadd.f32 %v4414, %v4415
        %4417 = vadd.xlane.f32.xlu0 %v4416
        %v4418 = vpop.xlane.xlu0 %4417
        %v4419 = vadd.f32 %v2585, %v2586
        %v4420 = vadd.f32 %v4419, %v2587
        %v4421 = vadd.f32 %v4420, %v2588
        %v4422 = vadd.f32 %v4421, %v2589
        %v4423 = vadd.f32 %v4422, %v2590
        %v4424 = vsel %vm217, %v2591, 0.0
        %v4425 = vadd.f32 %v4423, %v4424
        %4426 = vadd.xlane.f32.xlu0 %v4425
        %v4427 = vpop.xlane.xlu0 %4426
        %v4428 = vadd.f32 %v2592, %v2593
        %v4429 = vadd.f32 %v4428, %v2594
        %v4430 = vadd.f32 %v4429, %v2595
        %v4431 = vadd.f32 %v4430, %v2596
        %v4432 = vadd.f32 %v4431, %v2597
        %v4433 = vsel %vm217, %v2598, 0.0
        %v4434 = vadd.f32 %v4432, %v4433
        %4435 = vadd.xlane.f32.xlu0 %v4434
        %v4436 = vpop.xlane.xlu0 %4435
        %v4437 = vadd.f32 %v2599, %v2600
        %v4438 = vadd.f32 %v4437, %v2601
        %v4439 = vadd.f32 %v4438, %v2602
        %v4440 = vadd.f32 %v4439, %v2603
        %v4441 = vadd.f32 %v4440, %v2604
        %v4442 = vsel %vm217, %v2605, 0.0
        %v4443 = vadd.f32 %v4441, %v4442
        %4444 = vadd.xlane.f32.xlu0 %v4443
        %v4445 = vpop.xlane.xlu0 %4444
        %v4446 = vadd.f32 %v2606, %v2607
        %v4447 = vadd.f32 %v4446, %v2608
        %v4448 = vadd.f32 %v4447, %v2609
        %v4449 = vadd.f32 %v4448, %v2610
        %v4450 = vadd.f32 %v4449, %v2611
        %v4451 = vsel %vm217, %v2612, 0.0
        %v4452 = vadd.f32 %v4450, %v4451
        %4453 = vadd.xlane.f32.xlu0 %v4452
        %v4454 = vpop.xlane.xlu0 %4453
        %v4455 = vadd.f32 %v2613, %v2614
        %v4456 = vadd.f32 %v4455, %v2615
        %v4457 = vadd.f32 %v4456, %v2616
        %v4458 = vadd.f32 %v4457, %v2617
        %v4459 = vadd.f32 %v4458, %v2618
        %v4460 = vsel %vm217, %v2619, 0.0
        %v4461 = vadd.f32 %v4459, %v4460
        %4462 = vadd.xlane.f32.xlu0 %v4461
        %v4463 = vpop.xlane.xlu0 %4462
        %v4464 = vadd.f32 %v2620, %v2621
        %v4465 = vadd.f32 %v4464, %v2622
        %v4466 = vadd.f32 %v4465, %v2623
        %v4467 = vadd.f32 %v4466, %v2624
        %v4468 = vadd.f32 %v4467, %v2625
        %v4469 = vsel %vm217, %v2626, 0.0
        %v4470 = vadd.f32 %v4468, %v4469
        %4471 = vadd.xlane.f32.xlu0 %v4470
        %v4472 = vpop.xlane.xlu0 %4471
        %v4473 = vadd.f32 %v2627, %v2628
        %v4474 = vadd.f32 %v4473, %v2629
        %v4475 = vadd.f32 %v4474, %v2630
        %v4476 = vadd.f32 %v4475, %v2631
        %v4477 = vadd.f32 %v4476, %v2632
        %v4478 = vsel %vm217, %v2633, 0.0
        %v4479 = vadd.f32 %v4477, %v4478
        %4480 = vadd.xlane.f32.xlu0 %v4479
        %v4481 = vpop.xlane.xlu0 %4480
        %v4482 = vadd.f32 %v2634, %v2635
        %v4483 = vadd.f32 %v4482, %v2636
        %v4484 = vadd.f32 %v4483, %v2637
        %v4485 = vadd.f32 %v4484, %v2638
        %v4486 = vadd.f32 %v4485, %v2639
        %v4487 = vsel %vm217, %v2640, 0.0
        %v4488 = vadd.f32 %v4486, %v4487
        %4489 = vadd.xlane.f32.xlu0 %v4488
        %v4490 = vpop.xlane.xlu0 %4489
        %v4491 = vadd.f32 %v2641, %v2642
        %v4492 = vadd.f32 %v4491, %v2643
        %v4493 = vadd.f32 %v4492, %v2644
        %v4494 = vadd.f32 %v4493, %v2645
        %v4495 = vadd.f32 %v4494, %v2646
        %v4496 = vsel %vm217, %v2647, 0.0
        %v4497 = vadd.f32 %v4495, %v4496
        %4498 = vadd.xlane.f32.xlu0 %v4497
        %v4499 = vpop.xlane.xlu0 %4498
        %v4500 = vadd.f32 %v2648, %v2649
        %v4501 = vadd.f32 %v4500, %v2650
        %v4502 = vadd.f32 %v4501, %v2651
        %v4503 = vadd.f32 %v4502, %v2652
        %v4504 = vadd.f32 %v4503, %v2653
        %v4505 = vsel %vm217, %v2654, 0.0
        %v4506 = vadd.f32 %v4504, %v4505
        %4507 = vadd.xlane.f32.xlu0 %v4506
        %v4508 = vpop.xlane.xlu0 %4507
        %v4509 = vadd.f32 %v2655, %v2656
        %v4510 = vadd.f32 %v4509, %v2657
        %v4511 = vadd.f32 %v4510, %v2658
        %v4512 = vadd.f32 %v4511, %v2659
        %v4513 = vadd.f32 %v4512, %v2660
        %v4514 = vsel %vm217, %v2661, 0.0
        %v4515 = vadd.f32 %v4513, %v4514
        %4516 = vadd.xlane.f32.xlu0 %v4515
        %v4517 = vpop.xlane.xlu0 %4516
        %v4518 = vadd.f32 %v2662, %v2663
        %v4519 = vadd.f32 %v4518, %v2664
        %v4520 = vadd.f32 %v4519, %v2665
        %v4521 = vadd.f32 %v4520, %v2666
        %v4522 = vadd.f32 %v4521, %v2667
        %v4523 = vsel %vm217, %v2668, 0.0
        %v4524 = vadd.f32 %v4522, %v4523
        %4525 = vadd.xlane.f32.xlu0 %v4524
        %v4526 = vpop.xlane.xlu0 %4525
        %v4527 = vadd.f32 %v2669, %v2670
        %v4528 = vadd.f32 %v4527, %v2671
        %v4529 = vadd.f32 %v4528, %v2672
        %v4530 = vadd.f32 %v4529, %v2673
        %v4531 = vadd.f32 %v4530, %v2674
        %v4532 = vsel %vm217, %v2675, 0.0
        %v4533 = vadd.f32 %v4531, %v4532
        %4534 = vadd.xlane.f32.xlu0 %v4533
        %v4535 = vpop.xlane.xlu0 %4534
        %v4536 = vadd.f32 %v2676, %v2677
        %v4537 = vadd.f32 %v4536, %v2678
        %v4538 = vadd.f32 %v4537, %v2679
        %v4539 = vadd.f32 %v4538, %v2680
        %v4540 = vadd.f32 %v4539, %v2681
        %v4541 = vsel %vm217, %v2682, 0.0
        %v4542 = vadd.f32 %v4540, %v4541
        %4543 = vadd.xlane.f32.xlu0 %v4542
        %v4544 = vpop.xlane.xlu0 %4543
        %v4545 = vadd.f32 %v2683, %v2684
        %v4546 = vadd.f32 %v4545, %v2685
        %v4547 = vadd.f32 %v4546, %v2686
        %v4548 = vadd.f32 %v4547, %v2687
        %v4549 = vadd.f32 %v4548, %v2688
        %v4550 = vsel %vm217, %v2689, 0.0
        %v4551 = vadd.f32 %v4549, %v4550
        %4552 = vadd.xlane.f32.xlu0 %v4551
        %v4553 = vpop.xlane.xlu0 %4552
        %v4554 = vadd.f32 %v2690, %v2691
        %v4555 = vadd.f32 %v4554, %v2692
        %v4556 = vadd.f32 %v4555, %v2693
        %v4557 = vadd.f32 %v4556, %v2694
        %v4558 = vadd.f32 %v4557, %v2695
        %v4559 = vsel %vm217, %v2696, 0.0
        %v4560 = vadd.f32 %v4558, %v4559
        %4561 = vadd.xlane.f32.xlu0 %v4560
        %v4562 = vpop.xlane.xlu0 %4561
        %v4563 = vadd.f32 %v2697, %v2698
        %v4564 = vadd.f32 %v4563, %v2699
        %v4565 = vadd.f32 %v4564, %v2700
        %v4566 = vadd.f32 %v4565, %v2701
        %v4567 = vadd.f32 %v4566, %v2702
        %v4568 = vsel %vm217, %v2703, 0.0
        %v4569 = vadd.f32 %v4567, %v4568
        %4570 = vadd.xlane.f32.xlu0 %v4569
        %v4571 = vpop.xlane.xlu0 %4570
        %v4572 = vadd.f32 %v2704, %v2705
        %v4573 = vadd.f32 %v4572, %v2706
        %v4574 = vadd.f32 %v4573, %v2707
        %v4575 = vadd.f32 %v4574, %v2708
        %v4576 = vadd.f32 %v4575, %v2709
        %v4577 = vsel %vm217, %v2710, 0.0
        %v4578 = vadd.f32 %v4576, %v4577
        %4579 = vadd.xlane.f32.xlu0 %v4578
        %v4580 = vpop.xlane.xlu0 %4579
        %v4581 = vadd.f32 %v2711, %v2712
        %v4582 = vadd.f32 %v4581, %v2713
        %v4583 = vadd.f32 %v4582, %v2714
        %v4584 = vadd.f32 %v4583, %v2715
        %v4585 = vadd.f32 %v4584, %v2716
        %v4586 = vsel %vm217, %v2717, 0.0
        %v4587 = vadd.f32 %v4585, %v4586
        %4588 = vadd.xlane.f32.xlu0 %v4587
        %v4589 = vpop.xlane.xlu0 %4588
        %v4590 = vadd.f32 %v2718, %v2719
        %v4591 = vadd.f32 %v4590, %v2720
        %v4592 = vadd.f32 %v4591, %v2721
        %v4593 = vadd.f32 %v4592, %v2722
        %v4594 = vadd.f32 %v4593, %v2723
        %v4595 = vsel %vm217, %v2724, 0.0
        %v4596 = vadd.f32 %v4594, %v4595
        %4597 = vadd.xlane.f32.xlu0 %v4596
        %v4598 = vpop.xlane.xlu0 %4597
        %v4599 = vadd.f32 %v2725, %v2726
        %v4600 = vadd.f32 %v4599, %v2727
        %v4601 = vadd.f32 %v4600, %v2728
        %v4602 = vadd.f32 %v4601, %v2729
        %v4603 = vadd.f32 %v4602, %v2730
        %v4604 = vsel %vm217, %v2731, 0.0
        %v4605 = vadd.f32 %v4603, %v4604
        %4606 = vadd.xlane.f32.xlu0 %v4605
        %v4607 = vpop.xlane.xlu0 %4606
        %v4608 = vadd.f32 %v2732, %v2733
        %v4609 = vadd.f32 %v4608, %v2734
        %v4610 = vadd.f32 %v4609, %v2735
        %v4611 = vadd.f32 %v4610, %v2736
        %v4612 = vadd.f32 %v4611, %v2737
        %v4613 = vsel %vm217, %v2738, 0.0
        %v4614 = vadd.f32 %v4612, %v4613
        %4615 = vadd.xlane.f32.xlu0 %v4614
        %v4616 = vpop.xlane.xlu0 %4615
        %v4617 = vadd.f32 %v2739, %v2740
        %v4618 = vadd.f32 %v4617, %v2741
        %v4619 = vadd.f32 %v4618, %v2742
        %v4620 = vadd.f32 %v4619, %v2743
        %v4621 = vadd.f32 %v4620, %v2744
        %v4622 = vsel %vm217, %v2745, 0.0
        %v4623 = vadd.f32 %v4621, %v4622
        %4624 = vadd.xlane.f32.xlu0 %v4623
        %v4625 = vpop.xlane.xlu0 %4624
        %v4626 = vadd.f32 %v2746, %v2747
        %v4627 = vadd.f32 %v4626, %v2748
        %v4628 = vadd.f32 %v4627, %v2749
        %v4629 = vadd.f32 %v4628, %v2750
        %v4630 = vadd.f32 %v4629, %v2751
        %v4631 = vsel %vm217, %v2752, 0.0
        %v4632 = vadd.f32 %v4630, %v4631
        %4633 = vadd.xlane.f32.xlu0 %v4632
        %v4634 = vpop.xlane.xlu0 %4633
        %v4635 = vadd.f32 %v2753, %v2754
        %v4636 = vadd.f32 %v4635, %v2755
        %v4637 = vadd.f32 %v4636, %v2756
        %v4638 = vadd.f32 %v4637, %v2757
        %v4639 = vadd.f32 %v4638, %v2758
        %v4640 = vsel %vm217, %v2759, 0.0
        %v4641 = vadd.f32 %v4639, %v4640
        %4642 = vadd.xlane.f32.xlu0 %v4641
        %v4643 = vpop.xlane.xlu0 %4642
        %v4644 = vadd.f32 %v2760, %v2761
        %v4645 = vadd.f32 %v4644, %v2762
        %v4646 = vadd.f32 %v4645, %v2763
        %v4647 = vadd.f32 %v4646, %v2764
        %v4648 = vadd.f32 %v4647, %v2765
        %v4649 = vsel %vm217, %v2766, 0.0
        %v4650 = vadd.f32 %v4648, %v4649
        %4651 = vadd.xlane.f32.xlu0 %v4650
        %v4652 = vpop.xlane.xlu0 %4651
        %v4653 = vadd.f32 %v2767, %v2768
        %v4654 = vadd.f32 %v4653, %v2769
        %v4655 = vadd.f32 %v4654, %v2770
        %v4656 = vadd.f32 %v4655, %v2771
        %v4657 = vadd.f32 %v4656, %v2772
        %v4658 = vsel %vm217, %v2773, 0.0
        %v4659 = vadd.f32 %v4657, %v4658
        %4660 = vadd.xlane.f32.xlu0 %v4659
        %v4661 = vpop.xlane.xlu0 %4660
        %v4662 = vadd.f32 %v2774, %v2775
        %v4663 = vadd.f32 %v4662, %v2776
        %v4664 = vadd.f32 %v4663, %v2777
        %v4665 = vadd.f32 %v4664, %v2778
        %v4666 = vadd.f32 %v4665, %v2779
        %v4667 = vsel %vm217, %v2780, 0.0
        %v4668 = vadd.f32 %v4666, %v4667
        %4669 = vadd.xlane.f32.xlu0 %v4668
        %v4670 = vpop.xlane.xlu0 %4669
        %v4671 = vadd.f32 %v2781, %v2782
        %v4672 = vadd.f32 %v4671, %v2783
        %v4673 = vadd.f32 %v4672, %v2784
        %v4674 = vadd.f32 %v4673, %v2785
        %v4675 = vadd.f32 %v4674, %v2786
        %v4676 = vsel %vm217, %v2787, 0.0
        %v4677 = vadd.f32 %v4675, %v4676
        %4678 = vadd.xlane.f32.xlu0 %v4677
        %v4679 = vpop.xlane.xlu0 %4678
        %v4680 = vadd.f32 %v2788, %v2789
        %v4681 = vadd.f32 %v4680, %v2790
        %v4682 = vadd.f32 %v4681, %v2791
        %v4683 = vadd.f32 %v4682, %v2792
        %v4684 = vadd.f32 %v4683, %v2793
        %v4685 = vsel %vm217, %v2794, 0.0
        %v4686 = vadd.f32 %v4684, %v4685
        %4687 = vadd.xlane.f32.xlu0 %v4686
        %v4688 = vpop.xlane.xlu0 %4687
        %v4689 = vadd.f32 %v2795, %v2796
        %v4690 = vadd.f32 %v4689, %v2797
        %v4691 = vadd.f32 %v4690, %v2798
        %v4692 = vadd.f32 %v4691, %v2799
        %v4693 = vadd.f32 %v4692, %v2800
        %v4694 = vsel %vm217, %v2801, 0.0
        %v4695 = vadd.f32 %v4693, %v4694
        %4696 = vadd.xlane.f32.xlu0 %v4695
        %v4697 = vpop.xlane.xlu0 %4696
        %v4698 = vadd.f32 %v2802, %v2803
        %v4699 = vadd.f32 %v4698, %v2804
        %v4700 = vadd.f32 %v4699, %v2805
        %v4701 = vadd.f32 %v4700, %v2806
        %v4702 = vadd.f32 %v4701, %v2807
        %v4703 = vsel %vm217, %v2808, 0.0
        %v4704 = vadd.f32 %v4702, %v4703
        %4705 = vadd.xlane.f32.xlu0 %v4704
        %v4706 = vpop.xlane.xlu0 %4705
        %v4707 = vadd.f32 %v2809, %v2810
        %v4708 = vadd.f32 %v4707, %v2811
        %v4709 = vadd.f32 %v4708, %v2812
        %v4710 = vadd.f32 %v4709, %v2813
        %v4711 = vadd.f32 %v4710, %v2814
        %v4712 = vsel %vm217, %v2815, 0.0
        %v4713 = vadd.f32 %v4711, %v4712
        %4714 = vadd.xlane.f32.xlu0 %v4713
        %v4715 = vpop.xlane.xlu0 %4714
        %v4716 = vadd.f32 %v2816, %v2817
        %v4717 = vadd.f32 %v4716, %v2818
        %v4718 = vadd.f32 %v4717, %v2819
        %v4719 = vadd.f32 %v4718, %v2820
        %v4720 = vadd.f32 %v4719, %v2821
        %v4721 = vsel %vm217, %v2822, 0.0
        %v4722 = vadd.f32 %v4720, %v4721
        %4723 = vadd.xlane.f32.xlu0 %v4722
        %v4724 = vpop.xlane.xlu0 %4723
        %v4725 = vadd.f32 %v2823, %v2824
        %v4726 = vadd.f32 %v4725, %v2825
        %v4727 = vadd.f32 %v4726, %v2826
        %v4728 = vadd.f32 %v4727, %v2827
        %v4729 = vadd.f32 %v4728, %v2828
        %v4730 = vsel %vm217, %v2829, 0.0
        %v4731 = vadd.f32 %v4729, %v4730
        %4732 = vadd.xlane.f32.xlu0 %v4731
        %v4733 = vpop.xlane.xlu0 %4732
        %v4734 = vadd.f32 %v2830, %v2831
        %v4735 = vadd.f32 %v4734, %v2832
        %v4736 = vadd.f32 %v4735, %v2833
        %v4737 = vadd.f32 %v4736, %v2834
        %v4738 = vadd.f32 %v4737, %v2835
        %v4739 = vsel %vm217, %v2836, 0.0
        %v4740 = vadd.f32 %v4738, %v4739
        %4741 = vadd.xlane.f32.xlu0 %v4740
        %v4742 = vpop.xlane.xlu0 %4741
        %v4743 = vadd.f32 %v2837, %v2838
        %v4744 = vadd.f32 %v4743, %v2839
        %v4745 = vadd.f32 %v4744, %v2840
        %v4746 = vadd.f32 %v4745, %v2841
        %v4747 = vadd.f32 %v4746, %v2842
        %v4748 = vsel %vm217, %v2843, 0.0
        %v4749 = vadd.f32 %v4747, %v4748
        %4750 = vadd.xlane.f32.xlu0 %v4749
        %v4751 = vpop.xlane.xlu0 %4750
        %v4752 = vadd.f32 %v2844, %v2845
        %v4753 = vadd.f32 %v4752, %v2846
        %v4754 = vadd.f32 %v4753, %v2847
        %v4755 = vadd.f32 %v4754, %v2848
        %v4756 = vadd.f32 %v4755, %v2849
        %v4757 = vsel %vm217, %v2850, 0.0
        %v4758 = vadd.f32 %v4756, %v4757
        %4759 = vadd.xlane.f32.xlu0 %v4758
        %v4760 = vpop.xlane.xlu0 %4759
        %v4761 = vadd.f32 %v2851, %v2852
        %v4762 = vadd.f32 %v4761, %v2853
        %v4763 = vadd.f32 %v4762, %v2854
        %v4764 = vadd.f32 %v4763, %v2855
        %v4765 = vadd.f32 %v4764, %v2856
        %v4766 = vsel %vm217, %v2857, 0.0
        %v4767 = vadd.f32 %v4765, %v4766
        %4768 = vadd.xlane.f32.xlu0 %v4767
        %v4769 = vpop.xlane.xlu0 %4768
        %v4770 = vadd.f32 %v2858, %v2859
        %v4771 = vadd.f32 %v4770, %v2860
        %v4772 = vadd.f32 %v4771, %v2861
        %v4773 = vadd.f32 %v4772, %v2862
        %v4774 = vadd.f32 %v4773, %v2863
        %v4775 = vsel %vm217, %v2864, 0.0
        %v4776 = vadd.f32 %v4774, %v4775
        %4777 = vadd.xlane.f32.xlu0 %v4776
        %v4778 = vpop.xlane.xlu0 %4777
        %v4779 = vadd.f32 %v2865, %v2866
        %v4780 = vadd.f32 %v4779, %v2867
        %v4781 = vadd.f32 %v4780, %v2868
        %v4782 = vadd.f32 %v4781, %v2869
        %v4783 = vadd.f32 %v4782, %v2870
        %v4784 = vsel %vm217, %v2871, 0.0
        %v4785 = vadd.f32 %v4783, %v4784
        %4786 = vadd.xlane.f32.xlu0 %v4785
        %v4787 = vpop.xlane.xlu0 %4786
        %v4788 = vadd.f32 %v2872, %v2873
        %v4789 = vadd.f32 %v4788, %v2874
        %v4790 = vadd.f32 %v4789, %v2875
        %v4791 = vadd.f32 %v4790, %v2876
        %v4792 = vadd.f32 %v4791, %v2877
        %v4793 = vsel %vm217, %v2878, 0.0
        %v4794 = vadd.f32 %v4792, %v4793
        %4795 = vadd.xlane.f32.xlu0 %v4794
        %v4796 = vpop.xlane.xlu0 %4795
        %v4797 = vadd.f32 %v2879, %v2880
        %v4798 = vadd.f32 %v4797, %v2881
        %v4799 = vadd.f32 %v4798, %v2882
        %v4800 = vadd.f32 %v4799, %v2883
        %v4801 = vadd.f32 %v4800, %v2884
        %v4802 = vsel %vm217, %v2885, 0.0
        %v4803 = vadd.f32 %v4801, %v4802
        %4804 = vadd.xlane.f32.xlu0 %v4803
        %v4805 = vpop.xlane.xlu0 %4804
        %v4806 = vadd.f32 %v2886, %v2887
        %v4807 = vadd.f32 %v4806, %v2888
        %v4808 = vadd.f32 %v4807, %v2889
        %v4809 = vadd.f32 %v4808, %v2890
        %v4810 = vadd.f32 %v4809, %v2891
        %v4811 = vsel %vm217, %v2892, 0.0
        %v4812 = vadd.f32 %v4810, %v4811
        %4813 = vadd.xlane.f32.xlu0 %v4812
        %v4814 = vpop.xlane.xlu0 %4813
        %v4815 = vadd.f32 %v2893, %v2894
        %v4816 = vadd.f32 %v4815, %v2895
        %v4817 = vadd.f32 %v4816, %v2896
        %v4818 = vadd.f32 %v4817, %v2897
        %v4819 = vadd.f32 %v4818, %v2898
        %v4820 = vsel %vm217, %v2899, 0.0
        %v4821 = vadd.f32 %v4819, %v4820
        %4822 = vadd.xlane.f32.xlu0 %v4821
        %v4823 = vpop.xlane.xlu0 %4822
        %v4824 = vadd.f32 %v2900, %v2901
        %v4825 = vadd.f32 %v4824, %v2902
        %v4826 = vadd.f32 %v4825, %v2903
        %v4827 = vadd.f32 %v4826, %v2904
        %v4828 = vadd.f32 %v4827, %v2905
        %v4829 = vsel %vm217, %v2906, 0.0
        %v4830 = vadd.f32 %v4828, %v4829
        %4831 = vadd.xlane.f32.xlu0 %v4830
        %v4832 = vpop.xlane.xlu0 %4831
        %v4833 = vadd.f32 %v2907, %v2908
        %v4834 = vadd.f32 %v4833, %v2909
        %v4835 = vadd.f32 %v4834, %v2910
        %v4836 = vadd.f32 %v4835, %v2911
        %v4837 = vadd.f32 %v4836, %v2912
        %v4838 = vsel %vm217, %v2913, 0.0
        %v4839 = vadd.f32 %v4837, %v4838
        %4840 = vadd.xlane.f32.xlu0 %v4839
        %v4841 = vpop.xlane.xlu0 %4840
        %v4842 = vadd.f32 %v2914, %v2915
        %v4843 = vadd.f32 %v4842, %v2916
        %v4844 = vadd.f32 %v4843, %v2917
        %v4845 = vadd.f32 %v4844, %v2918
        %v4846 = vadd.f32 %v4845, %v2919
        %v4847 = vsel %vm217, %v2920, 0.0
        %v4848 = vadd.f32 %v4846, %v4847
        %4849 = vadd.xlane.f32.xlu0 %v4848
        %v4850 = vpop.xlane.xlu0 %4849
        %v4851 = vadd.f32 %v2921, %v2922
        %v4852 = vadd.f32 %v4851, %v2923
        %v4853 = vadd.f32 %v4852, %v2924
        %v4854 = vadd.f32 %v4853, %v2925
        %v4855 = vadd.f32 %v4854, %v2926
        %v4856 = vsel %vm217, %v2927, 0.0
        %v4857 = vadd.f32 %v4855, %v4856
        %4858 = vadd.xlane.f32.xlu0 %v4857
        %v4859 = vpop.xlane.xlu0 %4858
        %v4860 = vadd.f32 %v2928, %v2929
        %v4861 = vadd.f32 %v4860, %v2930
        %v4862 = vadd.f32 %v4861, %v2931
        %v4863 = vadd.f32 %v4862, %v2932
        %v4864 = vadd.f32 %v4863, %v2933
        %v4865 = vsel %vm217, %v2934, 0.0
        %v4866 = vadd.f32 %v4864, %v4865
        %4867 = vadd.xlane.f32.xlu0 %v4866
        %v4868 = vpop.xlane.xlu0 %4867
        %v4869 = vadd.f32 %v2935, %v2936
        %v4870 = vadd.f32 %v4869, %v2937
        %v4871 = vadd.f32 %v4870, %v2938
        %v4872 = vadd.f32 %v4871, %v2939
        %v4873 = vadd.f32 %v4872, %v2940
        %v4874 = vsel %vm217, %v2941, 0.0
        %v4875 = vadd.f32 %v4873, %v4874
        %4876 = vadd.xlane.f32.xlu0 %v4875
        %v4877 = vpop.xlane.xlu0 %4876
        %v4878 = vadd.f32 %v2942, %v2943
        %v4879 = vadd.f32 %v4878, %v2944
        %v4880 = vadd.f32 %v4879, %v2945
        %v4881 = vadd.f32 %v4880, %v2946
        %v4882 = vadd.f32 %v4881, %v2947
        %v4883 = vsel %vm217, %v2948, 0.0
        %v4884 = vadd.f32 %v4882, %v4883
        %4885 = vadd.xlane.f32.xlu0 %v4884
        %v4886 = vpop.xlane.xlu0 %4885
        %v4887 = vadd.f32 %v2949, %v2950
        %v4888 = vadd.f32 %v4887, %v2951
        %v4889 = vadd.f32 %v4888, %v2952
        %v4890 = vadd.f32 %v4889, %v2953
        %v4891 = vadd.f32 %v4890, %v2954
        %v4892 = vsel %vm217, %v2955, 0.0
        %v4893 = vadd.f32 %v4891, %v4892
        %4894 = vadd.xlane.f32.xlu0 %v4893
        %v4895 = vpop.xlane.xlu0 %4894
        %v4896 = vadd.f32 %v2956, %v2957
        %v4897 = vadd.f32 %v4896, %v2958
        %v4898 = vadd.f32 %v4897, %v2959
        %v4899 = vadd.f32 %v4898, %v2960
        %v4900 = vadd.f32 %v4899, %v2961
        %v4901 = vsel %vm217, %v2962, 0.0
        %v4902 = vadd.f32 %v4900, %v4901
        %4903 = vadd.xlane.f32.xlu0 %v4902
        %v4904 = vpop.xlane.xlu0 %4903
        %v4905 = vadd.f32 %v2963, %v2964
        %v4906 = vadd.f32 %v4905, %v2965
        %v4907 = vadd.f32 %v4906, %v2966
        %v4908 = vadd.f32 %v4907, %v2967
        %v4909 = vadd.f32 %v4908, %v2968
        %v4910 = vsel %vm217, %v2969, 0.0
        %v4911 = vadd.f32 %v4909, %v4910
        %4912 = vadd.xlane.f32.xlu0 %v4911
        %v4913 = vpop.xlane.xlu0 %4912
        %v4914 = vadd.f32 %v2970, %v2971
        %v4915 = vadd.f32 %v4914, %v2972
        %v4916 = vadd.f32 %v4915, %v2973
        %v4917 = vadd.f32 %v4916, %v2974
        %v4918 = vadd.f32 %v4917, %v2975
        %v4919 = vsel %vm217, %v2976, 0.0
        %v4920 = vadd.f32 %v4918, %v4919
        %4921 = vadd.xlane.f32.xlu0 %v4920
        %v4922 = vpop.xlane.xlu0 %4921
        %v4923 = vadd.f32 %v2977, %v2978
        %v4924 = vadd.f32 %v4923, %v2979
        %v4925 = vadd.f32 %v4924, %v2980
        %v4926 = vadd.f32 %v4925, %v2981
        %v4927 = vadd.f32 %v4926, %v2982
        %v4928 = vsel %vm217, %v2983, 0.0
        %v4929 = vadd.f32 %v4927, %v4928
        %4930 = vadd.xlane.f32.xlu0 %v4929
        %v4931 = vpop.xlane.xlu0 %4930
        %v4932 = vadd.f32 %v2984, %v2985
        %v4933 = vadd.f32 %v4932, %v2986
        %v4934 = vadd.f32 %v4933, %v2987
        %v4935 = vadd.f32 %v4934, %v2988
        %v4936 = vadd.f32 %v4935, %v2989
        %v4937 = vsel %vm217, %v2990, 0.0
        %v4938 = vadd.f32 %v4936, %v4937
        %4939 = vadd.xlane.f32.xlu0 %v4938
        %v4940 = vpop.xlane.xlu0 %4939
        %v4941 = vadd.f32 %v2991, %v2992
        %v4942 = vadd.f32 %v4941, %v2993
        %v4943 = vadd.f32 %v4942, %v2994
        %v4944 = vadd.f32 %v4943, %v2995
        %v4945 = vadd.f32 %v4944, %v2996
        %v4946 = vsel %vm217, %v2997, 0.0
        %v4947 = vadd.f32 %v4945, %v4946
        %4948 = vadd.xlane.f32.xlu0 %v4947
        %v4949 = vpop.xlane.xlu0 %4948
        %v4950 = vadd.f32 %v2998, %v2999
        %v4951 = vadd.f32 %v4950, %v3000
        %v4952 = vadd.f32 %v4951, %v3001
        %v4953 = vadd.f32 %v4952, %v3002
        %v4954 = vadd.f32 %v4953, %v3003
        %v4955 = vsel %vm217, %v3004, 0.0
        %v4956 = vadd.f32 %v4954, %v4955
        %4957 = vadd.xlane.f32.xlu0 %v4956
        %v4958 = vpop.xlane.xlu0 %4957
        %v4959 = vadd.f32 %v3005, %v3006
        %v4960 = vadd.f32 %v4959, %v3007
        %v4961 = vadd.f32 %v4960, %v3008
        %v4962 = vadd.f32 %v4961, %v3009
        %v4963 = vadd.f32 %v4962, %v3010
        %v4964 = vsel %vm217, %v3011, 0.0
        %v4965 = vadd.f32 %v4963, %v4964
        %4966 = vadd.xlane.f32.xlu0 %v4965
        %v4967 = vpop.xlane.xlu0 %4966
        %v4968 = vadd.f32 %v3012, %v3013
        %v4969 = vadd.f32 %v4968, %v3014
        %v4970 = vadd.f32 %v4969, %v3015
        %v4971 = vadd.f32 %v4970, %v3016
        %v4972 = vadd.f32 %v4971, %v3017
        %v4973 = vsel %vm217, %v3018, 0.0
        %v4974 = vadd.f32 %v4972, %v4973
        %4975 = vadd.xlane.f32.xlu0 %v4974
        %v4976 = vpop.xlane.xlu0 %4975
        %v4977 = vadd.f32 %v3019, %v3020
        %v4978 = vadd.f32 %v4977, %v3021
        %v4979 = vadd.f32 %v4978, %v3022
        %v4980 = vadd.f32 %v4979, %v3023
        %v4981 = vadd.f32 %v4980, %v3024
        %v4982 = vsel %vm217, %v3025, 0.0
        %v4983 = vadd.f32 %v4981, %v4982
        %4984 = vadd.xlane.f32.xlu0 %v4983
        %v4985 = vpop.xlane.xlu0 %4984
        %v4986 = vadd.f32 %v3026, %v3027
        %v4987 = vadd.f32 %v4986, %v3028
        %v4988 = vadd.f32 %v4987, %v3029
        %v4989 = vadd.f32 %v4988, %v3030
        %v4990 = vadd.f32 %v4989, %v3031
        %v4991 = vsel %vm217, %v3032, 0.0
        %v4992 = vadd.f32 %v4990, %v4991
        %4993 = vadd.xlane.f32.xlu0 %v4992
        %v4994 = vpop.xlane.xlu0 %4993
        %v4995 = vadd.f32 %v3033, %v3034
        %v4996 = vadd.f32 %v4995, %v3035
        %v4997 = vadd.f32 %v4996, %v3036
        %v4998 = vadd.f32 %v4997, %v3037
        %v4999 = vadd.f32 %v4998, %v3038
        %v5000 = vsel %vm217, %v3039, 0.0
        %v5001 = vadd.f32 %v4999, %v5000
        %5002 = vadd.xlane.f32.xlu0 %v5001
        %v5003 = vpop.xlane.xlu0 %5002
        %v5004 = vadd.f32 %v3040, %v3041
        %v5005 = vadd.f32 %v5004, %v3042
        %v5006 = vadd.f32 %v5005, %v3043
        %v5007 = vadd.f32 %v5006, %v3044
        %v5008 = vadd.f32 %v5007, %v3045
        %v5009 = vsel %vm217, %v3046, 0.0
        %v5010 = vadd.f32 %v5008, %v5009
        %5011 = vadd.xlane.f32.xlu0 %v5010
        %v5012 = vpop.xlane.xlu0 %5011
        %v5013 = vadd.f32 %v3047, %v3048
        %v5014 = vadd.f32 %v5013, %v3049
        %v5015 = vadd.f32 %v5014, %v3050
        %v5016 = vadd.f32 %v5015, %v3051
        %v5017 = vadd.f32 %v5016, %v3052
        %v5018 = vsel %vm217, %v3053, 0.0
        %v5019 = vadd.f32 %v5017, %v5018
        %5020 = vadd.xlane.f32.xlu0 %v5019
        %v5021 = vpop.xlane.xlu0 %5020
        %v5022 = vadd.f32 %v3054, %v3055
        %v5023 = vadd.f32 %v5022, %v3056
        %v5024 = vadd.f32 %v5023, %v3057
        %v5025 = vadd.f32 %v5024, %v3058
        %v5026 = vadd.f32 %v5025, %v3059
        %v5027 = vsel %vm217, %v3060, 0.0
        %v5028 = vadd.f32 %v5026, %v5027
        %5029 = vadd.xlane.f32.xlu0 %v5028
        %v5030 = vpop.xlane.xlu0 %5029
        %v5031 = vadd.f32 %v3061, %v3062
        %v5032 = vadd.f32 %v5031, %v3063
        %v5033 = vadd.f32 %v5032, %v3064
        %v5034 = vadd.f32 %v5033, %v3065
        %v5035 = vadd.f32 %v5034, %v3066
        %v5036 = vsel %vm217, %v3067, 0.0
        %v5037 = vadd.f32 %v5035, %v5036
        %5038 = vadd.xlane.f32.xlu0 %v5037
        %v5039 = vpop.xlane.xlu0 %5038
        %v5040 = vadd.f32 %v3068, %v3069
        %v5041 = vadd.f32 %v5040, %v3070
        %v5042 = vadd.f32 %v5041, %v3071
        %v5043 = vadd.f32 %v5042, %v3072
        %v5044 = vadd.f32 %v5043, %v3073
        %v5045 = vsel %vm217, %v3074, 0.0
        %v5046 = vadd.f32 %v5044, %v5045
        %5047 = vadd.xlane.f32.xlu0 %v5046
        %v5048 = vpop.xlane.xlu0 %5047
        %v5049 = vadd.f32 %v3075, %v3076
        %v5050 = vadd.f32 %v5049, %v3077
        %v5051 = vadd.f32 %v5050, %v3078
        %v5052 = vadd.f32 %v5051, %v3079
        %v5053 = vadd.f32 %v5052, %v3080
        %v5054 = vsel %vm217, %v3081, 0.0
        %v5055 = vadd.f32 %v5053, %v5054
        %5056 = vadd.xlane.f32.xlu0 %v5055
        %v5057 = vpop.xlane.xlu0 %5056
        %v5058 = vadd.f32 %v3082, %v3083
        %v5059 = vadd.f32 %v5058, %v3084
        %v5060 = vadd.f32 %v5059, %v3085
        %v5061 = vadd.f32 %v5060, %v3086
        %v5062 = vadd.f32 %v5061, %v3087
        %v5063 = vsel %vm217, %v3088, 0.0
        %v5064 = vadd.f32 %v5062, %v5063
        %5065 = vadd.xlane.f32.xlu0 %v5064
        %v5066 = vpop.xlane.xlu0 %5065
        %v5067 = vadd.f32 %v3089, %v3090
        %v5068 = vadd.f32 %v5067, %v3091
        %v5069 = vadd.f32 %v5068, %v3092
        %v5070 = vadd.f32 %v5069, %v3093
        %v5071 = vadd.f32 %v5070, %v3094
        %v5072 = vsel %vm217, %v3095, 0.0
        %v5073 = vadd.f32 %v5071, %v5072
        %5074 = vadd.xlane.f32.xlu0 %v5073
        %v5075 = vpop.xlane.xlu0 %5074
        %v5076 = vadd.f32 %v3096, %v3097
        %v5077 = vadd.f32 %v5076, %v3098
        %v5078 = vadd.f32 %v5077, %v3099
        %v5079 = vadd.f32 %v5078, %v3100
        %v5080 = vadd.f32 %v5079, %v3101
        %v5081 = vsel %vm217, %v3102, 0.0
        %v5082 = vadd.f32 %v5080, %v5081
        %5083 = vadd.xlane.f32.xlu0 %v5082
        %v5084 = vpop.xlane.xlu0 %5083
        %v5085 = vadd.f32 %v3103, %v3104
        %v5086 = vadd.f32 %v5085, %v3105
        %v5087 = vadd.f32 %v5086, %v3106
        %v5088 = vadd.f32 %v5087, %v3107
        %v5089 = vadd.f32 %v5088, %v3108
        %v5090 = vsel %vm217, %v3109, 0.0
        %v5091 = vadd.f32 %v5089, %v5090
        %5092 = vadd.xlane.f32.xlu0 %v5091
        %v5093 = vpop.xlane.xlu0 %5092
        %v5094 = vadd.f32 %v3110, %v3111
        %v5095 = vadd.f32 %v5094, %v3112
        %v5096 = vadd.f32 %v5095, %v3113
        %v5097 = vadd.f32 %v5096, %v3114
        %v5098 = vadd.f32 %v5097, %v3115
        %v5099 = vsel %vm217, %v3116, 0.0
        %v5100 = vadd.f32 %v5098, %v5099
        %5101 = vadd.xlane.f32.xlu0 %v5100
        %v5102 = vpop.xlane.xlu0 %5101
        %v5103 = vadd.f32 %v3117, %v3118
        %v5104 = vadd.f32 %v5103, %v3119
        %v5105 = vadd.f32 %v5104, %v3120
        %v5106 = vadd.f32 %v5105, %v3121
        %v5107 = vadd.f32 %v5106, %v3122
        %v5108 = vsel %vm217, %v3123, 0.0
        %v5109 = vadd.f32 %v5107, %v5108
        %5110 = vadd.xlane.f32.xlu0 %v5109
        %v5111 = vpop.xlane.xlu0 %5110
        %v5112 = vadd.f32 %v3124, %v3125
        %v5113 = vadd.f32 %v5112, %v3126
        %v5114 = vadd.f32 %v5113, %v3127
        %v5115 = vadd.f32 %v5114, %v3128
        %v5116 = vadd.f32 %v5115, %v3129
        %v5117 = vsel %vm217, %v3130, 0.0
        %v5118 = vadd.f32 %v5116, %v5117
        %5119 = vadd.xlane.f32.xlu0 %v5118
        %v5120 = vpop.xlane.xlu0 %5119
        %v5121 = vadd.f32 %v3131, %v3132
        %v5122 = vadd.f32 %v5121, %v3133
        %v5123 = vadd.f32 %v5122, %v3134
        %v5124 = vadd.f32 %v5123, %v3135
        %v5125 = vadd.f32 %v5124, %v3136
        %v5126 = vsel %vm217, %v3137, 0.0
        %v5127 = vadd.f32 %v5125, %v5126
        %5128 = vadd.xlane.f32.xlu0 %v5127
        %v5129 = vpop.xlane.xlu0 %5128
        %v5130 = vadd.f32 %v3138, %v3139
        %v5131 = vadd.f32 %v5130, %v3140
        %v5132 = vadd.f32 %v5131, %v3141
        %v5133 = vadd.f32 %v5132, %v3142
        %v5134 = vadd.f32 %v5133, %v3143
        %v5135 = vsel %vm217, %v3144, 0.0
        %v5136 = vadd.f32 %v5134, %v5135
        %5137 = vadd.xlane.f32.xlu0 %v5136
        %v5138 = vpop.xlane.xlu0 %5137
        %v5139 = vadd.f32 %v3145, %v3146
        %v5140 = vadd.f32 %v5139, %v3147
        %v5141 = vadd.f32 %v5140, %v3148
        %v5142 = vadd.f32 %v5141, %v3149
        %v5143 = vadd.f32 %v5142, %v3150
        %v5144 = vsel %vm217, %v3151, 0.0
        %v5145 = vadd.f32 %v5143, %v5144
        %5146 = vadd.xlane.f32.xlu0 %v5145
        %v5147 = vpop.xlane.xlu0 %5146
        %v5148 = vadd.f32 %v3152, %v3153
        %v5149 = vadd.f32 %v5148, %v3154
        %v5150 = vadd.f32 %v5149, %v3155
        %v5151 = vadd.f32 %v5150, %v3156
        %v5152 = vadd.f32 %v5151, %v3157
        %v5153 = vsel %vm217, %v3158, 0.0
        %v5154 = vadd.f32 %v5152, %v5153
        %5155 = vadd.xlane.f32.xlu0 %v5154
        %v5156 = vpop.xlane.xlu0 %5155
        %v5157 = vadd.f32 %v3159, %v3160
        %v5158 = vadd.f32 %v5157, %v3161
        %v5159 = vadd.f32 %v5158, %v3162
        %v5160 = vadd.f32 %v5159, %v3163
        %v5161 = vadd.f32 %v5160, %v3164
        %v5162 = vsel %vm217, %v3165, 0.0
        %v5163 = vadd.f32 %v5161, %v5162
        %5164 = vadd.xlane.f32.xlu0 %v5163
        %v5165 = vpop.xlane.xlu0 %5164
        %v5166 = vadd.f32 %v3166, %v3167
        %v5167 = vadd.f32 %v5166, %v3168
        %v5168 = vadd.f32 %v5167, %v3169
        %v5169 = vadd.f32 %v5168, %v3170
        %v5170 = vadd.f32 %v5169, %v3171
        %v5171 = vsel %vm217, %v3172, 0.0
        %v5172 = vadd.f32 %v5170, %v5171
        %5173 = vadd.xlane.f32.xlu0 %v5172
        %v5174 = vpop.xlane.xlu0 %5173
        %v5175 = vadd.f32 %v3173, %v3174
        %v5176 = vadd.f32 %v5175, %v3175
        %v5177 = vadd.f32 %v5176, %v3176
        %v5178 = vadd.f32 %v5177, %v3177
        %v5179 = vadd.f32 %v5178, %v3178
        %v5180 = vsel %vm217, %v3179, 0.0
        %v5181 = vadd.f32 %v5179, %v5180
        %5182 = vadd.xlane.f32.xlu0 %v5181
        %v5183 = vpop.xlane.xlu0 %5182
        %v5184 = vadd.f32 %v3180, %v3181
        %v5185 = vadd.f32 %v5184, %v3182
        %v5186 = vadd.f32 %v5185, %v3183
        %v5187 = vadd.f32 %v5186, %v3184
        %v5188 = vadd.f32 %v5187, %v3185
        %v5189 = vsel %vm217, %v3186, 0.0
        %v5190 = vadd.f32 %v5188, %v5189
        %5191 = vadd.xlane.f32.xlu0 %v5190
        %v5192 = vpop.xlane.xlu0 %5191
        %v5193 = vadd.f32 %v3187, %v3188
        %v5194 = vadd.f32 %v5193, %v3189
        %v5195 = vadd.f32 %v5194, %v3190
        %v5196 = vadd.f32 %v5195, %v3191
        %v5197 = vadd.f32 %v5196, %v3192
        %v5198 = vsel %vm217, %v3193, 0.0
        %v5199 = vadd.f32 %v5197, %v5198
        %5200 = vadd.xlane.f32.xlu0 %v5199
        %v5201 = vpop.xlane.xlu0 %5200
        %v5202 = vadd.f32 %v3194, %v3195
        %v5203 = vadd.f32 %v5202, %v3196
        %v5204 = vadd.f32 %v5203, %v3197
        %v5205 = vadd.f32 %v5204, %v3198
        %v5206 = vadd.f32 %v5205, %v3199
        %v5207 = vsel %vm217, %v3200, 0.0
        %v5208 = vadd.f32 %v5206, %v5207
        %5209 = vadd.xlane.f32.xlu0 %v5208
        %v5210 = vpop.xlane.xlu0 %5209
        %v5211 = vadd.f32 %v3201, %v3202
        %v5212 = vadd.f32 %v5211, %v3203
        %v5213 = vadd.f32 %v5212, %v3204
        %v5214 = vadd.f32 %v5213, %v3205
        %v5215 = vadd.f32 %v5214, %v3206
        %v5216 = vsel %vm217, %v3207, 0.0
        %v5217 = vadd.f32 %v5215, %v5216
        %5218 = vadd.xlane.f32.xlu0 %v5217
        %v5219 = vpop.xlane.xlu0 %5218
        %v5220 = vadd.f32 %v3208, %v3209
        %v5221 = vadd.f32 %v5220, %v3210
        %v5222 = vadd.f32 %v5221, %v3211
        %v5223 = vadd.f32 %v5222, %v3212
        %v5224 = vadd.f32 %v5223, %v3213
        %v5225 = vsel %vm217, %v3214, 0.0
        %v5226 = vadd.f32 %v5224, %v5225
        %5227 = vadd.xlane.f32.xlu0 %v5226
        %v5228 = vpop.xlane.xlu0 %5227
        %v5229 = vadd.f32 %v3215, %v3216
        %v5230 = vadd.f32 %v5229, %v3217
        %v5231 = vadd.f32 %v5230, %v3218
        %v5232 = vadd.f32 %v5231, %v3219
        %v5233 = vadd.f32 %v5232, %v3220
        %v5234 = vsel %vm217, %v3221, 0.0
        %v5235 = vadd.f32 %v5233, %v5234
        %5236 = vadd.xlane.f32.xlu0 %v5235
        %v5237 = vpop.xlane.xlu0 %5236
        %v5238 = vadd.f32 %v3222, %v3223
        %v5239 = vadd.f32 %v5238, %v3224
        %v5240 = vadd.f32 %v5239, %v3225
        %v5241 = vadd.f32 %v5240, %v3226
        %v5242 = vadd.f32 %v5241, %v3227
        %v5243 = vsel %vm217, %v3228, 0.0
        %v5244 = vadd.f32 %v5242, %v5243
        %5245 = vadd.xlane.f32.xlu0 %v5244
        %v5246 = vpop.xlane.xlu0 %5245
        %v5247 = vadd.f32 %v3229, %v3230
        %v5248 = vadd.f32 %v5247, %v3231
        %v5249 = vadd.f32 %v5248, %v3232
        %v5250 = vadd.f32 %v5249, %v3233
        %v5251 = vadd.f32 %v5250, %v3234
        %v5252 = vsel %vm217, %v3235, 0.0
        %v5253 = vadd.f32 %v5251, %v5252
        %5254 = vadd.xlane.f32.xlu0 %v5253
        %v5255 = vpop.xlane.xlu0 %5254
        %v5256 = vadd.f32 %v3236, %v3237
        %v5257 = vadd.f32 %v5256, %v3238
        %v5258 = vadd.f32 %v5257, %v3239
        %v5259 = vadd.f32 %v5258, %v3240
        %v5260 = vadd.f32 %v5259, %v3241
        %v5261 = vsel %vm217, %v3242, 0.0
        %v5262 = vadd.f32 %v5260, %v5261
        %5263 = vadd.xlane.f32.xlu0 %v5262
        %v5264 = vpop.xlane.xlu0 %5263
        %v5265 = vadd.f32 %v3243, %v3244
        %v5266 = vadd.f32 %v5265, %v3245
        %v5267 = vadd.f32 %v5266, %v3246
        %v5268 = vadd.f32 %v5267, %v3247
        %v5269 = vadd.f32 %v5268, %v3248
        %v5270 = vsel %vm217, %v3249, 0.0
        %v5271 = vadd.f32 %v5269, %v5270
        %5272 = vadd.xlane.f32.xlu0 %v5271
        %v5273 = vpop.xlane.xlu0 %5272
        %v5274 = vadd.f32 %v3250, %v3251
        %v5275 = vadd.f32 %v5274, %v3252
        %v5276 = vadd.f32 %v5275, %v3253
        %v5277 = vadd.f32 %v5276, %v3254
        %v5278 = vadd.f32 %v5277, %v3255
        %v5279 = vsel %vm217, %v3256, 0.0
        %v5280 = vadd.f32 %v5278, %v5279
        %5281 = vadd.xlane.f32.xlu0 %v5280
        %v5282 = vpop.xlane.xlu0 %5281
        %v5283 = vadd.f32 %v3257, %v3258
        %v5284 = vadd.f32 %v5283, %v3259
        %v5285 = vadd.f32 %v5284, %v3260
        %v5286 = vadd.f32 %v5285, %v3261
        %v5287 = vadd.f32 %v5286, %v3262
        %v5288 = vsel %vm217, %v3263, 0.0
        %v5289 = vadd.f32 %v5287, %v5288
        %5290 = vadd.xlane.f32.xlu0 %v5289
        %v5291 = vpop.xlane.xlu0 %5290
        %v5292 = vadd.f32 %v3264, %v3265
        %v5293 = vadd.f32 %v5292, %v3266
        %v5294 = vadd.f32 %v5293, %v3267
        %v5295 = vadd.f32 %v5294, %v3268
        %v5296 = vadd.f32 %v5295, %v3269
        %v5297 = vsel %vm217, %v3270, 0.0
        %v5298 = vadd.f32 %v5296, %v5297
        %5299 = vadd.xlane.f32.xlu0 %v5298
        %v5300 = vpop.xlane.xlu0 %5299
        %v5301 = vadd.f32 %v3271, %v3272
        %v5302 = vadd.f32 %v5301, %v3273
        %v5303 = vadd.f32 %v5302, %v3274
        %v5304 = vadd.f32 %v5303, %v3275
        %v5305 = vadd.f32 %v5304, %v3276
        %v5306 = vsel %vm217, %v3277, 0.0
        %v5307 = vadd.f32 %v5305, %v5306
        %5308 = vadd.xlane.f32.xlu0 %v5307
        %v5309 = vpop.xlane.xlu0 %5308
        %v5310 = vadd.f32 %v3278, %v3279
        %v5311 = vadd.f32 %v5310, %v3280
        %v5312 = vadd.f32 %v5311, %v3281
        %v5313 = vadd.f32 %v5312, %v3282
        %v5314 = vadd.f32 %v5313, %v3283
        %v5315 = vsel %vm217, %v3284, 0.0
        %v5316 = vadd.f32 %v5314, %v5315
        %5317 = vadd.xlane.f32.xlu0 %v5316
        %v5318 = vpop.xlane.xlu0 %5317
        %v5319 = vadd.f32 %v3285, %v3286
        %v5320 = vadd.f32 %v5319, %v3287
        %v5321 = vadd.f32 %v5320, %v3288
        %v5322 = vadd.f32 %v5321, %v3289
        %v5323 = vadd.f32 %v5322, %v3290
        %v5324 = vsel %vm217, %v3291, 0.0
        %v5325 = vadd.f32 %v5323, %v5324
        %5326 = vadd.xlane.f32.xlu0 %v5325
        %v5327 = vpop.xlane.xlu0 %5326
        %v5328 = vadd.f32 %v3292, %v3293
        %v5329 = vadd.f32 %v5328, %v3294
        %v5330 = vadd.f32 %v5329, %v3295
        %v5331 = vadd.f32 %v5330, %v3296
        %v5332 = vadd.f32 %v5331, %v3297
        %v5333 = vsel %vm217, %v3298, 0.0
        %v5334 = vadd.f32 %v5332, %v5333
        %5335 = vadd.xlane.f32.xlu0 %v5334
        %v5336 = vpop.xlane.xlu0 %5335
        %v5337 = vadd.f32 %v3299, %v3300
        %v5338 = vadd.f32 %v5337, %v3301
        %v5339 = vadd.f32 %v5338, %v3302
        %v5340 = vadd.f32 %v5339, %v3303
        %v5341 = vadd.f32 %v5340, %v3304
        %v5342 = vsel %vm217, %v3305, 0.0
        %v5343 = vadd.f32 %v5341, %v5342
        %5344 = vadd.xlane.f32.xlu0 %v5343
        %v5345 = vpop.xlane.xlu0 %5344
        %v5346 = vadd.f32 %v3306, %v3307
        %v5347 = vadd.f32 %v5346, %v3308
        %v5348 = vadd.f32 %v5347, %v3309
        %v5349 = vadd.f32 %v5348, %v3310
        %v5350 = vadd.f32 %v5349, %v3311
        %v5351 = vsel %vm217, %v3312, 0.0
        %v5352 = vadd.f32 %v5350, %v5351
        %5353 = vadd.xlane.f32.xlu0 %v5352
        %v5354 = vpop.xlane.xlu0 %5353
        %v5355 = vadd.f32 %v3313, %v3314
        %v5356 = vadd.f32 %v5355, %v3315
        %v5357 = vadd.f32 %v5356, %v3316
        %v5358 = vadd.f32 %v5357, %v3317
        %v5359 = vadd.f32 %v5358, %v3318
        %v5360 = vsel %vm217, %v3319, 0.0
        %v5361 = vadd.f32 %v5359, %v5360
        %5362 = vadd.xlane.f32.xlu0 %v5361
        %v5363 = vpop.xlane.xlu0 %5362
        %v5364 = vadd.f32 %v3320, %v3321
        %v5365 = vadd.f32 %v5364, %v3322
        %v5366 = vadd.f32 %v5365, %v3323
        %v5367 = vadd.f32 %v5366, %v3324
        %v5368 = vadd.f32 %v5367, %v3325
        %v5369 = vsel %vm217, %v3326, 0.0
        %v5370 = vadd.f32 %v5368, %v5369
        %5371 = vadd.xlane.f32.xlu0 %v5370
        %v5372 = vpop.xlane.xlu0 %5371
        %v5373 = vadd.f32 %v3327, %v3328
        %v5374 = vadd.f32 %v5373, %v3329
        %v5375 = vadd.f32 %v5374, %v3330
        %v5376 = vadd.f32 %v5375, %v3331
        %v5377 = vadd.f32 %v5376, %v3332
        %v5378 = vsel %vm217, %v3333, 0.0
        %v5379 = vadd.f32 %v5377, %v5378
        %5380 = vadd.xlane.f32.xlu0 %v5379
        %v5381 = vpop.xlane.xlu0 %5380
        %v5382 = vadd.f32 %v3334, %v3335
        %v5383 = vadd.f32 %v5382, %v3336
        %v5384 = vadd.f32 %v5383, %v3337
        %v5385 = vadd.f32 %v5384, %v3338
        %v5386 = vadd.f32 %v5385, %v3339
        %v5387 = vsel %vm217, %v3340, 0.0
        %v5388 = vadd.f32 %v5386, %v5387
        %5389 = vadd.xlane.f32.xlu0 %v5388
        %v5390 = vpop.xlane.xlu0 %5389
        %v5391 = vadd.f32 %v3341, %v3342
        %v5392 = vadd.f32 %v5391, %v3343
        %v5393 = vadd.f32 %v5392, %v3344
        %v5394 = vadd.f32 %v5393, %v3345
        %v5395 = vadd.f32 %v5394, %v3346
        %v5396 = vsel %vm217, %v3347, 0.0
        %v5397 = vadd.f32 %v5395, %v5396
        %5398 = vadd.xlane.f32.xlu0 %v5397
        %v5399 = vpop.xlane.xlu0 %5398
        %v5400 = vadd.f32 %v3348, %v3349
        %v5401 = vadd.f32 %v5400, %v3350
        %v5402 = vadd.f32 %v5401, %v3351
        %v5403 = vadd.f32 %v5402, %v3352
        %v5404 = vadd.f32 %v5403, %v3353
        %v5405 = vsel %vm217, %v3354, 0.0
        %v5406 = vadd.f32 %v5404, %v5405
        %5407 = vadd.xlane.f32.xlu0 %v5406
        %v5408 = vpop.xlane.xlu0 %5407
        %v5409 = vadd.f32 %v3355, %v3356
        %v5410 = vadd.f32 %v5409, %v3357
        %v5411 = vadd.f32 %v5410, %v3358
        %v5412 = vadd.f32 %v5411, %v3359
        %v5413 = vadd.f32 %v5412, %v3360
        %v5414 = vsel %vm217, %v3361, 0.0
        %v5415 = vadd.f32 %v5413, %v5414
        %5416 = vadd.xlane.f32.xlu0 %v5415
        %v5417 = vpop.xlane.xlu0 %5416
        %v5418 = vadd.f32 %v3362, %v3363
        %v5419 = vadd.f32 %v5418, %v3364
        %v5420 = vadd.f32 %v5419, %v3365
        %v5421 = vadd.f32 %v5420, %v3366
        %v5422 = vadd.f32 %v5421, %v3367
        %v5423 = vsel %vm217, %v3368, 0.0
        %v5424 = vadd.f32 %v5422, %v5423
        %5425 = vadd.xlane.f32.xlu0 %v5424
        %v5426 = vpop.xlane.xlu0 %5425
        %v5427 = vadd.f32 %v3369, %v3370
        %v5428 = vadd.f32 %v5427, %v3371
        %v5429 = vadd.f32 %v5428, %v3372
        %v5430 = vadd.f32 %v5429, %v3373
        %v5431 = vadd.f32 %v5430, %v3374
        %v5432 = vsel %vm217, %v3375, 0.0
        %v5433 = vadd.f32 %v5431, %v5432
        %5434 = vadd.xlane.f32.xlu0 %v5433
        %v5435 = vpop.xlane.xlu0 %5434
        %v5436 = vadd.f32 %v3376, %v3377
        %v5437 = vadd.f32 %v5436, %v3378
        %v5438 = vadd.f32 %v5437, %v3379
        %v5439 = vadd.f32 %v5438, %v3380
        %v5440 = vadd.f32 %v5439, %v3381
        %v5441 = vsel %vm217, %v3382, 0.0
        %v5442 = vadd.f32 %v5440, %v5441
        %5443 = vadd.xlane.f32.xlu0 %v5442
        %v5444 = vpop.xlane.xlu0 %5443
        %v5445 = vadd.f32 %v3383, %v3384
        %v5446 = vadd.f32 %v5445, %v3385
        %v5447 = vadd.f32 %v5446, %v3386
        %v5448 = vadd.f32 %v5447, %v3387
        %v5449 = vadd.f32 %v5448, %v3388
        %v5450 = vsel %vm217, %v3389, 0.0
        %v5451 = vadd.f32 %v5449, %v5450
        %5452 = vadd.xlane.f32.xlu0 %v5451
        %v5453 = vpop.xlane.xlu0 %5452
        %v5454 = vadd.f32 %v3390, %v3391
        %v5455 = vadd.f32 %v5454, %v3392
        %v5456 = vadd.f32 %v5455, %v3393
        %v5457 = vadd.f32 %v5456, %v3394
        %v5458 = vadd.f32 %v5457, %v3395
        %v5459 = vsel %vm217, %v3396, 0.0
        %v5460 = vadd.f32 %v5458, %v5459
        %5461 = vadd.xlane.f32.xlu0 %v5460
        %v5462 = vpop.xlane.xlu0 %5461
        %v5463 = vadd.f32 %v3397, %v3398
        %v5464 = vadd.f32 %v5463, %v3399
        %v5465 = vadd.f32 %v5464, %v3400
        %v5466 = vadd.f32 %v5465, %v3401
        %v5467 = vadd.f32 %v5466, %v3402
        %v5468 = vsel %vm217, %v3403, 0.0
        %v5469 = vadd.f32 %v5467, %v5468
        %5470 = vadd.xlane.f32.xlu0 %v5469
        %v5471 = vpop.xlane.xlu0 %5470
        %v5472 = vadd.f32 %v3404, %v3405
        %v5473 = vadd.f32 %v5472, %v3406
        %v5474 = vadd.f32 %v5473, %v3407
        %v5475 = vadd.f32 %v5474, %v3408
        %v5476 = vadd.f32 %v5475, %v3409
        %v5477 = vsel %vm217, %v3410, 0.0
        %v5478 = vadd.f32 %v5476, %v5477
        %5479 = vadd.xlane.f32.xlu0 %v5478
        %v5480 = vpop.xlane.xlu0 %5479
        %v5481 = vadd.f32 %v3411, %v3412
        %v5482 = vadd.f32 %v5481, %v3413
        %v5483 = vadd.f32 %v5482, %v3414
        %v5484 = vadd.f32 %v5483, %v3415
        %v5485 = vadd.f32 %v5484, %v3416
        %v5486 = vsel %vm217, %v3417, 0.0
        %v5487 = vadd.f32 %v5485, %v5486
        %5488 = vadd.xlane.f32.xlu0 %v5487
        %v5489 = vpop.xlane.xlu0 %5488
        %v5490 = vadd.f32 %v3418, %v3419
        %v5491 = vadd.f32 %v5490, %v3420
        %v5492 = vadd.f32 %v5491, %v3421
        %v5493 = vadd.f32 %v5492, %v3422
        %v5494 = vadd.f32 %v5493, %v3423
        %v5495 = vsel %vm217, %v3424, 0.0
        %v5496 = vadd.f32 %v5494, %v5495
        %5497 = vadd.xlane.f32.xlu0 %v5496
        %v5498 = vpop.xlane.xlu0 %5497
        %v5499 = vadd.f32 %v3425, %v3426
        %v5500 = vadd.f32 %v5499, %v3427
        %v5501 = vadd.f32 %v5500, %v3428
        %v5502 = vadd.f32 %v5501, %v3429
        %v5503 = vadd.f32 %v5502, %v3430
        %v5504 = vsel %vm217, %v3431, 0.0
        %v5505 = vadd.f32 %v5503, %v5504
        %5506 = vadd.xlane.f32.xlu0 %v5505
        %v5507 = vpop.xlane.xlu0 %5506
        %v5508 = vadd.f32 %v3432, %v3433
        %v5509 = vadd.f32 %v5508, %v3434
        %v5510 = vadd.f32 %v5509, %v3435
        %v5511 = vadd.f32 %v5510, %v3436
        %v5512 = vadd.f32 %v5511, %v3437
        %v5513 = vsel %vm217, %v3438, 0.0
        %v5514 = vadd.f32 %v5512, %v5513
        %5515 = vadd.xlane.f32.xlu0 %v5514
        %v5516 = vpop.xlane.xlu0 %5515
        %v5517 = vadd.f32 %v3439, %v3440
        %v5518 = vadd.f32 %v5517, %v3441
        %v5519 = vadd.f32 %v5518, %v3442
        %v5520 = vadd.f32 %v5519, %v3443
        %v5521 = vadd.f32 %v5520, %v3444
        %v5522 = vsel %vm217, %v3445, 0.0
        %v5523 = vadd.f32 %v5521, %v5522
        %5524 = vadd.xlane.f32.xlu0 %v5523
        %v5525 = vpop.xlane.xlu0 %5524
        %v5526 = vadd.f32 %v3446, %v3447
        %v5527 = vadd.f32 %v5526, %v3448
        %v5528 = vadd.f32 %v5527, %v3449
        %v5529 = vadd.f32 %v5528, %v3450
        %v5530 = vadd.f32 %v5529, %v3451
        %v5531 = vsel %vm217, %v3452, 0.0
        %v5532 = vadd.f32 %v5530, %v5531
        %5533 = vadd.xlane.f32.xlu0 %v5532
        %v5534 = vpop.xlane.xlu0 %5533
        %v5535 = vadd.f32 %v3453, %v3454
        %v5536 = vadd.f32 %v5535, %v3455
        %v5537 = vadd.f32 %v5536, %v3456
        %v5538 = vadd.f32 %v5537, %v3457
        %v5539 = vadd.f32 %v5538, %v3458
        %v5540 = vsel %vm217, %v3459, 0.0
        %v5541 = vadd.f32 %v5539, %v5540
        %5542 = vadd.xlane.f32.xlu0 %v5541
        %v5543 = vpop.xlane.xlu0 %5542
        %v5544 = vadd.f32 %v3460, %v3461
        %v5545 = vadd.f32 %v5544, %v3462
        %v5546 = vadd.f32 %v5545, %v3463
        %v5547 = vadd.f32 %v5546, %v3464
        %v5548 = vadd.f32 %v5547, %v3465
        %v5549 = vsel %vm217, %v3466, 0.0
        %v5550 = vadd.f32 %v5548, %v5549
        %5551 = vadd.xlane.f32.xlu0 %v5550
        %v5552 = vpop.xlane.xlu0 %5551
        %v5553 = vadd.f32 %v3467, %v3468
        %v5554 = vadd.f32 %v5553, %v3469
        %v5555 = vadd.f32 %v5554, %v3470
        %v5556 = vadd.f32 %v5555, %v3471
        %v5557 = vadd.f32 %v5556, %v3472
        %v5558 = vsel %vm217, %v3473, 0.0
        %v5559 = vadd.f32 %v5557, %v5558
        %5560 = vadd.xlane.f32.xlu0 %v5559
        %v5561 = vpop.xlane.xlu0 %5560
        %v5562 = vadd.f32 %v3474, %v3475
        %v5563 = vadd.f32 %v5562, %v3476
        %v5564 = vadd.f32 %v5563, %v3477
        %v5565 = vadd.f32 %v5564, %v3478
        %v5566 = vadd.f32 %v5565, %v3479
        %v5567 = vsel %vm217, %v3480, 0.0
        %v5568 = vadd.f32 %v5566, %v5567
        %5569 = vadd.xlane.f32.xlu0 %v5568
        %v5570 = vpop.xlane.xlu0 %5569
        %v5571 = vadd.f32 %v3481, %v3482
        %v5572 = vadd.f32 %v5571, %v3483
        %v5573 = vadd.f32 %v5572, %v3484
        %v5574 = vadd.f32 %v5573, %v3485
        %v5575 = vadd.f32 %v5574, %v3486
        %v5576 = vsel %vm217, %v3487, 0.0
        %v5577 = vadd.f32 %v5575, %v5576
        %5578 = vadd.xlane.f32.xlu0 %v5577
        %v5579 = vpop.xlane.xlu0 %5578
        %v5580 = vadd.f32 %v3488, %v3489
        %v5581 = vadd.f32 %v5580, %v3490
        %v5582 = vadd.f32 %v5581, %v3491
        %v5583 = vadd.f32 %v5582, %v3492
        %v5584 = vadd.f32 %v5583, %v3493
        %v5585 = vsel %vm217, %v3494, 0.0
        %v5586 = vadd.f32 %v5584, %v5585
        %5587 = vadd.xlane.f32.xlu0 %v5586
        %v5588 = vpop.xlane.xlu0 %5587
        %v5589 = vadd.f32 %v3495, %v3496
        %v5590 = vadd.f32 %v5589, %v3497
        %v5591 = vadd.f32 %v5590, %v3498
        %v5592 = vadd.f32 %v5591, %v3499
        %v5593 = vadd.f32 %v5592, %v3500
        %v5594 = vsel %vm217, %v3501, 0.0
        %v5595 = vadd.f32 %v5593, %v5594
        %5596 = vadd.xlane.f32.xlu0 %v5595
        %v5597 = vpop.xlane.xlu0 %5596
        %v5598 = vadd.f32 %v3502, %v3503
        %v5599 = vadd.f32 %v5598, %v3504
        %v5600 = vadd.f32 %v5599, %v3505
        %v5601 = vadd.f32 %v5600, %v3506
        %v5602 = vadd.f32 %v5601, %v3507
        %v5603 = vsel %vm217, %v3508, 0.0
        %v5604 = vadd.f32 %v5602, %v5603
        %5605 = vadd.xlane.f32.xlu0 %v5604
        %v5606 = vpop.xlane.xlu0 %5605
        %v5607 = vadd.f32 %v3509, %v3510
        %v5608 = vadd.f32 %v5607, %v3511
        %v5609 = vadd.f32 %v5608, %v3512
        %v5610 = vadd.f32 %v5609, %v3513
        %v5611 = vadd.f32 %v5610, %v3514
        %v5612 = vsel %vm217, %v3515, 0.0
        %v5613 = vadd.f32 %v5611, %v5612
        %5614 = vadd.xlane.f32.xlu0 %v5613
        %v5615 = vpop.xlane.xlu0 %5614
        %v5616 = vadd.f32 %v3516, %v3517
        %v5617 = vadd.f32 %v5616, %v3518
        %v5618 = vadd.f32 %v5617, %v3519
        %v5619 = vadd.f32 %v5618, %v3520
        %v5620 = vadd.f32 %v5619, %v3521
        %v5621 = vsel %vm217, %v3522, 0.0
        %v5622 = vadd.f32 %v5620, %v5621
        %5623 = vadd.xlane.f32.xlu0 %v5622
        %v5624 = vpop.xlane.xlu0 %5623
        %v5625 = vadd.f32 %v3523, %v3524
        %v5626 = vadd.f32 %v5625, %v3525
        %v5627 = vadd.f32 %v5626, %v3526
        %v5628 = vadd.f32 %v5627, %v3527
        %v5629 = vadd.f32 %v5628, %v3528
        %v5630 = vsel %vm217, %v3529, 0.0
        %v5631 = vadd.f32 %v5629, %v5630
        %5632 = vadd.xlane.f32.xlu0 %v5631
        %v5633 = vpop.xlane.xlu0 %5632
        %v5634 = vadd.f32 %v3530, %v3531
        %v5635 = vadd.f32 %v5634, %v3532
        %v5636 = vadd.f32 %v5635, %v3533
        %v5637 = vadd.f32 %v5636, %v3534
        %v5638 = vadd.f32 %v5637, %v3535
        %v5639 = vsel %vm217, %v3536, 0.0
        %v5640 = vadd.f32 %v5638, %v5639
        %5641 = vadd.xlane.f32.xlu0 %v5640
        %v5642 = vpop.xlane.xlu0 %5641
        %v5643 = vadd.f32 %v3537, %v3538
        %v5644 = vadd.f32 %v5643, %v3539
        %v5645 = vadd.f32 %v5644, %v3540
        %v5646 = vadd.f32 %v5645, %v3541
        %v5647 = vadd.f32 %v5646, %v3542
        %v5648 = vsel %vm217, %v3543, 0.0
        %v5649 = vadd.f32 %v5647, %v5648
        %5650 = vadd.xlane.f32.xlu0 %v5649
        %v5651 = vpop.xlane.xlu0 %5650
        %v5652 = vadd.f32 %v3544, %v3545
        %v5653 = vadd.f32 %v5652, %v3546
        %v5654 = vadd.f32 %v5653, %v3547
        %v5655 = vadd.f32 %v5654, %v3548
        %v5656 = vadd.f32 %v5655, %v3549
        %v5657 = vsel %vm217, %v3550, 0.0
        %v5658 = vadd.f32 %v5656, %v5657
        %5659 = vadd.xlane.f32.xlu0 %v5658
        %v5660 = vpop.xlane.xlu0 %5659
        %v5661 = vadd.f32 %v3551, %v3552
        %v5662 = vadd.f32 %v5661, %v3553
        %v5663 = vadd.f32 %v5662, %v3554
        %v5664 = vadd.f32 %v5663, %v3555
        %v5665 = vadd.f32 %v5664, %v3556
        %v5666 = vsel %vm217, %v3557, 0.0
        %v5667 = vadd.f32 %v5665, %v5666
        %5668 = vadd.xlane.f32.xlu0 %v5667
        %v5669 = vpop.xlane.xlu0 %5668
        %v5670 = vadd.f32 %v3558, %v3559
        %v5671 = vadd.f32 %v5670, %v3560
        %v5672 = vadd.f32 %v5671, %v3561
        %v5673 = vadd.f32 %v5672, %v3562
        %v5674 = vadd.f32 %v5673, %v3563
        %v5675 = vsel %vm217, %v3564, 0.0
        %v5676 = vadd.f32 %v5674, %v5675
        %5677 = vadd.xlane.f32.xlu0 %v5676
        %v5678 = vpop.xlane.xlu0 %5677
        %v5679 = vadd.f32 %v3565, %v3566
        %v5680 = vadd.f32 %v5679, %v3567
        %v5681 = vadd.f32 %v5680, %v3568
        %v5682 = vadd.f32 %v5681, %v3569
        %v5683 = vadd.f32 %v5682, %v3570
        %v5684 = vsel %vm217, %v3571, 0.0
        %v5685 = vadd.f32 %v5683, %v5684
        %5686 = vadd.xlane.f32.xlu0 %v5685
        %v5687 = vpop.xlane.xlu0 %5686
        %v5688 = vadd.f32 %v3572, %v3573
        %v5689 = vadd.f32 %v5688, %v3574
        %v5690 = vadd.f32 %v5689, %v3575
        %v5691 = vadd.f32 %v5690, %v3576
        %v5692 = vadd.f32 %v5691, %v3577
        %v5693 = vsel %vm217, %v3578, 0.0
        %v5694 = vadd.f32 %v5692, %v5693
        %5695 = vadd.xlane.f32.xlu0 %v5694
        %v5696 = vpop.xlane.xlu0 %5695
        %v5697 = vadd.f32 %v3579, %v3580
        %v5698 = vadd.f32 %v5697, %v3581
        %v5699 = vadd.f32 %v5698, %v3582
        %v5700 = vadd.f32 %v5699, %v3583
        %v5701 = vadd.f32 %v5700, %v3584
        %v5702 = vsel %vm217, %v3585, 0.0
        %v5703 = vadd.f32 %v5701, %v5702
        %5704 = vadd.xlane.f32.xlu0 %v5703
        %v5705 = vpop.xlane.xlu0 %5704
        %v5706 = vadd.f32 %v3586, %v3587
        %v5707 = vadd.f32 %v5706, %v3588
        %v5708 = vadd.f32 %v5707, %v3589
        %v5709 = vadd.f32 %v5708, %v3590
        %v5710 = vadd.f32 %v5709, %v3591
        %v5711 = vsel %vm217, %v3592, 0.0
        %v5712 = vadd.f32 %v5710, %v5711
        %5713 = vadd.xlane.f32.xlu0 %v5712
        %v5714 = vpop.xlane.xlu0 %5713
        %v5715 = vadd.f32 %v3593, %v3594
        %v5716 = vadd.f32 %v5715, %v3595
        %v5717 = vadd.f32 %v5716, %v3596
        %v5718 = vadd.f32 %v5717, %v3597
        %v5719 = vadd.f32 %v5718, %v3598
        %v5720 = vsel %vm217, %v3599, 0.0
        %v5721 = vadd.f32 %v5719, %v5720
        %5722 = vadd.xlane.f32.xlu0 %v5721
        %v5723 = vpop.xlane.xlu0 %5722
        %v5724 = vadd.f32 %v3600, %v3601
        %v5725 = vadd.f32 %v5724, %v3602
        %v5726 = vadd.f32 %v5725, %v3603
        %v5727 = vadd.f32 %v5726, %v3604
        %v5728 = vadd.f32 %v5727, %v3605
        %v5729 = vsel %vm217, %v3606, 0.0
        %v5730 = vadd.f32 %v5728, %v5729
        %5731 = vadd.xlane.f32.xlu0 %v5730
        %v5732 = vpop.xlane.xlu0 %5731
        %v5733 = vadd.f32 %v3607, %v3608
        %v5734 = vadd.f32 %v5733, %v3609
        %v5735 = vadd.f32 %v5734, %v3610
        %v5736 = vadd.f32 %v5735, %v3611
        %v5737 = vadd.f32 %v5736, %v3612
        %v5738 = vsel %vm217, %v3613, 0.0
        %v5739 = vadd.f32 %v5737, %v5738
        %5740 = vadd.xlane.f32.xlu0 %v5739
        %v5741 = vpop.xlane.xlu0 %5740
        %v5742 = vadd.f32 %v3614, %v3615
        %v5743 = vadd.f32 %v5742, %v3616
        %v5744 = vadd.f32 %v5743, %v3617
        %v5745 = vadd.f32 %v5744, %v3618
        %v5746 = vadd.f32 %v5745, %v3619
        %v5747 = vsel %vm217, %v3620, 0.0
        %v5748 = vadd.f32 %v5746, %v5747
        %5749 = vadd.xlane.f32.xlu0 %v5748
        %v5750 = vpop.xlane.xlu0 %5749
        %v5751 = vadd.f32 %v3621, %v3622
        %v5752 = vadd.f32 %v5751, %v3623
        %v5753 = vadd.f32 %v5752, %v3624
        %v5754 = vadd.f32 %v5753, %v3625
        %v5755 = vadd.f32 %v5754, %v3626
        %v5756 = vsel %vm217, %v3627, 0.0
        %v5757 = vadd.f32 %v5755, %v5756
        %5758 = vadd.xlane.f32.xlu0 %v5757
        %v5759 = vpop.xlane.xlu0 %5758
        %v5760 = vadd.f32 %v3628, %v3629
        %v5761 = vadd.f32 %v5760, %v3630
        %v5762 = vadd.f32 %v5761, %v3631
        %v5763 = vadd.f32 %v5762, %v3632
        %v5764 = vadd.f32 %v5763, %v3633
        %v5765 = vsel %vm217, %v3634, 0.0
        %v5766 = vadd.f32 %v5764, %v5765
        %5767 = vadd.xlane.f32.xlu0 %v5766
        %v5768 = vpop.xlane.xlu0 %5767
        %v5769 = vadd.f32 %v3635, %v3636
        %v5770 = vadd.f32 %v5769, %v3637
        %v5771 = vadd.f32 %v5770, %v3638
        %v5772 = vadd.f32 %v5771, %v3639
        %v5773 = vadd.f32 %v5772, %v3640
        %v5774 = vsel %vm217, %v3641, 0.0
        %v5775 = vadd.f32 %v5773, %v5774
        %5776 = vadd.xlane.f32.xlu0 %v5775
        %v5777 = vpop.xlane.xlu0 %5776
        %v5778 = vadd.f32 %v3642, %v3643
        %v5779 = vadd.f32 %v5778, %v3644
        %v5780 = vadd.f32 %v5779, %v3645
        %v5781 = vadd.f32 %v5780, %v3646
        %v5782 = vadd.f32 %v5781, %v3647
        %v5783 = vsel %vm217, %v3648, 0.0
        %v5784 = vadd.f32 %v5782, %v5783
        %5785 = vadd.xlane.f32.xlu0 %v5784
        %v5786 = vpop.xlane.xlu0 %5785
        %v5787 = vadd.f32 %v3649, %v3650
        %v5788 = vadd.f32 %v5787, %v3651
        %v5789 = vadd.f32 %v5788, %v3652
        %v5790 = vadd.f32 %v5789, %v3653
        %v5791 = vadd.f32 %v5790, %v3654
        %v5792 = vsel %vm217, %v3655, 0.0
        %v5793 = vadd.f32 %v5791, %v5792
        %5794 = vadd.xlane.f32.xlu0 %v5793
        %v5795 = vpop.xlane.xlu0 %5794
        %v5796 = vadd.f32 %v3656, %v3657
        %v5797 = vadd.f32 %v5796, %v3658
        %v5798 = vadd.f32 %v5797, %v3659
        %v5799 = vadd.f32 %v5798, %v3660
        %v5800 = vadd.f32 %v5799, %v3661
        %v5801 = vsel %vm217, %v3662, 0.0
        %v5802 = vadd.f32 %v5800, %v5801
        %5803 = vadd.xlane.f32.xlu0 %v5802
        %v5804 = vpop.xlane.xlu0 %5803
        %v5805 = vadd.f32 %v3663, %v3664
        %v5806 = vadd.f32 %v5805, %v3665
        %v5807 = vadd.f32 %v5806, %v3666
        %v5808 = vadd.f32 %v5807, %v3667
        %v5809 = vadd.f32 %v5808, %v3668
        %v5810 = vsel %vm217, %v3669, 0.0
        %v5811 = vadd.f32 %v5809, %v5810
        %5812 = vadd.xlane.f32.xlu0 %v5811
        %v5813 = vpop.xlane.xlu0 %5812
        %v5814 = vadd.f32 %v3670, %v3671
        %v5815 = vadd.f32 %v5814, %v3672
        %v5816 = vadd.f32 %v5815, %v3673
        %v5817 = vadd.f32 %v5816, %v3674
        %v5818 = vadd.f32 %v5817, %v3675
        %v5819 = vsel %vm217, %v3676, 0.0
        %v5820 = vadd.f32 %v5818, %v5819
        %5821 = vadd.xlane.f32.xlu0 %v5820
        %v5822 = vpop.xlane.xlu0 %5821
        %v5823 = vadd.f32 %v3677, %v3678
        %v5824 = vadd.f32 %v5823, %v3679
        %v5825 = vadd.f32 %v5824, %v3680
        %v5826 = vadd.f32 %v5825, %v3681
        %v5827 = vadd.f32 %v5826, %v3682
        %v5828 = vsel %vm217, %v3683, 0.0
        %v5829 = vadd.f32 %v5827, %v5828
        %5830 = vadd.xlane.f32.xlu0 %v5829
        %v5831 = vpop.xlane.xlu0 %5830
        %v5832 = vadd.f32 %v3684, %v3685
        %v5833 = vadd.f32 %v5832, %v3686
        %v5834 = vadd.f32 %v5833, %v3687
        %v5835 = vadd.f32 %v5834, %v3688
        %v5836 = vadd.f32 %v5835, %v3689
        %v5837 = vsel %vm217, %v3690, 0.0
        %v5838 = vadd.f32 %v5836, %v5837
        %5839 = vadd.xlane.f32.xlu0 %v5838
        %v5840 = vpop.xlane.xlu0 %5839
        %v5841 = vadd.f32 %v3691, %v3692
        %v5842 = vadd.f32 %v5841, %v3693
        %v5843 = vadd.f32 %v5842, %v3694
        %v5844 = vadd.f32 %v5843, %v3695
        %v5845 = vadd.f32 %v5844, %v3696
        %v5846 = vsel %vm217, %v3697, 0.0
        %v5847 = vadd.f32 %v5845, %v5846
        %5848 = vadd.xlane.f32.xlu0 %v5847
        %v5849 = vpop.xlane.xlu0 %5848
        %v5850 = vadd.f32 %v3698, %v3699
        %v5851 = vadd.f32 %v5850, %v3700
        %v5852 = vadd.f32 %v5851, %v3701
        %v5853 = vadd.f32 %v5852, %v3702
        %v5854 = vadd.f32 %v5853, %v3703
        %v5855 = vsel %vm217, %v3704, 0.0
        %v5856 = vadd.f32 %v5854, %v5855
        %5857 = vadd.xlane.f32.xlu0 %v5856
        %v5858 = vpop.xlane.xlu0 %5857
        %v5859 = vadd.f32 %v3705, %v3706
        %v5860 = vadd.f32 %v5859, %v3707
        %v5861 = vadd.f32 %v5860, %v3708
        %v5862 = vadd.f32 %v5861, %v3709
        %v5863 = vadd.f32 %v5862, %v3710
        %v5864 = vsel %vm217, %v3711, 0.0
        %v5865 = vadd.f32 %v5863, %v5864
        %5866 = vadd.xlane.f32.xlu0 %v5865
        %v5867 = vpop.xlane.xlu0 %5866
        %v5868 = vadd.f32 %v3712, %v3713
        %v5869 = vadd.f32 %v5868, %v3714
        %v5870 = vadd.f32 %v5869, %v3715
        %v5871 = vadd.f32 %v5870, %v3716
        %v5872 = vadd.f32 %v5871, %v3717
        %v5873 = vsel %vm217, %v3718, 0.0
        %v5874 = vadd.f32 %v5872, %v5873
        %5875 = vadd.xlane.f32.xlu0 %v5874
        %v5876 = vpop.xlane.xlu0 %5875
        %v5877 = vadd.f32 %v3719, %v3720
        %v5878 = vadd.f32 %v5877, %v3721
        %v5879 = vadd.f32 %v5878, %v3722
        %v5880 = vadd.f32 %v5879, %v3723
        %v5881 = vadd.f32 %v5880, %v3724
        %v5882 = vsel %vm217, %v3725, 0.0
        %v5883 = vadd.f32 %v5881, %v5882
        %5884 = vadd.xlane.f32.xlu0 %v5883
        %v5885 = vpop.xlane.xlu0 %5884
        %v5886 = vadd.f32 %v3726, %v3727
        %v5887 = vadd.f32 %v5886, %v3728
        %v5888 = vadd.f32 %v5887, %v3729
        %v5889 = vadd.f32 %v5888, %v3730
        %v5890 = vadd.f32 %v5889, %v3731
        %v5891 = vsel %vm217, %v3732, 0.0
        %v5892 = vadd.f32 %v5890, %v5891
        %5893 = vadd.xlane.f32.xlu0 %v5892
        %v5894 = vpop.xlane.xlu0 %5893
        %v5895 = vadd.f32 %v3733, %v3734
        %v5896 = vadd.f32 %v5895, %v3735
        %v5897 = vadd.f32 %v5896, %v3736
        %v5898 = vadd.f32 %v5897, %v3737
        %v5899 = vadd.f32 %v5898, %v3738
        %v5900 = vsel %vm217, %v3739, 0.0
        %v5901 = vadd.f32 %v5899, %v5900
        %5902 = vadd.xlane.f32.xlu0 %v5901
        %v5903 = vpop.xlane.xlu0 %5902
        %v5904 = vadd.f32 %v3740, %v3741
        %v5905 = vadd.f32 %v5904, %v3742
        %v5906 = vadd.f32 %v5905, %v3743
        %v5907 = vadd.f32 %v5906, %v3744
        %v5908 = vadd.f32 %v5907, %v3745
        %v5909 = vsel %vm217, %v3746, 0.0
        %v5910 = vadd.f32 %v5908, %v5909
        %5911 = vadd.xlane.f32.xlu0 %v5910
        %v5912 = vpop.xlane.xlu0 %5911
        %v5913 = vadd.f32 %v3747, %v3748
        %v5914 = vadd.f32 %v5913, %v3749
        %v5915 = vadd.f32 %v5914, %v3750
        %v5916 = vadd.f32 %v5915, %v3751
        %v5917 = vadd.f32 %v5916, %v3752
        %v5918 = vsel %vm217, %v3753, 0.0
        %v5919 = vadd.f32 %v5917, %v5918
        %5920 = vadd.xlane.f32.xlu0 %v5919
        %v5921 = vpop.xlane.xlu0 %5920
        %v5922 = vadd.f32 %v3754, %v3755
        %v5923 = vadd.f32 %v5922, %v3756
        %v5924 = vadd.f32 %v5923, %v3757
        %v5925 = vadd.f32 %v5924, %v3758
        %v5926 = vadd.f32 %v5925, %v3759
        %v5927 = vsel %vm217, %v3760, 0.0
        %v5928 = vadd.f32 %v5926, %v5927
        %5929 = vadd.xlane.f32.xlu0 %v5928
        %v5930 = vpop.xlane.xlu0 %5929
        %v5931 = vadd.f32 %v3761, %v3762
        %v5932 = vadd.f32 %v5931, %v3763
        %v5933 = vadd.f32 %v5932, %v3764
        %v5934 = vadd.f32 %v5933, %v3765
        %v5935 = vadd.f32 %v5934, %v3766
        %v5936 = vsel %vm217, %v3767, 0.0
        %v5937 = vadd.f32 %v5935, %v5936
        %5938 = vadd.xlane.f32.xlu0 %v5937
        %v5939 = vpop.xlane.xlu0 %5938
        %v5940 = vadd.f32 %v3768, %v3769
        %v5941 = vadd.f32 %v5940, %v3770
        %v5942 = vadd.f32 %v5941, %v3771
        %v5943 = vadd.f32 %v5942, %v3772
        %v5944 = vadd.f32 %v5943, %v3773
        %v5945 = vsel %vm217, %v3774, 0.0
        %v5946 = vadd.f32 %v5944, %v5945
        %5947 = vadd.xlane.f32.xlu0 %v5946
        %v5948 = vpop.xlane.xlu0 %5947
        %v5949 = vadd.f32 %v3775, %v3776
        %v5950 = vadd.f32 %v5949, %v3777
        %v5951 = vadd.f32 %v5950, %v3778
        %v5952 = vadd.f32 %v5951, %v3779
        %v5953 = vadd.f32 %v5952, %v3780
        %v5954 = vsel %vm217, %v3781, 0.0
        %v5955 = vadd.f32 %v5953, %v5954
        %5956 = vadd.xlane.f32.xlu0 %v5955
        %v5957 = vpop.xlane.xlu0 %5956
        %v5958 = vadd.f32 %v3782, %v3783
        %v5959 = vadd.f32 %v5958, %v3784
        %v5960 = vadd.f32 %v5959, %v3785
        %v5961 = vadd.f32 %v5960, %v3786
        %v5962 = vadd.f32 %v5961, %v3787
        %v5963 = vsel %vm217, %v3788, 0.0
        %v5964 = vadd.f32 %v5962, %v5963
        %5965 = vadd.xlane.f32.xlu0 %v5964
        %v5966 = vpop.xlane.xlu0 %5965
        %v5967 = vadd.f32 %v3789, %v3790
        %v5968 = vadd.f32 %v5967, %v3791
        %v5969 = vadd.f32 %v5968, %v3792
        %v5970 = vadd.f32 %v5969, %v3793
        %v5971 = vadd.f32 %v5970, %v3794
        %v5972 = vsel %vm217, %v3795, 0.0
        %v5973 = vadd.f32 %v5971, %v5972
        %5974 = vadd.xlane.f32.xlu0 %v5973
        %v5975 = vpop.xlane.xlu0 %5974
        %v5976 = vadd.f32 %v3796, %v3797
        %v5977 = vadd.f32 %v5976, %v3798
        %v5978 = vadd.f32 %v5977, %v3799
        %v5979 = vadd.f32 %v5978, %v3800
        %v5980 = vadd.f32 %v5979, %v3801
        %v5981 = vsel %vm217, %v3802, 0.0
        %v5982 = vadd.f32 %v5980, %v5981
        %5983 = vadd.xlane.f32.xlu0 %v5982
        %v5984 = vpop.xlane.xlu0 %5983
        %v5985 = vadd.f32 %v3803, %v3804
        %v5986 = vadd.f32 %v5985, %v3805
        %v5987 = vadd.f32 %v5986, %v3806
        %v5988 = vadd.f32 %v5987, %v3807
        %v5989 = vadd.f32 %v5988, %v3808
        %v5990 = vsel %vm217, %v3809, 0.0
        %v5991 = vadd.f32 %v5989, %v5990
        %5992 = vadd.xlane.f32.xlu0 %v5991
        %v5993 = vpop.xlane.xlu0 %5992
        %v5994 = vadd.f32 %v3810, %v3811
        %v5995 = vadd.f32 %v5994, %v3812
        %v5996 = vadd.f32 %v5995, %v3813
        %v5997 = vadd.f32 %v5996, %v3814
        %v5998 = vadd.f32 %v5997, %v3815
        %v5999 = vsel %vm217, %v3816, 0.0
        %v6000 = vadd.f32 %v5998, %v5999
        %6001 = vadd.xlane.f32.xlu0 %v6000
        %v6002 = vpop.xlane.xlu0 %6001
        %v6003 = vadd.f32 %v3817, %v3818
        %v6004 = vadd.f32 %v6003, %v3819
        %v6005 = vadd.f32 %v6004, %v3820
        %v6006 = vadd.f32 %v6005, %v3821
        %v6007 = vadd.f32 %v6006, %v3822
        %v6008 = vsel %vm217, %v3823, 0.0
        %v6009 = vadd.f32 %v6007, %v6008
        %6010 = vadd.xlane.f32.xlu0 %v6009
        %v6011 = vpop.xlane.xlu0 %6010
        %v6012 = vadd.f32 %v3824, %v3825
        %v6013 = vadd.f32 %v6012, %v3826
        %v6014 = vadd.f32 %v6013, %v3827
        %v6015 = vadd.f32 %v6014, %v3828
        %v6016 = vadd.f32 %v6015, %v3829
        %v6017 = vsel %vm217, %v3830, 0.0
        %v6018 = vadd.f32 %v6016, %v6017
        %6019 = vadd.xlane.f32.xlu0 %v6018
        %v6020 = vpop.xlane.xlu0 %6019
        %v6021 = vadd.f32 %v3831, %v3832
        %v6022 = vadd.f32 %v6021, %v3833
        %v6023 = vadd.f32 %v6022, %v3834
        %v6024 = vadd.f32 %v6023, %v3835
        %v6025 = vadd.f32 %v6024, %v3836
        %v6026 = vsel %vm217, %v3837, 0.0
        %v6027 = vadd.f32 %v6025, %v6026
        %6028 = vadd.xlane.f32.xlu0 %v6027
        %v6029 = vpop.xlane.xlu0 %6028
        %v6030 = vadd.f32 %v3838, %v3839
        %v6031 = vadd.f32 %v6030, %v3840
        %v6032 = vadd.f32 %v6031, %v3841
        %v6033 = vadd.f32 %v6032, %v3842
        %v6034 = vadd.f32 %v6033, %v3843
        %v6035 = vsel %vm217, %v3844, 0.0
        %v6036 = vadd.f32 %v6034, %v6035
        %6037 = vadd.xlane.f32.xlu0 %v6036
        %v6038 = vpop.xlane.xlu0 %6037
        %v6039 = vadd.f32 %v3845, %v3846
        %v6040 = vadd.f32 %v6039, %v3847
        %v6041 = vadd.f32 %v6040, %v3848
        %v6042 = vadd.f32 %v6041, %v3849
        %v6043 = vadd.f32 %v6042, %v3850
        %v6044 = vsel %vm217, %v3851, 0.0
        %v6045 = vadd.f32 %v6043, %v6044
        %6046 = vadd.xlane.f32.xlu0 %v6045
        %v6047 = vpop.xlane.xlu0 %6046
        %v6048 = vadd.f32 %v3852, %v3853
        %v6049 = vadd.f32 %v6048, %v3854
        %v6050 = vadd.f32 %v6049, %v3855
        %v6051 = vadd.f32 %v6050, %v3856
        %v6052 = vadd.f32 %v6051, %v3857
        %v6053 = vsel %vm217, %v3858, 0.0
        %v6054 = vadd.f32 %v6052, %v6053
        %6055 = vadd.xlane.f32.xlu0 %v6054
        %v6056 = vpop.xlane.xlu0 %6055
        %v6057 = vadd.f32 %v3859, %v3860
        %v6058 = vadd.f32 %v6057, %v3861
        %v6059 = vadd.f32 %v6058, %v3862
        %v6060 = vadd.f32 %v6059, %v3863
        %v6061 = vadd.f32 %v6060, %v3864
        %v6062 = vsel %vm217, %v3865, 0.0
        %v6063 = vadd.f32 %v6061, %v6062
        %6064 = vadd.xlane.f32.xlu0 %v6063
        %v6065 = vpop.xlane.xlu0 %6064
        %v6066 = vadd.f32 %v3866, %v3867
        %v6067 = vadd.f32 %v6066, %v3868
        %v6068 = vadd.f32 %v6067, %v3869
        %v6069 = vadd.f32 %v6068, %v3870
        %v6070 = vadd.f32 %v6069, %v3871
        %v6071 = vsel %vm217, %v3872, 0.0
        %v6072 = vadd.f32 %v6070, %v6071
        %6073 = vadd.xlane.f32.xlu0 %v6072
        %v6074 = vpop.xlane.xlu0 %6073
        %v6075 = vadd.f32 %v3873, %v3874
        %v6076 = vadd.f32 %v6075, %v3875
        %v6077 = vadd.f32 %v6076, %v3876
        %v6078 = vadd.f32 %v6077, %v3877
        %v6079 = vadd.f32 %v6078, %v3878
        %v6080 = vsel %vm217, %v3879, 0.0
        %v6081 = vadd.f32 %v6079, %v6080
        %6082 = vadd.xlane.f32.xlu0 %v6081
        %v6083 = vpop.xlane.xlu0 %6082
        %v6084 = vadd.f32 %v3880, %v3881
        %v6085 = vadd.f32 %v6084, %v3882
        %v6086 = vadd.f32 %v6085, %v3883
        %v6087 = vadd.f32 %v6086, %v3884
        %v6088 = vadd.f32 %v6087, %v3885
        %v6089 = vsel %vm217, %v3886, 0.0
        %v6090 = vadd.f32 %v6088, %v6089
        %6091 = vadd.xlane.f32.xlu0 %v6090
        %v6092 = vpop.xlane.xlu0 %6091
        %v6093 = vadd.f32 %v3887, %v3888
        %v6094 = vadd.f32 %v6093, %v3889
        %v6095 = vadd.f32 %v6094, %v3890
        %v6096 = vadd.f32 %v6095, %v3891
        %v6097 = vadd.f32 %v6096, %v3892
        %v6098 = vsel %vm217, %v3893, 0.0
        %v6099 = vadd.f32 %v6097, %v6098
        %6100 = vadd.xlane.f32.xlu0 %v6099
        %v6101 = vpop.xlane.xlu0 %6100
        %v6102 = vadd.f32 %v3894, %v3895
        %v6103 = vadd.f32 %v6102, %v3896
        %v6104 = vadd.f32 %v6103, %v3897
        %v6105 = vadd.f32 %v6104, %v3898
        %v6106 = vadd.f32 %v6105, %v3899
        %v6107 = vsel %vm217, %v3900, 0.0
        %v6108 = vadd.f32 %v6106, %v6107
        %6109 = vadd.xlane.f32.xlu0 %v6108
        %v6110 = vpop.xlane.xlu0 %6109
        %v6111 = vadd.f32 %v3901, %v3902
        %v6112 = vadd.f32 %v6111, %v3903
        %v6113 = vadd.f32 %v6112, %v3904
        %v6114 = vadd.f32 %v6113, %v3905
        %v6115 = vadd.f32 %v6114, %v3906
        %v6116 = vsel %vm217, %v3907, 0.0
        %v6117 = vadd.f32 %v6115, %v6116
        %6118 = vadd.xlane.f32.xlu0 %v6117
        %v6119 = vpop.xlane.xlu0 %6118
        %v6120 = vadd.f32 %v3908, %v3909
        %v6121 = vadd.f32 %v6120, %v3910
        %v6122 = vadd.f32 %v6121, %v3911
        %v6123 = vadd.f32 %v6122, %v3912
        %v6124 = vadd.f32 %v6123, %v3913
        %v6125 = vsel %vm217, %v3914, 0.0
        %v6126 = vadd.f32 %v6124, %v6125
        %6127 = vadd.xlane.f32.xlu0 %v6126
        %v6128 = vpop.xlane.xlu0 %6127
        %v6129 = vadd.f32 %v3915, %v3916
        %v6130 = vadd.f32 %v6129, %v3917
        %v6131 = vadd.f32 %v6130, %v3918
        %v6132 = vadd.f32 %v6131, %v3919
        %v6133 = vadd.f32 %v6132, %v3920
        %v6134 = vsel %vm217, %v3921, 0.0
        %v6135 = vadd.f32 %v6133, %v6134
        %6136 = vadd.xlane.f32.xlu0 %v6135
        %v6137 = vpop.xlane.xlu0 %6136
        %v6138 = vadd.f32 %v3922, %v3923
        %v6139 = vadd.f32 %v6138, %v3924
        %v6140 = vadd.f32 %v6139, %v3925
        %v6141 = vadd.f32 %v6140, %v3926
        %v6142 = vadd.f32 %v6141, %v3927
        %v6143 = vsel %vm217, %v3928, 0.0
        %v6144 = vadd.f32 %v6142, %v6143
        %6145 = vadd.xlane.f32.xlu0 %v6144
        %v6146 = vpop.xlane.xlu0 %6145
        %v6147 = vadd.f32 %v3929, %v3930
        %v6148 = vadd.f32 %v6147, %v3931
        %v6149 = vadd.f32 %v6148, %v3932
        %v6150 = vadd.f32 %v6149, %v3933
        %v6151 = vadd.f32 %v6150, %v3934
        %v6152 = vsel %vm217, %v3935, 0.0
        %v6153 = vadd.f32 %v6151, %v6152
        %6154 = vadd.xlane.f32.xlu0 %v6153
        %v6155 = vpop.xlane.xlu0 %6154
        %v6156 = vadd.f32 %v3936, %v3937
        %v6157 = vadd.f32 %v6156, %v3938
        %v6158 = vadd.f32 %v6157, %v3939
        %v6159 = vadd.f32 %v6158, %v3940
        %v6160 = vadd.f32 %v6159, %v3941
        %v6161 = vsel %vm217, %v3942, 0.0
        %v6162 = vadd.f32 %v6160, %v6161
        %6163 = vadd.xlane.f32.xlu0 %v6162
        %v6164 = vpop.xlane.xlu0 %6163
        %v6165 = vadd.f32 %v3943, %v3944
        %v6166 = vadd.f32 %v6165, %v3945
        %v6167 = vadd.f32 %v6166, %v3946
        %v6168 = vadd.f32 %v6167, %v3947
        %v6169 = vadd.f32 %v6168, %v3948
        %v6170 = vsel %vm217, %v3949, 0.0
        %v6171 = vadd.f32 %v6169, %v6170
        %6172 = vadd.xlane.f32.xlu0 %v6171
        %v6173 = vpop.xlane.xlu0 %6172
        %v6174 = vadd.f32 %v3950, %v3951
        %v6175 = vadd.f32 %v6174, %v3952
        %v6176 = vadd.f32 %v6175, %v3953
        %v6177 = vadd.f32 %v6176, %v3954
        %v6178 = vadd.f32 %v6177, %v3955
        %v6179 = vsel %vm217, %v3956, 0.0
        %v6180 = vadd.f32 %v6178, %v6179
        %6181 = vadd.xlane.f32.xlu0 %v6180
        %v6182 = vpop.xlane.xlu0 %6181
        %v6183 = vadd.f32 %v3957, %v3958
        %v6184 = vadd.f32 %v6183, %v3959
        %v6185 = vadd.f32 %v6184, %v3960
        %v6186 = vadd.f32 %v6185, %v3961
        %v6187 = vadd.f32 %v6186, %v3962
        %v6188 = vsel %vm217, %v3963, 0.0
        %v6189 = vadd.f32 %v6187, %v6188
        %6190 = vadd.xlane.f32.xlu0 %v6189
        %v6191 = vpop.xlane.xlu0 %6190
        %v6192 = vadd.f32 %v3964, %v3965
        %v6193 = vadd.f32 %v6192, %v3966
        %v6194 = vadd.f32 %v6193, %v3967
        %v6195 = vadd.f32 %v6194, %v3968
        %v6196 = vadd.f32 %v6195, %v3969
        %v6197 = vsel %vm217, %v3970, 0.0
        %v6198 = vadd.f32 %v6196, %v6197
        %6199 = vadd.xlane.f32.xlu0 %v6198
        %v6200 = vpop.xlane.xlu0 %6199
        %v6201 = vadd.f32 %v3971, %v3972
        %v6202 = vadd.f32 %v6201, %v3973
        %v6203 = vadd.f32 %v6202, %v3974
        %v6204 = vadd.f32 %v6203, %v3975
        %v6205 = vadd.f32 %v6204, %v3976
        %v6206 = vsel %vm217, %v3977, 0.0
        %v6207 = vadd.f32 %v6205, %v6206
        %6208 = vadd.xlane.f32.xlu0 %v6207
        %v6209 = vpop.xlane.xlu0 %6208
        %v6210 = vadd.f32 %v3978, %v3979
        %v6211 = vadd.f32 %v6210, %v3980
        %v6212 = vadd.f32 %v6211, %v3981
        %v6213 = vadd.f32 %v6212, %v3982
        %v6214 = vadd.f32 %v6213, %v3983
        %v6215 = vsel %vm217, %v3984, 0.0
        %v6216 = vadd.f32 %v6214, %v6215
        %6217 = vadd.xlane.f32.xlu0 %v6216
        %v6218 = vpop.xlane.xlu0 %6217
        %v6219 = vadd.f32 %v3985, %v3986
        %v6220 = vadd.f32 %v6219, %v3987
        %v6221 = vadd.f32 %v6220, %v3988
        %v6222 = vadd.f32 %v6221, %v3989
        %v6223 = vadd.f32 %v6222, %v3990
        %v6224 = vsel %vm217, %v3991, 0.0
        %v6225 = vadd.f32 %v6223, %v6224
        %6226 = vadd.xlane.f32.xlu0 %v6225
        %v6227 = vpop.xlane.xlu0 %6226
        %v6228 = vadd.f32 %v3992, %v3993
        %v6229 = vadd.f32 %v6228, %v3994
        %v6230 = vadd.f32 %v6229, %v3995
        %v6231 = vadd.f32 %v6230, %v3996
        %v6232 = vadd.f32 %v6231, %v3997
        %v6233 = vsel %vm217, %v3998, 0.0
        %v6234 = vadd.f32 %v6232, %v6233
        %6235 = vadd.xlane.f32.xlu0 %v6234
        %v6236 = vpop.xlane.xlu0 %6235
        %v6237 = vadd.f32 %v3999, %v4000
        %v6238 = vadd.f32 %v6237, %v4001
        %v6239 = vadd.f32 %v6238, %v4002
        %v6240 = vadd.f32 %v6239, %v4003
        %v6241 = vadd.f32 %v6240, %v4004
        %v6242 = vsel %vm217, %v4005, 0.0
        %v6243 = vadd.f32 %v6241, %v6242
        %6244 = vadd.xlane.f32.xlu0 %v6243
        %v6245 = vpop.xlane.xlu0 %6244
        %v6246 = vadd.f32 %v4006, %v4007
        %v6247 = vadd.f32 %v6246, %v4008
        %v6248 = vadd.f32 %v6247, %v4009
        %v6249 = vadd.f32 %v6248, %v4010
        %v6250 = vadd.f32 %v6249, %v4011
        %v6251 = vsel %vm217, %v4012, 0.0
        %v6252 = vadd.f32 %v6250, %v6251
        %6253 = vadd.xlane.f32.xlu0 %v6252
        %v6254 = vpop.xlane.xlu0 %6253
        %v6255 = vadd.f32 %v4013, %v4014
        %v6256 = vadd.f32 %v6255, %v4015
        %v6257 = vadd.f32 %v6256, %v4016
        %v6258 = vadd.f32 %v6257, %v4017
        %v6259 = vadd.f32 %v6258, %v4018
        %v6260 = vsel %vm217, %v4019, 0.0
        %v6261 = vadd.f32 %v6259, %v6260
        %6262 = vadd.xlane.f32.xlu0 %v6261
        %v6263 = vpop.xlane.xlu0 %6262
        %v6264 = vadd.f32 %v4020, %v4021
        %v6265 = vadd.f32 %v6264, %v4022
        %v6266 = vadd.f32 %v6265, %v4023
        %v6267 = vadd.f32 %v6266, %v4024
        %v6268 = vadd.f32 %v6267, %v4025
        %v6269 = vsel %vm217, %v4026, 0.0
        %v6270 = vadd.f32 %v6268, %v6269
        %6271 = vadd.xlane.f32.xlu0 %v6270
        %v6272 = vpop.xlane.xlu0 %6271
        %v6273 = vadd.f32 %v4027, %v4028
        %v6274 = vadd.f32 %v6273, %v4029
        %v6275 = vadd.f32 %v6274, %v4030
        %v6276 = vadd.f32 %v6275, %v4031
        %v6277 = vadd.f32 %v6276, %v4032
        %v6278 = vsel %vm217, %v4033, 0.0
        %v6279 = vadd.f32 %v6277, %v6278
        %6280 = vadd.xlane.f32.xlu0 %v6279
        %v6281 = vpop.xlane.xlu0 %6280
        %v6282 = vadd.f32 %v4034, %v4035
        %v6283 = vadd.f32 %v6282, %v4036
        %v6284 = vadd.f32 %v6283, %v4037
        %v6285 = vadd.f32 %v6284, %v4038
        %v6286 = vadd.f32 %v6285, %v4039
        %v6287 = vsel %vm217, %v4040, 0.0
        %v6288 = vadd.f32 %v6286, %v6287
        %6289 = vadd.xlane.f32.xlu0 %v6288
        %v6290 = vpop.xlane.xlu0 %6289
        %v6291 = vadd.f32 %v4041, %v4042
        %v6292 = vadd.f32 %v6291, %v4043
        %v6293 = vadd.f32 %v6292, %v4044
        %v6294 = vadd.f32 %v6293, %v4045
        %v6295 = vadd.f32 %v6294, %v4046
        %v6296 = vsel %vm217, %v4047, 0.0
        %v6297 = vadd.f32 %v6295, %v6296
        %6298 = vadd.xlane.f32.xlu0 %v6297
        %v6299 = vpop.xlane.xlu0 %6298
        %v6300 = vadd.f32 %v4048, %v4049
        %v6301 = vadd.f32 %v6300, %v4050
        %v6302 = vadd.f32 %v6301, %v4051
        %v6303 = vadd.f32 %v6302, %v4052
        %v6304 = vadd.f32 %v6303, %v4053
        %v6305 = vsel %vm217, %v4054, 0.0
        %v6306 = vadd.f32 %v6304, %v6305
        %6307 = vadd.xlane.f32.xlu0 %v6306
        %v6308 = vpop.xlane.xlu0 %6307
        %v6309 = vadd.f32 %v4055, %v4056
        %v6310 = vadd.f32 %v6309, %v4057
        %v6311 = vadd.f32 %v6310, %v4058
        %v6312 = vadd.f32 %v6311, %v4059
        %v6313 = vadd.f32 %v6312, %v4060
        %v6314 = vsel %vm217, %v4061, 0.0
        %v6315 = vadd.f32 %v6313, %v6314
        %6316 = vadd.xlane.f32.xlu0 %v6315
        %v6317 = vpop.xlane.xlu0 %6316
        %v6318 = vadd.f32 %v4062, %v4063
        %v6319 = vadd.f32 %v6318, %v4064
        %v6320 = vadd.f32 %v6319, %v4065
        %v6321 = vadd.f32 %v6320, %v4066
        %v6322 = vadd.f32 %v6321, %v4067
        %v6323 = vsel %vm217, %v4068, 0.0
        %v6324 = vadd.f32 %v6322, %v6323
        %6325 = vadd.xlane.f32.xlu0 %v6324
        %v6326 = vpop.xlane.xlu0 %6325
        %v6327 = vadd.f32 %v4069, %v4070
        %v6328 = vadd.f32 %v6327, %v4071
        %v6329 = vadd.f32 %v6328, %v4072
        %v6330 = vadd.f32 %v6329, %v4073
        %v6331 = vadd.f32 %v6330, %v4074
        %v6332 = vsel %vm217, %v4075, 0.0
        %v6333 = vadd.f32 %v6331, %v6332
        %6334 = vadd.xlane.f32.xlu0 %v6333
        %v6335 = vpop.xlane.xlu0 %6334
        %v6336 = vadd.f32 %v4076, %v4077
        %v6337 = vadd.f32 %v6336, %v4078
        %v6338 = vadd.f32 %v6337, %v4079
        %v6339 = vadd.f32 %v6338, %v4080
        %v6340 = vadd.f32 %v6339, %v4081
        %v6341 = vsel %vm217, %v4082, 0.0
        %v6342 = vadd.f32 %v6340, %v6341
        %6343 = vadd.xlane.f32.xlu0 %v6342
        %v6344 = vpop.xlane.xlu0 %6343
        %v6345 = vadd.f32 %v4083, %v4084
        %v6346 = vadd.f32 %v6345, %v4085
        %v6347 = vadd.f32 %v6346, %v4086
        %v6348 = vadd.f32 %v6347, %v4087
        %v6349 = vadd.f32 %v6348, %v4088
        %v6350 = vsel %vm217, %v4089, 0.0
        %v6351 = vadd.f32 %v6349, %v6350
        %6352 = vadd.xlane.f32.xlu0 %v6351
        %v6353 = vpop.xlane.xlu0 %6352
        %v6354 = vadd.f32 %v4090, %v4091
        %v6355 = vadd.f32 %v6354, %v4092
        %v6356 = vadd.f32 %v6355, %v4093
        %v6357 = vadd.f32 %v6356, %v4094
        %v6358 = vadd.f32 %v6357, %v4095
        %v6359 = vsel %vm217, %v4096, 0.0
        %v6360 = vadd.f32 %v6358, %v6359
        %6361 = vadd.xlane.f32.xlu0 %v6360
        %v6362 = vpop.xlane.xlu0 %6361
        %v6363 = vadd.f32 %v4097, %v4098
        %v6364 = vadd.f32 %v6363, %v4099
        %v6365 = vadd.f32 %v6364, %v4100
        %v6366 = vadd.f32 %v6365, %v4101
        %v6367 = vadd.f32 %v6366, %v4102
        %v6368 = vsel %vm217, %v4103, 0.0
        %v6369 = vadd.f32 %v6367, %v6368
        %6370 = vadd.xlane.f32.xlu0 %v6369
        %v6371 = vpop.xlane.xlu0 %6370
        %v6372 = vadd.f32 %v4104, %v4105
        %v6373 = vadd.f32 %v6372, %v4106
        %v6374 = vadd.f32 %v6373, %v4107
        %v6375 = vadd.f32 %v6374, %v4108
        %v6376 = vadd.f32 %v6375, %v4109
        %v6377 = vsel %vm217, %v4110, 0.0
        %v6378 = vadd.f32 %v6376, %v6377
        %6379 = vadd.xlane.f32.xlu0 %v6378
        %v6380 = vpop.xlane.xlu0 %6379
        %v6381 = vadd.f32 %v4111, %v4112
        %v6382 = vadd.f32 %v6381, %v4113
        %v6383 = vadd.f32 %v6382, %v4114
        %v6384 = vadd.f32 %v6383, %v4115
        %v6385 = vadd.f32 %v6384, %v4116
        %v6386 = vsel %vm217, %v4117, 0.0
        %v6387 = vadd.f32 %v6385, %v6386
        %6388 = vadd.xlane.f32.xlu0 %v6387
        %v6389 = vpop.xlane.xlu0 %6388
        %v6390 = vadd.f32 %v4118, %v4119
        %v6391 = vadd.f32 %v6390, %v4120
        %v6392 = vadd.f32 %v6391, %v4121
        %v6393 = vadd.f32 %v6392, %v4122
        %v6394 = vadd.f32 %v6393, %v4123
        %v6395 = vsel %vm217, %v4124, 0.0
        %v6396 = vadd.f32 %v6394, %v6395
        %6397 = vadd.xlane.f32.xlu0 %v6396
        %v6398 = vpop.xlane.xlu0 %6397
        %v6399 = vadd.f32 %v4125, %v4126
        %v6400 = vadd.f32 %v6399, %v4127
        %v6401 = vadd.f32 %v6400, %v4128
        %v6402 = vadd.f32 %v6401, %v4129
        %v6403 = vadd.f32 %v6402, %v4130
        %v6404 = vsel %vm217, %v4131, 0.0
        %v6405 = vadd.f32 %v6403, %v6404
        %6406 = vadd.xlane.f32.xlu0 %v6405
        %v6407 = vpop.xlane.xlu0 %6406
        %v6408 = vadd.f32 %v4132, %v4133
        %v6409 = vadd.f32 %v6408, %v4134
        %v6410 = vadd.f32 %v6409, %v4135
        %v6411 = vadd.f32 %v6410, %v4136
        %v6412 = vadd.f32 %v6411, %v4137
        %v6413 = vsel %vm217, %v4138, 0.0
        %v6414 = vadd.f32 %v6412, %v6413
        %6415 = vadd.xlane.f32.xlu0 %v6414
        %v6416 = vpop.xlane.xlu0 %6415
        %v6417 = vadd.f32 %v4139, %v4140
        %v6418 = vadd.f32 %v6417, %v4141
        %v6419 = vadd.f32 %v6418, %v4142
        %v6420 = vadd.f32 %v6419, %v4143
        %v6421 = vadd.f32 %v6420, %v4144
        %v6422 = vsel %vm217, %v4145, 0.0
        %v6423 = vadd.f32 %v6421, %v6422
        %6424 = vadd.xlane.f32.xlu0 %v6423
        %v6425 = vpop.xlane.xlu0 %6424
        %v6426 = vadd.f32 %v4146, %v4147
        %v6427 = vadd.f32 %v6426, %v4148
        %v6428 = vadd.f32 %v6427, %v4149
        %v6429 = vadd.f32 %v6428, %v4150
        %v6430 = vadd.f32 %v6429, %v4151
        %v6431 = vsel %vm217, %v4152, 0.0
        %v6432 = vadd.f32 %v6430, %v6431
        %6433 = vadd.xlane.f32.xlu0 %v6432
        %v6434 = vpop.xlane.xlu0 %6433
        %v6435 = vadd.f32 %v4153, %v4154
        %v6436 = vadd.f32 %v6435, %v4155
        %v6437 = vadd.f32 %v6436, %v4156
        %v6438 = vadd.f32 %v6437, %v4157
        %v6439 = vadd.f32 %v6438, %v4158
        %v6440 = vsel %vm217, %v4159, 0.0
        %v6441 = vadd.f32 %v6439, %v6440
        %6442 = vadd.xlane.f32.xlu0 %v6441
        %v6443 = vpop.xlane.xlu0 %6442
        %v6444 = vadd.f32 %v4160, %v4161
        %v6445 = vadd.f32 %v6444, %v4162
        %v6446 = vadd.f32 %v6445, %v4163
        %v6447 = vadd.f32 %v6446, %v4164
        %v6448 = vadd.f32 %v6447, %v4165
        %v6449 = vsel %vm217, %v4166, 0.0
        %v6450 = vadd.f32 %v6448, %v6449
        %6451 = vadd.xlane.f32.xlu0 %v6450
        %v6452 = vpop.xlane.xlu0 %6451
        %v6453 = vadd.f32 %v4167, %v4168
        %v6454 = vadd.f32 %v6453, %v4169
        %v6455 = vadd.f32 %v6454, %v4170
        %v6456 = vadd.f32 %v6455, %v4171
        %v6457 = vadd.f32 %v6456, %v4172
        %v6458 = vsel %vm217, %v4173, 0.0
        %v6459 = vadd.f32 %v6457, %v6458
        %6460 = vadd.xlane.f32.xlu0 %v6459
        %v6461 = vpop.xlane.xlu0 %6460
        %v6462 = vadd.f32 %v4174, %v4175
        %v6463 = vadd.f32 %v6462, %v4176
        %v6464 = vadd.f32 %v6463, %v4177
        %v6465 = vadd.f32 %v6464, %v4178
        %v6466 = vadd.f32 %v6465, %v4179
        %v6467 = vsel %vm217, %v4180, 0.0
        %v6468 = vadd.f32 %v6466, %v6467
        %6469 = vadd.xlane.f32.xlu0 %v6468
        %v6470 = vpop.xlane.xlu0 %6469
        %v6471 = vadd.f32 %v4181, %v4182
        %v6472 = vadd.f32 %v6471, %v4183
        %v6473 = vadd.f32 %v6472, %v4184
        %v6474 = vadd.f32 %v6473, %v4185
        %v6475 = vadd.f32 %v6474, %v4186
        %v6476 = vsel %vm217, %v4187, 0.0
        %v6477 = vadd.f32 %v6475, %v6476
        %6478 = vadd.xlane.f32.xlu0 %v6477
        %v6479 = vpop.xlane.xlu0 %6478
        %v6480 = vadd.f32 %v4188, %v4189
        %v6481 = vadd.f32 %v6480, %v4190
        %v6482 = vadd.f32 %v6481, %v4191
        %v6483 = vadd.f32 %v6482, %v4192
        %v6484 = vadd.f32 %v6483, %v4193
        %v6485 = vsel %vm217, %v4194, 0.0
        %v6486 = vadd.f32 %v6484, %v6485
        %6487 = vadd.xlane.f32.xlu0 %v6486
        %v6488 = vpop.xlane.xlu0 %6487
        %v6489 = vadd.f32 %v4195, %v4196
        %v6490 = vadd.f32 %v6489, %v4197
        %v6491 = vadd.f32 %v6490, %v4198
        %v6492 = vadd.f32 %v6491, %v4199
        %v6493 = vadd.f32 %v6492, %v4200
        %v6494 = vsel %vm217, %v4201, 0.0
        %v6495 = vadd.f32 %v6493, %v6494
        %6496 = vadd.xlane.f32.xlu0 %v6495
        %v6497 = vpop.xlane.xlu0 %6496
        %v6498 = vadd.f32 %v4202, %v4203
        %v6499 = vadd.f32 %v6498, %v4204
        %v6500 = vadd.f32 %v6499, %v4205
        %v6501 = vadd.f32 %v6500, %v4206
        %v6502 = vadd.f32 %v6501, %v4207
        %v6503 = vsel %vm217, %v4208, 0.0
        %v6504 = vadd.f32 %v6502, %v6503
        %6505 = vadd.xlane.f32.xlu0 %v6504
        %v6506 = vpop.xlane.xlu0 %6505
        %v6507 = vadd.f32 %v4209, %v4210
        %v6508 = vadd.f32 %v6507, %v4211
        %v6509 = vadd.f32 %v6508, %v4212
        %v6510 = vadd.f32 %v6509, %v4213
        %v6511 = vadd.f32 %v6510, %v4214
        %v6512 = vsel %vm217, %v4215, 0.0
        %v6513 = vadd.f32 %v6511, %v6512
        %6514 = vadd.xlane.f32.xlu0 %v6513
        %v6515 = vpop.xlane.xlu0 %6514
        %v6516 = vadd.f32 %v4216, %v4217
        %v6517 = vadd.f32 %v6516, %v4218
        %v6518 = vadd.f32 %v6517, %v4219
        %v6519 = vadd.f32 %v6518, %v4220
        %v6520 = vadd.f32 %v6519, %v4221
        %v6521 = vsel %vm217, %v4222, 0.0
        %v6522 = vadd.f32 %v6520, %v6521
        %6523 = vadd.xlane.f32.xlu0 %v6522
        %v6524 = vpop.xlane.xlu0 %6523
        %v6525 = vadd.f32 %v4223, %v4224
        %v6526 = vadd.f32 %v6525, %v4225
        %v6527 = vadd.f32 %v6526, %v4226
        %v6528 = vadd.f32 %v6527, %v4227
        %v6529 = vadd.f32 %v6528, %v4228
        %v6530 = vsel %vm217, %v4229, 0.0
        %v6531 = vadd.f32 %v6529, %v6530
        %6532 = vadd.xlane.f32.xlu0 %v6531
        %v6533 = vpop.xlane.xlu0 %6532
        %v6535 = vlaneseq
        %v6536 = vshrl.u32 %v6535, 7
        %v6537 = vsub.s32 0, %v6536
        %v6538 = vrot.slane %v223, %v6537
        %v6539 = vlaneseq
        %v6540 = vshrl.u32 %v6539, 7
        %v6541 = vsub.s32 1, %v6540
        %v6542 = vrot.slane %v223, %v6541
        %v6543 = vlaneseq
        %v6544 = vshrl.u32 %v6543, 7
        %v6545 = vsub.s32 2, %v6544
        %v6546 = vrot.slane %v223, %v6545
        %v6547 = vlaneseq
        %v6548 = vshrl.u32 %v6547, 7
        %v6549 = vsub.s32 3, %v6548
        %v6550 = vrot.slane %v223, %v6549
        %v6551 = vlaneseq
        %v6552 = vshrl.u32 %v6551, 7
        %v6553 = vsub.s32 4, %v6552
        %v6554 = vrot.slane %v223, %v6553
        %v6555 = vlaneseq
        %v6556 = vshrl.u32 %v6555, 7
        %v6557 = vsub.s32 5, %v6556
        %v6558 = vrot.slane %v223, %v6557
        %v6559 = vlaneseq
        %v6560 = vshrl.u32 %v6559, 7
        %v6561 = vsub.s32 6, %v6560
        %v6562 = vrot.slane %v223, %v6561
        %v6563 = vlaneseq
        %v6564 = vshrl.u32 %v6563, 7
        %v6565 = vsub.s32 7, %v6564
        %v6566 = vrot.slane %v223, %v6565
        %v6575 = vmul.f32 %v4238, %v6538
        %v6576 = vmul.f32 %v4247, %v6538
        %v6577 = vmul.f32 %v4256, %v6538
        %v6578 = vmul.f32 %v4265, %v6538
        %v6579 = vmul.f32 %v4274, %v6538
        %v6580 = vmul.f32 %v4283, %v6538
        %v6581 = vmul.f32 %v4292, %v6538
        %v6582 = vmul.f32 %v4301, %v6538
        %v6583 = vmul.f32 %v4310, %v6538
        %v6584 = vmul.f32 %v4319, %v6538
        %v6585 = vmul.f32 %v4328, %v6538
        %v6586 = vmul.f32 %v4337, %v6538
        %v6587 = vmul.f32 %v4346, %v6538
        %v6588 = vmul.f32 %v4355, %v6538
        %v6589 = vmul.f32 %v4364, %v6538
        %v6590 = vmul.f32 %v4373, %v6538
        %v6591 = vmul.f32 %v4382, %v6538
        %v6592 = vmul.f32 %v4391, %v6538
        %v6593 = vmul.f32 %v4400, %v6538
        %v6594 = vmul.f32 %v4409, %v6538
        %v6595 = vmul.f32 %v4418, %v6538
        %v6596 = vmul.f32 %v4427, %v6538
        %v6597 = vmul.f32 %v4436, %v6538
        %v6598 = vmul.f32 %v4445, %v6538
        %v6599 = vmul.f32 %v4454, %v6538
        %v6600 = vmul.f32 %v4463, %v6538
        %v6601 = vmul.f32 %v4472, %v6538
        %v6602 = vmul.f32 %v4481, %v6538
        %v6603 = vmul.f32 %v4490, %v6538
        %v6604 = vmul.f32 %v4499, %v6538
        %v6605 = vmul.f32 %v4508, %v6538
        %v6606 = vmul.f32 %v4517, %v6538
        %v6607 = vmul.f32 %v4526, %v6542
        %v6608 = vmul.f32 %v4535, %v6542
        %v6609 = vmul.f32 %v4544, %v6542
        %v6610 = vmul.f32 %v4553, %v6542
        %v6611 = vmul.f32 %v4562, %v6542
        %v6612 = vmul.f32 %v4571, %v6542
        %v6613 = vmul.f32 %v4580, %v6542
        %v6614 = vmul.f32 %v4589, %v6542
        %v6615 = vmul.f32 %v4598, %v6542
        %v6616 = vmul.f32 %v4607, %v6542
        %v6617 = vmul.f32 %v4616, %v6542
        %v6618 = vmul.f32 %v4625, %v6542
        %v6619 = vmul.f32 %v4634, %v6542
        %v6620 = vmul.f32 %v4643, %v6542
        %v6621 = vmul.f32 %v4652, %v6542
        %v6622 = vmul.f32 %v4661, %v6542
        %v6623 = vmul.f32 %v4670, %v6542
        %v6624 = vmul.f32 %v4679, %v6542
        %v6625 = vmul.f32 %v4688, %v6542
        %v6626 = vmul.f32 %v4697, %v6542
        %v6627 = vmul.f32 %v4706, %v6542
        %v6628 = vmul.f32 %v4715, %v6542
        %v6629 = vmul.f32 %v4724, %v6542
        %v6630 = vmul.f32 %v4733, %v6542
        %v6631 = vmul.f32 %v4742, %v6542
        %v6632 = vmul.f32 %v4751, %v6542
        %v6633 = vmul.f32 %v4760, %v6542
        %v6634 = vmul.f32 %v4769, %v6542
        %v6635 = vmul.f32 %v4778, %v6542
        %v6636 = vmul.f32 %v4787, %v6542
        %v6637 = vmul.f32 %v4796, %v6542
        %v6638 = vmul.f32 %v4805, %v6542
        %v6639 = vmul.f32 %v4814, %v6546
        %v6640 = vmul.f32 %v4823, %v6546
        %v6641 = vmul.f32 %v4832, %v6546
        %v6642 = vmul.f32 %v4841, %v6546
        %v6643 = vmul.f32 %v4850, %v6546
        %v6644 = vmul.f32 %v4859, %v6546
        %v6645 = vmul.f32 %v4868, %v6546
        %v6646 = vmul.f32 %v4877, %v6546
        %v6647 = vmul.f32 %v4886, %v6546
        %v6648 = vmul.f32 %v4895, %v6546
        %v6649 = vmul.f32 %v4904, %v6546
        %v6650 = vmul.f32 %v4913, %v6546
        %v6651 = vmul.f32 %v4922, %v6546
        %v6652 = vmul.f32 %v4931, %v6546
        %v6653 = vmul.f32 %v4940, %v6546
        %v6654 = vmul.f32 %v4949, %v6546
        %v6655 = vmul.f32 %v4958, %v6546
        %v6656 = vmul.f32 %v4967, %v6546
        %v6657 = vmul.f32 %v4976, %v6546
        %v6658 = vmul.f32 %v4985, %v6546
        %v6659 = vmul.f32 %v4994, %v6546
        %v6660 = vmul.f32 %v5003, %v6546
        %v6661 = vmul.f32 %v5012, %v6546
        %v6662 = vmul.f32 %v5021, %v6546
        %v6663 = vmul.f32 %v5030, %v6546
        %v6664 = vmul.f32 %v5039, %v6546
        %v6665 = vmul.f32 %v5048, %v6546
        %v6666 = vmul.f32 %v5057, %v6546
        %v6667 = vmul.f32 %v5066, %v6546
        %v6668 = vmul.f32 %v5075, %v6546
        %v6669 = vmul.f32 %v5084, %v6546
        %v6670 = vmul.f32 %v5093, %v6546
        %v6671 = vmul.f32 %v5102, %v6550
        %v6672 = vmul.f32 %v5111, %v6550
        %v6673 = vmul.f32 %v5120, %v6550
        %v6674 = vmul.f32 %v5129, %v6550
        %v6675 = vmul.f32 %v5138, %v6550
        %v6676 = vmul.f32 %v5147, %v6550
        %v6677 = vmul.f32 %v5156, %v6550
        %v6678 = vmul.f32 %v5165, %v6550
        %v6679 = vmul.f32 %v5174, %v6550
        %v6680 = vmul.f32 %v5183, %v6550
        %v6681 = vmul.f32 %v5192, %v6550
        %v6682 = vmul.f32 %v5201, %v6550
        %v6683 = vmul.f32 %v5210, %v6550
        %v6684 = vmul.f32 %v5219, %v6550
        %v6685 = vmul.f32 %v5228, %v6550
        %v6686 = vmul.f32 %v5237, %v6550
        %v6687 = vmul.f32 %v5246, %v6550
        %v6688 = vmul.f32 %v5255, %v6550
        %v6689 = vmul.f32 %v5264, %v6550
        %v6690 = vmul.f32 %v5273, %v6550
        %v6691 = vmul.f32 %v5282, %v6550
        %v6692 = vmul.f32 %v5291, %v6550
        %v6693 = vmul.f32 %v5300, %v6550
        %v6694 = vmul.f32 %v5309, %v6550
        %v6695 = vmul.f32 %v5318, %v6550
        %v6696 = vmul.f32 %v5327, %v6550
        %v6697 = vmul.f32 %v5336, %v6550
        %v6698 = vmul.f32 %v5345, %v6550
        %v6699 = vmul.f32 %v5354, %v6550
        %v6700 = vmul.f32 %v5363, %v6550
        %v6701 = vmul.f32 %v5372, %v6550
        %v6702 = vmul.f32 %v5381, %v6550
        %v6703 = vmul.f32 %v5390, %v6554
        %v6704 = vmul.f32 %v5399, %v6554
        %v6705 = vmul.f32 %v5408, %v6554
        %v6706 = vmul.f32 %v5417, %v6554
        %v6707 = vmul.f32 %v5426, %v6554
        %v6708 = vmul.f32 %v5435, %v6554
        %v6709 = vmul.f32 %v5444, %v6554
        %v6710 = vmul.f32 %v5453, %v6554
        %v6711 = vmul.f32 %v5462, %v6554
        %v6712 = vmul.f32 %v5471, %v6554
        %v6713 = vmul.f32 %v5480, %v6554
        %v6714 = vmul.f32 %v5489, %v6554
        %v6715 = vmul.f32 %v5498, %v6554
        %v6716 = vmul.f32 %v5507, %v6554
        %v6717 = vmul.f32 %v5516, %v6554
        %v6718 = vmul.f32 %v5525, %v6554
        %v6719 = vmul.f32 %v5534, %v6554
        %v6720 = vmul.f32 %v5543, %v6554
        %v6721 = vmul.f32 %v5552, %v6554
        %v6722 = vmul.f32 %v5561, %v6554
        %v6723 = vmul.f32 %v5570, %v6554
        %v6724 = vmul.f32 %v5579, %v6554
        %v6725 = vmul.f32 %v5588, %v6554
        %v6726 = vmul.f32 %v5597, %v6554
        %v6727 = vmul.f32 %v5606, %v6554
        %v6728 = vmul.f32 %v5615, %v6554
        %v6729 = vmul.f32 %v5624, %v6554
        %v6730 = vmul.f32 %v5633, %v6554
        %v6731 = vmul.f32 %v5642, %v6554
        %v6732 = vmul.f32 %v5651, %v6554
        %v6733 = vmul.f32 %v5660, %v6554
        %v6734 = vmul.f32 %v5669, %v6554
        %v6735 = vmul.f32 %v5678, %v6558
        %v6736 = vmul.f32 %v5687, %v6558
        %v6737 = vmul.f32 %v5696, %v6558
        %v6738 = vmul.f32 %v5705, %v6558
        %v6739 = vmul.f32 %v5714, %v6558
        %v6740 = vmul.f32 %v5723, %v6558
        %v6741 = vmul.f32 %v5732, %v6558
        %v6742 = vmul.f32 %v5741, %v6558
        %v6743 = vmul.f32 %v5750, %v6558
        %v6744 = vmul.f32 %v5759, %v6558
        %v6745 = vmul.f32 %v5768, %v6558
        %v6746 = vmul.f32 %v5777, %v6558
        %v6747 = vmul.f32 %v5786, %v6558
        %v6748 = vmul.f32 %v5795, %v6558
        %v6749 = vmul.f32 %v5804, %v6558
        %v6750 = vmul.f32 %v5813, %v6558
        %v6751 = vmul.f32 %v5822, %v6558
        %v6752 = vmul.f32 %v5831, %v6558
        %v6753 = vmul.f32 %v5840, %v6558
        %v6754 = vmul.f32 %v5849, %v6558
        %v6755 = vmul.f32 %v5858, %v6558
        %v6756 = vmul.f32 %v5867, %v6558
        %v6757 = vmul.f32 %v5876, %v6558
        %v6758 = vmul.f32 %v5885, %v6558
        %v6759 = vmul.f32 %v5894, %v6558
        %v6760 = vmul.f32 %v5903, %v6558
        %v6761 = vmul.f32 %v5912, %v6558
        %v6762 = vmul.f32 %v5921, %v6558
        %v6763 = vmul.f32 %v5930, %v6558
        %v6764 = vmul.f32 %v5939, %v6558
        %v6765 = vmul.f32 %v5948, %v6558
        %v6766 = vmul.f32 %v5957, %v6558
        %v6767 = vmul.f32 %v5966, %v6562
        %v6768 = vmul.f32 %v5975, %v6562
        %v6769 = vmul.f32 %v5984, %v6562
        %v6770 = vmul.f32 %v5993, %v6562
        %v6771 = vmul.f32 %v6002, %v6562
        %v6772 = vmul.f32 %v6011, %v6562
        %v6773 = vmul.f32 %v6020, %v6562
        %v6774 = vmul.f32 %v6029, %v6562
        %v6775 = vmul.f32 %v6038, %v6562
        %v6776 = vmul.f32 %v6047, %v6562
        %v6777 = vmul.f32 %v6056, %v6562
        %v6778 = vmul.f32 %v6065, %v6562
        %v6779 = vmul.f32 %v6074, %v6562
        %v6780 = vmul.f32 %v6083, %v6562
        %v6781 = vmul.f32 %v6092, %v6562
        %v6782 = vmul.f32 %v6101, %v6562
        %v6783 = vmul.f32 %v6110, %v6562
        %v6784 = vmul.f32 %v6119, %v6562
        %v6785 = vmul.f32 %v6128, %v6562
        %v6786 = vmul.f32 %v6137, %v6562
        %v6787 = vmul.f32 %v6146, %v6562
        %v6788 = vmul.f32 %v6155, %v6562
        %v6789 = vmul.f32 %v6164, %v6562
        %v6790 = vmul.f32 %v6173, %v6562
        %v6791 = vmul.f32 %v6182, %v6562
        %v6792 = vmul.f32 %v6191, %v6562
        %v6793 = vmul.f32 %v6200, %v6562
        %v6794 = vmul.f32 %v6209, %v6562
        %v6795 = vmul.f32 %v6218, %v6562
        %v6796 = vmul.f32 %v6227, %v6562
        %v6797 = vmul.f32 %v6236, %v6562
        %v6798 = vmul.f32 %v6245, %v6562
        %v6799 = vmul.f32 %v6254, %v6566
        %v6800 = vmul.f32 %v6263, %v6566
        %v6801 = vmul.f32 %v6272, %v6566
        %v6802 = vmul.f32 %v6281, %v6566
        %v6803 = vmul.f32 %v6290, %v6566
        %v6804 = vmul.f32 %v6299, %v6566
        %v6805 = vmul.f32 %v6308, %v6566
        %v6806 = vmul.f32 %v6317, %v6566
        %v6807 = vmul.f32 %v6326, %v6566
        %v6808 = vmul.f32 %v6335, %v6566
        %v6809 = vmul.f32 %v6344, %v6566
        %v6810 = vmul.f32 %v6353, %v6566
        %v6811 = vmul.f32 %v6362, %v6566
        %v6812 = vmul.f32 %v6371, %v6566
        %v6813 = vmul.f32 %v6380, %v6566
        %v6814 = vmul.f32 %v6389, %v6566
        %v6815 = vmul.f32 %v6398, %v6566
        %v6816 = vmul.f32 %v6407, %v6566
        %v6817 = vmul.f32 %v6416, %v6566
        %v6818 = vmul.f32 %v6425, %v6566
        %v6819 = vmul.f32 %v6434, %v6566
        %v6820 = vmul.f32 %v6443, %v6566
        %v6821 = vmul.f32 %v6452, %v6566
        %v6822 = vmul.f32 %v6461, %v6566
        %v6823 = vmul.f32 %v6470, %v6566
        %v6824 = vmul.f32 %v6479, %v6566
        %v6825 = vmul.f32 %v6488, %v6566
        %v6826 = vmul.f32 %v6497, %v6566
        %v6827 = vmul.f32 %v6506, %v6566
        %v6828 = vmul.f32 %v6515, %v6566
        %v6829 = vmul.f32 %v6524, %v6566
        %v6830 = vmul.f32 %v6533, %v6566
        %7087 = vset.pattern.permute.xlu0 0
        %7088 = vperm.xlu0 %7087, %v6575
        %v7089 = vpop.permute.xlu0 %7088
        %7090 = vset.pattern.permute.xlu0 0
        %7091 = vperm.xlu0 %7090, %v6576
        %v7092 = vpop.permute.xlu0 %7091
        %7093 = vset.pattern.permute.xlu0 0
        %7094 = vperm.xlu0 %7093, %v6577
        %v7095 = vpop.permute.xlu0 %7094
        %7096 = vset.pattern.permute.xlu0 0
        %7097 = vperm.xlu0 %7096, %v6578
        %v7098 = vpop.permute.xlu0 %7097
        %7099 = vset.pattern.permute.xlu0 0
        %7100 = vperm.xlu0 %7099, %v6579
        %v7101 = vpop.permute.xlu0 %7100
        %7102 = vset.pattern.permute.xlu0 0
        %7103 = vperm.xlu0 %7102, %v6580
        %v7104 = vpop.permute.xlu0 %7103
        %7105 = vset.pattern.permute.xlu0 0
        %7106 = vperm.xlu0 %7105, %v6581
        %v7107 = vpop.permute.xlu0 %7106
        %7108 = vset.pattern.permute.xlu0 0
        %7109 = vperm.xlu0 %7108, %v6582
        %v7110 = vpop.permute.xlu0 %7109
        %7111 = vset.pattern.permute.xlu0 0
        %7112 = vperm.xlu0 %7111, %v6583
        %v7113 = vpop.permute.xlu0 %7112
        %7114 = vset.pattern.permute.xlu0 0
        %7115 = vperm.xlu0 %7114, %v6584
        %v7116 = vpop.permute.xlu0 %7115
        %7117 = vset.pattern.permute.xlu0 0
        %7118 = vperm.xlu0 %7117, %v6585
        %v7119 = vpop.permute.xlu0 %7118
        %7120 = vset.pattern.permute.xlu0 0
        %7121 = vperm.xlu0 %7120, %v6586
        %v7122 = vpop.permute.xlu0 %7121
        %7123 = vset.pattern.permute.xlu0 0
        %7124 = vperm.xlu0 %7123, %v6587
        %v7125 = vpop.permute.xlu0 %7124
        %7126 = vset.pattern.permute.xlu0 0
        %7127 = vperm.xlu0 %7126, %v6588
        %v7128 = vpop.permute.xlu0 %7127
        %7129 = vset.pattern.permute.xlu0 0
        %7130 = vperm.xlu0 %7129, %v6589
        %v7131 = vpop.permute.xlu0 %7130
        %7132 = vset.pattern.permute.xlu0 0
        %7133 = vperm.xlu0 %7132, %v6590
        %v7134 = vpop.permute.xlu0 %7133
        %7135 = vset.pattern.permute.xlu0 0
        %7136 = vperm.xlu0 %7135, %v6591
        %v7137 = vpop.permute.xlu0 %7136
        %7138 = vset.pattern.permute.xlu0 0
        %7139 = vperm.xlu0 %7138, %v6592
        %v7140 = vpop.permute.xlu0 %7139
        %7141 = vset.pattern.permute.xlu0 0
        %7142 = vperm.xlu0 %7141, %v6593
        %v7143 = vpop.permute.xlu0 %7142
        %7144 = vset.pattern.permute.xlu0 0
        %7145 = vperm.xlu0 %7144, %v6594
        %v7146 = vpop.permute.xlu0 %7145
        %7147 = vset.pattern.permute.xlu0 0
        %7148 = vperm.xlu0 %7147, %v6595
        %v7149 = vpop.permute.xlu0 %7148
        %7150 = vset.pattern.permute.xlu0 0
        %7151 = vperm.xlu0 %7150, %v6596
        %v7152 = vpop.permute.xlu0 %7151
        %7153 = vset.pattern.permute.xlu0 0
        %7154 = vperm.xlu0 %7153, %v6597
        %v7155 = vpop.permute.xlu0 %7154
        %7156 = vset.pattern.permute.xlu0 0
        %7157 = vperm.xlu0 %7156, %v6598
        %v7158 = vpop.permute.xlu0 %7157
        %7159 = vset.pattern.permute.xlu0 0
        %7160 = vperm.xlu0 %7159, %v6599
        %v7161 = vpop.permute.xlu0 %7160
        %7162 = vset.pattern.permute.xlu0 0
        %7163 = vperm.xlu0 %7162, %v6600
        %v7164 = vpop.permute.xlu0 %7163
        %7165 = vset.pattern.permute.xlu0 0
        %7166 = vperm.xlu0 %7165, %v6601
        %v7167 = vpop.permute.xlu0 %7166
        %7168 = vset.pattern.permute.xlu0 0
        %7169 = vperm.xlu0 %7168, %v6602
        %v7170 = vpop.permute.xlu0 %7169
        %7171 = vset.pattern.permute.xlu0 0
        %7172 = vperm.xlu0 %7171, %v6603
        %v7173 = vpop.permute.xlu0 %7172
        %7174 = vset.pattern.permute.xlu0 0
        %7175 = vperm.xlu0 %7174, %v6604
        %v7176 = vpop.permute.xlu0 %7175
        %7177 = vset.pattern.permute.xlu0 0
        %7178 = vperm.xlu0 %7177, %v6605
        %v7179 = vpop.permute.xlu0 %7178
        %7180 = vset.pattern.permute.xlu0 0
        %7181 = vperm.xlu0 %7180, %v6606
        %v7182 = vpop.permute.xlu0 %7181
        %7183 = vset.pattern.permute.xlu0 0
        %7184 = vperm.xlu0 %7183, %v6607
        %v7185 = vpop.permute.xlu0 %7184
        %7186 = vset.pattern.permute.xlu0 0
        %7187 = vperm.xlu0 %7186, %v6608
        %v7188 = vpop.permute.xlu0 %7187
        %7189 = vset.pattern.permute.xlu0 0
        %7190 = vperm.xlu0 %7189, %v6609
        %v7191 = vpop.permute.xlu0 %7190
        %7192 = vset.pattern.permute.xlu0 0
        %7193 = vperm.xlu0 %7192, %v6610
        %v7194 = vpop.permute.xlu0 %7193
        %7195 = vset.pattern.permute.xlu0 0
        %7196 = vperm.xlu0 %7195, %v6611
        %v7197 = vpop.permute.xlu0 %7196
        %7198 = vset.pattern.permute.xlu0 0
        %7199 = vperm.xlu0 %7198, %v6612
        %v7200 = vpop.permute.xlu0 %7199
        %7201 = vset.pattern.permute.xlu0 0
        %7202 = vperm.xlu0 %7201, %v6613
        %v7203 = vpop.permute.xlu0 %7202
        %7204 = vset.pattern.permute.xlu0 0
        %7205 = vperm.xlu0 %7204, %v6614
        %v7206 = vpop.permute.xlu0 %7205
        %7207 = vset.pattern.permute.xlu0 0
        %7208 = vperm.xlu0 %7207, %v6615
        %v7209 = vpop.permute.xlu0 %7208
        %7210 = vset.pattern.permute.xlu0 0
        %7211 = vperm.xlu0 %7210, %v6616
        %v7212 = vpop.permute.xlu0 %7211
        %7213 = vset.pattern.permute.xlu0 0
        %7214 = vperm.xlu0 %7213, %v6617
        %v7215 = vpop.permute.xlu0 %7214
        %7216 = vset.pattern.permute.xlu0 0
        %7217 = vperm.xlu0 %7216, %v6618
        %v7218 = vpop.permute.xlu0 %7217
        %7219 = vset.pattern.permute.xlu0 0
        %7220 = vperm.xlu0 %7219, %v6619
        %v7221 = vpop.permute.xlu0 %7220
        %7222 = vset.pattern.permute.xlu0 0
        %7223 = vperm.xlu0 %7222, %v6620
        %v7224 = vpop.permute.xlu0 %7223
        %7225 = vset.pattern.permute.xlu0 0
        %7226 = vperm.xlu0 %7225, %v6621
        %v7227 = vpop.permute.xlu0 %7226
        %7228 = vset.pattern.permute.xlu0 0
        %7229 = vperm.xlu0 %7228, %v6622
        %v7230 = vpop.permute.xlu0 %7229
        %7231 = vset.pattern.permute.xlu0 0
        %7232 = vperm.xlu0 %7231, %v6623
        %v7233 = vpop.permute.xlu0 %7232
        %7234 = vset.pattern.permute.xlu0 0
        %7235 = vperm.xlu0 %7234, %v6624
        %v7236 = vpop.permute.xlu0 %7235
        %7237 = vset.pattern.permute.xlu0 0
        %7238 = vperm.xlu0 %7237, %v6625
        %v7239 = vpop.permute.xlu0 %7238
        %7240 = vset.pattern.permute.xlu0 0
        %7241 = vperm.xlu0 %7240, %v6626
        %v7242 = vpop.permute.xlu0 %7241
        %7243 = vset.pattern.permute.xlu0 0
        %7244 = vperm.xlu0 %7243, %v6627
        %v7245 = vpop.permute.xlu0 %7244
        %7246 = vset.pattern.permute.xlu0 0
        %7247 = vperm.xlu0 %7246, %v6628
        %v7248 = vpop.permute.xlu0 %7247
        %7249 = vset.pattern.permute.xlu0 0
        %7250 = vperm.xlu0 %7249, %v6629
        %v7251 = vpop.permute.xlu0 %7250
        %7252 = vset.pattern.permute.xlu0 0
        %7253 = vperm.xlu0 %7252, %v6630
        %v7254 = vpop.permute.xlu0 %7253
        %7255 = vset.pattern.permute.xlu0 0
        %7256 = vperm.xlu0 %7255, %v6631
        %v7257 = vpop.permute.xlu0 %7256
        %7258 = vset.pattern.permute.xlu0 0
        %7259 = vperm.xlu0 %7258, %v6632
        %v7260 = vpop.permute.xlu0 %7259
        %7261 = vset.pattern.permute.xlu0 0
        %7262 = vperm.xlu0 %7261, %v6633
        %v7263 = vpop.permute.xlu0 %7262
        %7264 = vset.pattern.permute.xlu0 0
        %7265 = vperm.xlu0 %7264, %v6634
        %v7266 = vpop.permute.xlu0 %7265
        %7267 = vset.pattern.permute.xlu0 0
        %7268 = vperm.xlu0 %7267, %v6635
        %v7269 = vpop.permute.xlu0 %7268
        %7270 = vset.pattern.permute.xlu0 0
        %7271 = vperm.xlu0 %7270, %v6636
        %v7272 = vpop.permute.xlu0 %7271
        %7273 = vset.pattern.permute.xlu0 0
        %7274 = vperm.xlu0 %7273, %v6637
        %v7275 = vpop.permute.xlu0 %7274
        %7276 = vset.pattern.permute.xlu0 0
        %7277 = vperm.xlu0 %7276, %v6638
        %v7278 = vpop.permute.xlu0 %7277
        %7279 = vset.pattern.permute.xlu0 0
        %7280 = vperm.xlu0 %7279, %v6639
        %v7281 = vpop.permute.xlu0 %7280
        %7282 = vset.pattern.permute.xlu0 0
        %7283 = vperm.xlu0 %7282, %v6640
        %v7284 = vpop.permute.xlu0 %7283
        %7285 = vset.pattern.permute.xlu0 0
        %7286 = vperm.xlu0 %7285, %v6641
        %v7287 = vpop.permute.xlu0 %7286
        %7288 = vset.pattern.permute.xlu0 0
        %7289 = vperm.xlu0 %7288, %v6642
        %v7290 = vpop.permute.xlu0 %7289
        %7291 = vset.pattern.permute.xlu0 0
        %7292 = vperm.xlu0 %7291, %v6643
        %v7293 = vpop.permute.xlu0 %7292
        %7294 = vset.pattern.permute.xlu0 0
        %7295 = vperm.xlu0 %7294, %v6644
        %v7296 = vpop.permute.xlu0 %7295
        %7297 = vset.pattern.permute.xlu0 0
        %7298 = vperm.xlu0 %7297, %v6645
        %v7299 = vpop.permute.xlu0 %7298
        %7300 = vset.pattern.permute.xlu0 0
        %7301 = vperm.xlu0 %7300, %v6646
        %v7302 = vpop.permute.xlu0 %7301
        %7303 = vset.pattern.permute.xlu0 0
        %7304 = vperm.xlu0 %7303, %v6647
        %v7305 = vpop.permute.xlu0 %7304
        %7306 = vset.pattern.permute.xlu0 0
        %7307 = vperm.xlu0 %7306, %v6648
        %v7308 = vpop.permute.xlu0 %7307
        %7309 = vset.pattern.permute.xlu0 0
        %7310 = vperm.xlu0 %7309, %v6649
        %v7311 = vpop.permute.xlu0 %7310
        %7312 = vset.pattern.permute.xlu0 0
        %7313 = vperm.xlu0 %7312, %v6650
        %v7314 = vpop.permute.xlu0 %7313
        %7315 = vset.pattern.permute.xlu0 0
        %7316 = vperm.xlu0 %7315, %v6651
        %v7317 = vpop.permute.xlu0 %7316
        %7318 = vset.pattern.permute.xlu0 0
        %7319 = vperm.xlu0 %7318, %v6652
        %v7320 = vpop.permute.xlu0 %7319
        %7321 = vset.pattern.permute.xlu0 0
        %7322 = vperm.xlu0 %7321, %v6653
        %v7323 = vpop.permute.xlu0 %7322
        %7324 = vset.pattern.permute.xlu0 0
        %7325 = vperm.xlu0 %7324, %v6654
        %v7326 = vpop.permute.xlu0 %7325
        %7327 = vset.pattern.permute.xlu0 0
        %7328 = vperm.xlu0 %7327, %v6655
        %v7329 = vpop.permute.xlu0 %7328
        %7330 = vset.pattern.permute.xlu0 0
        %7331 = vperm.xlu0 %7330, %v6656
        %v7332 = vpop.permute.xlu0 %7331
        %7333 = vset.pattern.permute.xlu0 0
        %7334 = vperm.xlu0 %7333, %v6657
        %v7335 = vpop.permute.xlu0 %7334
        %7336 = vset.pattern.permute.xlu0 0
        %7337 = vperm.xlu0 %7336, %v6658
        %v7338 = vpop.permute.xlu0 %7337
        %7339 = vset.pattern.permute.xlu0 0
        %7340 = vperm.xlu0 %7339, %v6659
        %v7341 = vpop.permute.xlu0 %7340
        %7342 = vset.pattern.permute.xlu0 0
        %7343 = vperm.xlu0 %7342, %v6660
        %v7344 = vpop.permute.xlu0 %7343
        %7345 = vset.pattern.permute.xlu0 0
        %7346 = vperm.xlu0 %7345, %v6661
        %v7347 = vpop.permute.xlu0 %7346
        %7348 = vset.pattern.permute.xlu0 0
        %7349 = vperm.xlu0 %7348, %v6662
        %v7350 = vpop.permute.xlu0 %7349
        %7351 = vset.pattern.permute.xlu0 0
        %7352 = vperm.xlu0 %7351, %v6663
        %v7353 = vpop.permute.xlu0 %7352
        %7354 = vset.pattern.permute.xlu0 0
        %7355 = vperm.xlu0 %7354, %v6664
        %v7356 = vpop.permute.xlu0 %7355
        %7357 = vset.pattern.permute.xlu0 0
        %7358 = vperm.xlu0 %7357, %v6665
        %v7359 = vpop.permute.xlu0 %7358
        %7360 = vset.pattern.permute.xlu0 0
        %7361 = vperm.xlu0 %7360, %v6666
        %v7362 = vpop.permute.xlu0 %7361
        %7363 = vset.pattern.permute.xlu0 0
        %7364 = vperm.xlu0 %7363, %v6667
        %v7365 = vpop.permute.xlu0 %7364
        %7366 = vset.pattern.permute.xlu0 0
        %7367 = vperm.xlu0 %7366, %v6668
        %v7368 = vpop.permute.xlu0 %7367
        %7369 = vset.pattern.permute.xlu0 0
        %7370 = vperm.xlu0 %7369, %v6669
        %v7371 = vpop.permute.xlu0 %7370
        %7372 = vset.pattern.permute.xlu0 0
        %7373 = vperm.xlu0 %7372, %v6670
        %v7374 = vpop.permute.xlu0 %7373
        %7375 = vset.pattern.permute.xlu0 0
        %7376 = vperm.xlu0 %7375, %v6671
        %v7377 = vpop.permute.xlu0 %7376
        %7378 = vset.pattern.permute.xlu0 0
        %7379 = vperm.xlu0 %7378, %v6672
        %v7380 = vpop.permute.xlu0 %7379
        %7381 = vset.pattern.permute.xlu0 0
        %7382 = vperm.xlu0 %7381, %v6673
        %v7383 = vpop.permute.xlu0 %7382
        %7384 = vset.pattern.permute.xlu0 0
        %7385 = vperm.xlu0 %7384, %v6674
        %v7386 = vpop.permute.xlu0 %7385
        %7387 = vset.pattern.permute.xlu0 0
        %7388 = vperm.xlu0 %7387, %v6675
        %v7389 = vpop.permute.xlu0 %7388
        %7390 = vset.pattern.permute.xlu0 0
        %7391 = vperm.xlu0 %7390, %v6676
        %v7392 = vpop.permute.xlu0 %7391
        %7393 = vset.pattern.permute.xlu0 0
        %7394 = vperm.xlu0 %7393, %v6677
        %v7395 = vpop.permute.xlu0 %7394
        %7396 = vset.pattern.permute.xlu0 0
        %7397 = vperm.xlu0 %7396, %v6678
        %v7398 = vpop.permute.xlu0 %7397
        %7399 = vset.pattern.permute.xlu0 0
        %7400 = vperm.xlu0 %7399, %v6679
        %v7401 = vpop.permute.xlu0 %7400
        %7402 = vset.pattern.permute.xlu0 0
        %7403 = vperm.xlu0 %7402, %v6680
        %v7404 = vpop.permute.xlu0 %7403
        %7405 = vset.pattern.permute.xlu0 0
        %7406 = vperm.xlu0 %7405, %v6681
        %v7407 = vpop.permute.xlu0 %7406
        %7408 = vset.pattern.permute.xlu0 0
        %7409 = vperm.xlu0 %7408, %v6682
        %v7410 = vpop.permute.xlu0 %7409
        %7411 = vset.pattern.permute.xlu0 0
        %7412 = vperm.xlu0 %7411, %v6683
        %v7413 = vpop.permute.xlu0 %7412
        %7414 = vset.pattern.permute.xlu0 0
        %7415 = vperm.xlu0 %7414, %v6684
        %v7416 = vpop.permute.xlu0 %7415
        %7417 = vset.pattern.permute.xlu0 0
        %7418 = vperm.xlu0 %7417, %v6685
        %v7419 = vpop.permute.xlu0 %7418
        %7420 = vset.pattern.permute.xlu0 0
        %7421 = vperm.xlu0 %7420, %v6686
        %v7422 = vpop.permute.xlu0 %7421
        %7423 = vset.pattern.permute.xlu0 0
        %7424 = vperm.xlu0 %7423, %v6687
        %v7425 = vpop.permute.xlu0 %7424
        %7426 = vset.pattern.permute.xlu0 0
        %7427 = vperm.xlu0 %7426, %v6688
        %v7428 = vpop.permute.xlu0 %7427
        %7429 = vset.pattern.permute.xlu0 0
        %7430 = vperm.xlu0 %7429, %v6689
        %v7431 = vpop.permute.xlu0 %7430
        %7432 = vset.pattern.permute.xlu0 0
        %7433 = vperm.xlu0 %7432, %v6690
        %v7434 = vpop.permute.xlu0 %7433
        %7435 = vset.pattern.permute.xlu0 0
        %7436 = vperm.xlu0 %7435, %v6691
        %v7437 = vpop.permute.xlu0 %7436
        %7438 = vset.pattern.permute.xlu0 0
        %7439 = vperm.xlu0 %7438, %v6692
        %v7440 = vpop.permute.xlu0 %7439
        %7441 = vset.pattern.permute.xlu0 0
        %7442 = vperm.xlu0 %7441, %v6693
        %v7443 = vpop.permute.xlu0 %7442
        %7444 = vset.pattern.permute.xlu0 0
        %7445 = vperm.xlu0 %7444, %v6694
        %v7446 = vpop.permute.xlu0 %7445
        %7447 = vset.pattern.permute.xlu0 0
        %7448 = vperm.xlu0 %7447, %v6695
        %v7449 = vpop.permute.xlu0 %7448
        %7450 = vset.pattern.permute.xlu0 0
        %7451 = vperm.xlu0 %7450, %v6696
        %v7452 = vpop.permute.xlu0 %7451
        %7453 = vset.pattern.permute.xlu0 0
        %7454 = vperm.xlu0 %7453, %v6697
        %v7455 = vpop.permute.xlu0 %7454
        %7456 = vset.pattern.permute.xlu0 0
        %7457 = vperm.xlu0 %7456, %v6698
        %v7458 = vpop.permute.xlu0 %7457
        %7459 = vset.pattern.permute.xlu0 0
        %7460 = vperm.xlu0 %7459, %v6699
        %v7461 = vpop.permute.xlu0 %7460
        %7462 = vset.pattern.permute.xlu0 0
        %7463 = vperm.xlu0 %7462, %v6700
        %v7464 = vpop.permute.xlu0 %7463
        %7465 = vset.pattern.permute.xlu0 0
        %7466 = vperm.xlu0 %7465, %v6701
        %v7467 = vpop.permute.xlu0 %7466
        %7468 = vset.pattern.permute.xlu0 0
        %7469 = vperm.xlu0 %7468, %v6702
        %v7470 = vpop.permute.xlu0 %7469
        %7471 = vset.pattern.permute.xlu0 0
        %7472 = vperm.xlu0 %7471, %v6703
        %v7473 = vpop.permute.xlu0 %7472
        %7474 = vset.pattern.permute.xlu0 0
        %7475 = vperm.xlu0 %7474, %v6704
        %v7476 = vpop.permute.xlu0 %7475
        %7477 = vset.pattern.permute.xlu0 0
        %7478 = vperm.xlu0 %7477, %v6705
        %v7479 = vpop.permute.xlu0 %7478
        %7480 = vset.pattern.permute.xlu0 0
        %7481 = vperm.xlu0 %7480, %v6706
        %v7482 = vpop.permute.xlu0 %7481
        %7483 = vset.pattern.permute.xlu0 0
        %7484 = vperm.xlu0 %7483, %v6707
        %v7485 = vpop.permute.xlu0 %7484
        %7486 = vset.pattern.permute.xlu0 0
        %7487 = vperm.xlu0 %7486, %v6708
        %v7488 = vpop.permute.xlu0 %7487
        %7489 = vset.pattern.permute.xlu0 0
        %7490 = vperm.xlu0 %7489, %v6709
        %v7491 = vpop.permute.xlu0 %7490
        %7492 = vset.pattern.permute.xlu0 0
        %7493 = vperm.xlu0 %7492, %v6710
        %v7494 = vpop.permute.xlu0 %7493
        %7495 = vset.pattern.permute.xlu0 0
        %7496 = vperm.xlu0 %7495, %v6711
        %v7497 = vpop.permute.xlu0 %7496
        %7498 = vset.pattern.permute.xlu0 0
        %7499 = vperm.xlu0 %7498, %v6712
        %v7500 = vpop.permute.xlu0 %7499
        %7501 = vset.pattern.permute.xlu0 0
        %7502 = vperm.xlu0 %7501, %v6713
        %v7503 = vpop.permute.xlu0 %7502
        %7504 = vset.pattern.permute.xlu0 0
        %7505 = vperm.xlu0 %7504, %v6714
        %v7506 = vpop.permute.xlu0 %7505
        %7507 = vset.pattern.permute.xlu0 0
        %7508 = vperm.xlu0 %7507, %v6715
        %v7509 = vpop.permute.xlu0 %7508
        %7510 = vset.pattern.permute.xlu0 0
        %7511 = vperm.xlu0 %7510, %v6716
        %v7512 = vpop.permute.xlu0 %7511
        %7513 = vset.pattern.permute.xlu0 0
        %7514 = vperm.xlu0 %7513, %v6717
        %v7515 = vpop.permute.xlu0 %7514
        %7516 = vset.pattern.permute.xlu0 0
        %7517 = vperm.xlu0 %7516, %v6718
        %v7518 = vpop.permute.xlu0 %7517
        %7519 = vset.pattern.permute.xlu0 0
        %7520 = vperm.xlu0 %7519, %v6719
        %v7521 = vpop.permute.xlu0 %7520
        %7522 = vset.pattern.permute.xlu0 0
        %7523 = vperm.xlu0 %7522, %v6720
        %v7524 = vpop.permute.xlu0 %7523
        %7525 = vset.pattern.permute.xlu0 0
        %7526 = vperm.xlu0 %7525, %v6721
        %v7527 = vpop.permute.xlu0 %7526
        %7528 = vset.pattern.permute.xlu0 0
        %7529 = vperm.xlu0 %7528, %v6722
        %v7530 = vpop.permute.xlu0 %7529
        %7531 = vset.pattern.permute.xlu0 0
        %7532 = vperm.xlu0 %7531, %v6723
        %v7533 = vpop.permute.xlu0 %7532
        %7534 = vset.pattern.permute.xlu0 0
        %7535 = vperm.xlu0 %7534, %v6724
        %v7536 = vpop.permute.xlu0 %7535
        %7537 = vset.pattern.permute.xlu0 0
        %7538 = vperm.xlu0 %7537, %v6725
        %v7539 = vpop.permute.xlu0 %7538
        %7540 = vset.pattern.permute.xlu0 0
        %7541 = vperm.xlu0 %7540, %v6726
        %v7542 = vpop.permute.xlu0 %7541
        %7543 = vset.pattern.permute.xlu0 0
        %7544 = vperm.xlu0 %7543, %v6727
        %v7545 = vpop.permute.xlu0 %7544
        %7546 = vset.pattern.permute.xlu0 0
        %7547 = vperm.xlu0 %7546, %v6728
        %v7548 = vpop.permute.xlu0 %7547
        %7549 = vset.pattern.permute.xlu0 0
        %7550 = vperm.xlu0 %7549, %v6729
        %v7551 = vpop.permute.xlu0 %7550
        %7552 = vset.pattern.permute.xlu0 0
        %7553 = vperm.xlu0 %7552, %v6730
        %v7554 = vpop.permute.xlu0 %7553
        %7555 = vset.pattern.permute.xlu0 0
        %7556 = vperm.xlu0 %7555, %v6731
        %v7557 = vpop.permute.xlu0 %7556
        %7558 = vset.pattern.permute.xlu0 0
        %7559 = vperm.xlu0 %7558, %v6732
        %v7560 = vpop.permute.xlu0 %7559
        %7561 = vset.pattern.permute.xlu0 0
        %7562 = vperm.xlu0 %7561, %v6733
        %v7563 = vpop.permute.xlu0 %7562
        %7564 = vset.pattern.permute.xlu0 0
        %7565 = vperm.xlu0 %7564, %v6734
        %v7566 = vpop.permute.xlu0 %7565
        %7567 = vset.pattern.permute.xlu0 0
        %7568 = vperm.xlu0 %7567, %v6735
        %v7569 = vpop.permute.xlu0 %7568
        %7570 = vset.pattern.permute.xlu0 0
        %7571 = vperm.xlu0 %7570, %v6736
        %v7572 = vpop.permute.xlu0 %7571
        %7573 = vset.pattern.permute.xlu0 0
        %7574 = vperm.xlu0 %7573, %v6737
        %v7575 = vpop.permute.xlu0 %7574
        %7576 = vset.pattern.permute.xlu0 0
        %7577 = vperm.xlu0 %7576, %v6738
        %v7578 = vpop.permute.xlu0 %7577
        %7579 = vset.pattern.permute.xlu0 0
        %7580 = vperm.xlu0 %7579, %v6739
        %v7581 = vpop.permute.xlu0 %7580
        %7582 = vset.pattern.permute.xlu0 0
        %7583 = vperm.xlu0 %7582, %v6740
        %v7584 = vpop.permute.xlu0 %7583
        %7585 = vset.pattern.permute.xlu0 0
        %7586 = vperm.xlu0 %7585, %v6741
        %v7587 = vpop.permute.xlu0 %7586
        %7588 = vset.pattern.permute.xlu0 0
        %7589 = vperm.xlu0 %7588, %v6742
        %v7590 = vpop.permute.xlu0 %7589
        %7591 = vset.pattern.permute.xlu0 0
        %7592 = vperm.xlu0 %7591, %v6743
        %v7593 = vpop.permute.xlu0 %7592
        %7594 = vset.pattern.permute.xlu0 0
        %7595 = vperm.xlu0 %7594, %v6744
        %v7596 = vpop.permute.xlu0 %7595
        %7597 = vset.pattern.permute.xlu0 0
        %7598 = vperm.xlu0 %7597, %v6745
        %v7599 = vpop.permute.xlu0 %7598
        %7600 = vset.pattern.permute.xlu0 0
        %7601 = vperm.xlu0 %7600, %v6746
        %v7602 = vpop.permute.xlu0 %7601
        %7603 = vset.pattern.permute.xlu0 0
        %7604 = vperm.xlu0 %7603, %v6747
        %v7605 = vpop.permute.xlu0 %7604
        %7606 = vset.pattern.permute.xlu0 0
        %7607 = vperm.xlu0 %7606, %v6748
        %v7608 = vpop.permute.xlu0 %7607
        %7609 = vset.pattern.permute.xlu0 0
        %7610 = vperm.xlu0 %7609, %v6749
        %v7611 = vpop.permute.xlu0 %7610
        %7612 = vset.pattern.permute.xlu0 0
        %7613 = vperm.xlu0 %7612, %v6750
        %v7614 = vpop.permute.xlu0 %7613
        %7615 = vset.pattern.permute.xlu0 0
        %7616 = vperm.xlu0 %7615, %v6751
        %v7617 = vpop.permute.xlu0 %7616
        %7618 = vset.pattern.permute.xlu0 0
        %7619 = vperm.xlu0 %7618, %v6752
        %v7620 = vpop.permute.xlu0 %7619
        %7621 = vset.pattern.permute.xlu0 0
        %7622 = vperm.xlu0 %7621, %v6753
        %v7623 = vpop.permute.xlu0 %7622
        %7624 = vset.pattern.permute.xlu0 0
        %7625 = vperm.xlu0 %7624, %v6754
        %v7626 = vpop.permute.xlu0 %7625
        %7627 = vset.pattern.permute.xlu0 0
        %7628 = vperm.xlu0 %7627, %v6755
        %v7629 = vpop.permute.xlu0 %7628
        %7630 = vset.pattern.permute.xlu0 0
        %7631 = vperm.xlu0 %7630, %v6756
        %v7632 = vpop.permute.xlu0 %7631
        %7633 = vset.pattern.permute.xlu0 0
        %7634 = vperm.xlu0 %7633, %v6757
        %v7635 = vpop.permute.xlu0 %7634
        %7636 = vset.pattern.permute.xlu0 0
        %7637 = vperm.xlu0 %7636, %v6758
        %v7638 = vpop.permute.xlu0 %7637
        %7639 = vset.pattern.permute.xlu0 0
        %7640 = vperm.xlu0 %7639, %v6759
        %v7641 = vpop.permute.xlu0 %7640
        %7642 = vset.pattern.permute.xlu0 0
        %7643 = vperm.xlu0 %7642, %v6760
        %v7644 = vpop.permute.xlu0 %7643
        %7645 = vset.pattern.permute.xlu0 0
        %7646 = vperm.xlu0 %7645, %v6761
        %v7647 = vpop.permute.xlu0 %7646
        %7648 = vset.pattern.permute.xlu0 0
        %7649 = vperm.xlu0 %7648, %v6762
        %v7650 = vpop.permute.xlu0 %7649
        %7651 = vset.pattern.permute.xlu0 0
        %7652 = vperm.xlu0 %7651, %v6763
        %v7653 = vpop.permute.xlu0 %7652
        %7654 = vset.pattern.permute.xlu0 0
        %7655 = vperm.xlu0 %7654, %v6764
        %v7656 = vpop.permute.xlu0 %7655
        %7657 = vset.pattern.permute.xlu0 0
        %7658 = vperm.xlu0 %7657, %v6765
        %v7659 = vpop.permute.xlu0 %7658
        %7660 = vset.pattern.permute.xlu0 0
        %7661 = vperm.xlu0 %7660, %v6766
        %v7662 = vpop.permute.xlu0 %7661
        %7663 = vset.pattern.permute.xlu0 0
        %7664 = vperm.xlu0 %7663, %v6767
        %v7665 = vpop.permute.xlu0 %7664
        %7666 = vset.pattern.permute.xlu0 0
        %7667 = vperm.xlu0 %7666, %v6768
        %v7668 = vpop.permute.xlu0 %7667
        %7669 = vset.pattern.permute.xlu0 0
        %7670 = vperm.xlu0 %7669, %v6769
        %v7671 = vpop.permute.xlu0 %7670
        %7672 = vset.pattern.permute.xlu0 0
        %7673 = vperm.xlu0 %7672, %v6770
        %v7674 = vpop.permute.xlu0 %7673
        %7675 = vset.pattern.permute.xlu0 0
        %7676 = vperm.xlu0 %7675, %v6771
        %v7677 = vpop.permute.xlu0 %7676
        %7678 = vset.pattern.permute.xlu0 0
        %7679 = vperm.xlu0 %7678, %v6772
        %v7680 = vpop.permute.xlu0 %7679
        %7681 = vset.pattern.permute.xlu0 0
        %7682 = vperm.xlu0 %7681, %v6773
        %v7683 = vpop.permute.xlu0 %7682
        %7684 = vset.pattern.permute.xlu0 0
        %7685 = vperm.xlu0 %7684, %v6774
        %v7686 = vpop.permute.xlu0 %7685
        %7687 = vset.pattern.permute.xlu0 0
        %7688 = vperm.xlu0 %7687, %v6775
        %v7689 = vpop.permute.xlu0 %7688
        %7690 = vset.pattern.permute.xlu0 0
        %7691 = vperm.xlu0 %7690, %v6776
        %v7692 = vpop.permute.xlu0 %7691
        %7693 = vset.pattern.permute.xlu0 0
        %7694 = vperm.xlu0 %7693, %v6777
        %v7695 = vpop.permute.xlu0 %7694
        %7696 = vset.pattern.permute.xlu0 0
        %7697 = vperm.xlu0 %7696, %v6778
        %v7698 = vpop.permute.xlu0 %7697
        %7699 = vset.pattern.permute.xlu0 0
        %7700 = vperm.xlu0 %7699, %v6779
        %v7701 = vpop.permute.xlu0 %7700
        %7702 = vset.pattern.permute.xlu0 0
        %7703 = vperm.xlu0 %7702, %v6780
        %v7704 = vpop.permute.xlu0 %7703
        %7705 = vset.pattern.permute.xlu0 0
        %7706 = vperm.xlu0 %7705, %v6781
        %v7707 = vpop.permute.xlu0 %7706
        %7708 = vset.pattern.permute.xlu0 0
        %7709 = vperm.xlu0 %7708, %v6782
        %v7710 = vpop.permute.xlu0 %7709
        %7711 = vset.pattern.permute.xlu0 0
        %7712 = vperm.xlu0 %7711, %v6783
        %v7713 = vpop.permute.xlu0 %7712
        %7714 = vset.pattern.permute.xlu0 0
        %7715 = vperm.xlu0 %7714, %v6784
        %v7716 = vpop.permute.xlu0 %7715
        %7717 = vset.pattern.permute.xlu0 0
        %7718 = vperm.xlu0 %7717, %v6785
        %v7719 = vpop.permute.xlu0 %7718
        %7720 = vset.pattern.permute.xlu0 0
        %7721 = vperm.xlu0 %7720, %v6786
        %v7722 = vpop.permute.xlu0 %7721
        %7723 = vset.pattern.permute.xlu0 0
        %7724 = vperm.xlu0 %7723, %v6787
        %v7725 = vpop.permute.xlu0 %7724
        %7726 = vset.pattern.permute.xlu0 0
        %7727 = vperm.xlu0 %7726, %v6788
        %v7728 = vpop.permute.xlu0 %7727
        %7729 = vset.pattern.permute.xlu0 0
        %7730 = vperm.xlu0 %7729, %v6789
        %v7731 = vpop.permute.xlu0 %7730
        %7732 = vset.pattern.permute.xlu0 0
        %7733 = vperm.xlu0 %7732, %v6790
        %v7734 = vpop.permute.xlu0 %7733
        %7735 = vset.pattern.permute.xlu0 0
        %7736 = vperm.xlu0 %7735, %v6791
        %v7737 = vpop.permute.xlu0 %7736
        %7738 = vset.pattern.permute.xlu0 0
        %7739 = vperm.xlu0 %7738, %v6792
        %v7740 = vpop.permute.xlu0 %7739
        %7741 = vset.pattern.permute.xlu0 0
        %7742 = vperm.xlu0 %7741, %v6793
        %v7743 = vpop.permute.xlu0 %7742
        %7744 = vset.pattern.permute.xlu0 0
        %7745 = vperm.xlu0 %7744, %v6794
        %v7746 = vpop.permute.xlu0 %7745
        %7747 = vset.pattern.permute.xlu0 0
        %7748 = vperm.xlu0 %7747, %v6795
        %v7749 = vpop.permute.xlu0 %7748
        %7750 = vset.pattern.permute.xlu0 0
        %7751 = vperm.xlu0 %7750, %v6796
        %v7752 = vpop.permute.xlu0 %7751
        %7753 = vset.pattern.permute.xlu0 0
        %7754 = vperm.xlu0 %7753, %v6797
        %v7755 = vpop.permute.xlu0 %7754
        %7756 = vset.pattern.permute.xlu0 0
        %7757 = vperm.xlu0 %7756, %v6798
        %v7758 = vpop.permute.xlu0 %7757
        %7759 = vset.pattern.permute.xlu0 0
        %7760 = vperm.xlu0 %7759, %v6799
        %v7761 = vpop.permute.xlu0 %7760
        %7762 = vset.pattern.permute.xlu0 0
        %7763 = vperm.xlu0 %7762, %v6800
        %v7764 = vpop.permute.xlu0 %7763
        %7765 = vset.pattern.permute.xlu0 0
        %7766 = vperm.xlu0 %7765, %v6801
        %v7767 = vpop.permute.xlu0 %7766
        %7768 = vset.pattern.permute.xlu0 0
        %7769 = vperm.xlu0 %7768, %v6802
        %v7770 = vpop.permute.xlu0 %7769
        %7771 = vset.pattern.permute.xlu0 0
        %7772 = vperm.xlu0 %7771, %v6803
        %v7773 = vpop.permute.xlu0 %7772
        %7774 = vset.pattern.permute.xlu0 0
        %7775 = vperm.xlu0 %7774, %v6804
        %v7776 = vpop.permute.xlu0 %7775
        %7777 = vset.pattern.permute.xlu0 0
        %7778 = vperm.xlu0 %7777, %v6805
        %v7779 = vpop.permute.xlu0 %7778
        %7780 = vset.pattern.permute.xlu0 0
        %7781 = vperm.xlu0 %7780, %v6806
        %v7782 = vpop.permute.xlu0 %7781
        %7783 = vset.pattern.permute.xlu0 0
        %7784 = vperm.xlu0 %7783, %v6807
        %v7785 = vpop.permute.xlu0 %7784
        %7786 = vset.pattern.permute.xlu0 0
        %7787 = vperm.xlu0 %7786, %v6808
        %v7788 = vpop.permute.xlu0 %7787
        %7789 = vset.pattern.permute.xlu0 0
        %7790 = vperm.xlu0 %7789, %v6809
        %v7791 = vpop.permute.xlu0 %7790
        %7792 = vset.pattern.permute.xlu0 0
        %7793 = vperm.xlu0 %7792, %v6810
        %v7794 = vpop.permute.xlu0 %7793
        %7795 = vset.pattern.permute.xlu0 0
        %7796 = vperm.xlu0 %7795, %v6811
        %v7797 = vpop.permute.xlu0 %7796
        %7798 = vset.pattern.permute.xlu0 0
        %7799 = vperm.xlu0 %7798, %v6812
        %v7800 = vpop.permute.xlu0 %7799
        %7801 = vset.pattern.permute.xlu0 0
        %7802 = vperm.xlu0 %7801, %v6813
        %v7803 = vpop.permute.xlu0 %7802
        %7804 = vset.pattern.permute.xlu0 0
        %7805 = vperm.xlu0 %7804, %v6814
        %v7806 = vpop.permute.xlu0 %7805
        %7807 = vset.pattern.permute.xlu0 0
        %7808 = vperm.xlu0 %7807, %v6815
        %v7809 = vpop.permute.xlu0 %7808
        %7810 = vset.pattern.permute.xlu0 0
        %7811 = vperm.xlu0 %7810, %v6816
        %v7812 = vpop.permute.xlu0 %7811
        %7813 = vset.pattern.permute.xlu0 0
        %7814 = vperm.xlu0 %7813, %v6817
        %v7815 = vpop.permute.xlu0 %7814
        %7816 = vset.pattern.permute.xlu0 0
        %7817 = vperm.xlu0 %7816, %v6818
        %v7818 = vpop.permute.xlu0 %7817
        %7819 = vset.pattern.permute.xlu0 0
        %7820 = vperm.xlu0 %7819, %v6819
        %v7821 = vpop.permute.xlu0 %7820
        %7822 = vset.pattern.permute.xlu0 0
        %7823 = vperm.xlu0 %7822, %v6820
        %v7824 = vpop.permute.xlu0 %7823
        %7825 = vset.pattern.permute.xlu0 0
        %7826 = vperm.xlu0 %7825, %v6821
        %v7827 = vpop.permute.xlu0 %7826
        %7828 = vset.pattern.permute.xlu0 0
        %7829 = vperm.xlu0 %7828, %v6822
        %v7830 = vpop.permute.xlu0 %7829
        %7831 = vset.pattern.permute.xlu0 0
        %7832 = vperm.xlu0 %7831, %v6823
        %v7833 = vpop.permute.xlu0 %7832
        %7834 = vset.pattern.permute.xlu0 0
        %7835 = vperm.xlu0 %7834, %v6824
        %v7836 = vpop.permute.xlu0 %7835
        %7837 = vset.pattern.permute.xlu0 0
        %7838 = vperm.xlu0 %7837, %v6825
        %v7839 = vpop.permute.xlu0 %7838
        %7840 = vset.pattern.permute.xlu0 0
        %7841 = vperm.xlu0 %7840, %v6826
        %v7842 = vpop.permute.xlu0 %7841
        %7843 = vset.pattern.permute.xlu0 0
        %7844 = vperm.xlu0 %7843, %v6827
        %v7845 = vpop.permute.xlu0 %7844
        %7846 = vset.pattern.permute.xlu0 0
        %7847 = vperm.xlu0 %7846, %v6828
        %v7848 = vpop.permute.xlu0 %7847
        %7849 = vset.pattern.permute.xlu0 0
        %7850 = vperm.xlu0 %7849, %v6829
        %v7851 = vpop.permute.xlu0 %7850
        %7852 = vset.pattern.permute.xlu0 0
        %7853 = vperm.xlu0 %7852, %v6830
        %v7854 = vpop.permute.xlu0 %7853
        %v7855 = vlaneseq
        %v7856 = vand.u32 %v7855, 127
        %v7857 = vlaneseq
        %v7858 = vshrl.u32 %v7857, 7
        %v7859 = vsub.s32 %v7856, %v7858
        %v7860 = vrot.slane %v7089, %v7859
        %v7861 = vadd.s32 %v7856, 4294967288
        %v7862 = vlaneseq
        %v7863 = vshrl.u32 %v7862, 7
        %v7864 = vsub.s32 %v7861, %v7863
        %v7865 = vrot.slane %v7092, %v7864
        %vm7866 = vcmask 130112
        %v7867 = vsel %vm7866, %v7865, %v7860
        %v7868 = vadd.s32 %v7856, 4294967280
        %v7869 = vlaneseq
        %v7870 = vshrl.u32 %v7869, 7
        %v7871 = vsub.s32 %v7868, %v7870
        %v7872 = vrot.slane %v7095, %v7871
        %vm7873 = vcmask 195712
        %v7874 = vsel %vm7873, %v7872, %v7867
        %v7875 = vadd.s32 %v7856, 4294967272
        %v7876 = vlaneseq
        %v7877 = vshrl.u32 %v7876, 7
        %v7878 = vsub.s32 %v7875, %v7877
        %v7879 = vrot.slane %v7098, %v7878
        %vm7880 = vcmask 261312
        %v7881 = vsel %vm7880, %v7879, %v7874
        %v7882 = vadd.s32 %v7856, 4294967264
        %v7883 = vlaneseq
        %v7884 = vshrl.u32 %v7883, 7
        %v7885 = vsub.s32 %v7882, %v7884
        %v7886 = vrot.slane %v7101, %v7885
        %vm7887 = vcmask 326912
        %v7888 = vsel %vm7887, %v7886, %v7881
        %v7889 = vadd.s32 %v7856, 4294967256
        %v7890 = vlaneseq
        %v7891 = vshrl.u32 %v7890, 7
        %v7892 = vsub.s32 %v7889, %v7891
        %v7893 = vrot.slane %v7104, %v7892
        %vm7894 = vcmask 392512
        %v7895 = vsel %vm7894, %v7893, %v7888
        %v7896 = vadd.s32 %v7856, 4294967248
        %v7897 = vlaneseq
        %v7898 = vshrl.u32 %v7897, 7
        %v7899 = vsub.s32 %v7896, %v7898
        %v7900 = vrot.slane %v7107, %v7899
        %vm7901 = vcmask 458112
        %v7902 = vsel %vm7901, %v7900, %v7895
        %v7903 = vadd.s32 %v7856, 4294967240
        %v7904 = vlaneseq
        %v7905 = vshrl.u32 %v7904, 7
        %v7906 = vsub.s32 %v7903, %v7905
        %v7907 = vrot.slane %v7110, %v7906
        %vm7908 = vcmask 523712
        %v7909 = vsel %vm7908, %v7907, %v7902
        %v7910 = vadd.s32 %v7856, 4294967232
        %v7911 = vlaneseq
        %v7912 = vshrl.u32 %v7911, 7
        %v7913 = vsub.s32 %v7910, %v7912
        %v7914 = vrot.slane %v7113, %v7913
        %vm7915 = vcmask 589312
        %v7916 = vsel %vm7915, %v7914, %v7909
        %v7917 = vadd.s32 %v7856, 4294967224
        %v7918 = vlaneseq
        %v7919 = vshrl.u32 %v7918, 7
        %v7920 = vsub.s32 %v7917, %v7919
        %v7921 = vrot.slane %v7116, %v7920
        %vm7922 = vcmask 654912
        %v7923 = vsel %vm7922, %v7921, %v7916
        %v7924 = vadd.s32 %v7856, 4294967216
        %v7925 = vlaneseq
        %v7926 = vshrl.u32 %v7925, 7
        %v7927 = vsub.s32 %v7924, %v7926
        %v7928 = vrot.slane %v7119, %v7927
        %vm7929 = vcmask 720512
        %v7930 = vsel %vm7929, %v7928, %v7923
        %v7931 = vadd.s32 %v7856, 4294967208
        %v7932 = vlaneseq
        %v7933 = vshrl.u32 %v7932, 7
        %v7934 = vsub.s32 %v7931, %v7933
        %v7935 = vrot.slane %v7122, %v7934
        %vm7936 = vcmask 786112
        %v7937 = vsel %vm7936, %v7935, %v7930
        %v7938 = vadd.s32 %v7856, 4294967200
        %v7939 = vlaneseq
        %v7940 = vshrl.u32 %v7939, 7
        %v7941 = vsub.s32 %v7938, %v7940
        %v7942 = vrot.slane %v7125, %v7941
        %vm7943 = vcmask 851712
        %v7944 = vsel %vm7943, %v7942, %v7937
        %v7945 = vadd.s32 %v7856, 4294967192
        %v7946 = vlaneseq
        %v7947 = vshrl.u32 %v7946, 7
        %v7948 = vsub.s32 %v7945, %v7947
        %v7949 = vrot.slane %v7128, %v7948
        %vm7950 = vcmask 917312
        %v7951 = vsel %vm7950, %v7949, %v7944
        %v7952 = vadd.s32 %v7856, 4294967184
        %v7953 = vlaneseq
        %v7954 = vshrl.u32 %v7953, 7
        %v7955 = vsub.s32 %v7952, %v7954
        %v7956 = vrot.slane %v7131, %v7955
        %vm7957 = vcmask 982912
        %v7958 = vsel %vm7957, %v7956, %v7951
        %v7959 = vadd.s32 %v7856, 4294967176
        %v7960 = vlaneseq
        %v7961 = vshrl.u32 %v7960, 7
        %v7962 = vsub.s32 %v7959, %v7961
        %v7963 = vrot.slane %v7134, %v7962
        %vm7964 = vcmask 1048512
        %v7965 = vsel %vm7964, %v7963, %v7958
        %v7966 = vlaneseq
        %v7967 = vshrl.u32 %v7966, 7
        %v7968 = vsub.s32 %v7856, %v7967
        %v7969 = vrot.slane %v7137, %v7968
        %v7970 = vlaneseq
        %v7971 = vshrl.u32 %v7970, 7
        %v7972 = vsub.s32 %v7861, %v7971
        %v7973 = vrot.slane %v7140, %v7972
        %v7974 = vsel %vm7866, %v7973, %v7969
        %v7975 = vlaneseq
        %v7976 = vshrl.u32 %v7975, 7
        %v7977 = vsub.s32 %v7868, %v7976
        %v7978 = vrot.slane %v7143, %v7977
        %v7979 = vsel %vm7873, %v7978, %v7974
        %v7980 = vlaneseq
        %v7981 = vshrl.u32 %v7980, 7
        %v7982 = vsub.s32 %v7875, %v7981
        %v7983 = vrot.slane %v7146, %v7982
        %v7984 = vsel %vm7880, %v7983, %v7979
        %v7985 = vlaneseq
        %v7986 = vshrl.u32 %v7985, 7
        %v7987 = vsub.s32 %v7882, %v7986
        %v7988 = vrot.slane %v7149, %v7987
        %v7989 = vsel %vm7887, %v7988, %v7984
        %v7990 = vlaneseq
        %v7991 = vshrl.u32 %v7990, 7
        %v7992 = vsub.s32 %v7889, %v7991
        %v7993 = vrot.slane %v7152, %v7992
        %v7994 = vsel %vm7894, %v7993, %v7989
        %v7995 = vlaneseq
        %v7996 = vshrl.u32 %v7995, 7
        %v7997 = vsub.s32 %v7896, %v7996
        %v7998 = vrot.slane %v7155, %v7997
        %v7999 = vsel %vm7901, %v7998, %v7994
        %v8000 = vlaneseq
        %v8001 = vshrl.u32 %v8000, 7
        %v8002 = vsub.s32 %v7903, %v8001
        %v8003 = vrot.slane %v7158, %v8002
        %v8004 = vsel %vm7908, %v8003, %v7999
        %v8005 = vlaneseq
        %v8006 = vshrl.u32 %v8005, 7
        %v8007 = vsub.s32 %v7910, %v8006
        %v8008 = vrot.slane %v7161, %v8007
        %v8009 = vsel %vm7915, %v8008, %v8004
        %v8010 = vlaneseq
        %v8011 = vshrl.u32 %v8010, 7
        %v8012 = vsub.s32 %v7917, %v8011
        %v8013 = vrot.slane %v7164, %v8012
        %v8014 = vsel %vm7922, %v8013, %v8009
        %v8015 = vlaneseq
        %v8016 = vshrl.u32 %v8015, 7
        %v8017 = vsub.s32 %v7924, %v8016
        %v8018 = vrot.slane %v7167, %v8017
        %v8019 = vsel %vm7929, %v8018, %v8014
        %v8020 = vlaneseq
        %v8021 = vshrl.u32 %v8020, 7
        %v8022 = vsub.s32 %v7931, %v8021
        %v8023 = vrot.slane %v7170, %v8022
        %v8024 = vsel %vm7936, %v8023, %v8019
        %v8025 = vlaneseq
        %v8026 = vshrl.u32 %v8025, 7
        %v8027 = vsub.s32 %v7938, %v8026
        %v8028 = vrot.slane %v7173, %v8027
        %v8029 = vsel %vm7943, %v8028, %v8024
        %v8030 = vlaneseq
        %v8031 = vshrl.u32 %v8030, 7
        %v8032 = vsub.s32 %v7945, %v8031
        %v8033 = vrot.slane %v7176, %v8032
        %v8034 = vsel %vm7950, %v8033, %v8029
        %v8035 = vlaneseq
        %v8036 = vshrl.u32 %v8035, 7
        %v8037 = vsub.s32 %v7952, %v8036
        %v8038 = vrot.slane %v7179, %v8037
        %v8039 = vsel %vm7957, %v8038, %v8034
        %v8040 = vlaneseq
        %v8041 = vshrl.u32 %v8040, 7
        %v8042 = vsub.s32 %v7959, %v8041
        %v8043 = vrot.slane %v7182, %v8042
        %v8044 = vsel %vm7964, %v8043, %v8039
        %v8045 = vlaneseq
        %v8046 = vshrl.u32 %v8045, 7
        %v8047 = vsub.s32 %v7856, %v8046
        %v8048 = vrot.slane %v7185, %v8047
        %v8049 = vlaneseq
        %v8050 = vshrl.u32 %v8049, 7
        %v8051 = vsub.s32 %v7861, %v8050
        %v8052 = vrot.slane %v7188, %v8051
        %v8053 = vsel %vm7866, %v8052, %v8048
        %v8054 = vlaneseq
        %v8055 = vshrl.u32 %v8054, 7
        %v8056 = vsub.s32 %v7868, %v8055
        %v8057 = vrot.slane %v7191, %v8056
        %v8058 = vsel %vm7873, %v8057, %v8053
        %v8059 = vlaneseq
        %v8060 = vshrl.u32 %v8059, 7
        %v8061 = vsub.s32 %v7875, %v8060
        %v8062 = vrot.slane %v7194, %v8061
        %v8063 = vsel %vm7880, %v8062, %v8058
        %v8064 = vlaneseq
        %v8065 = vshrl.u32 %v8064, 7
        %v8066 = vsub.s32 %v7882, %v8065
        %v8067 = vrot.slane %v7197, %v8066
        %v8068 = vsel %vm7887, %v8067, %v8063
        %v8069 = vlaneseq
        %v8070 = vshrl.u32 %v8069, 7
        %v8071 = vsub.s32 %v7889, %v8070
        %v8072 = vrot.slane %v7200, %v8071
        %v8073 = vsel %vm7894, %v8072, %v8068
        %v8074 = vlaneseq
        %v8075 = vshrl.u32 %v8074, 7
        %v8076 = vsub.s32 %v7896, %v8075
        %v8077 = vrot.slane %v7203, %v8076
        %v8078 = vsel %vm7901, %v8077, %v8073
        %v8079 = vlaneseq
        %v8080 = vshrl.u32 %v8079, 7
        %v8081 = vsub.s32 %v7903, %v8080
        %v8082 = vrot.slane %v7206, %v8081
        %v8083 = vsel %vm7908, %v8082, %v8078
        %v8084 = vlaneseq
        %v8085 = vshrl.u32 %v8084, 7
        %v8086 = vsub.s32 %v7910, %v8085
        %v8087 = vrot.slane %v7209, %v8086
        %v8088 = vsel %vm7915, %v8087, %v8083
        %v8089 = vlaneseq
        %v8090 = vshrl.u32 %v8089, 7
        %v8091 = vsub.s32 %v7917, %v8090
        %v8092 = vrot.slane %v7212, %v8091
        %v8093 = vsel %vm7922, %v8092, %v8088
        %v8094 = vlaneseq
        %v8095 = vshrl.u32 %v8094, 7
        %v8096 = vsub.s32 %v7924, %v8095
        %v8097 = vrot.slane %v7215, %v8096
        %v8098 = vsel %vm7929, %v8097, %v8093
        %v8099 = vlaneseq
        %v8100 = vshrl.u32 %v8099, 7
        %v8101 = vsub.s32 %v7931, %v8100
        %v8102 = vrot.slane %v7218, %v8101
        %v8103 = vsel %vm7936, %v8102, %v8098
        %v8104 = vlaneseq
        %v8105 = vshrl.u32 %v8104, 7
        %v8106 = vsub.s32 %v7938, %v8105
        %v8107 = vrot.slane %v7221, %v8106
        %v8108 = vsel %vm7943, %v8107, %v8103
        %v8109 = vlaneseq
        %v8110 = vshrl.u32 %v8109, 7
        %v8111 = vsub.s32 %v7945, %v8110
        %v8112 = vrot.slane %v7224, %v8111
        %v8113 = vsel %vm7950, %v8112, %v8108
        %v8114 = vlaneseq
        %v8115 = vshrl.u32 %v8114, 7
        %v8116 = vsub.s32 %v7952, %v8115
        %v8117 = vrot.slane %v7227, %v8116
        %v8118 = vsel %vm7957, %v8117, %v8113
        %v8119 = vlaneseq
        %v8120 = vshrl.u32 %v8119, 7
        %v8121 = vsub.s32 %v7959, %v8120
        %v8122 = vrot.slane %v7230, %v8121
        %v8123 = vsel %vm7964, %v8122, %v8118
        %v8124 = vlaneseq
        %v8125 = vshrl.u32 %v8124, 7
        %v8126 = vsub.s32 %v7856, %v8125
        %v8127 = vrot.slane %v7233, %v8126
        %v8128 = vlaneseq
        %v8129 = vshrl.u32 %v8128, 7
        %v8130 = vsub.s32 %v7861, %v8129
        %v8131 = vrot.slane %v7236, %v8130
        %v8132 = vsel %vm7866, %v8131, %v8127
        %v8133 = vlaneseq
        %v8134 = vshrl.u32 %v8133, 7
        %v8135 = vsub.s32 %v7868, %v8134
        %v8136 = vrot.slane %v7239, %v8135
        %v8137 = vsel %vm7873, %v8136, %v8132
        %v8138 = vlaneseq
        %v8139 = vshrl.u32 %v8138, 7
        %v8140 = vsub.s32 %v7875, %v8139
        %v8141 = vrot.slane %v7242, %v8140
        %v8142 = vsel %vm7880, %v8141, %v8137
        %v8143 = vlaneseq
        %v8144 = vshrl.u32 %v8143, 7
        %v8145 = vsub.s32 %v7882, %v8144
        %v8146 = vrot.slane %v7245, %v8145
        %v8147 = vsel %vm7887, %v8146, %v8142
        %v8148 = vlaneseq
        %v8149 = vshrl.u32 %v8148, 7
        %v8150 = vsub.s32 %v7889, %v8149
        %v8151 = vrot.slane %v7248, %v8150
        %v8152 = vsel %vm7894, %v8151, %v8147
        %v8153 = vlaneseq
        %v8154 = vshrl.u32 %v8153, 7
        %v8155 = vsub.s32 %v7896, %v8154
        %v8156 = vrot.slane %v7251, %v8155
        %v8157 = vsel %vm7901, %v8156, %v8152
        %v8158 = vlaneseq
        %v8159 = vshrl.u32 %v8158, 7
        %v8160 = vsub.s32 %v7903, %v8159
        %v8161 = vrot.slane %v7254, %v8160
        %v8162 = vsel %vm7908, %v8161, %v8157
        %v8163 = vlaneseq
        %v8164 = vshrl.u32 %v8163, 7
        %v8165 = vsub.s32 %v7910, %v8164
        %v8166 = vrot.slane %v7257, %v8165
        %v8167 = vsel %vm7915, %v8166, %v8162
        %v8168 = vlaneseq
        %v8169 = vshrl.u32 %v8168, 7
        %v8170 = vsub.s32 %v7917, %v8169
        %v8171 = vrot.slane %v7260, %v8170
        %v8172 = vsel %vm7922, %v8171, %v8167
        %v8173 = vlaneseq
        %v8174 = vshrl.u32 %v8173, 7
        %v8175 = vsub.s32 %v7924, %v8174
        %v8176 = vrot.slane %v7263, %v8175
        %v8177 = vsel %vm7929, %v8176, %v8172
        %v8178 = vlaneseq
        %v8179 = vshrl.u32 %v8178, 7
        %v8180 = vsub.s32 %v7931, %v8179
        %v8181 = vrot.slane %v7266, %v8180
        %v8182 = vsel %vm7936, %v8181, %v8177
        %v8183 = vlaneseq
        %v8184 = vshrl.u32 %v8183, 7
        %v8185 = vsub.s32 %v7938, %v8184
        %v8186 = vrot.slane %v7269, %v8185
        %v8187 = vsel %vm7943, %v8186, %v8182
        %v8188 = vlaneseq
        %v8189 = vshrl.u32 %v8188, 7
        %v8190 = vsub.s32 %v7945, %v8189
        %v8191 = vrot.slane %v7272, %v8190
        %v8192 = vsel %vm7950, %v8191, %v8187
        %v8193 = vlaneseq
        %v8194 = vshrl.u32 %v8193, 7
        %v8195 = vsub.s32 %v7952, %v8194
        %v8196 = vrot.slane %v7275, %v8195
        %v8197 = vsel %vm7957, %v8196, %v8192
        %v8198 = vlaneseq
        %v8199 = vshrl.u32 %v8198, 7
        %v8200 = vsub.s32 %v7959, %v8199
        %v8201 = vrot.slane %v7278, %v8200
        %v8202 = vsel %vm7964, %v8201, %v8197
        %v8203 = vlaneseq
        %v8204 = vshrl.u32 %v8203, 7
        %v8205 = vsub.s32 %v7856, %v8204
        %v8206 = vrot.slane %v7281, %v8205
        %v8207 = vlaneseq
        %v8208 = vshrl.u32 %v8207, 7
        %v8209 = vsub.s32 %v7861, %v8208
        %v8210 = vrot.slane %v7284, %v8209
        %v8211 = vsel %vm7866, %v8210, %v8206
        %v8212 = vlaneseq
        %v8213 = vshrl.u32 %v8212, 7
        %v8214 = vsub.s32 %v7868, %v8213
        %v8215 = vrot.slane %v7287, %v8214
        %v8216 = vsel %vm7873, %v8215, %v8211
        %v8217 = vlaneseq
        %v8218 = vshrl.u32 %v8217, 7
        %v8219 = vsub.s32 %v7875, %v8218
        %v8220 = vrot.slane %v7290, %v8219
        %v8221 = vsel %vm7880, %v8220, %v8216
        %v8222 = vlaneseq
        %v8223 = vshrl.u32 %v8222, 7
        %v8224 = vsub.s32 %v7882, %v8223
        %v8225 = vrot.slane %v7293, %v8224
        %v8226 = vsel %vm7887, %v8225, %v8221
        %v8227 = vlaneseq
        %v8228 = vshrl.u32 %v8227, 7
        %v8229 = vsub.s32 %v7889, %v8228
        %v8230 = vrot.slane %v7296, %v8229
        %v8231 = vsel %vm7894, %v8230, %v8226
        %v8232 = vlaneseq
        %v8233 = vshrl.u32 %v8232, 7
        %v8234 = vsub.s32 %v7896, %v8233
        %v8235 = vrot.slane %v7299, %v8234
        %v8236 = vsel %vm7901, %v8235, %v8231
        %v8237 = vlaneseq
        %v8238 = vshrl.u32 %v8237, 7
        %v8239 = vsub.s32 %v7903, %v8238
        %v8240 = vrot.slane %v7302, %v8239
        %v8241 = vsel %vm7908, %v8240, %v8236
        %v8242 = vlaneseq
        %v8243 = vshrl.u32 %v8242, 7
        %v8244 = vsub.s32 %v7910, %v8243
        %v8245 = vrot.slane %v7305, %v8244
        %v8246 = vsel %vm7915, %v8245, %v8241
        %v8247 = vlaneseq
        %v8248 = vshrl.u32 %v8247, 7
        %v8249 = vsub.s32 %v7917, %v8248
        %v8250 = vrot.slane %v7308, %v8249
        %v8251 = vsel %vm7922, %v8250, %v8246
        %v8252 = vlaneseq
        %v8253 = vshrl.u32 %v8252, 7
        %v8254 = vsub.s32 %v7924, %v8253
        %v8255 = vrot.slane %v7311, %v8254
        %v8256 = vsel %vm7929, %v8255, %v8251
        %v8257 = vlaneseq
        %v8258 = vshrl.u32 %v8257, 7
        %v8259 = vsub.s32 %v7931, %v8258
        %v8260 = vrot.slane %v7314, %v8259
        %v8261 = vsel %vm7936, %v8260, %v8256
        %v8262 = vlaneseq
        %v8263 = vshrl.u32 %v8262, 7
        %v8264 = vsub.s32 %v7938, %v8263
        %v8265 = vrot.slane %v7317, %v8264
        %v8266 = vsel %vm7943, %v8265, %v8261
        %v8267 = vlaneseq
        %v8268 = vshrl.u32 %v8267, 7
        %v8269 = vsub.s32 %v7945, %v8268
        %v8270 = vrot.slane %v7320, %v8269
        %v8271 = vsel %vm7950, %v8270, %v8266
        %v8272 = vlaneseq
        %v8273 = vshrl.u32 %v8272, 7
        %v8274 = vsub.s32 %v7952, %v8273
        %v8275 = vrot.slane %v7323, %v8274
        %v8276 = vsel %vm7957, %v8275, %v8271
        %v8277 = vlaneseq
        %v8278 = vshrl.u32 %v8277, 7
        %v8279 = vsub.s32 %v7959, %v8278
        %v8280 = vrot.slane %v7326, %v8279
        %v8281 = vsel %vm7964, %v8280, %v8276
        %v8282 = vlaneseq
        %v8283 = vshrl.u32 %v8282, 7
        %v8284 = vsub.s32 %v7856, %v8283
        %v8285 = vrot.slane %v7329, %v8284
        %v8286 = vlaneseq
        %v8287 = vshrl.u32 %v8286, 7
        %v8288 = vsub.s32 %v7861, %v8287
        %v8289 = vrot.slane %v7332, %v8288
        %v8290 = vsel %vm7866, %v8289, %v8285
        %v8291 = vlaneseq
        %v8292 = vshrl.u32 %v8291, 7
        %v8293 = vsub.s32 %v7868, %v8292
        %v8294 = vrot.slane %v7335, %v8293
        %v8295 = vsel %vm7873, %v8294, %v8290
        %v8296 = vlaneseq
        %v8297 = vshrl.u32 %v8296, 7
        %v8298 = vsub.s32 %v7875, %v8297
        %v8299 = vrot.slane %v7338, %v8298
        %v8300 = vsel %vm7880, %v8299, %v8295
        %v8301 = vlaneseq
        %v8302 = vshrl.u32 %v8301, 7
        %v8303 = vsub.s32 %v7882, %v8302
        %v8304 = vrot.slane %v7341, %v8303
        %v8305 = vsel %vm7887, %v8304, %v8300
        %v8306 = vlaneseq
        %v8307 = vshrl.u32 %v8306, 7
        %v8308 = vsub.s32 %v7889, %v8307
        %v8309 = vrot.slane %v7344, %v8308
        %v8310 = vsel %vm7894, %v8309, %v8305
        %v8311 = vlaneseq
        %v8312 = vshrl.u32 %v8311, 7
        %v8313 = vsub.s32 %v7896, %v8312
        %v8314 = vrot.slane %v7347, %v8313
        %v8315 = vsel %vm7901, %v8314, %v8310
        %v8316 = vlaneseq
        %v8317 = vshrl.u32 %v8316, 7
        %v8318 = vsub.s32 %v7903, %v8317
        %v8319 = vrot.slane %v7350, %v8318
        %v8320 = vsel %vm7908, %v8319, %v8315
        %v8321 = vlaneseq
        %v8322 = vshrl.u32 %v8321, 7
        %v8323 = vsub.s32 %v7910, %v8322
        %v8324 = vrot.slane %v7353, %v8323
        %v8325 = vsel %vm7915, %v8324, %v8320
        %v8326 = vlaneseq
        %v8327 = vshrl.u32 %v8326, 7
        %v8328 = vsub.s32 %v7917, %v8327
        %v8329 = vrot.slane %v7356, %v8328
        %v8330 = vsel %vm7922, %v8329, %v8325
        %v8331 = vlaneseq
        %v8332 = vshrl.u32 %v8331, 7
        %v8333 = vsub.s32 %v7924, %v8332
        %v8334 = vrot.slane %v7359, %v8333
        %v8335 = vsel %vm7929, %v8334, %v8330
        %v8336 = vlaneseq
        %v8337 = vshrl.u32 %v8336, 7
        %v8338 = vsub.s32 %v7931, %v8337
        %v8339 = vrot.slane %v7362, %v8338
        %v8340 = vsel %vm7936, %v8339, %v8335
        %v8341 = vlaneseq
        %v8342 = vshrl.u32 %v8341, 7
        %v8343 = vsub.s32 %v7938, %v8342
        %v8344 = vrot.slane %v7365, %v8343
        %v8345 = vsel %vm7943, %v8344, %v8340
        %v8346 = vlaneseq
        %v8347 = vshrl.u32 %v8346, 7
        %v8348 = vsub.s32 %v7945, %v8347
        %v8349 = vrot.slane %v7368, %v8348
        %v8350 = vsel %vm7950, %v8349, %v8345
        %v8351 = vlaneseq
        %v8352 = vshrl.u32 %v8351, 7
        %v8353 = vsub.s32 %v7952, %v8352
        %v8354 = vrot.slane %v7371, %v8353
        %v8355 = vsel %vm7957, %v8354, %v8350
        %v8356 = vlaneseq
        %v8357 = vshrl.u32 %v8356, 7
        %v8358 = vsub.s32 %v7959, %v8357
        %v8359 = vrot.slane %v7374, %v8358
        %v8360 = vsel %vm7964, %v8359, %v8355
        %v8361 = vlaneseq
        %v8362 = vshrl.u32 %v8361, 7
        %v8363 = vsub.s32 %v7856, %v8362
        %v8364 = vrot.slane %v7377, %v8363
        %v8365 = vlaneseq
        %v8366 = vshrl.u32 %v8365, 7
        %v8367 = vsub.s32 %v7861, %v8366
        %v8368 = vrot.slane %v7380, %v8367
        %v8369 = vsel %vm7866, %v8368, %v8364
        %v8370 = vlaneseq
        %v8371 = vshrl.u32 %v8370, 7
        %v8372 = vsub.s32 %v7868, %v8371
        %v8373 = vrot.slane %v7383, %v8372
        %v8374 = vsel %vm7873, %v8373, %v8369
        %v8375 = vlaneseq
        %v8376 = vshrl.u32 %v8375, 7
        %v8377 = vsub.s32 %v7875, %v8376
        %v8378 = vrot.slane %v7386, %v8377
        %v8379 = vsel %vm7880, %v8378, %v8374
        %v8380 = vlaneseq
        %v8381 = vshrl.u32 %v8380, 7
        %v8382 = vsub.s32 %v7882, %v8381
        %v8383 = vrot.slane %v7389, %v8382
        %v8384 = vsel %vm7887, %v8383, %v8379
        %v8385 = vlaneseq
        %v8386 = vshrl.u32 %v8385, 7
        %v8387 = vsub.s32 %v7889, %v8386
        %v8388 = vrot.slane %v7392, %v8387
        %v8389 = vsel %vm7894, %v8388, %v8384
        %v8390 = vlaneseq
        %v8391 = vshrl.u32 %v8390, 7
        %v8392 = vsub.s32 %v7896, %v8391
        %v8393 = vrot.slane %v7395, %v8392
        %v8394 = vsel %vm7901, %v8393, %v8389
        %v8395 = vlaneseq
        %v8396 = vshrl.u32 %v8395, 7
        %v8397 = vsub.s32 %v7903, %v8396
        %v8398 = vrot.slane %v7398, %v8397
        %v8399 = vsel %vm7908, %v8398, %v8394
        %v8400 = vlaneseq
        %v8401 = vshrl.u32 %v8400, 7
        %v8402 = vsub.s32 %v7910, %v8401
        %v8403 = vrot.slane %v7401, %v8402
        %v8404 = vsel %vm7915, %v8403, %v8399
        %v8405 = vlaneseq
        %v8406 = vshrl.u32 %v8405, 7
        %v8407 = vsub.s32 %v7917, %v8406
        %v8408 = vrot.slane %v7404, %v8407
        %v8409 = vsel %vm7922, %v8408, %v8404
        %v8410 = vlaneseq
        %v8411 = vshrl.u32 %v8410, 7
        %v8412 = vsub.s32 %v7924, %v8411
        %v8413 = vrot.slane %v7407, %v8412
        %v8414 = vsel %vm7929, %v8413, %v8409
        %v8415 = vlaneseq
        %v8416 = vshrl.u32 %v8415, 7
        %v8417 = vsub.s32 %v7931, %v8416
        %v8418 = vrot.slane %v7410, %v8417
        %v8419 = vsel %vm7936, %v8418, %v8414
        %v8420 = vlaneseq
        %v8421 = vshrl.u32 %v8420, 7
        %v8422 = vsub.s32 %v7938, %v8421
        %v8423 = vrot.slane %v7413, %v8422
        %v8424 = vsel %vm7943, %v8423, %v8419
        %v8425 = vlaneseq
        %v8426 = vshrl.u32 %v8425, 7
        %v8427 = vsub.s32 %v7945, %v8426
        %v8428 = vrot.slane %v7416, %v8427
        %v8429 = vsel %vm7950, %v8428, %v8424
        %v8430 = vlaneseq
        %v8431 = vshrl.u32 %v8430, 7
        %v8432 = vsub.s32 %v7952, %v8431
        %v8433 = vrot.slane %v7419, %v8432
        %v8434 = vsel %vm7957, %v8433, %v8429
        %v8435 = vlaneseq
        %v8436 = vshrl.u32 %v8435, 7
        %v8437 = vsub.s32 %v7959, %v8436
        %v8438 = vrot.slane %v7422, %v8437
        %v8439 = vsel %vm7964, %v8438, %v8434
        %v8440 = vlaneseq
        %v8441 = vshrl.u32 %v8440, 7
        %v8442 = vsub.s32 %v7856, %v8441
        %v8443 = vrot.slane %v7425, %v8442
        %v8444 = vlaneseq
        %v8445 = vshrl.u32 %v8444, 7
        %v8446 = vsub.s32 %v7861, %v8445
        %v8447 = vrot.slane %v7428, %v8446
        %v8448 = vsel %vm7866, %v8447, %v8443
        %v8449 = vlaneseq
        %v8450 = vshrl.u32 %v8449, 7
        %v8451 = vsub.s32 %v7868, %v8450
        %v8452 = vrot.slane %v7431, %v8451
        %v8453 = vsel %vm7873, %v8452, %v8448
        %v8454 = vlaneseq
        %v8455 = vshrl.u32 %v8454, 7
        %v8456 = vsub.s32 %v7875, %v8455
        %v8457 = vrot.slane %v7434, %v8456
        %v8458 = vsel %vm7880, %v8457, %v8453
        %v8459 = vlaneseq
        %v8460 = vshrl.u32 %v8459, 7
        %v8461 = vsub.s32 %v7882, %v8460
        %v8462 = vrot.slane %v7437, %v8461
        %v8463 = vsel %vm7887, %v8462, %v8458
        %v8464 = vlaneseq
        %v8465 = vshrl.u32 %v8464, 7
        %v8466 = vsub.s32 %v7889, %v8465
        %v8467 = vrot.slane %v7440, %v8466
        %v8468 = vsel %vm7894, %v8467, %v8463
        %v8469 = vlaneseq
        %v8470 = vshrl.u32 %v8469, 7
        %v8471 = vsub.s32 %v7896, %v8470
        %v8472 = vrot.slane %v7443, %v8471
        %v8473 = vsel %vm7901, %v8472, %v8468
        %v8474 = vlaneseq
        %v8475 = vshrl.u32 %v8474, 7
        %v8476 = vsub.s32 %v7903, %v8475
        %v8477 = vrot.slane %v7446, %v8476
        %v8478 = vsel %vm7908, %v8477, %v8473
        %v8479 = vlaneseq
        %v8480 = vshrl.u32 %v8479, 7
        %v8481 = vsub.s32 %v7910, %v8480
        %v8482 = vrot.slane %v7449, %v8481
        %v8483 = vsel %vm7915, %v8482, %v8478
        %v8484 = vlaneseq
        %v8485 = vshrl.u32 %v8484, 7
        %v8486 = vsub.s32 %v7917, %v8485
        %v8487 = vrot.slane %v7452, %v8486
        %v8488 = vsel %vm7922, %v8487, %v8483
        %v8489 = vlaneseq
        %v8490 = vshrl.u32 %v8489, 7
        %v8491 = vsub.s32 %v7924, %v8490
        %v8492 = vrot.slane %v7455, %v8491
        %v8493 = vsel %vm7929, %v8492, %v8488
        %v8494 = vlaneseq
        %v8495 = vshrl.u32 %v8494, 7
        %v8496 = vsub.s32 %v7931, %v8495
        %v8497 = vrot.slane %v7458, %v8496
        %v8498 = vsel %vm7936, %v8497, %v8493
        %v8499 = vlaneseq
        %v8500 = vshrl.u32 %v8499, 7
        %v8501 = vsub.s32 %v7938, %v8500
        %v8502 = vrot.slane %v7461, %v8501
        %v8503 = vsel %vm7943, %v8502, %v8498
        %v8504 = vlaneseq
        %v8505 = vshrl.u32 %v8504, 7
        %v8506 = vsub.s32 %v7945, %v8505
        %v8507 = vrot.slane %v7464, %v8506
        %v8508 = vsel %vm7950, %v8507, %v8503
        %v8509 = vlaneseq
        %v8510 = vshrl.u32 %v8509, 7
        %v8511 = vsub.s32 %v7952, %v8510
        %v8512 = vrot.slane %v7467, %v8511
        %v8513 = vsel %vm7957, %v8512, %v8508
        %v8514 = vlaneseq
        %v8515 = vshrl.u32 %v8514, 7
        %v8516 = vsub.s32 %v7959, %v8515
        %v8517 = vrot.slane %v7470, %v8516
        %v8518 = vsel %vm7964, %v8517, %v8513
        %v8519 = vlaneseq
        %v8520 = vshrl.u32 %v8519, 7
        %v8521 = vsub.s32 %v7856, %v8520
        %v8522 = vrot.slane %v7473, %v8521
        %v8523 = vlaneseq
        %v8524 = vshrl.u32 %v8523, 7
        %v8525 = vsub.s32 %v7861, %v8524
        %v8526 = vrot.slane %v7476, %v8525
        %v8527 = vsel %vm7866, %v8526, %v8522
        %v8528 = vlaneseq
        %v8529 = vshrl.u32 %v8528, 7
        %v8530 = vsub.s32 %v7868, %v8529
        %v8531 = vrot.slane %v7479, %v8530
        %v8532 = vsel %vm7873, %v8531, %v8527
        %v8533 = vlaneseq
        %v8534 = vshrl.u32 %v8533, 7
        %v8535 = vsub.s32 %v7875, %v8534
        %v8536 = vrot.slane %v7482, %v8535
        %v8537 = vsel %vm7880, %v8536, %v8532
        %v8538 = vlaneseq
        %v8539 = vshrl.u32 %v8538, 7
        %v8540 = vsub.s32 %v7882, %v8539
        %v8541 = vrot.slane %v7485, %v8540
        %v8542 = vsel %vm7887, %v8541, %v8537
        %v8543 = vlaneseq
        %v8544 = vshrl.u32 %v8543, 7
        %v8545 = vsub.s32 %v7889, %v8544
        %v8546 = vrot.slane %v7488, %v8545
        %v8547 = vsel %vm7894, %v8546, %v8542
        %v8548 = vlaneseq
        %v8549 = vshrl.u32 %v8548, 7
        %v8550 = vsub.s32 %v7896, %v8549
        %v8551 = vrot.slane %v7491, %v8550
        %v8552 = vsel %vm7901, %v8551, %v8547
        %v8553 = vlaneseq
        %v8554 = vshrl.u32 %v8553, 7
        %v8555 = vsub.s32 %v7903, %v8554
        %v8556 = vrot.slane %v7494, %v8555
        %v8557 = vsel %vm7908, %v8556, %v8552
        %v8558 = vlaneseq
        %v8559 = vshrl.u32 %v8558, 7
        %v8560 = vsub.s32 %v7910, %v8559
        %v8561 = vrot.slane %v7497, %v8560
        %v8562 = vsel %vm7915, %v8561, %v8557
        %v8563 = vlaneseq
        %v8564 = vshrl.u32 %v8563, 7
        %v8565 = vsub.s32 %v7917, %v8564
        %v8566 = vrot.slane %v7500, %v8565
        %v8567 = vsel %vm7922, %v8566, %v8562
        %v8568 = vlaneseq
        %v8569 = vshrl.u32 %v8568, 7
        %v8570 = vsub.s32 %v7924, %v8569
        %v8571 = vrot.slane %v7503, %v8570
        %v8572 = vsel %vm7929, %v8571, %v8567
        %v8573 = vlaneseq
        %v8574 = vshrl.u32 %v8573, 7
        %v8575 = vsub.s32 %v7931, %v8574
        %v8576 = vrot.slane %v7506, %v8575
        %v8577 = vsel %vm7936, %v8576, %v8572
        %v8578 = vlaneseq
        %v8579 = vshrl.u32 %v8578, 7
        %v8580 = vsub.s32 %v7938, %v8579
        %v8581 = vrot.slane %v7509, %v8580
        %v8582 = vsel %vm7943, %v8581, %v8577
        %v8583 = vlaneseq
        %v8584 = vshrl.u32 %v8583, 7
        %v8585 = vsub.s32 %v7945, %v8584
        %v8586 = vrot.slane %v7512, %v8585
        %v8587 = vsel %vm7950, %v8586, %v8582
        %v8588 = vlaneseq
        %v8589 = vshrl.u32 %v8588, 7
        %v8590 = vsub.s32 %v7952, %v8589
        %v8591 = vrot.slane %v7515, %v8590
        %v8592 = vsel %vm7957, %v8591, %v8587
        %v8593 = vlaneseq
        %v8594 = vshrl.u32 %v8593, 7
        %v8595 = vsub.s32 %v7959, %v8594
        %v8596 = vrot.slane %v7518, %v8595
        %v8597 = vsel %vm7964, %v8596, %v8592
        %v8598 = vlaneseq
        %v8599 = vshrl.u32 %v8598, 7
        %v8600 = vsub.s32 %v7856, %v8599
        %v8601 = vrot.slane %v7521, %v8600
        %v8602 = vlaneseq
        %v8603 = vshrl.u32 %v8602, 7
        %v8604 = vsub.s32 %v7861, %v8603
        %v8605 = vrot.slane %v7524, %v8604
        %v8606 = vsel %vm7866, %v8605, %v8601
        %v8607 = vlaneseq
        %v8608 = vshrl.u32 %v8607, 7
        %v8609 = vsub.s32 %v7868, %v8608
        %v8610 = vrot.slane %v7527, %v8609
        %v8611 = vsel %vm7873, %v8610, %v8606
        %v8612 = vlaneseq
        %v8613 = vshrl.u32 %v8612, 7
        %v8614 = vsub.s32 %v7875, %v8613
        %v8615 = vrot.slane %v7530, %v8614
        %v8616 = vsel %vm7880, %v8615, %v8611
        %v8617 = vlaneseq
        %v8618 = vshrl.u32 %v8617, 7
        %v8619 = vsub.s32 %v7882, %v8618
        %v8620 = vrot.slane %v7533, %v8619
        %v8621 = vsel %vm7887, %v8620, %v8616
        %v8622 = vlaneseq
        %v8623 = vshrl.u32 %v8622, 7
        %v8624 = vsub.s32 %v7889, %v8623
        %v8625 = vrot.slane %v7536, %v8624
        %v8626 = vsel %vm7894, %v8625, %v8621
        %v8627 = vlaneseq
        %v8628 = vshrl.u32 %v8627, 7
        %v8629 = vsub.s32 %v7896, %v8628
        %v8630 = vrot.slane %v7539, %v8629
        %v8631 = vsel %vm7901, %v8630, %v8626
        %v8632 = vlaneseq
        %v8633 = vshrl.u32 %v8632, 7
        %v8634 = vsub.s32 %v7903, %v8633
        %v8635 = vrot.slane %v7542, %v8634
        %v8636 = vsel %vm7908, %v8635, %v8631
        %v8637 = vlaneseq
        %v8638 = vshrl.u32 %v8637, 7
        %v8639 = vsub.s32 %v7910, %v8638
        %v8640 = vrot.slane %v7545, %v8639
        %v8641 = vsel %vm7915, %v8640, %v8636
        %v8642 = vlaneseq
        %v8643 = vshrl.u32 %v8642, 7
        %v8644 = vsub.s32 %v7917, %v8643
        %v8645 = vrot.slane %v7548, %v8644
        %v8646 = vsel %vm7922, %v8645, %v8641
        %v8647 = vlaneseq
        %v8648 = vshrl.u32 %v8647, 7
        %v8649 = vsub.s32 %v7924, %v8648
        %v8650 = vrot.slane %v7551, %v8649
        %v8651 = vsel %vm7929, %v8650, %v8646
        %v8652 = vlaneseq
        %v8653 = vshrl.u32 %v8652, 7
        %v8654 = vsub.s32 %v7931, %v8653
        %v8655 = vrot.slane %v7554, %v8654
        %v8656 = vsel %vm7936, %v8655, %v8651
        %v8657 = vlaneseq
        %v8658 = vshrl.u32 %v8657, 7
        %v8659 = vsub.s32 %v7938, %v8658
        %v8660 = vrot.slane %v7557, %v8659
        %v8661 = vsel %vm7943, %v8660, %v8656
        %v8662 = vlaneseq
        %v8663 = vshrl.u32 %v8662, 7
        %v8664 = vsub.s32 %v7945, %v8663
        %v8665 = vrot.slane %v7560, %v8664
        %v8666 = vsel %vm7950, %v8665, %v8661
        %v8667 = vlaneseq
        %v8668 = vshrl.u32 %v8667, 7
        %v8669 = vsub.s32 %v7952, %v8668
        %v8670 = vrot.slane %v7563, %v8669
        %v8671 = vsel %vm7957, %v8670, %v8666
        %v8672 = vlaneseq
        %v8673 = vshrl.u32 %v8672, 7
        %v8674 = vsub.s32 %v7959, %v8673
        %v8675 = vrot.slane %v7566, %v8674
        %v8676 = vsel %vm7964, %v8675, %v8671
        %v8677 = vlaneseq
        %v8678 = vshrl.u32 %v8677, 7
        %v8679 = vsub.s32 %v7856, %v8678
        %v8680 = vrot.slane %v7569, %v8679
        %v8681 = vlaneseq
        %v8682 = vshrl.u32 %v8681, 7
        %v8683 = vsub.s32 %v7861, %v8682
        %v8684 = vrot.slane %v7572, %v8683
        %v8685 = vsel %vm7866, %v8684, %v8680
        %v8686 = vlaneseq
        %v8687 = vshrl.u32 %v8686, 7
        %v8688 = vsub.s32 %v7868, %v8687
        %v8689 = vrot.slane %v7575, %v8688
        %v8690 = vsel %vm7873, %v8689, %v8685
        %v8691 = vlaneseq
        %v8692 = vshrl.u32 %v8691, 7
        %v8693 = vsub.s32 %v7875, %v8692
        %v8694 = vrot.slane %v7578, %v8693
        %v8695 = vsel %vm7880, %v8694, %v8690
        %v8696 = vlaneseq
        %v8697 = vshrl.u32 %v8696, 7
        %v8698 = vsub.s32 %v7882, %v8697
        %v8699 = vrot.slane %v7581, %v8698
        %v8700 = vsel %vm7887, %v8699, %v8695
        %v8701 = vlaneseq
        %v8702 = vshrl.u32 %v8701, 7
        %v8703 = vsub.s32 %v7889, %v8702
        %v8704 = vrot.slane %v7584, %v8703
        %v8705 = vsel %vm7894, %v8704, %v8700
        %v8706 = vlaneseq
        %v8707 = vshrl.u32 %v8706, 7
        %v8708 = vsub.s32 %v7896, %v8707
        %v8709 = vrot.slane %v7587, %v8708
        %v8710 = vsel %vm7901, %v8709, %v8705
        %v8711 = vlaneseq
        %v8712 = vshrl.u32 %v8711, 7
        %v8713 = vsub.s32 %v7903, %v8712
        %v8714 = vrot.slane %v7590, %v8713
        %v8715 = vsel %vm7908, %v8714, %v8710
        %v8716 = vlaneseq
        %v8717 = vshrl.u32 %v8716, 7
        %v8718 = vsub.s32 %v7910, %v8717
        %v8719 = vrot.slane %v7593, %v8718
        %v8720 = vsel %vm7915, %v8719, %v8715
        %v8721 = vlaneseq
        %v8722 = vshrl.u32 %v8721, 7
        %v8723 = vsub.s32 %v7917, %v8722
        %v8724 = vrot.slane %v7596, %v8723
        %v8725 = vsel %vm7922, %v8724, %v8720
        %v8726 = vlaneseq
        %v8727 = vshrl.u32 %v8726, 7
        %v8728 = vsub.s32 %v7924, %v8727
        %v8729 = vrot.slane %v7599, %v8728
        %v8730 = vsel %vm7929, %v8729, %v8725
        %v8731 = vlaneseq
        %v8732 = vshrl.u32 %v8731, 7
        %v8733 = vsub.s32 %v7931, %v8732
        %v8734 = vrot.slane %v7602, %v8733
        %v8735 = vsel %vm7936, %v8734, %v8730
        %v8736 = vlaneseq
        %v8737 = vshrl.u32 %v8736, 7
        %v8738 = vsub.s32 %v7938, %v8737
        %v8739 = vrot.slane %v7605, %v8738
        %v8740 = vsel %vm7943, %v8739, %v8735
        %v8741 = vlaneseq
        %v8742 = vshrl.u32 %v8741, 7
        %v8743 = vsub.s32 %v7945, %v8742
        %v8744 = vrot.slane %v7608, %v8743
        %v8745 = vsel %vm7950, %v8744, %v8740
        %v8746 = vlaneseq
        %v8747 = vshrl.u32 %v8746, 7
        %v8748 = vsub.s32 %v7952, %v8747
        %v8749 = vrot.slane %v7611, %v8748
        %v8750 = vsel %vm7957, %v8749, %v8745
        %v8751 = vlaneseq
        %v8752 = vshrl.u32 %v8751, 7
        %v8753 = vsub.s32 %v7959, %v8752
        %v8754 = vrot.slane %v7614, %v8753
        %v8755 = vsel %vm7964, %v8754, %v8750
        %v8756 = vlaneseq
        %v8757 = vshrl.u32 %v8756, 7
        %v8758 = vsub.s32 %v7856, %v8757
        %v8759 = vrot.slane %v7617, %v8758
        %v8760 = vlaneseq
        %v8761 = vshrl.u32 %v8760, 7
        %v8762 = vsub.s32 %v7861, %v8761
        %v8763 = vrot.slane %v7620, %v8762
        %v8764 = vsel %vm7866, %v8763, %v8759
        %v8765 = vlaneseq
        %v8766 = vshrl.u32 %v8765, 7
        %v8767 = vsub.s32 %v7868, %v8766
        %v8768 = vrot.slane %v7623, %v8767
        %v8769 = vsel %vm7873, %v8768, %v8764
        %v8770 = vlaneseq
        %v8771 = vshrl.u32 %v8770, 7
        %v8772 = vsub.s32 %v7875, %v8771
        %v8773 = vrot.slane %v7626, %v8772
        %v8774 = vsel %vm7880, %v8773, %v8769
        %v8775 = vlaneseq
        %v8776 = vshrl.u32 %v8775, 7
        %v8777 = vsub.s32 %v7882, %v8776
        %v8778 = vrot.slane %v7629, %v8777
        %v8779 = vsel %vm7887, %v8778, %v8774
        %v8780 = vlaneseq
        %v8781 = vshrl.u32 %v8780, 7
        %v8782 = vsub.s32 %v7889, %v8781
        %v8783 = vrot.slane %v7632, %v8782
        %v8784 = vsel %vm7894, %v8783, %v8779
        %v8785 = vlaneseq
        %v8786 = vshrl.u32 %v8785, 7
        %v8787 = vsub.s32 %v7896, %v8786
        %v8788 = vrot.slane %v7635, %v8787
        %v8789 = vsel %vm7901, %v8788, %v8784
        %v8790 = vlaneseq
        %v8791 = vshrl.u32 %v8790, 7
        %v8792 = vsub.s32 %v7903, %v8791
        %v8793 = vrot.slane %v7638, %v8792
        %v8794 = vsel %vm7908, %v8793, %v8789
        %v8795 = vlaneseq
        %v8796 = vshrl.u32 %v8795, 7
        %v8797 = vsub.s32 %v7910, %v8796
        %v8798 = vrot.slane %v7641, %v8797
        %v8799 = vsel %vm7915, %v8798, %v8794
        %v8800 = vlaneseq
        %v8801 = vshrl.u32 %v8800, 7
        %v8802 = vsub.s32 %v7917, %v8801
        %v8803 = vrot.slane %v7644, %v8802
        %v8804 = vsel %vm7922, %v8803, %v8799
        %v8805 = vlaneseq
        %v8806 = vshrl.u32 %v8805, 7
        %v8807 = vsub.s32 %v7924, %v8806
        %v8808 = vrot.slane %v7647, %v8807
        %v8809 = vsel %vm7929, %v8808, %v8804
        %v8810 = vlaneseq
        %v8811 = vshrl.u32 %v8810, 7
        %v8812 = vsub.s32 %v7931, %v8811
        %v8813 = vrot.slane %v7650, %v8812
        %v8814 = vsel %vm7936, %v8813, %v8809
        %v8815 = vlaneseq
        %v8816 = vshrl.u32 %v8815, 7
        %v8817 = vsub.s32 %v7938, %v8816
        %v8818 = vrot.slane %v7653, %v8817
        %v8819 = vsel %vm7943, %v8818, %v8814
        %v8820 = vlaneseq
        %v8821 = vshrl.u32 %v8820, 7
        %v8822 = vsub.s32 %v7945, %v8821
        %v8823 = vrot.slane %v7656, %v8822
        %v8824 = vsel %vm7950, %v8823, %v8819
        %v8825 = vlaneseq
        %v8826 = vshrl.u32 %v8825, 7
        %v8827 = vsub.s32 %v7952, %v8826
        %v8828 = vrot.slane %v7659, %v8827
        %v8829 = vsel %vm7957, %v8828, %v8824
        %v8830 = vlaneseq
        %v8831 = vshrl.u32 %v8830, 7
        %v8832 = vsub.s32 %v7959, %v8831
        %v8833 = vrot.slane %v7662, %v8832
        %v8834 = vsel %vm7964, %v8833, %v8829
        %v8835 = vlaneseq
        %v8836 = vshrl.u32 %v8835, 7
        %v8837 = vsub.s32 %v7856, %v8836
        %v8838 = vrot.slane %v7665, %v8837
        %v8839 = vlaneseq
        %v8840 = vshrl.u32 %v8839, 7
        %v8841 = vsub.s32 %v7861, %v8840
        %v8842 = vrot.slane %v7668, %v8841
        %v8843 = vsel %vm7866, %v8842, %v8838
        %v8844 = vlaneseq
        %v8845 = vshrl.u32 %v8844, 7
        %v8846 = vsub.s32 %v7868, %v8845
        %v8847 = vrot.slane %v7671, %v8846
        %v8848 = vsel %vm7873, %v8847, %v8843
        %v8849 = vlaneseq
        %v8850 = vshrl.u32 %v8849, 7
        %v8851 = vsub.s32 %v7875, %v8850
        %v8852 = vrot.slane %v7674, %v8851
        %v8853 = vsel %vm7880, %v8852, %v8848
        %v8854 = vlaneseq
        %v8855 = vshrl.u32 %v8854, 7
        %v8856 = vsub.s32 %v7882, %v8855
        %v8857 = vrot.slane %v7677, %v8856
        %v8858 = vsel %vm7887, %v8857, %v8853
        %v8859 = vlaneseq
        %v8860 = vshrl.u32 %v8859, 7
        %v8861 = vsub.s32 %v7889, %v8860
        %v8862 = vrot.slane %v7680, %v8861
        %v8863 = vsel %vm7894, %v8862, %v8858
        %v8864 = vlaneseq
        %v8865 = vshrl.u32 %v8864, 7
        %v8866 = vsub.s32 %v7896, %v8865
        %v8867 = vrot.slane %v7683, %v8866
        %v8868 = vsel %vm7901, %v8867, %v8863
        %v8869 = vlaneseq
        %v8870 = vshrl.u32 %v8869, 7
        %v8871 = vsub.s32 %v7903, %v8870
        %v8872 = vrot.slane %v7686, %v8871
        %v8873 = vsel %vm7908, %v8872, %v8868
        %v8874 = vlaneseq
        %v8875 = vshrl.u32 %v8874, 7
        %v8876 = vsub.s32 %v7910, %v8875
        %v8877 = vrot.slane %v7689, %v8876
        %v8878 = vsel %vm7915, %v8877, %v8873
        %v8879 = vlaneseq
        %v8880 = vshrl.u32 %v8879, 7
        %v8881 = vsub.s32 %v7917, %v8880
        %v8882 = vrot.slane %v7692, %v8881
        %v8883 = vsel %vm7922, %v8882, %v8878
        %v8884 = vlaneseq
        %v8885 = vshrl.u32 %v8884, 7
        %v8886 = vsub.s32 %v7924, %v8885
        %v8887 = vrot.slane %v7695, %v8886
        %v8888 = vsel %vm7929, %v8887, %v8883
        %v8889 = vlaneseq
        %v8890 = vshrl.u32 %v8889, 7
        %v8891 = vsub.s32 %v7931, %v8890
        %v8892 = vrot.slane %v7698, %v8891
        %v8893 = vsel %vm7936, %v8892, %v8888
        %v8894 = vlaneseq
        %v8895 = vshrl.u32 %v8894, 7
        %v8896 = vsub.s32 %v7938, %v8895
        %v8897 = vrot.slane %v7701, %v8896
        %v8898 = vsel %vm7943, %v8897, %v8893
        %v8899 = vlaneseq
        %v8900 = vshrl.u32 %v8899, 7
        %v8901 = vsub.s32 %v7945, %v8900
        %v8902 = vrot.slane %v7704, %v8901
        %v8903 = vsel %vm7950, %v8902, %v8898
        %v8904 = vlaneseq
        %v8905 = vshrl.u32 %v8904, 7
        %v8906 = vsub.s32 %v7952, %v8905
        %v8907 = vrot.slane %v7707, %v8906
        %v8908 = vsel %vm7957, %v8907, %v8903
        %v8909 = vlaneseq
        %v8910 = vshrl.u32 %v8909, 7
        %v8911 = vsub.s32 %v7959, %v8910
        %v8912 = vrot.slane %v7710, %v8911
        %v8913 = vsel %vm7964, %v8912, %v8908
        %v8914 = vlaneseq
        %v8915 = vshrl.u32 %v8914, 7
        %v8916 = vsub.s32 %v7856, %v8915
        %v8917 = vrot.slane %v7713, %v8916
        %v8918 = vlaneseq
        %v8919 = vshrl.u32 %v8918, 7
        %v8920 = vsub.s32 %v7861, %v8919
        %v8921 = vrot.slane %v7716, %v8920
        %v8922 = vsel %vm7866, %v8921, %v8917
        %v8923 = vlaneseq
        %v8924 = vshrl.u32 %v8923, 7
        %v8925 = vsub.s32 %v7868, %v8924
        %v8926 = vrot.slane %v7719, %v8925
        %v8927 = vsel %vm7873, %v8926, %v8922
        %v8928 = vlaneseq
        %v8929 = vshrl.u32 %v8928, 7
        %v8930 = vsub.s32 %v7875, %v8929
        %v8931 = vrot.slane %v7722, %v8930
        %v8932 = vsel %vm7880, %v8931, %v8927
        %v8933 = vlaneseq
        %v8934 = vshrl.u32 %v8933, 7
        %v8935 = vsub.s32 %v7882, %v8934
        %v8936 = vrot.slane %v7725, %v8935
        %v8937 = vsel %vm7887, %v8936, %v8932
        %v8938 = vlaneseq
        %v8939 = vshrl.u32 %v8938, 7
        %v8940 = vsub.s32 %v7889, %v8939
        %v8941 = vrot.slane %v7728, %v8940
        %v8942 = vsel %vm7894, %v8941, %v8937
        %v8943 = vlaneseq
        %v8944 = vshrl.u32 %v8943, 7
        %v8945 = vsub.s32 %v7896, %v8944
        %v8946 = vrot.slane %v7731, %v8945
        %v8947 = vsel %vm7901, %v8946, %v8942
        %v8948 = vlaneseq
        %v8949 = vshrl.u32 %v8948, 7
        %v8950 = vsub.s32 %v7903, %v8949
        %v8951 = vrot.slane %v7734, %v8950
        %v8952 = vsel %vm7908, %v8951, %v8947
        %v8953 = vlaneseq
        %v8954 = vshrl.u32 %v8953, 7
        %v8955 = vsub.s32 %v7910, %v8954
        %v8956 = vrot.slane %v7737, %v8955
        %v8957 = vsel %vm7915, %v8956, %v8952
        %v8958 = vlaneseq
        %v8959 = vshrl.u32 %v8958, 7
        %v8960 = vsub.s32 %v7917, %v8959
        %v8961 = vrot.slane %v7740, %v8960
        %v8962 = vsel %vm7922, %v8961, %v8957
        %v8963 = vlaneseq
        %v8964 = vshrl.u32 %v8963, 7
        %v8965 = vsub.s32 %v7924, %v8964
        %v8966 = vrot.slane %v7743, %v8965
        %v8967 = vsel %vm7929, %v8966, %v8962
        %v8968 = vlaneseq
        %v8969 = vshrl.u32 %v8968, 7
        %v8970 = vsub.s32 %v7931, %v8969
        %v8971 = vrot.slane %v7746, %v8970
        %v8972 = vsel %vm7936, %v8971, %v8967
        %v8973 = vlaneseq
        %v8974 = vshrl.u32 %v8973, 7
        %v8975 = vsub.s32 %v7938, %v8974
        %v8976 = vrot.slane %v7749, %v8975
        %v8977 = vsel %vm7943, %v8976, %v8972
        %v8978 = vlaneseq
        %v8979 = vshrl.u32 %v8978, 7
        %v8980 = vsub.s32 %v7945, %v8979
        %v8981 = vrot.slane %v7752, %v8980
        %v8982 = vsel %vm7950, %v8981, %v8977
        %v8983 = vlaneseq
        %v8984 = vshrl.u32 %v8983, 7
        %v8985 = vsub.s32 %v7952, %v8984
        %v8986 = vrot.slane %v7755, %v8985
        %v8987 = vsel %vm7957, %v8986, %v8982
        %v8988 = vlaneseq
        %v8989 = vshrl.u32 %v8988, 7
        %v8990 = vsub.s32 %v7959, %v8989
        %v8991 = vrot.slane %v7758, %v8990
        %v8992 = vsel %vm7964, %v8991, %v8987
        %v8993 = vlaneseq
        %v8994 = vshrl.u32 %v8993, 7
        %v8995 = vsub.s32 %v7856, %v8994
        %v8996 = vrot.slane %v7761, %v8995
        %v8997 = vlaneseq
        %v8998 = vshrl.u32 %v8997, 7
        %v8999 = vsub.s32 %v7861, %v8998
        %v9000 = vrot.slane %v7764, %v8999
        %v9001 = vsel %vm7866, %v9000, %v8996
        %v9002 = vlaneseq
        %v9003 = vshrl.u32 %v9002, 7
        %v9004 = vsub.s32 %v7868, %v9003
        %v9005 = vrot.slane %v7767, %v9004
        %v9006 = vsel %vm7873, %v9005, %v9001
        %v9007 = vlaneseq
        %v9008 = vshrl.u32 %v9007, 7
        %v9009 = vsub.s32 %v7875, %v9008
        %v9010 = vrot.slane %v7770, %v9009
        %v9011 = vsel %vm7880, %v9010, %v9006
        %v9012 = vlaneseq
        %v9013 = vshrl.u32 %v9012, 7
        %v9014 = vsub.s32 %v7882, %v9013
        %v9015 = vrot.slane %v7773, %v9014
        %v9016 = vsel %vm7887, %v9015, %v9011
        %v9017 = vlaneseq
        %v9018 = vshrl.u32 %v9017, 7
        %v9019 = vsub.s32 %v7889, %v9018
        %v9020 = vrot.slane %v7776, %v9019
        %v9021 = vsel %vm7894, %v9020, %v9016
        %v9022 = vlaneseq
        %v9023 = vshrl.u32 %v9022, 7
        %v9024 = vsub.s32 %v7896, %v9023
        %v9025 = vrot.slane %v7779, %v9024
        %v9026 = vsel %vm7901, %v9025, %v9021
        %v9027 = vlaneseq
        %v9028 = vshrl.u32 %v9027, 7
        %v9029 = vsub.s32 %v7903, %v9028
        %v9030 = vrot.slane %v7782, %v9029
        %v9031 = vsel %vm7908, %v9030, %v9026
        %v9032 = vlaneseq
        %v9033 = vshrl.u32 %v9032, 7
        %v9034 = vsub.s32 %v7910, %v9033
        %v9035 = vrot.slane %v7785, %v9034
        %v9036 = vsel %vm7915, %v9035, %v9031
        %v9037 = vlaneseq
        %v9038 = vshrl.u32 %v9037, 7
        %v9039 = vsub.s32 %v7917, %v9038
        %v9040 = vrot.slane %v7788, %v9039
        %v9041 = vsel %vm7922, %v9040, %v9036
        %v9042 = vlaneseq
        %v9043 = vshrl.u32 %v9042, 7
        %v9044 = vsub.s32 %v7924, %v9043
        %v9045 = vrot.slane %v7791, %v9044
        %v9046 = vsel %vm7929, %v9045, %v9041
        %v9047 = vlaneseq
        %v9048 = vshrl.u32 %v9047, 7
        %v9049 = vsub.s32 %v7931, %v9048
        %v9050 = vrot.slane %v7794, %v9049
        %v9051 = vsel %vm7936, %v9050, %v9046
        %v9052 = vlaneseq
        %v9053 = vshrl.u32 %v9052, 7
        %v9054 = vsub.s32 %v7938, %v9053
        %v9055 = vrot.slane %v7797, %v9054
        %v9056 = vsel %vm7943, %v9055, %v9051
        %v9057 = vlaneseq
        %v9058 = vshrl.u32 %v9057, 7
        %v9059 = vsub.s32 %v7945, %v9058
        %v9060 = vrot.slane %v7800, %v9059
        %v9061 = vsel %vm7950, %v9060, %v9056
        %v9062 = vlaneseq
        %v9063 = vshrl.u32 %v9062, 7
        %v9064 = vsub.s32 %v7952, %v9063
        %v9065 = vrot.slane %v7803, %v9064
        %v9066 = vsel %vm7957, %v9065, %v9061
        %v9067 = vlaneseq
        %v9068 = vshrl.u32 %v9067, 7
        %v9069 = vsub.s32 %v7959, %v9068
        %v9070 = vrot.slane %v7806, %v9069
        %v9071 = vsel %vm7964, %v9070, %v9066
        %v9072 = vlaneseq
        %v9073 = vshrl.u32 %v9072, 7
        %v9074 = vsub.s32 %v7856, %v9073
        %v9075 = vrot.slane %v7809, %v9074
        %v9076 = vlaneseq
        %v9077 = vshrl.u32 %v9076, 7
        %v9078 = vsub.s32 %v7861, %v9077
        %v9079 = vrot.slane %v7812, %v9078
        %v9080 = vsel %vm7866, %v9079, %v9075
        %v9081 = vlaneseq
        %v9082 = vshrl.u32 %v9081, 7
        %v9083 = vsub.s32 %v7868, %v9082
        %v9084 = vrot.slane %v7815, %v9083
        %v9085 = vsel %vm7873, %v9084, %v9080
        %v9086 = vlaneseq
        %v9087 = vshrl.u32 %v9086, 7
        %v9088 = vsub.s32 %v7875, %v9087
        %v9089 = vrot.slane %v7818, %v9088
        %v9090 = vsel %vm7880, %v9089, %v9085
        %v9091 = vlaneseq
        %v9092 = vshrl.u32 %v9091, 7
        %v9093 = vsub.s32 %v7882, %v9092
        %v9094 = vrot.slane %v7821, %v9093
        %v9095 = vsel %vm7887, %v9094, %v9090
        %v9096 = vlaneseq
        %v9097 = vshrl.u32 %v9096, 7
        %v9098 = vsub.s32 %v7889, %v9097
        %v9099 = vrot.slane %v7824, %v9098
        %v9100 = vsel %vm7894, %v9099, %v9095
        %v9101 = vlaneseq
        %v9102 = vshrl.u32 %v9101, 7
        %v9103 = vsub.s32 %v7896, %v9102
        %v9104 = vrot.slane %v7827, %v9103
        %v9105 = vsel %vm7901, %v9104, %v9100
        %v9106 = vlaneseq
        %v9107 = vshrl.u32 %v9106, 7
        %v9108 = vsub.s32 %v7903, %v9107
        %v9109 = vrot.slane %v7830, %v9108
        %v9110 = vsel %vm7908, %v9109, %v9105
        %v9111 = vlaneseq
        %v9112 = vshrl.u32 %v9111, 7
        %v9113 = vsub.s32 %v7910, %v9112
        %v9114 = vrot.slane %v7833, %v9113
        %v9115 = vsel %vm7915, %v9114, %v9110
        %v9116 = vlaneseq
        %v9117 = vshrl.u32 %v9116, 7
        %v9118 = vsub.s32 %v7917, %v9117
        %v9119 = vrot.slane %v7836, %v9118
        %v9120 = vsel %vm7922, %v9119, %v9115
        %v9121 = vlaneseq
        %v9122 = vshrl.u32 %v9121, 7
        %v9123 = vsub.s32 %v7924, %v9122
        %v9124 = vrot.slane %v7839, %v9123
        %v9125 = vsel %vm7929, %v9124, %v9120
        %v9126 = vlaneseq
        %v9127 = vshrl.u32 %v9126, 7
        %v9128 = vsub.s32 %v7931, %v9127
        %v9129 = vrot.slane %v7842, %v9128
        %v9130 = vsel %vm7936, %v9129, %v9125
        %v9131 = vlaneseq
        %v9132 = vshrl.u32 %v9131, 7
        %v9133 = vsub.s32 %v7938, %v9132
        %v9134 = vrot.slane %v7845, %v9133
        %v9135 = vsel %vm7943, %v9134, %v9130
        %v9136 = vlaneseq
        %v9137 = vshrl.u32 %v9136, 7
        %v9138 = vsub.s32 %v7945, %v9137
        %v9139 = vrot.slane %v7848, %v9138
        %v9140 = vsel %vm7950, %v9139, %v9135
        %v9141 = vlaneseq
        %v9142 = vshrl.u32 %v9141, 7
        %v9143 = vsub.s32 %v7952, %v9142
        %v9144 = vrot.slane %v7851, %v9143
        %v9145 = vsel %vm7957, %v9144, %v9140
        %v9146 = vlaneseq
        %v9147 = vshrl.u32 %v9146, 7
        %v9148 = vsub.s32 %v7959, %v9147
        %v9149 = vrot.slane %v7854, %v9148
        %v9150 = vsel %vm7964, %v9149, %v9145
        %vm9151 = vcmask 1041409
        %v9152 = vsel %vm9151, %v8123, %v7965
        %vm9153 = vcmask 1042434
        %v9154 = vsel %vm9153, %v8281, %v9152
        %vm9155 = vcmask 1043459
        %v9156 = vsel %vm9155, %v8439, %v9154
        %vm9157 = vcmask 1044484
        %v9158 = vsel %vm9157, %v8597, %v9156
        %vm9159 = vcmask 1045509
        %v9160 = vsel %vm9159, %v8755, %v9158
        %vm9161 = vcmask 1046534
        %v9162 = vsel %vm9161, %v8913, %v9160
        %vm9163 = vcmask 1047559
        %v9164 = vsel %vm9163, %v9071, %v9162
        %v9165 = vsel %vm9151, %v8202, %v8044
        %v9166 = vsel %vm9153, %v8360, %v9165
        %v9167 = vsel %vm9155, %v8518, %v9166
        %v9168 = vsel %vm9157, %v8676, %v9167
        %v9169 = vsel %vm9159, %v8834, %v9168
        %v9170 = vsel %vm9161, %v8992, %v9169
        %v9171 = vsel %vm9163, %v9150, %v9170
        %9174 = vst [vmem:[%s196] sm:$0xff] %v9164
        %9175 = vst [vmem:[%s196 + $0x8] sm:$0xff] %v9171
        %s9176 = sand.u32 %s95, 1
        %s9177 = scalar_lea.sflag [#allocation4], %s9176
        %s9178 = sand.u32 %s95, 1
        %s9179 = smul.addr %s9178, 16
        %s9180 = scalar_lea.vmem [#allocation5], %s9179
        // Predicated region
        $region33: #{tpu_custom_call.1} parent=27 // pred_check
          %p9181 = pneg %p105
        $region34: #{tpu_custom_call.1} parent=27 // pred_check_branch
          %9183 = sbr.rel (%p9181) target = $region36
        $region35: #{tpu_custom_call.1} parent=27 // pred_region
          %s9184 = smul.u32 2, %s24
          %s9186 = ssub.s32 256, 256
          %9187 = vsyncadd %s9177, %s9186
          %s9188 = smul.addr %s23, 2
          %s9189 = sadd.s32 %s9184, %s9188
          %s9190 = smul.addr %s9189, 128
          %s9191 = scalar_lea.hbm %s2, %s9190
          %s9193 = sshll.u32 %s9180, 4
          %s9194 = int_to_ptr.vmem [resolvable:$true] %s9193
          %9196 = dma.vmem_to_hbm [thread:$0]  %s9194, 256, %s9191, %s9177
        $region36: #{tpu_custom_call.1} parent=27 // pred_fallthru
          _
      $region28: #{tpu_custom_call.1} parent=5 // pred_fallthru
        _
      %p9197 = scmp.le.s32.totalorder 2, %s14
      // Predicated region
      $region37: #{tpu_custom_call.1} parent=5 // pred_check
        %p9198 = pneg %p9197
      $region38: #{tpu_custom_call.1} parent=5 // pred_check_branch
        %9200 = sbr.rel (%p9198) target = $region40
      $region39: #{tpu_custom_call.1} parent=5 // pred_region
        %s9201 = ssub.s32 %s14, 2
        // Predicated region
        $region41: #{tpu_custom_call.1} parent=39 // pred_check
          %p9202 = pneg %p111
        $region42: #{tpu_custom_call.1} parent=39 // pred_check_branch
          %9204 = sbr.rel (%p9202) target = $region44
        $region43: #{tpu_custom_call.1} parent=39 // pred_region
          %s9205 = sand.u32 %s96, 1
          %s9206 = scalar_lea.sflag [#allocation4], %s9205
          %s9207 = sand.u32 %s96, 1
          %s9208 = smul.addr %s9207, 16
          %s9209 = scalar_lea.vmem [#allocation5], %s9208
          %9210 = dma.done %s9206, 256
        $region44: #{tpu_custom_call.1} parent=39 // pred_fallthru
          _
      $region40: #{tpu_custom_call.1} parent=5 // pred_fallthru
        _
    $region6: #{tpu_custom_call.1} parent=1 // loop_footer
      %s18 = sadd.s32 1, %s14
    $region7: #{tpu_custom_call.1} parent=1 // loop_footer_branch
      %13 = sbr.rel target = $region3
    $region8: #{tpu_custom_call.1} parent=1 // loop_exit
      _
    %9211 = vsyncpa [#allocation3], 1
    %s9212 = scalar_lea.sflag [#allocation3], 1
    %9213 = vsyncpa %s9212, 1
    %9214 = vsyncpa [#allocation4], 1
    %s9215 = scalar_lea.sflag [#allocation4], 1
    %9216 = vsyncpa %s9215, 1

</llo_original>
